<compile_context>
chip_gen: v7x
topology: tpu7x:2x2x1
jax: 0.10.0
libtpu: 0.0.40
codegen_flags: <defaults>
</compile_context>

<pallas_src>
import math

import jax
import jax.numpy as jnp
from jax.experimental import pallas as pl
from jax.experimental.pallas import tpu as pltpu


_NEG_SLOPE = 0.2
_BN_EPS = 0.8            # nn.BatchNorm1d(out_feat, 0.8): second positional arg is eps
_HIDDEN_DIMS = (1024, 512, 256, 128)


def _leaky_relu(x, slope=_NEG_SLOPE):
    # For 0 < slope < 1, max(x, slope*x) == LeakyReLU(x): one mul + one max.
    return jnp.maximum(x, slope * x)


def _round_up(x, m):
    return ((x + m - 1) // m) * m


# --------------------------------------------------------------------------
# Kernel: fused 5-layer MLP for one batch tile.  Layer 1 is K-tiled over the
# flattened image features (grid axis 1, "arbitrary"); layers 2-5 run on the
# last K step.  Weights (constant index maps) stay VMEM-resident.
# --------------------------------------------------------------------------
def encoder_kernel(x_ref,
                   w1_ref, b1_ref,
                   w2_ref, b2_ref,
                   w3_ref, b3_ref,
                   w4_ref, b4_ref,
                   w5_ref, b5_ref,
                   z_ref,
                   h1_acc):
    k = pl.program_id(1)

    @pl.when(k == 0)
    def _():
        h1_acc[...] = jnp.zeros_like(h1_acc)

    # Layer 1: Linear(prod(img_shape) -> 1024); x streamed in bf16, f32 accum.
    h1_acc[...] += jnp.dot(x_ref[...], w1_ref[...],
                           preferred_element_type=jnp.float32)

    @pl.when(k == pl.num_programs(1) - 1)
    def _():
        h = h1_acc[...] + b1_ref[...]

        # Layer 2: Linear(1024 -> 512) + folded eval-BN + LeakyReLU(0.2)
        h = jnp.dot(h.astype(jnp.bfloat16), w2_ref[...],
                    preferred_element_type=jnp.float32) + b2_ref[...]
        h = _leaky_relu(h)

        # Layer 3: Linear(512 -> 256) + BN + LeakyReLU
        h = jnp.dot(h.astype(jnp.bfloat16), w3_ref[...],
                    preferred_element_type=jnp.float32) + b3_ref[...]
        h = _leaky_relu(h)

        # Layer 4: Linear(256 -> 128) + BN + LeakyReLU
        h = jnp.dot(h.astype(jnp.bfloat16), w4_ref[...],
                    preferred_element_type=jnp.float32) + b4_ref[...]
        h = _leaky_relu(h)

        # Layer 5: Linear(128 -> latent, zero-padded to 128 lanes) + BN +
        # LeakyReLU, then Tanh.  Lane-dense store.
        h = jnp.dot(h.astype(jnp.bfloat16), w5_ref[...],
                    preferred_element_type=jnp.float32) + b5_ref[...]
        h = _leaky_relu(h)
        z_ref[...] = jnp.tanh(h).astype(z_ref.dtype)


# --------------------------------------------------------------------------
# Parameter handling (PyTorch-equivalent init + eval-mode BN folding).
# --------------------------------------------------------------------------
def _init_linear(key, fan_in, fan_out):
    """nn.Linear default init: U(-1/sqrt(fan_in), 1/sqrt(fan_in)); W stored (in,out)."""
    kw, kb = jax.random.split(key)
    bound = 1.0 / math.sqrt(fan_in)
    w = jax.random.uniform(kw, (fan_in, fan_out), jnp.float32, -bound, bound)
    b = jax.random.uniform(kb, (fan_out,), jnp.float32, -bound, bound)
    return w, b


def init_encoder_params(key, latent_dim, img_shape):
    d_in = int(math.prod(img_shape))
    dims = [d_in] + list(_HIDDEN_DIMS) + [latent_dim]
    keys = jax.random.split(key, 2 * (len(dims) - 1))

    first = _init_linear(keys[0], dims[0], dims[1])
    blocks = []
    for li in range(1, len(dims) - 1):
        w, b = _init_linear(keys[2 * li], dims[li], dims[li + 1])
        out = dims[li + 1]
        kg, kb2, km, kv = jax.random.split(keys[2 * li + 1], 4)
        gamma = jax.random.uniform(kg, (out,), jnp.float32, 0.5, 1.5)
        beta = jax.random.uniform(kb2, (out,), jnp.float32, -0.1, 0.1)
        mean = jax.random.uniform(km, (out,), jnp.float32, -0.1, 0.1)
        var = jax.random.uniform(kv, (out,), jnp.float32, 0.5, 1.5)
        blocks.append((w, b, gamma, beta, mean, var))
    return {"first": first, "blocks": blocks}


def _fold_bn(w, b, gamma, beta, mean, var, eps=_BN_EPS):
    """Fold eval-mode BatchNorm1d into the preceding Linear (w: (in,out), b: (out,))."""
    scale = gamma / jnp.sqrt(var + eps)
    return w * scale[None, :], b * scale + (beta - mean * scale)


def prepare_encoder_params(params, latent_pad):
    """Fold BN, cast weights to bf16 (f32 accumulation in-kernel), pad last layer lanes."""
    w1, b1 = params["first"]
    prepared = [(w1.astype(jnp.bfloat16), b1.reshape(1, -1).astype(jnp.float32))]
    blocks = params["blocks"]
    for i, (w, b, gamma, beta, mean, var) in enumerate(blocks):
        w_f, b_f = _fold_bn(w, b, gamma, beta, mean, var)
        if i == len(blocks) - 1:
            out = w_f.shape[1]
            w_f = jnp.pad(w_f, ((0, 0), (0, latent_pad - out)))
            b_f = jnp.pad(b_f, ((0, latent_pad - out),))
        prepared.append((w_f.astype(jnp.bfloat16),
                         b_f.reshape(1, -1).astype(jnp.float32)))
    return prepared


# --------------------------------------------------------------------------
# Generation-aware tiling helpers.
# --------------------------------------------------------------------------
def _device_kind():
    try:
        return jax.devices()[0].device_kind.lower()
    except Exception:
        return ""


def _default_tile_m_max():
    kind = _device_kind()
    if "v5e" in kind or "v5 lite" in kind or "v5litepod" in kind:
        return 128      # match v5e's 128-high MXU
    if "v6" in kind:
        return 512      # 128 MiB VMEM, fewer grid steps
    return 256          # v7x / unknown


def _choose_tile_m(batch, tile_m_max):
    """Padding-aware tile: <= tile_m_max rows, multiple of 8, >=2 tiles if batch>8."""
    n_tiles = max(1, -(-batch // tile_m_max))
    if n_tiles < 2 and batch > 8:
        n_tiles = 2      # let ("parallel",) shard across v7x's two TensorCores
    return _round_up(-(-batch // n_tiles), 8)


# --------------------------------------------------------------------------
# Forward wrapper.
# --------------------------------------------------------------------------
def encoder_forward(img, params, img_shape, *, tile_m_max=None):
    """img: (B, prod(img_shape)) float32 — the flat layout the module's first
    nn.Linear expects. Returns (img.reshape(B, *img_shape), z), like
    Encoder.forward. TODO(synk): BatchNorm1d uses running statistics
    (eval mode); training-mode batch stats would need a cross-tile reduction.
    """
    B, d_in = img.shape
    assert d_in == int(math.prod(img_shape))
    latent_dim = params["blocks"][-1][0].shape[1]
    latent_pad = _round_up(latent_dim, 128)

    prepared = prepare_encoder_params(params, latent_pad)

    # ---- batch (M) tiling ------------------------------------------------
    if tile_m_max is None:
        tile_m_max = _default_tile_m_max()
    tile_m = _choose_tile_m(B, tile_m_max)
    b_pad = _round_up(B, tile_m)
    num_m = b_pad // tile_m

    # ---- layer-1 reduction (K) tiling so W1 fits in VMEM for large images -
    w1, b1 = prepared[0]
    if d_in * _HIDDEN_DIMS[0] * 2 <= 8 * 1024 * 1024:   # W1 (bf16) <= 8 MiB
        tile_k, d_pad = d_in, d_in
    else:
        tile_k = 2048
        d_pad = _round_up(d_in, tile_k)
        w1 = jnp.pad(w1, ((0, d_pad - d_in), (0, 0)))   # zero rows: no contribution
    num_k = d_pad // tile_k

    # Stream the activation input in bf16 (halves the dominant per-tile DMA
    # and removes the in-kernel cast; weights are already bf16/VMEM-resident).
    x = img.astype(jnp.bfloat16)
    if b_pad != B or d_pad != d_in:
        x = jnp.pad(x, ((0, b_pad - B), (0, d_pad - d_in)))

    grid = (num_m, num_k)

    flat_args = [x, w1, b1]
    for w, b in prepared[1:]:
        flat_args.extend([w, b])
    weight_args = flat_args[1:]

    def build_specs(use_buffered):
        def resident(shape):
            # Constant index map -> block is VMEM-resident; single-buffer it.
            idx = lambda i, k: (0, 0)
            if use_buffered:
                return pl.BlockSpec(shape, idx,
                                    pipeline_mode=pl.Buffered(buffer_count=1))
            return pl.BlockSpec(shape, idx)

        specs = [pl.BlockSpec((tile_m, tile_k), lambda i, k: (i, k))]   # x streams
        if num_k == 1:
            specs.append(resident((tile_k, _HIDDEN_DIMS[0])))           # whole W1
        else:
            specs.append(pl.BlockSpec((tile_k, _HIDDEN_DIMS[0]),
                                      lambda i, k: (k, 0)))             # W1 streams
        specs.append(resident(b1.shape))
        for w, b in prepared[1:]:
            specs.append(resident(w.shape))
            specs.append(resident(b.shape))
        return specs

    out_spec = pl.BlockSpec((tile_m, latent_pad), lambda i, k: (i, 0))

    # Advisory cost estimate (bf16 input, weights counted once, f32 output).
    dims = [d_in] + [w.shape[1] for w, _ in prepared]
    flops = int(2 * b_pad * sum(a * c for a, c in zip(dims[:-1], dims[1:])))
    bytes_accessed = int(x.size * 2
                         + sum(a.size * a.dtype.itemsize for a in weight_args)
                         + b_pad * latent_pad * 4)
    cost = pl.CostEstimate(flops=flops,
                           transcendentals=int(b_pad * latent_pad),
                           bytes_accessed=bytes_accessed)

    # VMEM budget: resident weights (1x) + streamed x/out (2x) + W1 stream +
    # f32 layer-1 accumulator, with headroom; cap per generation.
    resident_bytes = sum(a.size * a.dtype.itemsize for a in weight_args)
    stream_bytes = (2 * tile_m * tile_k * 2
                    + 2 * tile_m * latent_pad * 4
                    + (2 * tile_k * _HIDDEN_DIMS[0] * 2 if num_k > 1 else 0)
                    + tile_m * _HIDDEN_DIMS[0] * 4)
    kind = _device_kind()
    cap = (100 << 20) if ("v5" in kind or "v6" in kind) else (56 << 20)  # v7x: 64 MiB phys
    vmem_limit = int(min(max(resident_bytes + stream_bytes + (8 << 20), 32 << 20), cap))

    def _run(use_buffered):
        return pl.pallas_call(
            encoder_kernel,
            out_shape=jax.ShapeDtypeStruct((b_pad, latent_pad), jnp.float32),
            grid_spec=pltpu.PrefetchScalarGridSpec(
                num_scalar_prefetch=0,
                grid=grid,
                in_specs=build_specs(use_buffered),
                out_specs=out_spec,
                scratch_shapes=[pltpu.VMEM((tile_m, _HIDDEN_DIMS[0]), jnp.float32)]),
            compiler_params=pltpu.CompilerParams(
                dimension_semantics=("parallel", "arbitrary"),
                vmem_limit_bytes=vmem_limit),
            cost_estimate=cost,
        )(*flat_args)

    try:
        z_pad = _run(True)
    except Exception:
        # Fallback for jax versions without BlockSpec(pipeline_mode=pl.Buffered(1)).
        z_pad = _run(False)

    z = z_pad[:B, :latent_dim]
    img_reshaped = img.reshape((B,) + tuple(img_shape))
    return img_reshaped, z


# --------------------------------------------------------------------------
# Pure-JAX f32 reference (mirrors the PyTorch module in eval mode).
# --------------------------------------------------------------------------
def encoder_reference(img, params):
    w1, b1 = params["first"]
    h = img @ w1 + b1
    for (w, b, gamma, beta, mean, var) in params["blocks"]:
        h = h @ w + b
        h = (h - mean) / jnp.sqrt(var + _BN_EPS) * gamma + beta
        h = jnp.where(h > 0, h, _NEG_SLOPE * h)
    return jnp.tanh(h)


if __name__ == "__main__":
    B = 2
    latent_dim = 32
    img_shape = (4, 16, 16)                 # prod = 1024 = first Linear's fan-in
    d_in = int(math.prod(img_shape))

    key = jax.random.PRNGKey(0)
    k_params, k_img = jax.random.split(key)

    params = init_encoder_params(k_params, latent_dim, img_shape)
    img = jax.random.normal(k_img, (B, d_in), jnp.float32)   # flat, as the module expects

    img_out, z = encoder_forward(img, params, img_shape)
    img_out, z = jax.block_until_ready((img_out, z))

    assert img_out.shape == (B,) + img_shape, img_out.shape
    assert z.shape == (B, latent_dim), z.shape
    assert z.dtype == jnp.float32
    assert bool(jnp.all(jnp.isfinite(z)))
    assert bool(jnp.all(jnp.abs(z) <= 1.0))   # Tanh range sanity check

    # bf16 weights/activations vs f32 reference: loose tolerance on tanh output.
    z_ref = encoder_reference(img, params)
    max_err = float(jnp.max(jnp.abs(z - z_ref)))
    assert max_err < 0.1, f"max abs error vs f32 reference: {max_err}"

    print("KERNEL_OK")
</pallas_src>

<mosaic_0001>
module attributes {stable_mosaic.version = 11 : i64} {
  func.func @encoder_kernel(%arg0: i32, %arg1: i32, %arg2: memref<8x1024xbf16, #tpu.memory_space<vmem>>, %arg3: memref<1024x1024xbf16, #tpu.memory_space<vmem>>, %arg4: memref<1x1024xf32, #tpu.memory_space<vmem>>, %arg5: memref<1024x512xbf16, #tpu.memory_space<vmem>>, %arg6: memref<1x512xf32, #tpu.memory_space<vmem>>, %arg7: memref<512x256xbf16, #tpu.memory_space<vmem>>, %arg8: memref<1x256xf32, #tpu.memory_space<vmem>>, %arg9: memref<256x128xbf16, #tpu.memory_space<vmem>>, %arg10: memref<1x128xf32, #tpu.memory_space<vmem>>, %arg11: memref<128x128xbf16, #tpu.memory_space<vmem>>, %arg12: memref<1x128xf32, #tpu.memory_space<vmem>>, %arg13: memref<8x128xf32, #tpu.memory_space<vmem>>, %arg14: memref<8x1024xf32, #tpu.memory_space<vmem>>) attributes {dimension_semantics = [#tpu.dimension_semantics<parallel>, #tpu.dimension_semantics<arbitrary>], iteration_bounds = array<i64: 1, 1>, scalar_prefetch = 0 : i64, scratch_operands = 1 : i64, tpu.core_type = #tpu.core_type<tc>, window_params = [{transform_indices = @transform_0, window_bounds = array<i64: 8, 1024>}, {pipeline_mode = #tpu.pipeline_mode<synchronous>, transform_indices = @transform_1, window_bounds = array<i64: 1024, 1024>}, {pipeline_mode = #tpu.pipeline_mode<synchronous>, transform_indices = @transform_2, window_bounds = array<i64: 1, 1024>}, {pipeline_mode = #tpu.pipeline_mode<synchronous>, transform_indices = @transform_3, window_bounds = array<i64: 1024, 512>}, {pipeline_mode = #tpu.pipeline_mode<synchronous>, transform_indices = @transform_4, window_bounds = array<i64: 1, 512>}, {pipeline_mode = #tpu.pipeline_mode<synchronous>, transform_indices = @transform_5, window_bounds = array<i64: 512, 256>}, {pipeline_mode = #tpu.pipeline_mode<synchronous>, transform_indices = @transform_6, window_bounds = array<i64: 1, 256>}, {pipeline_mode = #tpu.pipeline_mode<synchronous>, transform_indices = @transform_7, window_bounds = array<i64: 256, 128>}, {pipeline_mode = #tpu.pipeline_mode<synchronous>, transform_indices = @transform_8, window_bounds = array<i64: 1, 128>}, {pipeline_mode = #tpu.pipeline_mode<synchronous>, transform_indices = @transform_9, window_bounds = array<i64: 128, 128>}, {pipeline_mode = #tpu.pipeline_mode<synchronous>, transform_indices = @transform_10, window_bounds = array<i64: 1, 128>}, {transform_indices = @transform_11, window_bounds = array<i64: 8, 128>}]} {
    %c0_i32 = arith.constant 0 : i32
    %0 = arith.cmpi eq, %arg1, %c0_i32 : i32
    %1 = arith.extui %0 : i1 to i32
    %c0_i32_0 = arith.constant 0 : i32
    %2 = arith.cmpi ne, %1, %c0_i32_0 : i32
    scf.if %2 {
      %cst_10 = arith.constant 0.000000e+00 : f32
      %12 = vector.broadcast %cst_10 : f32 to vector<8x1024xf32>
      %c0_11 = arith.constant 0 : index
      %c0_12 = arith.constant 0 : index
      %13 = vector.load %arg14[%c0_11, %c0_12] : memref<8x1024xf32, #tpu.memory_space<vmem>>, vector<8x1024xf32>
      tpu.vector_store %arg14[%c0_11, %c0_12], %12 {strides = array<i32>} : memref<8x1024xf32, #tpu.memory_space<vmem>>, vector<8x1024xf32>,
    } else {
    }
    %c0 = arith.constant 0 : index
    %c0_1 = arith.constant 0 : index
    %3 = vector.load %arg14[%c0, %c0_1] : memref<8x1024xf32, #tpu.memory_space<vmem>>, vector<8x1024xf32>
    %c0_2 = arith.constant 0 : index
    %c0_3 = arith.constant 0 : index
    %4 = vector.load %arg2[%c0_2, %c0_3] : memref<8x1024xbf16, #tpu.memory_space<vmem>>, vector<8x1024xbf16>
    %c0_4 = arith.constant 0 : index
    %c0_5 = arith.constant 0 : index
    %5 = vector.load %arg3[%c0_4, %c0_5] : memref<1024x1024xbf16, #tpu.memory_space<vmem>>, vector<1024x1024xbf16>
    %cst = arith.constant dense<0.000000e+00> : vector<8x1024xf32>
    %6 = tpu.matmul %4, %5, %cst {dimension_numbers = #tpu.dot_dimension_numbers<[1], [0], [0], [1], [0, 0, 1, 1], [], []>} : vector<8x1024xbf16>, vector<1024x1024xbf16>, vector<8x1024xf32> -> vector<8x1024xf32>
    %7 = arith.addf %3, %6 : vector<8x1024xf32>
    %c0_6 = arith.constant 0 : index
    %c0_7 = arith.constant 0 : index
    %8 = vector.load %arg14[%c0_6, %c0_7] : memref<8x1024xf32, #tpu.memory_space<vmem>>, vector<8x1024xf32>
    tpu.vector_store %arg14[%c0_6, %c0_7], %7 {strides = array<i32>} : memref<8x1024xf32, #tpu.memory_space<vmem>>, vector<8x1024xf32>,
    %c0_i32_8 = arith.constant 0 : i32
    %9 = arith.cmpi eq, %arg1, %c0_i32_8 : i32
    %10 = arith.extui %9 : i1 to i32
    %c0_i32_9 = arith.constant 0 : i32
    %11 = arith.cmpi ne, %10, %c0_i32_9 : i32
    scf.if %11 {
      %c0_10 = arith.constant 0 : index
      %c0_11 = arith.constant 0 : index
      %12 = vector.load %arg14[%c0_10, %c0_11] : memref<8x1024xf32, #tpu.memory_space<vmem>>, vector<8x1024xf32>
      %c0_12 = arith.constant 0 : index
      %c0_13 = arith.constant 0 : index
      %13 = vector.load %arg4[%c0_12, %c0_13] : memref<1x1024xf32, #tpu.memory_space<vmem>>, vector<1x1024xf32>
      %14 = vector.broadcast %13 : vector<1x1024xf32> to vector<8x1024xf32>
      %15 = arith.addf %12, %14 : vector<8x1024xf32>
      %16 = arith.truncf %15 : vector<8x1024xf32> to vector<8x1024xbf16>
      %c0_14 = arith.constant 0 : index
      %c0_15 = arith.constant 0 : index
      %17 = vector.load %arg5[%c0_14, %c0_15] : memref<1024x512xbf16, #tpu.memory_space<vmem>>, vector<1024x512xbf16>
      %cst_16 = arith.constant dense<0.000000e+00> : vector<8x512xf32>
      %18 = tpu.matmul %16, %17, %cst_16 {dimension_numbers = #tpu.dot_dimension_numbers<[1], [0], [0], [1], [0, 0, 1, 1], [], []>} : vector<8x1024xbf16>, vector<1024x512xbf16>, vector<8x512xf32> -> vector<8x512xf32>
      %c0_17 = arith.constant 0 : index
      %c0_18 = arith.constant 0 : index
      %19 = vector.load %arg6[%c0_17, %c0_18] : memref<1x512xf32, #tpu.memory_space<vmem>>, vector<1x512xf32>
      %20 = vector.broadcast %19 : vector<1x512xf32> to vector<8x512xf32>
      %21 = arith.addf %18, %20 : vector<8x512xf32>
      %cst_19 = arith.constant 2.000000e-01 : f32
      %22 = vector.broadcast %cst_19 : f32 to vector<8x512xf32>
      %23 = arith.mulf %22, %21 : vector<8x512xf32>
      %24 = arith.maximumf %21, %23 : vector<8x512xf32>
      %25 = arith.truncf %24 : vector<8x512xf32> to vector<8x512xbf16>
      %c0_20 = arith.constant 0 : index
      %c0_21 = arith.constant 0 : index
      %26 = vector.load %arg7[%c0_20, %c0_21] : memref<512x256xbf16, #tpu.memory_space<vmem>>, vector<512x256xbf16>
      %cst_22 = arith.constant dense<0.000000e+00> : vector<8x256xf32>
      %27 = tpu.matmul %25, %26, %cst_22 {dimension_numbers = #tpu.dot_dimension_numbers<[1], [0], [0], [1], [0, 0, 1, 1], [], []>} : vector<8x512xbf16>, vector<512x256xbf16>, vector<8x256xf32> -> vector<8x256xf32>
      %c0_23 = arith.constant 0 : index
      %c0_24 = arith.constant 0 : index
      %28 = vector.load %arg8[%c0_23, %c0_24] : memref<1x256xf32, #tpu.memory_space<vmem>>, vector<1x256xf32>
      %29 = vector.broadcast %28 : vector<1x256xf32> to vector<8x256xf32>
      %30 = arith.addf %27, %29 : vector<8x256xf32>
      %cst_25 = arith.constant 2.000000e-01 : f32
      %31 = vector.broadcast %cst_25 : f32 to vector<8x256xf32>
      %32 = arith.mulf %31, %30 : vector<8x256xf32>
      %33 = arith.maximumf %30, %32 : vector<8x256xf32>
      %34 = arith.truncf %33 : vector<8x256xf32> to vector<8x256xbf16>
      %c0_26 = arith.constant 0 : index
      %c0_27 = arith.constant 0 : index
      %35 = vector.load %arg9[%c0_26, %c0_27] : memref<256x128xbf16, #tpu.memory_space<vmem>>, vector<256x128xbf16>
      %cst_28 = arith.constant dense<0.000000e+00> : vector<8x128xf32>
      %36 = tpu.matmul %34, %35, %cst_28 {dimension_numbers = #tpu.dot_dimension_numbers<[1], [0], [0], [1], [0, 0, 1, 1], [], []>} : vector<8x256xbf16>, vector<256x128xbf16>, vector<8x128xf32> -> vector<8x128xf32>
      %c0_29 = arith.constant 0 : index
      %c0_30 = arith.constant 0 : index
      %37 = vector.load %arg10[%c0_29, %c0_30] : memref<1x128xf32, #tpu.memory_space<vmem>>, vector<1x128xf32>
      %38 = vector.broadcast %37 : vector<1x128xf32> to vector<8x128xf32>
      %39 = arith.addf %36, %38 : vector<8x128xf32>
      %cst_31 = arith.constant 2.000000e-01 : f32
      %40 = vector.broadcast %cst_31 : f32 to vector<8x128xf32>
      %41 = arith.mulf %40, %39 : vector<8x128xf32>
      %42 = arith.maximumf %39, %41 : vector<8x128xf32>
      %43 = arith.truncf %42 : vector<8x128xf32> to vector<8x128xbf16>
      %c0_32 = arith.constant 0 : index
      %c0_33 = arith.constant 0 : index
      %44 = vector.load %arg11[%c0_32, %c0_33] : memref<128x128xbf16, #tpu.memory_space<vmem>>, vector<128x128xbf16>
      %cst_34 = arith.constant dense<0.000000e+00> : vector<8x128xf32>
      %45 = tpu.matmul %43, %44, %cst_34 {dimension_numbers = #tpu.dot_dimension_numbers<[1], [0], [0], [1], [0, 0, 1, 1], [], []>} : vector<8x128xbf16>, vector<128x128xbf16>, vector<8x128xf32> -> vector<8x128xf32>
      %c0_35 = arith.constant 0 : index
      %c0_36 = arith.constant 0 : index
      %46 = vector.load %arg12[%c0_35, %c0_36] : memref<1x128xf32, #tpu.memory_space<vmem>>, vector<1x128xf32>
      %47 = vector.broadcast %46 : vector<1x128xf32> to vector<8x128xf32>
      %48 = arith.addf %45, %47 : vector<8x128xf32>
      %cst_37 = arith.constant 2.000000e-01 : f32
      %49 = vector.broadcast %cst_37 : f32 to vector<8x128xf32>
      %50 = arith.mulf %49, %48 : vector<8x128xf32>
      %51 = arith.maximumf %48, %50 : vector<8x128xf32>
      %52 = math.tanh %51 : vector<8x128xf32>
      %c0_38 = arith.constant 0 : index
      %c0_39 = arith.constant 0 : index
      %53 = vector.load %arg13[%c0_38, %c0_39] : memref<8x128xf32, #tpu.memory_space<vmem>>, vector<8x128xf32>
      tpu.vector_store %arg13[%c0_38, %c0_39], %52 {strides = array<i32>} : memref<8x128xf32, #tpu.memory_space<vmem>>, vector<8x128xf32>,
    } else {
    }
    return
  }
  func.func @transform_0(%arg0: i32, %arg1: i32) -> (i32, i32) {
    %c0_i32 = arith.constant 0 : i32
    return %arg0, %arg1 : i32, i32
  }
  func.func @transform_1(%arg0: i32, %arg1: i32) -> (i32, i32) {
    %c0_i32 = arith.constant 0 : i32
    %c0_i32_0 = arith.constant 0 : i32
    %c0_i32_1 = arith.constant 0 : i32
    return %c0_i32, %c0_i32_0 : i32, i32
  }
  func.func @transform_2(%arg0: i32, %arg1: i32) -> (i32, i32) {
    %c0_i32 = arith.constant 0 : i32
    %c0_i32_0 = arith.constant 0 : i32
    %c0_i32_1 = arith.constant 0 : i32
    return %c0_i32, %c0_i32_0 : i32, i32
  }
  func.func @transform_3(%arg0: i32, %arg1: i32) -> (i32, i32) {
    %c0_i32 = arith.constant 0 : i32
    %c0_i32_0 = arith.constant 0 : i32
    %c0_i32_1 = arith.constant 0 : i32
    return %c0_i32, %c0_i32_0 : i32, i32
  }
  func.func @transform_4(%arg0: i32, %arg1: i32) -> (i32, i32) {
    %c0_i32 = arith.constant 0 : i32
    %c0_i32_0 = arith.constant 0 : i32
    %c0_i32_1 = arith.constant 0 : i32
    return %c0_i32, %c0_i32_0 : i32, i32
  }
  func.func @transform_5(%arg0: i32, %arg1: i32) -> (i32, i32) {
    %c0_i32 = arith.constant 0 : i32
    %c0_i32_0 = arith.constant 0 : i32
    %c0_i32_1 = arith.constant 0 : i32
    return %c0_i32, %c0_i32_0 : i32, i32
  }
  func.func @transform_6(%arg0: i32, %arg1: i32) -> (i32, i32) {
    %c0_i32 = arith.constant 0 : i32
    %c0_i32_0 = arith.constant 0 : i32
    %c0_i32_1 = arith.constant 0 : i32
    return %c0_i32, %c0_i32_0 : i32, i32
  }
  func.func @transform_7(%arg0: i32, %arg1: i32) -> (i32, i32) {
    %c0_i32 = arith.constant 0 : i32
    %c0_i32_0 = arith.constant 0 : i32
    %c0_i32_1 = arith.constant 0 : i32
    return %c0_i32, %c0_i32_0 : i32, i32
  }
  func.func @transform_8(%arg0: i32, %arg1: i32) -> (i32, i32) {
    %c0_i32 = arith.constant 0 : i32
    %c0_i32_0 = arith.constant 0 : i32
    %c0_i32_1 = arith.constant 0 : i32
    return %c0_i32, %c0_i32_0 : i32, i32
  }
  func.func @transform_9(%arg0: i32, %arg1: i32) -> (i32, i32) {
    %c0_i32 = arith.constant 0 : i32
    %c0_i32_0 = arith.constant 0 : i32
    %c0_i32_1 = arith.constant 0 : i32
    return %c0_i32, %c0_i32_0 : i32, i32
  }
  func.func @transform_10(%arg0: i32, %arg1: i32) -> (i32, i32) {
    %c0_i32 = arith.constant 0 : i32
    %c0_i32_0 = arith.constant 0 : i32
    %c0_i32_1 = arith.constant 0 : i32
    return %c0_i32, %c0_i32_0 : i32, i32
  }
  func.func @transform_11(%arg0: i32, %arg1: i32) -> (i32, i32) {
    %c0_i32 = arith.constant 0 : i32
    %c0_i32_0 = arith.constant 0 : i32
    return %arg0, %c0_i32 : i32, i32
  }
}

module attributes {stable_mosaic.version = 11 : i64} {
  func.func @encoder_kernel(%arg0: i32, %arg1: i32, %arg2: memref<8x1024xbf16, #tpu.memory_space<vmem>>, %arg3: memref<1024x1024xbf16, #tpu.memory_space<vmem>>, %arg4: memref<1x1024xf32, #tpu.memory_space<vmem>>, %arg5: memref<1024x512xbf16, #tpu.memory_space<vmem>>, %arg6: memref<1x512xf32, #tpu.memory_space<vmem>>, %arg7: memref<512x256xbf16, #tpu.memory_space<vmem>>, %arg8: memref<1x256xf32, #tpu.memory_space<vmem>>, %arg9: memref<256x128xbf16, #tpu.memory_space<vmem>>, %arg10: memref<1x128xf32, #tpu.memory_space<vmem>>, %arg11: memref<128x128xbf16, #tpu.memory_space<vmem>>, %arg12: memref<1x128xf32, #tpu.memory_space<vmem>>, %arg13: memref<8x128xf32, #tpu.memory_space<vmem>>, %arg14: memref<8x1024xf32, #tpu.memory_space<vmem>>) attributes {dimension_semantics = [#tpu.dimension_semantics<parallel>, #tpu.dimension_semantics<arbitrary>], iteration_bounds = array<i64: 1, 1>, scalar_prefetch = 0 : i64, scratch_operands = 1 : i64, tpu.core_type = #tpu.core_type<tc>, window_params = [{transform_indices = @transform_0, window_bounds = array<i64: 8, 1024>}, {pipeline_mode = #tpu.pipeline_mode<synchronous>, transform_indices = @transform_1, window_bounds = array<i64: 1024, 1024>}, {pipeline_mode = #tpu.pipeline_mode<synchronous>, transform_indices = @transform_2, window_bounds = array<i64: 1, 1024>}, {pipeline_mode = #tpu.pipeline_mode<synchronous>, transform_indices = @transform_3, window_bounds = array<i64: 1024, 512>}, {pipeline_mode = #tpu.pipeline_mode<synchronous>, transform_indices = @transform_4, window_bounds = array<i64: 1, 512>}, {pipeline_mode = #tpu.pipeline_mode<synchronous>, transform_indices = @transform_5, window_bounds = array<i64: 512, 256>}, {pipeline_mode = #tpu.pipeline_mode<synchronous>, transform_indices = @transform_6, window_bounds = array<i64: 1, 256>}, {pipeline_mode = #tpu.pipeline_mode<synchronous>, transform_indices = @transform_7, window_bounds = array<i64: 256, 128>}, {pipeline_mode = #tpu.pipeline_mode<synchronous>, transform_indices = @transform_8, window_bounds = array<i64: 1, 128>}, {pipeline_mode = #tpu.pipeline_mode<synchronous>, transform_indices = @transform_9, window_bounds = array<i64: 128, 128>}, {pipeline_mode = #tpu.pipeline_mode<synchronous>, transform_indices = @transform_10, window_bounds = array<i64: 1, 128>}, {transform_indices = @transform_11, window_bounds = array<i64: 8, 128>}]} {
    %c0_i32 = arith.constant 0 : i32
    %0 = arith.cmpi eq, %arg1, %c0_i32 : i32
    %1 = arith.extui %0 : i1 to i32
    %c0_i32_0 = arith.constant 0 : i32
    %2 = arith.cmpi ne, %1, %c0_i32_0 : i32
    scf.if %2 {
      %cst_10 = arith.constant 0.000000e+00 : f32
      %12 = vector.broadcast %cst_10 : f32 to vector<8x1024xf32>
      %c0_11 = arith.constant 0 : index
      %c0_12 = arith.constant 0 : index
      %13 = vector.load %arg14[%c0_11, %c0_12] : memref<8x1024xf32, #tpu.memory_space<vmem>>, vector<8x1024xf32>
      tpu.vector_store %arg14[%c0_11, %c0_12], %12 {strides = array<i32>} : memref<8x1024xf32, #tpu.memory_space<vmem>>, vector<8x1024xf32>,
    } else {
    }
    %c0 = arith.constant 0 : index
    %c0_1 = arith.constant 0 : index
    %3 = vector.load %arg14[%c0, %c0_1] : memref<8x1024xf32, #tpu.memory_space<vmem>>, vector<8x1024xf32>
    %c0_2 = arith.constant 0 : index
    %c0_3 = arith.constant 0 : index
    %4 = vector.load %arg2[%c0_2, %c0_3] : memref<8x1024xbf16, #tpu.memory_space<vmem>>, vector<8x1024xbf16>
    %c0_4 = arith.constant 0 : index
    %c0_5 = arith.constant 0 : index
    %5 = vector.load %arg3[%c0_4, %c0_5] : memref<1024x1024xbf16, #tpu.memory_space<vmem>>, vector<1024x1024xbf16>
    %cst = arith.constant dense<0.000000e+00> : vector<8x1024xf32>
    %6 = tpu.matmul %4, %5, %cst {dimension_numbers = #tpu.dot_dimension_numbers<[1], [0], [0], [1], [0, 0, 1, 1], [], []>} : vector<8x1024xbf16>, vector<1024x1024xbf16>, vector<8x1024xf32> -> vector<8x1024xf32>
    %7 = arith.addf %3, %6 : vector<8x1024xf32>
    %c0_6 = arith.constant 0 : index
    %c0_7 = arith.constant 0 : index
    %8 = vector.load %arg14[%c0_6, %c0_7] : memref<8x1024xf32, #tpu.memory_space<vmem>>, vector<8x1024xf32>
    tpu.vector_store %arg14[%c0_6, %c0_7], %7 {strides = array<i32>} : memref<8x1024xf32, #tpu.memory_space<vmem>>, vector<8x1024xf32>,
    %c0_i32_8 = arith.constant 0 : i32
    %9 = arith.cmpi eq, %arg1, %c0_i32_8 : i32
    %10 = arith.extui %9 : i1 to i32
    %c0_i32_9 = arith.constant 0 : i32
    %11 = arith.cmpi ne, %10, %c0_i32_9 : i32
    scf.if %11 {
      %c0_10 = arith.constant 0 : index
      %c0_11 = arith.constant 0 : index
      %12 = vector.load %arg14[%c0_10, %c0_11] : memref<8x1024xf32, #tpu.memory_space<vmem>>, vector<8x1024xf32>
      %c0_12 = arith.constant 0 : index
      %c0_13 = arith.constant 0 : index
      %13 = vector.load %arg4[%c0_12, %c0_13] : memref<1x1024xf32, #tpu.memory_space<vmem>>, vector<1x1024xf32>
      %14 = vector.broadcast %13 : vector<1x1024xf32> to vector<8x1024xf32>
      %15 = arith.addf %12, %14 : vector<8x1024xf32>
      %16 = arith.truncf %15 : vector<8x1024xf32> to vector<8x1024xbf16>
      %c0_14 = arith.constant 0 : index
      %c0_15 = arith.constant 0 : index
      %17 = vector.load %arg5[%c0_14, %c0_15] : memref<1024x512xbf16, #tpu.memory_space<vmem>>, vector<1024x512xbf16>
      %cst_16 = arith.constant dense<0.000000e+00> : vector<8x512xf32>
      %18 = tpu.matmul %16, %17, %cst_16 {dimension_numbers = #tpu.dot_dimension_numbers<[1], [0], [0], [1], [0, 0, 1, 1], [], []>} : vector<8x1024xbf16>, vector<1024x512xbf16>, vector<8x512xf32> -> vector<8x512xf32>
      %c0_17 = arith.constant 0 : index
      %c0_18 = arith.constant 0 : index
      %19 = vector.load %arg6[%c0_17, %c0_18] : memref<1x512xf32, #tpu.memory_space<vmem>>, vector<1x512xf32>
      %20 = vector.broadcast %19 : vector<1x512xf32> to vector<8x512xf32>
      %21 = arith.addf %18, %20 : vector<8x512xf32>
      %cst_19 = arith.constant 2.000000e-01 : f32
      %22 = vector.broadcast %cst_19 : f32 to vector<8x512xf32>
      %23 = arith.mulf %22, %21 : vector<8x512xf32>
      %24 = arith.maximumf %21, %23 : vector<8x512xf32>
      %25 = arith.truncf %24 : vector<8x512xf32> to vector<8x512xbf16>
      %c0_20 = arith.constant 0 : index
      %c0_21 = arith.constant 0 : index
      %26 = vector.load %arg7[%c0_20, %c0_21] : memref<512x256xbf16, #tpu.memory_space<vmem>>, vector<512x256xbf16>
      %cst_22 = arith.constant dense<0.000000e+00> : vector<8x256xf32>
      %27 = tpu.matmul %25, %26, %cst_22 {dimension_numbers = #tpu.dot_dimension_numbers<[1], [0], [0], [1], [0, 0, 1, 1], [], []>} : vector<8x512xbf16>, vector<512x256xbf16>, vector<8x256xf32> -> vector<8x256xf32>
      %c0_23 = arith.constant 0 : index
      %c0_24 = arith.constant 0 : index
      %28 = vector.load %arg8[%c0_23, %c0_24] : memref<1x256xf32, #tpu.memory_space<vmem>>, vector<1x256xf32>
      %29 = vector.broadcast %28 : vector<1x256xf32> to vector<8x256xf32>
      %30 = arith.addf %27, %29 : vector<8x256xf32>
      %cst_25 = arith.constant 2.000000e-01 : f32
      %31 = vector.broadcast %cst_25 : f32 to vector<8x256xf32>
      %32 = arith.mulf %31, %30 : vector<8x256xf32>
      %33 = arith.maximumf %30, %32 : vector<8x256xf32>
      %34 = arith.truncf %33 : vector<8x256xf32> to vector<8x256xbf16>
      %c0_26 = arith.constant 0 : index
      %c0_27 = arith.constant 0 : index
      %35 = vector.load %arg9[%c0_26, %c0_27] : memref<256x128xbf16, #tpu.memory_space<vmem>>, vector<256x128xbf16>
      %cst_28 = arith.constant dense<0.000000e+00> : vector<8x128xf32>
      %36 = tpu.matmul %34, %35, %cst_28 {dimension_numbers = #tpu.dot_dimension_numbers<[1], [0], [0], [1], [0, 0, 1, 1], [], []>} : vector<8x256xbf16>, vector<256x128xbf16>, vector<8x128xf32> -> vector<8x128xf32>
      %c0_29 = arith.constant 0 : index
      %c0_30 = arith.constant 0 : index
      %37 = vector.load %arg10[%c0_29, %c0_30] : memref<1x128xf32, #tpu.memory_space<vmem>>, vector<1x128xf32>
      %38 = vector.broadcast %37 : vector<1x128xf32> to vector<8x128xf32>
      %39 = arith.addf %36, %38 : vector<8x128xf32>
      %cst_31 = arith.constant 2.000000e-01 : f32
      %40 = vector.broadcast %cst_31 : f32 to vector<8x128xf32>
      %41 = arith.mulf %40, %39 : vector<8x128xf32>
      %42 = arith.maximumf %39, %41 : vector<8x128xf32>
      %43 = arith.truncf %42 : vector<8x128xf32> to vector<8x128xbf16>
      %c0_32 = arith.constant 0 : index
      %c0_33 = arith.constant 0 : index
      %44 = vector.load %arg11[%c0_32, %c0_33] : memref<128x128xbf16, #tpu.memory_space<vmem>>, vector<128x128xbf16>
      %cst_34 = arith.constant dense<0.000000e+00> : vector<8x128xf32>
      %45 = tpu.matmul %43, %44, %cst_34 {dimension_numbers = #tpu.dot_dimension_numbers<[1], [0], [0], [1], [0, 0, 1, 1], [], []>} : vector<8x128xbf16>, vector<128x128xbf16>, vector<8x128xf32> -> vector<8x128xf32>
      %c0_35 = arith.constant 0 : index
      %c0_36 = arith.constant 0 : index
      %46 = vector.load %arg12[%c0_35, %c0_36] : memref<1x128xf32, #tpu.memory_space<vmem>>, vector<1x128xf32>
      %47 = vector.broadcast %46 : vector<1x128xf32> to vector<8x128xf32>
      %48 = arith.addf %45, %47 : vector<8x128xf32>
      %cst_37 = arith.constant 2.000000e-01 : f32
      %49 = vector.broadcast %cst_37 : f32 to vector<8x128xf32>
      %50 = arith.mulf %49, %48 : vector<8x128xf32>
      %51 = arith.maximumf %48, %50 : vector<8x128xf32>
      %52 = math.tanh %51 : vector<8x128xf32>
      %c0_38 = arith.constant 0 : index
      %c0_39 = arith.constant 0 : index
      %53 = vector.load %arg13[%c0_38, %c0_39] : memref<8x128xf32, #tpu.memory_space<vmem>>, vector<8x128xf32>
      tpu.vector_store %arg13[%c0_38, %c0_39], %52 {strides = array<i32>} : memref<8x128xf32, #tpu.memory_space<vmem>>, vector<8x128xf32>,
    } else {
    }
    return
  }
  func.func @transform_0(%arg0: i32, %arg1: i32) -> (i32, i32) {
    %c0_i32 = arith.constant 0 : i32
    return %arg0, %arg1 : i32, i32
  }
  func.func @transform_1(%arg0: i32, %arg1: i32) -> (i32, i32) {
    %c0_i32 = arith.constant 0 : i32
    %c0_i32_0 = arith.constant 0 : i32
    %c0_i32_1 = arith.constant 0 : i32
    return %c0_i32, %c0_i32_0 : i32, i32
  }
  func.func @transform_2(%arg0: i32, %arg1: i32) -> (i32, i32) {
    %c0_i32 = arith.constant 0 : i32
    %c0_i32_0 = arith.constant 0 : i32
    %c0_i32_1 = arith.constant 0 : i32
    return %c0_i32, %c0_i32_0 : i32, i32
  }
  func.func @transform_3(%arg0: i32, %arg1: i32) -> (i32, i32) {
    %c0_i32 = arith.constant 0 : i32
    %c0_i32_0 = arith.constant 0 : i32
    %c0_i32_1 = arith.constant 0 : i32
    return %c0_i32, %c0_i32_0 : i32, i32
  }
  func.func @transform_4(%arg0: i32, %arg1: i32) -> (i32, i32) {
    %c0_i32 = arith.constant 0 : i32
    %c0_i32_0 = arith.constant 0 : i32
    %c0_i32_1 = arith.constant 0 : i32
    return %c0_i32, %c0_i32_0 : i32, i32
  }
  func.func @transform_5(%arg0: i32, %arg1: i32) -> (i32, i32) {
    %c0_i32 = arith.constant 0 : i32
    %c0_i32_0 = arith.constant 0 : i32
    %c0_i32_1 = arith.constant 0 : i32
    return %c0_i32, %c0_i32_0 : i32, i32
  }
  func.func @transform_6(%arg0: i32, %arg1: i32) -> (i32, i32) {
    %c0_i32 = arith.constant 0 : i32
    %c0_i32_0 = arith.constant 0 : i32
    %c0_i32_1 = arith.constant 0 : i32
    return %c0_i32, %c0_i32_0 : i32, i32
  }
  func.func @transform_7(%arg0: i32, %arg1: i32) -> (i32, i32) {
    %c0_i32 = arith.constant 0 : i32
    %c0_i32_0 = arith.constant 0 : i32
    %c0_i32_1 = arith.constant 0 : i32
    return %c0_i32, %c0_i32_0 : i32, i32
  }
  func.func @transform_8(%arg0: i32, %arg1: i32) -> (i32, i32) {
    %c0_i32 = arith.constant 0 : i32
    %c0_i32_0 = arith.constant 0 : i32
    %c0_i32_1 = arith.constant 0 : i32
    return %c0_i32, %c0_i32_0 : i32, i32
  }
  func.func @transform_9(%arg0: i32, %arg1: i32) -> (i32, i32) {
    %c0_i32 = arith.constant 0 : i32
    %c0_i32_0 = arith.constant 0 : i32
    %c0_i32_1 = arith.constant 0 : i32
    return %c0_i32, %c0_i32_0 : i32, i32
  }
  func.func @transform_10(%arg0: i32, %arg1: i32) -> (i32, i32) {
    %c0_i32 = arith.constant 0 : i32
    %c0_i32_0 = arith.constant 0 : i32
    %c0_i32_1 = arith.constant 0 : i32
    return %c0_i32, %c0_i32_0 : i32, i32
  }
  func.func @transform_11(%arg0: i32, %arg1: i32) -> (i32, i32) {
    %c0_i32 = arith.constant 0 : i32
    %c0_i32_0 = arith.constant 0 : i32
    return %arg0, %c0_i32 : i32, i32
  }
}

</mosaic_0001>

<llo_original>
// kernel: tpu_custom_call.1
$region0: #{tpu_custom_call.1}
  #allocation0 [shape = 'u32[]', space=smem, size = 0x4, offset = 0x4, fixed_abs, tag = 'smem constant byte address 0x4 - core index']
  #allocation1 [shape = 'u32[144,128]{1,0:T(1,128)}', space=vmem, size = 0x12000, scoped, tag = 'internal scratch']
  #allocation2 [shape = 'f32[8,1024]{1,0:T(8,128)}', space=vmem, size = 0x8000, scoped, tag = 'scratch operand']
  %s0 = inlined_call_operand.hbm [shape: bf16[8,1024], index: 0, kind: input, shape index: {}]
  %s1 = inlined_call_operand.hbm [shape: bf16[1024,1024], index: 1, kind: input, shape index: {}]
  %s2 = inlined_call_operand.hbm [shape: f32[1,1024], index: 2, kind: input, shape index: {}]
  %s3 = inlined_call_operand.hbm [shape: bf16[1024,512], index: 3, kind: input, shape index: {}]
  %s4 = inlined_call_operand.hbm [shape: f32[1,512], index: 4, kind: input, shape index: {}]
  %s5 = inlined_call_operand.hbm [shape: bf16[512,256], index: 5, kind: input, shape index: {}]
  %s6 = inlined_call_operand.hbm [shape: f32[1,256], index: 6, kind: input, shape index: {}]
  %s7 = inlined_call_operand.hbm [shape: bf16[256,128], index: 7, kind: input, shape index: {}]
  %s8 = inlined_call_operand.hbm [shape: f32[1,128], index: 8, kind: input, shape index: {}]
  %s9 = inlined_call_operand.hbm [shape: bf16[128,128], index: 9, kind: input, shape index: {}]
  %s10 = inlined_call_operand.hbm [shape: f32[1,128], index: 10, kind: input, shape index: {}]
  %s11 = inlined_call_operand.hbm [shape: f32[8,128], index: 11, kind: output, shape index: {}]
  %s12 = sld [smem:[#allocation0]]
  $region106: #{tpu_custom_call.1} parent=0
    _
  %s14 = ssub.s32 1, %s12
  %s15 = scalar_select 0, %s14, %s12
  $region1: #{tpu_custom_call.1} parent=0
    #allocation3 [shape = 'u8[16384]{0}', space=vmem, size = 0x4000, scoped, tag = 'input window, operand 0, single buffered']
    #allocation4 [shape = 's32[1]{0}', space=sflag, size = 0x4, scoped, tag = 'scoped memory for tpu_custom_call.1']
    #allocation5 [shape = 's32[1]{0}', space=sflag, size = 0x4, scoped, tag = 'scoped memory for tpu_custom_call.1']
    #allocation6 [shape = 'u8[2097152]{0}', space=vmem, size = 0x200000, scoped, tag = 'input window, operand 1, single buffered']
    #allocation7 [shape = 's32[1]{0}', space=sflag, size = 0x4, scoped, tag = 'scoped memory for tpu_custom_call.1']
    #allocation8 [shape = 'u8[4096]{0}', space=vmem, size = 0x1000, scoped, tag = 'input window, operand 2, single buffered']
    #allocation9 [shape = 'u8[1048576]{0}', space=vmem, size = 0x100000, scoped, tag = 'input window, operand 3, single buffered']
    #allocation10 [shape = 's32[1]{0}', space=sflag, size = 0x4, scoped, tag = 'scoped memory for tpu_custom_call.1']
    #allocation11 [shape = 'u8[2048]{0}', space=vmem, size = 0x800, scoped, tag = 'input window, operand 4, single buffered']
    #allocation12 [shape = 'u8[262144]{0}', space=vmem, size = 0x40000, scoped, tag = 'input window, operand 5, single buffered']
    #allocation13 [shape = 's32[1]{0}', space=sflag, size = 0x4, scoped, tag = 'scoped memory for tpu_custom_call.1']
    #allocation14 [shape = 'u8[1024]{0}', space=vmem, size = 0x400, scoped, tag = 'input window, operand 6, single buffered']
    #allocation15 [shape = 'u8[65536]{0}', space=vmem, size = 0x10000, scoped, tag = 'input window, operand 7, single buffered']
    #allocation16 [shape = 's32[1]{0}', space=sflag, size = 0x4, scoped, tag = 'scoped memory for tpu_custom_call.1']
    #allocation17 [shape = 'u8[512]{0}', space=vmem, size = 0x400, scoped, tag = 'input window, operand 8, single buffered']
    #allocation18 [shape = 'u8[32768]{0}', space=vmem, size = 0x8000, scoped, tag = 'input window, operand 9, single buffered']
    #allocation19 [shape = 's32[1]{0}', space=sflag, size = 0x4, scoped, tag = 'scoped memory for tpu_custom_call.1']
    #allocation20 [shape = 'u8[512]{0}', space=vmem, size = 0x400, scoped, tag = 'input window, operand 10, single buffered']
    #allocation21 [shape = 'u8[4096]{0}', space=vmem, size = 0x1000, scoped, tag = 'output window, operand 0, single buffered']
    %16 = vsyncpa [#allocation4], 0
    %17 = vsyncpa [#allocation7], 0
    %18 = vsyncpa [#allocation10], 0
    %19 = vsyncpa [#allocation13], 0
    %20 = vsyncpa [#allocation16], 0
    %21 = vsyncpa [#allocation19], 0
    %22 = vsyncpa [#allocation5], 0
    // Predicated region
    $region2: #{tpu_custom_call.1} parent=1 // pred_check
      _
    $region3: #{tpu_custom_call.1} parent=1 // pred_check_branch
      %24 = sbr.rel (0) target = $region5
    $region4: #{tpu_custom_call.1} parent=1 // pred_region
      %s26 = ssub.s32 512, 512
      %27 = vsyncadd [#allocation4], %s26
      %s29 = sshll.u32 [#allocation3], 4
      %s30 = int_to_ptr.vmem [resolvable:$true] %s29
      %32 = dma.hbm_to_vmem [thread:$0]  %s0, 512, %s30, [#allocation4]
    $region5: #{tpu_custom_call.1} parent=1 // pred_fallthru
      _
    // Predicated region
    $region6: #{tpu_custom_call.1} parent=1 // pred_check
      _
    $region7: #{tpu_custom_call.1} parent=1 // pred_check_branch
      %34 = sbr.rel (0) target = $region9
    $region8: #{tpu_custom_call.1} parent=1 // pred_region
      %s36 = ssub.s32 65536, 65536
      %37 = vsyncadd [#allocation7], %s36
      %s38 = sshll.u32 [#allocation6], 4
      %s39 = int_to_ptr.vmem [resolvable:$true] %s38
      %44 = dma.hbm_to_vmem [thread:$0]  %s1, 65536, %s39, [#allocation7], 512, 512, 32
    $region9: #{tpu_custom_call.1} parent=1 // pred_fallthru
      _
    // Predicated region
    $region10: #{tpu_custom_call.1} parent=1 // pred_check
      _
    $region11: #{tpu_custom_call.1} parent=1 // pred_check_branch
      %46 = sbr.rel (0) target = $region13
    $region12: #{tpu_custom_call.1} parent=1 // pred_region
      %s48 = ssub.s32 128, 128
      %49 = vsyncadd [#allocation7], %s48
      %s51 = sshll.u32 [#allocation8], 4
      %s52 = int_to_ptr.vmem [resolvable:$true] %s51
      %54 = dma.hbm_to_vmem [thread:$0]  %s2, 128, %s52, [#allocation7]
    $region13: #{tpu_custom_call.1} parent=1 // pred_fallthru
      _
    // Predicated region
    $region14: #{tpu_custom_call.1} parent=1 // pred_check
      _
    $region15: #{tpu_custom_call.1} parent=1 // pred_check_branch
      %56 = sbr.rel (0) target = $region17
    $region16: #{tpu_custom_call.1} parent=1 // pred_region
      %s58 = ssub.s32 32768, 32768
      %59 = vsyncadd [#allocation10], %s58
      %s60 = sshll.u32 [#allocation9], 4
      %s61 = int_to_ptr.vmem [resolvable:$true] %s60
      %66 = dma.hbm_to_vmem [thread:$0]  %s3, 32768, %s61, [#allocation10], 256, 256, 16
    $region17: #{tpu_custom_call.1} parent=1 // pred_fallthru
      _
    // Predicated region
    $region18: #{tpu_custom_call.1} parent=1 // pred_check
      _
    $region19: #{tpu_custom_call.1} parent=1 // pred_check_branch
      %68 = sbr.rel (0) target = $region21
    $region20: #{tpu_custom_call.1} parent=1 // pred_region
      %s70 = ssub.s32 64, 64
      %71 = vsyncadd [#allocation10], %s70
      %s73 = sshll.u32 [#allocation11], 4
      %s74 = int_to_ptr.vmem [resolvable:$true] %s73
      %76 = dma.hbm_to_vmem [thread:$0]  %s4, 64, %s74, [#allocation10]
    $region21: #{tpu_custom_call.1} parent=1 // pred_fallthru
      _
    // Predicated region
    $region22: #{tpu_custom_call.1} parent=1 // pred_check
      _
    $region23: #{tpu_custom_call.1} parent=1 // pred_check_branch
      %78 = sbr.rel (0) target = $region25
    $region24: #{tpu_custom_call.1} parent=1 // pred_region
      %s80 = ssub.s32 8192, 8192
      %81 = vsyncadd [#allocation13], %s80
      %s82 = sshll.u32 [#allocation12], 4
      %s83 = int_to_ptr.vmem [resolvable:$true] %s82
      %88 = dma.hbm_to_vmem [thread:$0]  %s5, 8192, %s83, [#allocation13], 128, 128, 8
    $region25: #{tpu_custom_call.1} parent=1 // pred_fallthru
      _
    // Predicated region
    $region26: #{tpu_custom_call.1} parent=1 // pred_check
      _
    $region27: #{tpu_custom_call.1} parent=1 // pred_check_branch
      %90 = sbr.rel (0) target = $region29
    $region28: #{tpu_custom_call.1} parent=1 // pred_region
      %s92 = ssub.s32 32, 32
      %93 = vsyncadd [#allocation13], %s92
      %s95 = sshll.u32 [#allocation14], 4
      %s96 = int_to_ptr.vmem [resolvable:$true] %s95
      %98 = dma.hbm_to_vmem [thread:$0]  %s6, 32, %s96, [#allocation13]
    $region29: #{tpu_custom_call.1} parent=1 // pred_fallthru
      _
    // Predicated region
    $region30: #{tpu_custom_call.1} parent=1 // pred_check
      _
    $region31: #{tpu_custom_call.1} parent=1 // pred_check_branch
      %100 = sbr.rel (0) target = $region33
    $region32: #{tpu_custom_call.1} parent=1 // pred_region
      %s102 = ssub.s32 2048, 2048
      %103 = vsyncadd [#allocation16], %s102
      %s104 = sshll.u32 [#allocation15], 4
      %s105 = int_to_ptr.vmem [resolvable:$true] %s104
      %110 = dma.hbm_to_vmem [thread:$0]  %s7, 2048, %s105, [#allocation16], 64, 64, 4
    $region33: #{tpu_custom_call.1} parent=1 // pred_fallthru
      _
    // Predicated region
    $region34: #{tpu_custom_call.1} parent=1 // pred_check
      _
    $region35: #{tpu_custom_call.1} parent=1 // pred_check_branch
      %112 = sbr.rel (0) target = $region37
    $region36: #{tpu_custom_call.1} parent=1 // pred_region
      %s114 = ssub.s32 16, 16
      %115 = vsyncadd [#allocation16], %s114
      %s117 = sshll.u32 [#allocation17], 4
      %s118 = int_to_ptr.vmem [resolvable:$true] %s117
      %120 = dma.hbm_to_vmem [thread:$0]  %s8, 16, %s118, [#allocation16]
    $region37: #{tpu_custom_call.1} parent=1 // pred_fallthru
      _
    // Predicated region
    $region38: #{tpu_custom_call.1} parent=1 // pred_check
      _
    $region39: #{tpu_custom_call.1} parent=1 // pred_check_branch
      %122 = sbr.rel (0) target = $region41
    $region40: #{tpu_custom_call.1} parent=1 // pred_region
      %s124 = ssub.s32 1024, 1024
      %125 = vsyncadd [#allocation19], %s124
      %s126 = sshll.u32 [#allocation18], 4
      %s127 = int_to_ptr.vmem [resolvable:$true] %s126
      %132 = dma.hbm_to_vmem [thread:$0]  %s9, 1024, %s127, [#allocation19], 64, 64, 4
    $region41: #{tpu_custom_call.1} parent=1 // pred_fallthru
      _
    // Predicated region
    $region42: #{tpu_custom_call.1} parent=1 // pred_check
      _
    $region43: #{tpu_custom_call.1} parent=1 // pred_check_branch
      %134 = sbr.rel (0) target = $region45
    $region44: #{tpu_custom_call.1} parent=1 // pred_region
      %s136 = ssub.s32 16, 16
      %137 = vsyncadd [#allocation19], %s136
      %s139 = sshll.u32 [#allocation20], 4
      %s140 = int_to_ptr.vmem [resolvable:$true] %s139
      %142 = dma.hbm_to_vmem [thread:$0]  %s10, 16, %s140, [#allocation19]
    $region45: #{tpu_custom_call.1} parent=1 // pred_fallthru
      _
    // Predicated region
    $region46: #{tpu_custom_call.1} parent=1 // pred_check
      _
    $region47: #{tpu_custom_call.1} parent=1 // pred_check_branch
      %144 = sbr.rel (0) target = $region49
    $region48: #{tpu_custom_call.1} parent=1 // pred_region
      %145 = dma.done [#allocation4], 512
    $region49: #{tpu_custom_call.1} parent=1 // pred_fallthru
      _
    // Predicated region
    $region50: #{tpu_custom_call.1} parent=1 // pred_check
      _
    $region51: #{tpu_custom_call.1} parent=1 // pred_check_branch
      %147 = sbr.rel (0) target = $region53
    $region52: #{tpu_custom_call.1} parent=1 // pred_region
      %148 = dma.done [#allocation7], 65536
    $region53: #{tpu_custom_call.1} parent=1 // pred_fallthru
      _
    // Predicated region
    $region54: #{tpu_custom_call.1} parent=1 // pred_check
      _
    $region55: #{tpu_custom_call.1} parent=1 // pred_check_branch
      %150 = sbr.rel (0) target = $region57
    $region56: #{tpu_custom_call.1} parent=1 // pred_region
      %151 = dma.done [#allocation7], 128
    $region57: #{tpu_custom_call.1} parent=1 // pred_fallthru
      _
    // Predicated region
    $region58: #{tpu_custom_call.1} parent=1 // pred_check
      _
    $region59: #{tpu_custom_call.1} parent=1 // pred_check_branch
      %153 = sbr.rel (0) target = $region61
    $region60: #{tpu_custom_call.1} parent=1 // pred_region
      %154 = dma.done [#allocation10], 32768
    $region61: #{tpu_custom_call.1} parent=1 // pred_fallthru
      _
    // Predicated region
    $region62: #{tpu_custom_call.1} parent=1 // pred_check
      _
    $region63: #{tpu_custom_call.1} parent=1 // pred_check_branch
      %156 = sbr.rel (0) target = $region65
    $region64: #{tpu_custom_call.1} parent=1 // pred_region
      %157 = dma.done [#allocation10], 64
    $region65: #{tpu_custom_call.1} parent=1 // pred_fallthru
      _
    // Predicated region
    $region66: #{tpu_custom_call.1} parent=1 // pred_check
      _
    $region67: #{tpu_custom_call.1} parent=1 // pred_check_branch
      %159 = sbr.rel (0) target = $region69
    $region68: #{tpu_custom_call.1} parent=1 // pred_region
      %160 = dma.done [#allocation13], 8192
    $region69: #{tpu_custom_call.1} parent=1 // pred_fallthru
      _
    // Predicated region
    $region70: #{tpu_custom_call.1} parent=1 // pred_check
      _
    $region71: #{tpu_custom_call.1} parent=1 // pred_check_branch
      %162 = sbr.rel (0) target = $region73
    $region72: #{tpu_custom_call.1} parent=1 // pred_region
      %163 = dma.done [#allocation13], 32
    $region73: #{tpu_custom_call.1} parent=1 // pred_fallthru
      _
    // Predicated region
    $region74: #{tpu_custom_call.1} parent=1 // pred_check
      _
    $region75: #{tpu_custom_call.1} parent=1 // pred_check_branch
      %165 = sbr.rel (0) target = $region77
    $region76: #{tpu_custom_call.1} parent=1 // pred_region
      %166 = dma.done [#allocation16], 2048
    $region77: #{tpu_custom_call.1} parent=1 // pred_fallthru
      _
    // Predicated region
    $region78: #{tpu_custom_call.1} parent=1 // pred_check
      _
    $region79: #{tpu_custom_call.1} parent=1 // pred_check_branch
      %168 = sbr.rel (0) target = $region81
    $region80: #{tpu_custom_call.1} parent=1 // pred_region
      %169 = dma.done [#allocation16], 16
    $region81: #{tpu_custom_call.1} parent=1 // pred_fallthru
      _
    // Predicated region
    $region82: #{tpu_custom_call.1} parent=1 // pred_check
      _
    $region83: #{tpu_custom_call.1} parent=1 // pred_check_branch
      %171 = sbr.rel (0) target = $region85
    $region84: #{tpu_custom_call.1} parent=1 // pred_region
      %172 = dma.done [#allocation19], 1024
    $region85: #{tpu_custom_call.1} parent=1 // pred_fallthru
      _
    // Predicated region
    $region86: #{tpu_custom_call.1} parent=1 // pred_check
      _
    $region87: #{tpu_custom_call.1} parent=1 // pred_check_branch
      %174 = sbr.rel (0) target = $region89
    $region88: #{tpu_custom_call.1} parent=1 // pred_region
      %175 = dma.done [#allocation19], 16
    $region89: #{tpu_custom_call.1} parent=1 // pred_fallthru
      _
    %p177 = scmp.eq.s32.totalorder 0, 0
    // Predicated region
    $region90: #{tpu_custom_call.1} parent=1 // pred_check
      %p178 = pneg %p177
    $region91: #{tpu_custom_call.1} parent=1 // pred_check_branch
      %180 = sbr.rel (%p178) target = $region93
    $region92: #{tpu_custom_call.1} parent=1 // pred_region
      %181 = vst [vmem:[#allocation2] sm:$0xff] 0.0
      %182 = vst [vmem:[#allocation2 + $0x8] sm:$0xff] 0.0
      %183 = vst [vmem:[#allocation2 + $0x10] sm:$0xff] 0.0
      %184 = vst [vmem:[#allocation2 + $0x18] sm:$0xff] 0.0
      %185 = vst [vmem:[#allocation2 + $0x20] sm:$0xff] 0.0
      %186 = vst [vmem:[#allocation2 + $0x28] sm:$0xff] 0.0
      %187 = vst [vmem:[#allocation2 + $0x30] sm:$0xff] 0.0
      %188 = vst [vmem:[#allocation2 + $0x38] sm:$0xff] 0.0
    $region93: #{tpu_custom_call.1} parent=1 // pred_fallthru
      _
    %v189 = vld [vmem:[#allocation2] sm:$0xff]
    %v190 = vld [vmem:[#allocation2 + $0x8] sm:$0xff]
    %v191 = vld [vmem:[#allocation2 + $0x10] sm:$0xff]
    %v192 = vld [vmem:[#allocation2 + $0x18] sm:$0xff]
    %v193 = vld [vmem:[#allocation2 + $0x20] sm:$0xff]
    %v194 = vld [vmem:[#allocation2 + $0x28] sm:$0xff]
    %v195 = vld [vmem:[#allocation2 + $0x30] sm:$0xff]
    %v196 = vld [vmem:[#allocation2 + $0x38] sm:$0xff]
    %v197 = vld [vmem:[#allocation3] sm:$0xff]
    %v198 = vld [vmem:[#allocation3 + $0x8] sm:$0xff]
    %v199 = vld [vmem:[#allocation3 + $0x10] sm:$0xff]
    %v200 = vld [vmem:[#allocation3 + $0x18] sm:$0xff]
    %v201 = vld [vmem:[#allocation6] sm:$0xff]
    %v202 = vld [vmem:[#allocation6 + $0x8] sm:$0xff]
    %v203 = vld [vmem:[#allocation6 + $0x10] sm:$0xff]
    %v204 = vld [vmem:[#allocation6 + $0x18] sm:$0xff]
    %v205 = vld [vmem:[#allocation6 + $0x20] sm:$0xff]
    %v206 = vld [vmem:[#allocation6 + $0x28] sm:$0xff]
    %v207 = vld [vmem:[#allocation6 + $0x30] sm:$0xff]
    %v208 = vld [vmem:[#allocation6 + $0x38] sm:$0xff]
    %v209 = vld [vmem:[#allocation6 + $0x40] sm:$0xff]
    %v210 = vld [vmem:[#allocation6 + $0x48] sm:$0xff]
    %v211 = vld [vmem:[#allocation6 + $0x50] sm:$0xff]
    %v212 = vld [vmem:[#allocation6 + $0x58] sm:$0xff]
    %v213 = vld [vmem:[#allocation6 + $0x60] sm:$0xff]
    %v214 = vld [vmem:[#allocation6 + $0x68] sm:$0xff]
    %v215 = vld [vmem:[#allocation6 + $0x70] sm:$0xff]
    %v216 = vld [vmem:[#allocation6 + $0x78] sm:$0xff]
    %v217 = vld [vmem:[#allocation6 + $0x80] sm:$0xff]
    %v218 = vld [vmem:[#allocation6 + $0x88] sm:$0xff]
    %v219 = vld [vmem:[#allocation6 + $0x90] sm:$0xff]
    %v220 = vld [vmem:[#allocation6 + $0x98] sm:$0xff]
    %v221 = vld [vmem:[#allocation6 + $0xa0] sm:$0xff]
    %v222 = vld [vmem:[#allocation6 + $0xa8] sm:$0xff]
    %v223 = vld [vmem:[#allocation6 + $0xb0] sm:$0xff]
    %v224 = vld [vmem:[#allocation6 + $0xb8] sm:$0xff]
    %v225 = vld [vmem:[#allocation6 + $0xc0] sm:$0xff]
    %v226 = vld [vmem:[#allocation6 + $0xc8] sm:$0xff]
    %v227 = vld [vmem:[#allocation6 + $0xd0] sm:$0xff]
    %v228 = vld [vmem:[#allocation6 + $0xd8] sm:$0xff]
    %v229 = vld [vmem:[#allocation6 + $0xe0] sm:$0xff]
    %v230 = vld [vmem:[#allocation6 + $0xe8] sm:$0xff]
    %v231 = vld [vmem:[#allocation6 + $0xf0] sm:$0xff]
    %v232 = vld [vmem:[#allocation6 + $0xf8] sm:$0xff]
    %v233 = vld [vmem:[#allocation6 + $0x100] sm:$0xff]
    %v234 = vld [vmem:[#allocation6 + $0x108] sm:$0xff]
    %v235 = vld [vmem:[#allocation6 + $0x110] sm:$0xff]
    %v236 = vld [vmem:[#allocation6 + $0x118] sm:$0xff]
    %v237 = vld [vmem:[#allocation6 + $0x120] sm:$0xff]
    %v238 = vld [vmem:[#allocation6 + $0x128] sm:$0xff]
    %v239 = vld [vmem:[#allocation6 + $0x130] sm:$0xff]
    %v240 = vld [vmem:[#allocation6 + $0x138] sm:$0xff]
    %v241 = vld [vmem:[#allocation6 + $0x140] sm:$0xff]
    %v242 = vld [vmem:[#allocation6 + $0x148] sm:$0xff]
    %v243 = vld [vmem:[#allocation6 + $0x150] sm:$0xff]
    %v244 = vld [vmem:[#allocation6 + $0x158] sm:$0xff]
    %v245 = vld [vmem:[#allocation6 + $0x160] sm:$0xff]
    %v246 = vld [vmem:[#allocation6 + $0x168] sm:$0xff]
    %v247 = vld [vmem:[#allocation6 + $0x170] sm:$0xff]
    %v248 = vld [vmem:[#allocation6 + $0x178] sm:$0xff]
    %v249 = vld [vmem:[#allocation6 + $0x180] sm:$0xff]
    %v250 = vld [vmem:[#allocation6 + $0x188] sm:$0xff]
    %v251 = vld [vmem:[#allocation6 + $0x190] sm:$0xff]
    %v252 = vld [vmem:[#allocation6 + $0x198] sm:$0xff]
    %v253 = vld [vmem:[#allocation6 + $0x1a0] sm:$0xff]
    %v254 = vld [vmem:[#allocation6 + $0x1a8] sm:$0xff]
    %v255 = vld [vmem:[#allocation6 + $0x1b0] sm:$0xff]
    %v256 = vld [vmem:[#allocation6 + $0x1b8] sm:$0xff]
    %v257 = vld [vmem:[#allocation6 + $0x1c0] sm:$0xff]
    %v258 = vld [vmem:[#allocation6 + $0x1c8] sm:$0xff]
    %v259 = vld [vmem:[#allocation6 + $0x1d0] sm:$0xff]
    %v260 = vld [vmem:[#allocation6 + $0x1d8] sm:$0xff]
    %v261 = vld [vmem:[#allocation6 + $0x1e0] sm:$0xff]
    %v262 = vld [vmem:[#allocation6 + $0x1e8] sm:$0xff]
    %v263 = vld [vmem:[#allocation6 + $0x1f0] sm:$0xff]
    %v264 = vld [vmem:[#allocation6 + $0x1f8] sm:$0xff]
    %v265 = vld [vmem:[#allocation6 + $0x200] sm:$0xff]
    %v266 = vld [vmem:[#allocation6 + $0x208] sm:$0xff]
    %v267 = vld [vmem:[#allocation6 + $0x210] sm:$0xff]
    %v268 = vld [vmem:[#allocation6 + $0x218] sm:$0xff]
    %v269 = vld [vmem:[#allocation6 + $0x220] sm:$0xff]
    %v270 = vld [vmem:[#allocation6 + $0x228] sm:$0xff]
    %v271 = vld [vmem:[#allocation6 + $0x230] sm:$0xff]
    %v272 = vld [vmem:[#allocation6 + $0x238] sm:$0xff]
    %v273 = vld [vmem:[#allocation6 + $0x240] sm:$0xff]
    %v274 = vld [vmem:[#allocation6 + $0x248] sm:$0xff]
    %v275 = vld [vmem:[#allocation6 + $0x250] sm:$0xff]
    %v276 = vld [vmem:[#allocation6 + $0x258] sm:$0xff]
    %v277 = vld [vmem:[#allocation6 + $0x260] sm:$0xff]
    %v278 = vld [vmem:[#allocation6 + $0x268] sm:$0xff]
    %v279 = vld [vmem:[#allocation6 + $0x270] sm:$0xff]
    %v280 = vld [vmem:[#allocation6 + $0x278] sm:$0xff]
    %v281 = vld [vmem:[#allocation6 + $0x280] sm:$0xff]
    %v282 = vld [vmem:[#allocation6 + $0x288] sm:$0xff]
    %v283 = vld [vmem:[#allocation6 + $0x290] sm:$0xff]
    %v284 = vld [vmem:[#allocation6 + $0x298] sm:$0xff]
    %v285 = vld [vmem:[#allocation6 + $0x2a0] sm:$0xff]
    %v286 = vld [vmem:[#allocation6 + $0x2a8] sm:$0xff]
    %v287 = vld [vmem:[#allocation6 + $0x2b0] sm:$0xff]
    %v288 = vld [vmem:[#allocation6 + $0x2b8] sm:$0xff]
    %v289 = vld [vmem:[#allocation6 + $0x2c0] sm:$0xff]
    %v290 = vld [vmem:[#allocation6 + $0x2c8] sm:$0xff]
    %v291 = vld [vmem:[#allocation6 + $0x2d0] sm:$0xff]
    %v292 = vld [vmem:[#allocation6 + $0x2d8] sm:$0xff]
    %v293 = vld [vmem:[#allocation6 + $0x2e0] sm:$0xff]
    %v294 = vld [vmem:[#allocation6 + $0x2e8] sm:$0xff]
    %v295 = vld [vmem:[#allocation6 + $0x2f0] sm:$0xff]
    %v296 = vld [vmem:[#allocation6 + $0x2f8] sm:$0xff]
    %v297 = vld [vmem:[#allocation6 + $0x300] sm:$0xff]
    %v298 = vld [vmem:[#allocation6 + $0x308] sm:$0xff]
    %v299 = vld [vmem:[#allocation6 + $0x310] sm:$0xff]
    %v300 = vld [vmem:[#allocation6 + $0x318] sm:$0xff]
    %v301 = vld [vmem:[#allocation6 + $0x320] sm:$0xff]
    %v302 = vld [vmem:[#allocation6 + $0x328] sm:$0xff]
    %v303 = vld [vmem:[#allocation6 + $0x330] sm:$0xff]
    %v304 = vld [vmem:[#allocation6 + $0x338] sm:$0xff]
    %v305 = vld [vmem:[#allocation6 + $0x340] sm:$0xff]
    %v306 = vld [vmem:[#allocation6 + $0x348] sm:$0xff]
    %v307 = vld [vmem:[#allocation6 + $0x350] sm:$0xff]
    %v308 = vld [vmem:[#allocation6 + $0x358] sm:$0xff]
    %v309 = vld [vmem:[#allocation6 + $0x360] sm:$0xff]
    %v310 = vld [vmem:[#allocation6 + $0x368] sm:$0xff]
    %v311 = vld [vmem:[#allocation6 + $0x370] sm:$0xff]
    %v312 = vld [vmem:[#allocation6 + $0x378] sm:$0xff]
    %v313 = vld [vmem:[#allocation6 + $0x380] sm:$0xff]
    %v314 = vld [vmem:[#allocation6 + $0x388] sm:$0xff]
    %v315 = vld [vmem:[#allocation6 + $0x390] sm:$0xff]
    %v316 = vld [vmem:[#allocation6 + $0x398] sm:$0xff]
    %v317 = vld [vmem:[#allocation6 + $0x3a0] sm:$0xff]
    %v318 = vld [vmem:[#allocation6 + $0x3a8] sm:$0xff]
    %v319 = vld [vmem:[#allocation6 + $0x3b0] sm:$0xff]
    %v320 = vld [vmem:[#allocation6 + $0x3b8] sm:$0xff]
    %v321 = vld [vmem:[#allocation6 + $0x3c0] sm:$0xff]
    %v322 = vld [vmem:[#allocation6 + $0x3c8] sm:$0xff]
    %v323 = vld [vmem:[#allocation6 + $0x3d0] sm:$0xff]
    %v324 = vld [vmem:[#allocation6 + $0x3d8] sm:$0xff]
    %v325 = vld [vmem:[#allocation6 + $0x3e0] sm:$0xff]
    %v326 = vld [vmem:[#allocation6 + $0x3e8] sm:$0xff]
    %v327 = vld [vmem:[#allocation6 + $0x3f0] sm:$0xff]
    %v328 = vld [vmem:[#allocation6 + $0x3f8] sm:$0xff]
    %v329 = vld [vmem:[#allocation6 + $0x400] sm:$0xff]
    %v330 = vld [vmem:[#allocation6 + $0x408] sm:$0xff]
    %v331 = vld [vmem:[#allocation6 + $0x410] sm:$0xff]
    %v332 = vld [vmem:[#allocation6 + $0x418] sm:$0xff]
    %v333 = vld [vmem:[#allocation6 + $0x420] sm:$0xff]
    %v334 = vld [vmem:[#allocation6 + $0x428] sm:$0xff]
    %v335 = vld [vmem:[#allocation6 + $0x430] sm:$0xff]
    %v336 = vld [vmem:[#allocation6 + $0x438] sm:$0xff]
    %v337 = vld [vmem:[#allocation6 + $0x440] sm:$0xff]
    %v338 = vld [vmem:[#allocation6 + $0x448] sm:$0xff]
    %v339 = vld [vmem:[#allocation6 + $0x450] sm:$0xff]
    %v340 = vld [vmem:[#allocation6 + $0x458] sm:$0xff]
    %v341 = vld [vmem:[#allocation6 + $0x460] sm:$0xff]
    %v342 = vld [vmem:[#allocation6 + $0x468] sm:$0xff]
    %v343 = vld [vmem:[#allocation6 + $0x470] sm:$0xff]
    %v344 = vld [vmem:[#allocation6 + $0x478] sm:$0xff]
    %v345 = vld [vmem:[#allocation6 + $0x480] sm:$0xff]
    %v346 = vld [vmem:[#allocation6 + $0x488] sm:$0xff]
    %v347 = vld [vmem:[#allocation6 + $0x490] sm:$0xff]
    %v348 = vld [vmem:[#allocation6 + $0x498] sm:$0xff]
    %v349 = vld [vmem:[#allocation6 + $0x4a0] sm:$0xff]
    %v350 = vld [vmem:[#allocation6 + $0x4a8] sm:$0xff]
    %v351 = vld [vmem:[#allocation6 + $0x4b0] sm:$0xff]
    %v352 = vld [vmem:[#allocation6 + $0x4b8] sm:$0xff]
    %v353 = vld [vmem:[#allocation6 + $0x4c0] sm:$0xff]
    %v354 = vld [vmem:[#allocation6 + $0x4c8] sm:$0xff]
    %v355 = vld [vmem:[#allocation6 + $0x4d0] sm:$0xff]
    %v356 = vld [vmem:[#allocation6 + $0x4d8] sm:$0xff]
    %v357 = vld [vmem:[#allocation6 + $0x4e0] sm:$0xff]
    %v358 = vld [vmem:[#allocation6 + $0x4e8] sm:$0xff]
    %v359 = vld [vmem:[#allocation6 + $0x4f0] sm:$0xff]
    %v360 = vld [vmem:[#allocation6 + $0x4f8] sm:$0xff]
    %v361 = vld [vmem:[#allocation6 + $0x500] sm:$0xff]
    %v362 = vld [vmem:[#allocation6 + $0x508] sm:$0xff]
    %v363 = vld [vmem:[#allocation6 + $0x510] sm:$0xff]
    %v364 = vld [vmem:[#allocation6 + $0x518] sm:$0xff]
    %v365 = vld [vmem:[#allocation6 + $0x520] sm:$0xff]
    %v366 = vld [vmem:[#allocation6 + $0x528] sm:$0xff]
    %v367 = vld [vmem:[#allocation6 + $0x530] sm:$0xff]
    %v368 = vld [vmem:[#allocation6 + $0x538] sm:$0xff]
    %v369 = vld [vmem:[#allocation6 + $0x540] sm:$0xff]
    %v370 = vld [vmem:[#allocation6 + $0x548] sm:$0xff]
    %v371 = vld [vmem:[#allocation6 + $0x550] sm:$0xff]
    %v372 = vld [vmem:[#allocation6 + $0x558] sm:$0xff]
    %v373 = vld [vmem:[#allocation6 + $0x560] sm:$0xff]
    %v374 = vld [vmem:[#allocation6 + $0x568] sm:$0xff]
    %v375 = vld [vmem:[#allocation6 + $0x570] sm:$0xff]
    %v376 = vld [vmem:[#allocation6 + $0x578] sm:$0xff]
    %v377 = vld [vmem:[#allocation6 + $0x580] sm:$0xff]
    %v378 = vld [vmem:[#allocation6 + $0x588] sm:$0xff]
    %v379 = vld [vmem:[#allocation6 + $0x590] sm:$0xff]
    %v380 = vld [vmem:[#allocation6 + $0x598] sm:$0xff]
    %v381 = vld [vmem:[#allocation6 + $0x5a0] sm:$0xff]
    %v382 = vld [vmem:[#allocation6 + $0x5a8] sm:$0xff]
    %v383 = vld [vmem:[#allocation6 + $0x5b0] sm:$0xff]
    %v384 = vld [vmem:[#allocation6 + $0x5b8] sm:$0xff]
    %v385 = vld [vmem:[#allocation6 + $0x5c0] sm:$0xff]
    %v386 = vld [vmem:[#allocation6 + $0x5c8] sm:$0xff]
    %v387 = vld [vmem:[#allocation6 + $0x5d0] sm:$0xff]
    %v388 = vld [vmem:[#allocation6 + $0x5d8] sm:$0xff]
    %v389 = vld [vmem:[#allocation6 + $0x5e0] sm:$0xff]
    %v390 = vld [vmem:[#allocation6 + $0x5e8] sm:$0xff]
    %v391 = vld [vmem:[#allocation6 + $0x5f0] sm:$0xff]
    %v392 = vld [vmem:[#allocation6 + $0x5f8] sm:$0xff]
    %v393 = vld [vmem:[#allocation6 + $0x600] sm:$0xff]
    %v394 = vld [vmem:[#allocation6 + $0x608] sm:$0xff]
    %v395 = vld [vmem:[#allocation6 + $0x610] sm:$0xff]
    %v396 = vld [vmem:[#allocation6 + $0x618] sm:$0xff]
    %v397 = vld [vmem:[#allocation6 + $0x620] sm:$0xff]
    %v398 = vld [vmem:[#allocation6 + $0x628] sm:$0xff]
    %v399 = vld [vmem:[#allocation6 + $0x630] sm:$0xff]
    %v400 = vld [vmem:[#allocation6 + $0x638] sm:$0xff]
    %v401 = vld [vmem:[#allocation6 + $0x640] sm:$0xff]
    %v402 = vld [vmem:[#allocation6 + $0x648] sm:$0xff]
    %v403 = vld [vmem:[#allocation6 + $0x650] sm:$0xff]
    %v404 = vld [vmem:[#allocation6 + $0x658] sm:$0xff]
    %v405 = vld [vmem:[#allocation6 + $0x660] sm:$0xff]
    %v406 = vld [vmem:[#allocation6 + $0x668] sm:$0xff]
    %v407 = vld [vmem:[#allocation6 + $0x670] sm:$0xff]
    %v408 = vld [vmem:[#allocation6 + $0x678] sm:$0xff]
    %v409 = vld [vmem:[#allocation6 + $0x680] sm:$0xff]
    %v410 = vld [vmem:[#allocation6 + $0x688] sm:$0xff]
    %v411 = vld [vmem:[#allocation6 + $0x690] sm:$0xff]
    %v412 = vld [vmem:[#allocation6 + $0x698] sm:$0xff]
    %v413 = vld [vmem:[#allocation6 + $0x6a0] sm:$0xff]
    %v414 = vld [vmem:[#allocation6 + $0x6a8] sm:$0xff]
    %v415 = vld [vmem:[#allocation6 + $0x6b0] sm:$0xff]
    %v416 = vld [vmem:[#allocation6 + $0x6b8] sm:$0xff]
    %v417 = vld [vmem:[#allocation6 + $0x6c0] sm:$0xff]
    %v418 = vld [vmem:[#allocation6 + $0x6c8] sm:$0xff]
    %v419 = vld [vmem:[#allocation6 + $0x6d0] sm:$0xff]
    %v420 = vld [vmem:[#allocation6 + $0x6d8] sm:$0xff]
    %v421 = vld [vmem:[#allocation6 + $0x6e0] sm:$0xff]
    %v422 = vld [vmem:[#allocation6 + $0x6e8] sm:$0xff]
    %v423 = vld [vmem:[#allocation6 + $0x6f0] sm:$0xff]
    %v424 = vld [vmem:[#allocation6 + $0x6f8] sm:$0xff]
    %v425 = vld [vmem:[#allocation6 + $0x700] sm:$0xff]
    %v426 = vld [vmem:[#allocation6 + $0x708] sm:$0xff]
    %v427 = vld [vmem:[#allocation6 + $0x710] sm:$0xff]
    %v428 = vld [vmem:[#allocation6 + $0x718] sm:$0xff]
    %v429 = vld [vmem:[#allocation6 + $0x720] sm:$0xff]
    %v430 = vld [vmem:[#allocation6 + $0x728] sm:$0xff]
    %v431 = vld [vmem:[#allocation6 + $0x730] sm:$0xff]
    %v432 = vld [vmem:[#allocation6 + $0x738] sm:$0xff]
    %v433 = vld [vmem:[#allocation6 + $0x740] sm:$0xff]
    %v434 = vld [vmem:[#allocation6 + $0x748] sm:$0xff]
    %v435 = vld [vmem:[#allocation6 + $0x750] sm:$0xff]
    %v436 = vld [vmem:[#allocation6 + $0x758] sm:$0xff]
    %v437 = vld [vmem:[#allocation6 + $0x760] sm:$0xff]
    %v438 = vld [vmem:[#allocation6 + $0x768] sm:$0xff]
    %v439 = vld [vmem:[#allocation6 + $0x770] sm:$0xff]
    %v440 = vld [vmem:[#allocation6 + $0x778] sm:$0xff]
    %v441 = vld [vmem:[#allocation6 + $0x780] sm:$0xff]
    %v442 = vld [vmem:[#allocation6 + $0x788] sm:$0xff]
    %v443 = vld [vmem:[#allocation6 + $0x790] sm:$0xff]
    %v444 = vld [vmem:[#allocation6 + $0x798] sm:$0xff]
    %v445 = vld [vmem:[#allocation6 + $0x7a0] sm:$0xff]
    %v446 = vld [vmem:[#allocation6 + $0x7a8] sm:$0xff]
    %v447 = vld [vmem:[#allocation6 + $0x7b0] sm:$0xff]
    %v448 = vld [vmem:[#allocation6 + $0x7b8] sm:$0xff]
    %v449 = vld [vmem:[#allocation6 + $0x7c0] sm:$0xff]
    %v450 = vld [vmem:[#allocation6 + $0x7c8] sm:$0xff]
    %v451 = vld [vmem:[#allocation6 + $0x7d0] sm:$0xff]
    %v452 = vld [vmem:[#allocation6 + $0x7d8] sm:$0xff]
    %v453 = vld [vmem:[#allocation6 + $0x7e0] sm:$0xff]
    %v454 = vld [vmem:[#allocation6 + $0x7e8] sm:$0xff]
    %v455 = vld [vmem:[#allocation6 + $0x7f0] sm:$0xff]
    %v456 = vld [vmem:[#allocation6 + $0x7f8] sm:$0xff]
    %v457 = vld [vmem:[#allocation6 + $0x800] sm:$0xff]
    %v458 = vld [vmem:[#allocation6 + $0x808] sm:$0xff]
    %v459 = vld [vmem:[#allocation6 + $0x810] sm:$0xff]
    %v460 = vld [vmem:[#allocation6 + $0x818] sm:$0xff]
    %v461 = vld [vmem:[#allocation6 + $0x820] sm:$0xff]
    %v462 = vld [vmem:[#allocation6 + $0x828] sm:$0xff]
    %v463 = vld [vmem:[#allocation6 + $0x830] sm:$0xff]
    %v464 = vld [vmem:[#allocation6 + $0x838] sm:$0xff]
    %v465 = vld [vmem:[#allocation6 + $0x840] sm:$0xff]
    %v466 = vld [vmem:[#allocation6 + $0x848] sm:$0xff]
    %v467 = vld [vmem:[#allocation6 + $0x850] sm:$0xff]
    %v468 = vld [vmem:[#allocation6 + $0x858] sm:$0xff]
    %v469 = vld [vmem:[#allocation6 + $0x860] sm:$0xff]
    %v470 = vld [vmem:[#allocation6 + $0x868] sm:$0xff]
    %v471 = vld [vmem:[#allocation6 + $0x870] sm:$0xff]
    %v472 = vld [vmem:[#allocation6 + $0x878] sm:$0xff]
    %v473 = vld [vmem:[#allocation6 + $0x880] sm:$0xff]
    %v474 = vld [vmem:[#allocation6 + $0x888] sm:$0xff]
    %v475 = vld [vmem:[#allocation6 + $0x890] sm:$0xff]
    %v476 = vld [vmem:[#allocation6 + $0x898] sm:$0xff]
    %v477 = vld [vmem:[#allocation6 + $0x8a0] sm:$0xff]
    %v478 = vld [vmem:[#allocation6 + $0x8a8] sm:$0xff]
    %v479 = vld [vmem:[#allocation6 + $0x8b0] sm:$0xff]
    %v480 = vld [vmem:[#allocation6 + $0x8b8] sm:$0xff]
    %v481 = vld [vmem:[#allocation6 + $0x8c0] sm:$0xff]
    %v482 = vld [vmem:[#allocation6 + $0x8c8] sm:$0xff]
    %v483 = vld [vmem:[#allocation6 + $0x8d0] sm:$0xff]
    %v484 = vld [vmem:[#allocation6 + $0x8d8] sm:$0xff]
    %v485 = vld [vmem:[#allocation6 + $0x8e0] sm:$0xff]
    %v486 = vld [vmem:[#allocation6 + $0x8e8] sm:$0xff]
    %v487 = vld [vmem:[#allocation6 + $0x8f0] sm:$0xff]
    %v488 = vld [vmem:[#allocation6 + $0x8f8] sm:$0xff]
    %v489 = vld [vmem:[#allocation6 + $0x900] sm:$0xff]
    %v490 = vld [vmem:[#allocation6 + $0x908] sm:$0xff]
    %v491 = vld [vmem:[#allocation6 + $0x910] sm:$0xff]
    %v492 = vld [vmem:[#allocation6 + $0x918] sm:$0xff]
    %v493 = vld [vmem:[#allocation6 + $0x920] sm:$0xff]
    %v494 = vld [vmem:[#allocation6 + $0x928] sm:$0xff]
    %v495 = vld [vmem:[#allocation6 + $0x930] sm:$0xff]
    %v496 = vld [vmem:[#allocation6 + $0x938] sm:$0xff]
    %v497 = vld [vmem:[#allocation6 + $0x940] sm:$0xff]
    %v498 = vld [vmem:[#allocation6 + $0x948] sm:$0xff]
    %v499 = vld [vmem:[#allocation6 + $0x950] sm:$0xff]
    %v500 = vld [vmem:[#allocation6 + $0x958] sm:$0xff]
    %v501 = vld [vmem:[#allocation6 + $0x960] sm:$0xff]
    %v502 = vld [vmem:[#allocation6 + $0x968] sm:$0xff]
    %v503 = vld [vmem:[#allocation6 + $0x970] sm:$0xff]
    %v504 = vld [vmem:[#allocation6 + $0x978] sm:$0xff]
    %v505 = vld [vmem:[#allocation6 + $0x980] sm:$0xff]
    %v506 = vld [vmem:[#allocation6 + $0x988] sm:$0xff]
    %v507 = vld [vmem:[#allocation6 + $0x990] sm:$0xff]
    %v508 = vld [vmem:[#allocation6 + $0x998] sm:$0xff]
    %v509 = vld [vmem:[#allocation6 + $0x9a0] sm:$0xff]
    %v510 = vld [vmem:[#allocation6 + $0x9a8] sm:$0xff]
    %v511 = vld [vmem:[#allocation6 + $0x9b0] sm:$0xff]
    %v512 = vld [vmem:[#allocation6 + $0x9b8] sm:$0xff]
    %v513 = vld [vmem:[#allocation6 + $0x9c0] sm:$0xff]
    %v514 = vld [vmem:[#allocation6 + $0x9c8] sm:$0xff]
    %v515 = vld [vmem:[#allocation6 + $0x9d0] sm:$0xff]
    %v516 = vld [vmem:[#allocation6 + $0x9d8] sm:$0xff]
    %v517 = vld [vmem:[#allocation6 + $0x9e0] sm:$0xff]
    %v518 = vld [vmem:[#allocation6 + $0x9e8] sm:$0xff]
    %v519 = vld [vmem:[#allocation6 + $0x9f0] sm:$0xff]
    %v520 = vld [vmem:[#allocation6 + $0x9f8] sm:$0xff]
    %v521 = vld [vmem:[#allocation6 + $0xa00] sm:$0xff]
    %v522 = vld [vmem:[#allocation6 + $0xa08] sm:$0xff]
    %v523 = vld [vmem:[#allocation6 + $0xa10] sm:$0xff]
    %v524 = vld [vmem:[#allocation6 + $0xa18] sm:$0xff]
    %v525 = vld [vmem:[#allocation6 + $0xa20] sm:$0xff]
    %v526 = vld [vmem:[#allocation6 + $0xa28] sm:$0xff]
    %v527 = vld [vmem:[#allocation6 + $0xa30] sm:$0xff]
    %v528 = vld [vmem:[#allocation6 + $0xa38] sm:$0xff]
    %v529 = vld [vmem:[#allocation6 + $0xa40] sm:$0xff]
    %v530 = vld [vmem:[#allocation6 + $0xa48] sm:$0xff]
    %v531 = vld [vmem:[#allocation6 + $0xa50] sm:$0xff]
    %v532 = vld [vmem:[#allocation6 + $0xa58] sm:$0xff]
    %v533 = vld [vmem:[#allocation6 + $0xa60] sm:$0xff]
    %v534 = vld [vmem:[#allocation6 + $0xa68] sm:$0xff]
    %v535 = vld [vmem:[#allocation6 + $0xa70] sm:$0xff]
    %v536 = vld [vmem:[#allocation6 + $0xa78] sm:$0xff]
    %v537 = vld [vmem:[#allocation6 + $0xa80] sm:$0xff]
    %v538 = vld [vmem:[#allocation6 + $0xa88] sm:$0xff]
    %v539 = vld [vmem:[#allocation6 + $0xa90] sm:$0xff]
    %v540 = vld [vmem:[#allocation6 + $0xa98] sm:$0xff]
    %v541 = vld [vmem:[#allocation6 + $0xaa0] sm:$0xff]
    %v542 = vld [vmem:[#allocation6 + $0xaa8] sm:$0xff]
    %v543 = vld [vmem:[#allocation6 + $0xab0] sm:$0xff]
    %v544 = vld [vmem:[#allocation6 + $0xab8] sm:$0xff]
    %v545 = vld [vmem:[#allocation6 + $0xac0] sm:$0xff]
    %v546 = vld [vmem:[#allocation6 + $0xac8] sm:$0xff]
    %v547 = vld [vmem:[#allocation6 + $0xad0] sm:$0xff]
    %v548 = vld [vmem:[#allocation6 + $0xad8] sm:$0xff]
    %v549 = vld [vmem:[#allocation6 + $0xae0] sm:$0xff]
    %v550 = vld [vmem:[#allocation6 + $0xae8] sm:$0xff]
    %v551 = vld [vmem:[#allocation6 + $0xaf0] sm:$0xff]
    %v552 = vld [vmem:[#allocation6 + $0xaf8] sm:$0xff]
    %v553 = vld [vmem:[#allocation6 + $0xb00] sm:$0xff]
    %v554 = vld [vmem:[#allocation6 + $0xb08] sm:$0xff]
    %v555 = vld [vmem:[#allocation6 + $0xb10] sm:$0xff]
    %v556 = vld [vmem:[#allocation6 + $0xb18] sm:$0xff]
    %v557 = vld [vmem:[#allocation6 + $0xb20] sm:$0xff]
    %v558 = vld [vmem:[#allocation6 + $0xb28] sm:$0xff]
    %v559 = vld [vmem:[#allocation6 + $0xb30] sm:$0xff]
    %v560 = vld [vmem:[#allocation6 + $0xb38] sm:$0xff]
    %v561 = vld [vmem:[#allocation6 + $0xb40] sm:$0xff]
    %v562 = vld [vmem:[#allocation6 + $0xb48] sm:$0xff]
    %v563 = vld [vmem:[#allocation6 + $0xb50] sm:$0xff]
    %v564 = vld [vmem:[#allocation6 + $0xb58] sm:$0xff]
    %v565 = vld [vmem:[#allocation6 + $0xb60] sm:$0xff]
    %v566 = vld [vmem:[#allocation6 + $0xb68] sm:$0xff]
    %v567 = vld [vmem:[#allocation6 + $0xb70] sm:$0xff]
    %v568 = vld [vmem:[#allocation6 + $0xb78] sm:$0xff]
    %v569 = vld [vmem:[#allocation6 + $0xb80] sm:$0xff]
    %v570 = vld [vmem:[#allocation6 + $0xb88] sm:$0xff]
    %v571 = vld [vmem:[#allocation6 + $0xb90] sm:$0xff]
    %v572 = vld [vmem:[#allocation6 + $0xb98] sm:$0xff]
    %v573 = vld [vmem:[#allocation6 + $0xba0] sm:$0xff]
    %v574 = vld [vmem:[#allocation6 + $0xba8] sm:$0xff]
    %v575 = vld [vmem:[#allocation6 + $0xbb0] sm:$0xff]
    %v576 = vld [vmem:[#allocation6 + $0xbb8] sm:$0xff]
    %v577 = vld [vmem:[#allocation6 + $0xbc0] sm:$0xff]
    %v578 = vld [vmem:[#allocation6 + $0xbc8] sm:$0xff]
    %v579 = vld [vmem:[#allocation6 + $0xbd0] sm:$0xff]
    %v580 = vld [vmem:[#allocation6 + $0xbd8] sm:$0xff]
    %v581 = vld [vmem:[#allocation6 + $0xbe0] sm:$0xff]
    %v582 = vld [vmem:[#allocation6 + $0xbe8] sm:$0xff]
    %v583 = vld [vmem:[#allocation6 + $0xbf0] sm:$0xff]
    %v584 = vld [vmem:[#allocation6 + $0xbf8] sm:$0xff]
    %v585 = vld [vmem:[#allocation6 + $0xc00] sm:$0xff]
    %v586 = vld [vmem:[#allocation6 + $0xc08] sm:$0xff]
    %v587 = vld [vmem:[#allocation6 + $0xc10] sm:$0xff]
    %v588 = vld [vmem:[#allocation6 + $0xc18] sm:$0xff]
    %v589 = vld [vmem:[#allocation6 + $0xc20] sm:$0xff]
    %v590 = vld [vmem:[#allocation6 + $0xc28] sm:$0xff]
    %v591 = vld [vmem:[#allocation6 + $0xc30] sm:$0xff]
    %v592 = vld [vmem:[#allocation6 + $0xc38] sm:$0xff]
    %v593 = vld [vmem:[#allocation6 + $0xc40] sm:$0xff]
    %v594 = vld [vmem:[#allocation6 + $0xc48] sm:$0xff]
    %v595 = vld [vmem:[#allocation6 + $0xc50] sm:$0xff]
    %v596 = vld [vmem:[#allocation6 + $0xc58] sm:$0xff]
    %v597 = vld [vmem:[#allocation6 + $0xc60] sm:$0xff]
    %v598 = vld [vmem:[#allocation6 + $0xc68] sm:$0xff]
    %v599 = vld [vmem:[#allocation6 + $0xc70] sm:$0xff]
    %v600 = vld [vmem:[#allocation6 + $0xc78] sm:$0xff]
    %v601 = vld [vmem:[#allocation6 + $0xc80] sm:$0xff]
    %v602 = vld [vmem:[#allocation6 + $0xc88] sm:$0xff]
    %v603 = vld [vmem:[#allocation6 + $0xc90] sm:$0xff]
    %v604 = vld [vmem:[#allocation6 + $0xc98] sm:$0xff]
    %v605 = vld [vmem:[#allocation6 + $0xca0] sm:$0xff]
    %v606 = vld [vmem:[#allocation6 + $0xca8] sm:$0xff]
    %v607 = vld [vmem:[#allocation6 + $0xcb0] sm:$0xff]
    %v608 = vld [vmem:[#allocation6 + $0xcb8] sm:$0xff]
    %v609 = vld [vmem:[#allocation6 + $0xcc0] sm:$0xff]
    %v610 = vld [vmem:[#allocation6 + $0xcc8] sm:$0xff]
    %v611 = vld [vmem:[#allocation6 + $0xcd0] sm:$0xff]
    %v612 = vld [vmem:[#allocation6 + $0xcd8] sm:$0xff]
    %v613 = vld [vmem:[#allocation6 + $0xce0] sm:$0xff]
    %v614 = vld [vmem:[#allocation6 + $0xce8] sm:$0xff]
    %v615 = vld [vmem:[#allocation6 + $0xcf0] sm:$0xff]
    %v616 = vld [vmem:[#allocation6 + $0xcf8] sm:$0xff]
    %v617 = vld [vmem:[#allocation6 + $0xd00] sm:$0xff]
    %v618 = vld [vmem:[#allocation6 + $0xd08] sm:$0xff]
    %v619 = vld [vmem:[#allocation6 + $0xd10] sm:$0xff]
    %v620 = vld [vmem:[#allocation6 + $0xd18] sm:$0xff]
    %v621 = vld [vmem:[#allocation6 + $0xd20] sm:$0xff]
    %v622 = vld [vmem:[#allocation6 + $0xd28] sm:$0xff]
    %v623 = vld [vmem:[#allocation6 + $0xd30] sm:$0xff]
    %v624 = vld [vmem:[#allocation6 + $0xd38] sm:$0xff]
    %v625 = vld [vmem:[#allocation6 + $0xd40] sm:$0xff]
    %v626 = vld [vmem:[#allocation6 + $0xd48] sm:$0xff]
    %v627 = vld [vmem:[#allocation6 + $0xd50] sm:$0xff]
    %v628 = vld [vmem:[#allocation6 + $0xd58] sm:$0xff]
    %v629 = vld [vmem:[#allocation6 + $0xd60] sm:$0xff]
    %v630 = vld [vmem:[#allocation6 + $0xd68] sm:$0xff]
    %v631 = vld [vmem:[#allocation6 + $0xd70] sm:$0xff]
    %v632 = vld [vmem:[#allocation6 + $0xd78] sm:$0xff]
    %v633 = vld [vmem:[#allocation6 + $0xd80] sm:$0xff]
    %v634 = vld [vmem:[#allocation6 + $0xd88] sm:$0xff]
    %v635 = vld [vmem:[#allocation6 + $0xd90] sm:$0xff]
    %v636 = vld [vmem:[#allocation6 + $0xd98] sm:$0xff]
    %v637 = vld [vmem:[#allocation6 + $0xda0] sm:$0xff]
    %v638 = vld [vmem:[#allocation6 + $0xda8] sm:$0xff]
    %v639 = vld [vmem:[#allocation6 + $0xdb0] sm:$0xff]
    %v640 = vld [vmem:[#allocation6 + $0xdb8] sm:$0xff]
    %v641 = vld [vmem:[#allocation6 + $0xdc0] sm:$0xff]
    %v642 = vld [vmem:[#allocation6 + $0xdc8] sm:$0xff]
    %v643 = vld [vmem:[#allocation6 + $0xdd0] sm:$0xff]
    %v644 = vld [vmem:[#allocation6 + $0xdd8] sm:$0xff]
    %v645 = vld [vmem:[#allocation6 + $0xde0] sm:$0xff]
    %v646 = vld [vmem:[#allocation6 + $0xde8] sm:$0xff]
    %v647 = vld [vmem:[#allocation6 + $0xdf0] sm:$0xff]
    %v648 = vld [vmem:[#allocation6 + $0xdf8] sm:$0xff]
    %v649 = vld [vmem:[#allocation6 + $0xe00] sm:$0xff]
    %v650 = vld [vmem:[#allocation6 + $0xe08] sm:$0xff]
    %v651 = vld [vmem:[#allocation6 + $0xe10] sm:$0xff]
    %v652 = vld [vmem:[#allocation6 + $0xe18] sm:$0xff]
    %v653 = vld [vmem:[#allocation6 + $0xe20] sm:$0xff]
    %v654 = vld [vmem:[#allocation6 + $0xe28] sm:$0xff]
    %v655 = vld [vmem:[#allocation6 + $0xe30] sm:$0xff]
    %v656 = vld [vmem:[#allocation6 + $0xe38] sm:$0xff]
    %v657 = vld [vmem:[#allocation6 + $0xe40] sm:$0xff]
    %v658 = vld [vmem:[#allocation6 + $0xe48] sm:$0xff]
    %v659 = vld [vmem:[#allocation6 + $0xe50] sm:$0xff]
    %v660 = vld [vmem:[#allocation6 + $0xe58] sm:$0xff]
    %v661 = vld [vmem:[#allocation6 + $0xe60] sm:$0xff]
    %v662 = vld [vmem:[#allocation6 + $0xe68] sm:$0xff]
    %v663 = vld [vmem:[#allocation6 + $0xe70] sm:$0xff]
    %v664 = vld [vmem:[#allocation6 + $0xe78] sm:$0xff]
    %v665 = vld [vmem:[#allocation6 + $0xe80] sm:$0xff]
    %v666 = vld [vmem:[#allocation6 + $0xe88] sm:$0xff]
    %v667 = vld [vmem:[#allocation6 + $0xe90] sm:$0xff]
    %v668 = vld [vmem:[#allocation6 + $0xe98] sm:$0xff]
    %v669 = vld [vmem:[#allocation6 + $0xea0] sm:$0xff]
    %v670 = vld [vmem:[#allocation6 + $0xea8] sm:$0xff]
    %v671 = vld [vmem:[#allocation6 + $0xeb0] sm:$0xff]
    %v672 = vld [vmem:[#allocation6 + $0xeb8] sm:$0xff]
    %v673 = vld [vmem:[#allocation6 + $0xec0] sm:$0xff]
    %v674 = vld [vmem:[#allocation6 + $0xec8] sm:$0xff]
    %v675 = vld [vmem:[#allocation6 + $0xed0] sm:$0xff]
    %v676 = vld [vmem:[#allocation6 + $0xed8] sm:$0xff]
    %v677 = vld [vmem:[#allocation6 + $0xee0] sm:$0xff]
    %v678 = vld [vmem:[#allocation6 + $0xee8] sm:$0xff]
    %v679 = vld [vmem:[#allocation6 + $0xef0] sm:$0xff]
    %v680 = vld [vmem:[#allocation6 + $0xef8] sm:$0xff]
    %v681 = vld [vmem:[#allocation6 + $0xf00] sm:$0xff]
    %v682 = vld [vmem:[#allocation6 + $0xf08] sm:$0xff]
    %v683 = vld [vmem:[#allocation6 + $0xf10] sm:$0xff]
    %v684 = vld [vmem:[#allocation6 + $0xf18] sm:$0xff]
    %v685 = vld [vmem:[#allocation6 + $0xf20] sm:$0xff]
    %v686 = vld [vmem:[#allocation6 + $0xf28] sm:$0xff]
    %v687 = vld [vmem:[#allocation6 + $0xf30] sm:$0xff]
    %v688 = vld [vmem:[#allocation6 + $0xf38] sm:$0xff]
    %v689 = vld [vmem:[#allocation6 + $0xf40] sm:$0xff]
    %v690 = vld [vmem:[#allocation6 + $0xf48] sm:$0xff]
    %v691 = vld [vmem:[#allocation6 + $0xf50] sm:$0xff]
    %v692 = vld [vmem:[#allocation6 + $0xf58] sm:$0xff]
    %v693 = vld [vmem:[#allocation6 + $0xf60] sm:$0xff]
    %v694 = vld [vmem:[#allocation6 + $0xf68] sm:$0xff]
    %v695 = vld [vmem:[#allocation6 + $0xf70] sm:$0xff]
    %v696 = vld [vmem:[#allocation6 + $0xf78] sm:$0xff]
    %v697 = vld [vmem:[#allocation6 + $0xf80] sm:$0xff]
    %v698 = vld [vmem:[#allocation6 + $0xf88] sm:$0xff]
    %v699 = vld [vmem:[#allocation6 + $0xf90] sm:$0xff]
    %v700 = vld [vmem:[#allocation6 + $0xf98] sm:$0xff]
    %v701 = vld [vmem:[#allocation6 + $0xfa0] sm:$0xff]
    %v702 = vld [vmem:[#allocation6 + $0xfa8] sm:$0xff]
    %v703 = vld [vmem:[#allocation6 + $0xfb0] sm:$0xff]
    %v704 = vld [vmem:[#allocation6 + $0xfb8] sm:$0xff]
    %v705 = vld [vmem:[#allocation6 + $0xfc0] sm:$0xff]
    %v706 = vld [vmem:[#allocation6 + $0xfc8] sm:$0xff]
    %v707 = vld [vmem:[#allocation6 + $0xfd0] sm:$0xff]
    %v708 = vld [vmem:[#allocation6 + $0xfd8] sm:$0xff]
    %v709 = vld [vmem:[#allocation6 + $0xfe0] sm:$0xff]
    %v710 = vld [vmem:[#allocation6 + $0xfe8] sm:$0xff]
    %v711 = vld [vmem:[#allocation6 + $0xff0] sm:$0xff]
    %v712 = vld [vmem:[#allocation6 + $0xff8] sm:$0xff]
    %v717 = vunpack.c.l.b16 %v197
    %v718 = vunpack.c.h.b16 %v197
    %v719 = vunpack.c.l.b16 %v198
    %v720 = vunpack.c.h.b16 %v198
    %v721 = vunpack.c.l.b16 %v199
    %v722 = vunpack.c.h.b16 %v199
    %v723 = vunpack.c.l.b16 %v200
    %v724 = vunpack.c.h.b16 %v200
    %v725 = vpack.c.b16 %v717, %v717
    %v726 = vpack.c.b16 %v718, %v718
    %v727 = vpack.c.b16 %v719, %v719
    %v728 = vpack.c.b16 %v720, %v720
    %v729 = vpack.c.b16 %v721, %v721
    %v730 = vpack.c.b16 %v722, %v722
    %v731 = vpack.c.b16 %v723, %v723
    %v732 = vpack.c.b16 %v724, %v724
    %v1253 = vunpack.c.l.b16 %v201
    %v1254 = vunpack.c.h.b16 %v201
    %v1255 = vunpack.c.l.b16 %v202
    %v1256 = vunpack.c.h.b16 %v202
    %v1257 = vunpack.c.l.b16 %v203
    %v1258 = vunpack.c.h.b16 %v203
    %v1259 = vunpack.c.l.b16 %v204
    %v1260 = vunpack.c.h.b16 %v204
    %v1261 = vunpack.c.l.b16 %v205
    %v1262 = vunpack.c.h.b16 %v205
    %v1263 = vunpack.c.l.b16 %v206
    %v1264 = vunpack.c.h.b16 %v206
    %v1265 = vunpack.c.l.b16 %v207
    %v1266 = vunpack.c.h.b16 %v207
    %v1267 = vunpack.c.l.b16 %v208
    %v1268 = vunpack.c.h.b16 %v208
    %v1269 = vunpack.c.l.b16 %v209
    %v1270 = vunpack.c.h.b16 %v209
    %v1271 = vunpack.c.l.b16 %v210
    %v1272 = vunpack.c.h.b16 %v210
    %v1273 = vunpack.c.l.b16 %v211
    %v1274 = vunpack.c.h.b16 %v211
    %v1275 = vunpack.c.l.b16 %v212
    %v1276 = vunpack.c.h.b16 %v212
    %v1277 = vunpack.c.l.b16 %v213
    %v1278 = vunpack.c.h.b16 %v213
    %v1279 = vunpack.c.l.b16 %v214
    %v1280 = vunpack.c.h.b16 %v214
    %v1281 = vunpack.c.l.b16 %v215
    %v1282 = vunpack.c.h.b16 %v215
    %v1283 = vunpack.c.l.b16 %v216
    %v1284 = vunpack.c.h.b16 %v216
    %v1285 = vunpack.c.l.b16 %v217
    %v1286 = vunpack.c.h.b16 %v217
    %v1287 = vunpack.c.l.b16 %v218
    %v1288 = vunpack.c.h.b16 %v218
    %v1289 = vunpack.c.l.b16 %v219
    %v1290 = vunpack.c.h.b16 %v219
    %v1291 = vunpack.c.l.b16 %v220
    %v1292 = vunpack.c.h.b16 %v220
    %v1293 = vunpack.c.l.b16 %v221
    %v1294 = vunpack.c.h.b16 %v221
    %v1295 = vunpack.c.l.b16 %v222
    %v1296 = vunpack.c.h.b16 %v222
    %v1297 = vunpack.c.l.b16 %v223
    %v1298 = vunpack.c.h.b16 %v223
    %v1299 = vunpack.c.l.b16 %v224
    %v1300 = vunpack.c.h.b16 %v224
    %v1301 = vunpack.c.l.b16 %v225
    %v1302 = vunpack.c.h.b16 %v225
    %v1303 = vunpack.c.l.b16 %v226
    %v1304 = vunpack.c.h.b16 %v226
    %v1305 = vunpack.c.l.b16 %v227
    %v1306 = vunpack.c.h.b16 %v227
    %v1307 = vunpack.c.l.b16 %v228
    %v1308 = vunpack.c.h.b16 %v228
    %v1309 = vunpack.c.l.b16 %v229
    %v1310 = vunpack.c.h.b16 %v229
    %v1311 = vunpack.c.l.b16 %v230
    %v1312 = vunpack.c.h.b16 %v230
    %v1313 = vunpack.c.l.b16 %v231
    %v1314 = vunpack.c.h.b16 %v231
    %v1315 = vunpack.c.l.b16 %v232
    %v1316 = vunpack.c.h.b16 %v232
    %v1317 = vunpack.c.l.b16 %v233
    %v1318 = vunpack.c.h.b16 %v233
    %v1319 = vunpack.c.l.b16 %v234
    %v1320 = vunpack.c.h.b16 %v234
    %v1321 = vunpack.c.l.b16 %v235
    %v1322 = vunpack.c.h.b16 %v235
    %v1323 = vunpack.c.l.b16 %v236
    %v1324 = vunpack.c.h.b16 %v236
    %v1325 = vunpack.c.l.b16 %v237
    %v1326 = vunpack.c.h.b16 %v237
    %v1327 = vunpack.c.l.b16 %v238
    %v1328 = vunpack.c.h.b16 %v238
    %v1329 = vunpack.c.l.b16 %v239
    %v1330 = vunpack.c.h.b16 %v239
    %v1331 = vunpack.c.l.b16 %v240
    %v1332 = vunpack.c.h.b16 %v240
    %v1333 = vunpack.c.l.b16 %v241
    %v1334 = vunpack.c.h.b16 %v241
    %v1335 = vunpack.c.l.b16 %v242
    %v1336 = vunpack.c.h.b16 %v242
    %v1337 = vunpack.c.l.b16 %v243
    %v1338 = vunpack.c.h.b16 %v243
    %v1339 = vunpack.c.l.b16 %v244
    %v1340 = vunpack.c.h.b16 %v244
    %v1341 = vunpack.c.l.b16 %v245
    %v1342 = vunpack.c.h.b16 %v245
    %v1343 = vunpack.c.l.b16 %v246
    %v1344 = vunpack.c.h.b16 %v246
    %v1345 = vunpack.c.l.b16 %v247
    %v1346 = vunpack.c.h.b16 %v247
    %v1347 = vunpack.c.l.b16 %v248
    %v1348 = vunpack.c.h.b16 %v248
    %v1349 = vunpack.c.l.b16 %v249
    %v1350 = vunpack.c.h.b16 %v249
    %v1351 = vunpack.c.l.b16 %v250
    %v1352 = vunpack.c.h.b16 %v250
    %v1353 = vunpack.c.l.b16 %v251
    %v1354 = vunpack.c.h.b16 %v251
    %v1355 = vunpack.c.l.b16 %v252
    %v1356 = vunpack.c.h.b16 %v252
    %v1357 = vunpack.c.l.b16 %v253
    %v1358 = vunpack.c.h.b16 %v253
    %v1359 = vunpack.c.l.b16 %v254
    %v1360 = vunpack.c.h.b16 %v254
    %v1361 = vunpack.c.l.b16 %v255
    %v1362 = vunpack.c.h.b16 %v255
    %v1363 = vunpack.c.l.b16 %v256
    %v1364 = vunpack.c.h.b16 %v256
    %v1365 = vunpack.c.l.b16 %v257
    %v1366 = vunpack.c.h.b16 %v257
    %v1367 = vunpack.c.l.b16 %v258
    %v1368 = vunpack.c.h.b16 %v258
    %v1369 = vunpack.c.l.b16 %v259
    %v1370 = vunpack.c.h.b16 %v259
    %v1371 = vunpack.c.l.b16 %v260
    %v1372 = vunpack.c.h.b16 %v260
    %v1373 = vunpack.c.l.b16 %v261
    %v1374 = vunpack.c.h.b16 %v261
    %v1375 = vunpack.c.l.b16 %v262
    %v1376 = vunpack.c.h.b16 %v262
    %v1377 = vunpack.c.l.b16 %v263
    %v1378 = vunpack.c.h.b16 %v263
    %v1379 = vunpack.c.l.b16 %v264
    %v1380 = vunpack.c.h.b16 %v264
    %v1381 = vunpack.c.l.b16 %v265
    %v1382 = vunpack.c.h.b16 %v265
    %v1383 = vunpack.c.l.b16 %v266
    %v1384 = vunpack.c.h.b16 %v266
    %v1385 = vunpack.c.l.b16 %v267
    %v1386 = vunpack.c.h.b16 %v267
    %v1387 = vunpack.c.l.b16 %v268
    %v1388 = vunpack.c.h.b16 %v268
    %v1389 = vunpack.c.l.b16 %v269
    %v1390 = vunpack.c.h.b16 %v269
    %v1391 = vunpack.c.l.b16 %v270
    %v1392 = vunpack.c.h.b16 %v270
    %v1393 = vunpack.c.l.b16 %v271
    %v1394 = vunpack.c.h.b16 %v271
    %v1395 = vunpack.c.l.b16 %v272
    %v1396 = vunpack.c.h.b16 %v272
    %v1397 = vunpack.c.l.b16 %v273
    %v1398 = vunpack.c.h.b16 %v273
    %v1399 = vunpack.c.l.b16 %v274
    %v1400 = vunpack.c.h.b16 %v274
    %v1401 = vunpack.c.l.b16 %v275
    %v1402 = vunpack.c.h.b16 %v275
    %v1403 = vunpack.c.l.b16 %v276
    %v1404 = vunpack.c.h.b16 %v276
    %v1405 = vunpack.c.l.b16 %v277
    %v1406 = vunpack.c.h.b16 %v277
    %v1407 = vunpack.c.l.b16 %v278
    %v1408 = vunpack.c.h.b16 %v278
    %v1409 = vunpack.c.l.b16 %v279
    %v1410 = vunpack.c.h.b16 %v279
    %v1411 = vunpack.c.l.b16 %v280
    %v1412 = vunpack.c.h.b16 %v280
    %v1413 = vunpack.c.l.b16 %v281
    %v1414 = vunpack.c.h.b16 %v281
    %v1415 = vunpack.c.l.b16 %v282
    %v1416 = vunpack.c.h.b16 %v282
    %v1417 = vunpack.c.l.b16 %v283
    %v1418 = vunpack.c.h.b16 %v283
    %v1419 = vunpack.c.l.b16 %v284
    %v1420 = vunpack.c.h.b16 %v284
    %v1421 = vunpack.c.l.b16 %v285
    %v1422 = vunpack.c.h.b16 %v285
    %v1423 = vunpack.c.l.b16 %v286
    %v1424 = vunpack.c.h.b16 %v286
    %v1425 = vunpack.c.l.b16 %v287
    %v1426 = vunpack.c.h.b16 %v287
    %v1427 = vunpack.c.l.b16 %v288
    %v1428 = vunpack.c.h.b16 %v288
    %v1429 = vunpack.c.l.b16 %v289
    %v1430 = vunpack.c.h.b16 %v289
    %v1431 = vunpack.c.l.b16 %v290
    %v1432 = vunpack.c.h.b16 %v290
    %v1433 = vunpack.c.l.b16 %v291
    %v1434 = vunpack.c.h.b16 %v291
    %v1435 = vunpack.c.l.b16 %v292
    %v1436 = vunpack.c.h.b16 %v292
    %v1437 = vunpack.c.l.b16 %v293
    %v1438 = vunpack.c.h.b16 %v293
    %v1439 = vunpack.c.l.b16 %v294
    %v1440 = vunpack.c.h.b16 %v294
    %v1441 = vunpack.c.l.b16 %v295
    %v1442 = vunpack.c.h.b16 %v295
    %v1443 = vunpack.c.l.b16 %v296
    %v1444 = vunpack.c.h.b16 %v296
    %v1445 = vunpack.c.l.b16 %v297
    %v1446 = vunpack.c.h.b16 %v297
    %v1447 = vunpack.c.l.b16 %v298
    %v1448 = vunpack.c.h.b16 %v298
    %v1449 = vunpack.c.l.b16 %v299
    %v1450 = vunpack.c.h.b16 %v299
    %v1451 = vunpack.c.l.b16 %v300
    %v1452 = vunpack.c.h.b16 %v300
    %v1453 = vunpack.c.l.b16 %v301
    %v1454 = vunpack.c.h.b16 %v301
    %v1455 = vunpack.c.l.b16 %v302
    %v1456 = vunpack.c.h.b16 %v302
    %v1457 = vunpack.c.l.b16 %v303
    %v1458 = vunpack.c.h.b16 %v303
    %v1459 = vunpack.c.l.b16 %v304
    %v1460 = vunpack.c.h.b16 %v304
    %v1461 = vunpack.c.l.b16 %v305
    %v1462 = vunpack.c.h.b16 %v305
    %v1463 = vunpack.c.l.b16 %v306
    %v1464 = vunpack.c.h.b16 %v306
    %v1465 = vunpack.c.l.b16 %v307
    %v1466 = vunpack.c.h.b16 %v307
    %v1467 = vunpack.c.l.b16 %v308
    %v1468 = vunpack.c.h.b16 %v308
    %v1469 = vunpack.c.l.b16 %v309
    %v1470 = vunpack.c.h.b16 %v309
    %v1471 = vunpack.c.l.b16 %v310
    %v1472 = vunpack.c.h.b16 %v310
    %v1473 = vunpack.c.l.b16 %v311
    %v1474 = vunpack.c.h.b16 %v311
    %v1475 = vunpack.c.l.b16 %v312
    %v1476 = vunpack.c.h.b16 %v312
    %v1477 = vunpack.c.l.b16 %v313
    %v1478 = vunpack.c.h.b16 %v313
    %v1479 = vunpack.c.l.b16 %v314
    %v1480 = vunpack.c.h.b16 %v314
    %v1481 = vunpack.c.l.b16 %v315
    %v1482 = vunpack.c.h.b16 %v315
    %v1483 = vunpack.c.l.b16 %v316
    %v1484 = vunpack.c.h.b16 %v316
    %v1485 = vunpack.c.l.b16 %v317
    %v1486 = vunpack.c.h.b16 %v317
    %v1487 = vunpack.c.l.b16 %v318
    %v1488 = vunpack.c.h.b16 %v318
    %v1489 = vunpack.c.l.b16 %v319
    %v1490 = vunpack.c.h.b16 %v319
    %v1491 = vunpack.c.l.b16 %v320
    %v1492 = vunpack.c.h.b16 %v320
    %v1493 = vunpack.c.l.b16 %v321
    %v1494 = vunpack.c.h.b16 %v321
    %v1495 = vunpack.c.l.b16 %v322
    %v1496 = vunpack.c.h.b16 %v322
    %v1497 = vunpack.c.l.b16 %v323
    %v1498 = vunpack.c.h.b16 %v323
    %v1499 = vunpack.c.l.b16 %v324
    %v1500 = vunpack.c.h.b16 %v324
    %v1501 = vunpack.c.l.b16 %v325
    %v1502 = vunpack.c.h.b16 %v325
    %v1503 = vunpack.c.l.b16 %v326
    %v1504 = vunpack.c.h.b16 %v326
    %v1505 = vunpack.c.l.b16 %v327
    %v1506 = vunpack.c.h.b16 %v327
    %v1507 = vunpack.c.l.b16 %v328
    %v1508 = vunpack.c.h.b16 %v328
    %v1509 = vunpack.c.l.b16 %v329
    %v1510 = vunpack.c.h.b16 %v329
    %v1511 = vunpack.c.l.b16 %v330
    %v1512 = vunpack.c.h.b16 %v330
    %v1513 = vunpack.c.l.b16 %v331
    %v1514 = vunpack.c.h.b16 %v331
    %v1515 = vunpack.c.l.b16 %v332
    %v1516 = vunpack.c.h.b16 %v332
    %v1517 = vunpack.c.l.b16 %v333
    %v1518 = vunpack.c.h.b16 %v333
    %v1519 = vunpack.c.l.b16 %v334
    %v1520 = vunpack.c.h.b16 %v334
    %v1521 = vunpack.c.l.b16 %v335
    %v1522 = vunpack.c.h.b16 %v335
    %v1523 = vunpack.c.l.b16 %v336
    %v1524 = vunpack.c.h.b16 %v336
    %v1525 = vunpack.c.l.b16 %v337
    %v1526 = vunpack.c.h.b16 %v337
    %v1527 = vunpack.c.l.b16 %v338
    %v1528 = vunpack.c.h.b16 %v338
    %v1529 = vunpack.c.l.b16 %v339
    %v1530 = vunpack.c.h.b16 %v339
    %v1531 = vunpack.c.l.b16 %v340
    %v1532 = vunpack.c.h.b16 %v340
    %v1533 = vunpack.c.l.b16 %v341
    %v1534 = vunpack.c.h.b16 %v341
    %v1535 = vunpack.c.l.b16 %v342
    %v1536 = vunpack.c.h.b16 %v342
    %v1537 = vunpack.c.l.b16 %v343
    %v1538 = vunpack.c.h.b16 %v343
    %v1539 = vunpack.c.l.b16 %v344
    %v1540 = vunpack.c.h.b16 %v344
    %v1541 = vunpack.c.l.b16 %v345
    %v1542 = vunpack.c.h.b16 %v345
    %v1543 = vunpack.c.l.b16 %v346
    %v1544 = vunpack.c.h.b16 %v346
    %v1545 = vunpack.c.l.b16 %v347
    %v1546 = vunpack.c.h.b16 %v347
    %v1547 = vunpack.c.l.b16 %v348
    %v1548 = vunpack.c.h.b16 %v348
    %v1549 = vunpack.c.l.b16 %v349
    %v1550 = vunpack.c.h.b16 %v349
    %v1551 = vunpack.c.l.b16 %v350
    %v1552 = vunpack.c.h.b16 %v350
    %v1553 = vunpack.c.l.b16 %v351
    %v1554 = vunpack.c.h.b16 %v351
    %v1555 = vunpack.c.l.b16 %v352
    %v1556 = vunpack.c.h.b16 %v352
    %v1557 = vunpack.c.l.b16 %v353
    %v1558 = vunpack.c.h.b16 %v353
    %v1559 = vunpack.c.l.b16 %v354
    %v1560 = vunpack.c.h.b16 %v354
    %v1561 = vunpack.c.l.b16 %v355
    %v1562 = vunpack.c.h.b16 %v355
    %v1563 = vunpack.c.l.b16 %v356
    %v1564 = vunpack.c.h.b16 %v356
    %v1565 = vunpack.c.l.b16 %v357
    %v1566 = vunpack.c.h.b16 %v357
    %v1567 = vunpack.c.l.b16 %v358
    %v1568 = vunpack.c.h.b16 %v358
    %v1569 = vunpack.c.l.b16 %v359
    %v1570 = vunpack.c.h.b16 %v359
    %v1571 = vunpack.c.l.b16 %v360
    %v1572 = vunpack.c.h.b16 %v360
    %v1573 = vunpack.c.l.b16 %v361
    %v1574 = vunpack.c.h.b16 %v361
    %v1575 = vunpack.c.l.b16 %v362
    %v1576 = vunpack.c.h.b16 %v362
    %v1577 = vunpack.c.l.b16 %v363
    %v1578 = vunpack.c.h.b16 %v363
    %v1579 = vunpack.c.l.b16 %v364
    %v1580 = vunpack.c.h.b16 %v364
    %v1581 = vunpack.c.l.b16 %v365
    %v1582 = vunpack.c.h.b16 %v365
    %v1583 = vunpack.c.l.b16 %v366
    %v1584 = vunpack.c.h.b16 %v366
    %v1585 = vunpack.c.l.b16 %v367
    %v1586 = vunpack.c.h.b16 %v367
    %v1587 = vunpack.c.l.b16 %v368
    %v1588 = vunpack.c.h.b16 %v368
    %v1589 = vunpack.c.l.b16 %v369
    %v1590 = vunpack.c.h.b16 %v369
    %v1591 = vunpack.c.l.b16 %v370
    %v1592 = vunpack.c.h.b16 %v370
    %v1593 = vunpack.c.l.b16 %v371
    %v1594 = vunpack.c.h.b16 %v371
    %v1595 = vunpack.c.l.b16 %v372
    %v1596 = vunpack.c.h.b16 %v372
    %v1597 = vunpack.c.l.b16 %v373
    %v1598 = vunpack.c.h.b16 %v373
    %v1599 = vunpack.c.l.b16 %v374
    %v1600 = vunpack.c.h.b16 %v374
    %v1601 = vunpack.c.l.b16 %v375
    %v1602 = vunpack.c.h.b16 %v375
    %v1603 = vunpack.c.l.b16 %v376
    %v1604 = vunpack.c.h.b16 %v376
    %v1605 = vunpack.c.l.b16 %v377
    %v1606 = vunpack.c.h.b16 %v377
    %v1607 = vunpack.c.l.b16 %v378
    %v1608 = vunpack.c.h.b16 %v378
    %v1609 = vunpack.c.l.b16 %v379
    %v1610 = vunpack.c.h.b16 %v379
    %v1611 = vunpack.c.l.b16 %v380
    %v1612 = vunpack.c.h.b16 %v380
    %v1613 = vunpack.c.l.b16 %v381
    %v1614 = vunpack.c.h.b16 %v381
    %v1615 = vunpack.c.l.b16 %v382
    %v1616 = vunpack.c.h.b16 %v382
    %v1617 = vunpack.c.l.b16 %v383
    %v1618 = vunpack.c.h.b16 %v383
    %v1619 = vunpack.c.l.b16 %v384
    %v1620 = vunpack.c.h.b16 %v384
    %v1621 = vunpack.c.l.b16 %v385
    %v1622 = vunpack.c.h.b16 %v385
    %v1623 = vunpack.c.l.b16 %v386
    %v1624 = vunpack.c.h.b16 %v386
    %v1625 = vunpack.c.l.b16 %v387
    %v1626 = vunpack.c.h.b16 %v387
    %v1627 = vunpack.c.l.b16 %v388
    %v1628 = vunpack.c.h.b16 %v388
    %v1629 = vunpack.c.l.b16 %v389
    %v1630 = vunpack.c.h.b16 %v389
    %v1631 = vunpack.c.l.b16 %v390
    %v1632 = vunpack.c.h.b16 %v390
    %v1633 = vunpack.c.l.b16 %v391
    %v1634 = vunpack.c.h.b16 %v391
    %v1635 = vunpack.c.l.b16 %v392
    %v1636 = vunpack.c.h.b16 %v392
    %v1637 = vunpack.c.l.b16 %v393
    %v1638 = vunpack.c.h.b16 %v393
    %v1639 = vunpack.c.l.b16 %v394
    %v1640 = vunpack.c.h.b16 %v394
    %v1641 = vunpack.c.l.b16 %v395
    %v1642 = vunpack.c.h.b16 %v395
    %v1643 = vunpack.c.l.b16 %v396
    %v1644 = vunpack.c.h.b16 %v396
    %v1645 = vunpack.c.l.b16 %v397
    %v1646 = vunpack.c.h.b16 %v397
    %v1647 = vunpack.c.l.b16 %v398
    %v1648 = vunpack.c.h.b16 %v398
    %v1649 = vunpack.c.l.b16 %v399
    %v1650 = vunpack.c.h.b16 %v399
    %v1651 = vunpack.c.l.b16 %v400
    %v1652 = vunpack.c.h.b16 %v400
    %v1653 = vunpack.c.l.b16 %v401
    %v1654 = vunpack.c.h.b16 %v401
    %v1655 = vunpack.c.l.b16 %v402
    %v1656 = vunpack.c.h.b16 %v402
    %v1657 = vunpack.c.l.b16 %v403
    %v1658 = vunpack.c.h.b16 %v403
    %v1659 = vunpack.c.l.b16 %v404
    %v1660 = vunpack.c.h.b16 %v404
    %v1661 = vunpack.c.l.b16 %v405
    %v1662 = vunpack.c.h.b16 %v405
    %v1663 = vunpack.c.l.b16 %v406
    %v1664 = vunpack.c.h.b16 %v406
    %v1665 = vunpack.c.l.b16 %v407
    %v1666 = vunpack.c.h.b16 %v407
    %v1667 = vunpack.c.l.b16 %v408
    %v1668 = vunpack.c.h.b16 %v408
    %v1669 = vunpack.c.l.b16 %v409
    %v1670 = vunpack.c.h.b16 %v409
    %v1671 = vunpack.c.l.b16 %v410
    %v1672 = vunpack.c.h.b16 %v410
    %v1673 = vunpack.c.l.b16 %v411
    %v1674 = vunpack.c.h.b16 %v411
    %v1675 = vunpack.c.l.b16 %v412
    %v1676 = vunpack.c.h.b16 %v412
    %v1677 = vunpack.c.l.b16 %v413
    %v1678 = vunpack.c.h.b16 %v413
    %v1679 = vunpack.c.l.b16 %v414
    %v1680 = vunpack.c.h.b16 %v414
    %v1681 = vunpack.c.l.b16 %v415
    %v1682 = vunpack.c.h.b16 %v415
    %v1683 = vunpack.c.l.b16 %v416
    %v1684 = vunpack.c.h.b16 %v416
    %v1685 = vunpack.c.l.b16 %v417
    %v1686 = vunpack.c.h.b16 %v417
    %v1687 = vunpack.c.l.b16 %v418
    %v1688 = vunpack.c.h.b16 %v418
    %v1689 = vunpack.c.l.b16 %v419
    %v1690 = vunpack.c.h.b16 %v419
    %v1691 = vunpack.c.l.b16 %v420
    %v1692 = vunpack.c.h.b16 %v420
    %v1693 = vunpack.c.l.b16 %v421
    %v1694 = vunpack.c.h.b16 %v421
    %v1695 = vunpack.c.l.b16 %v422
    %v1696 = vunpack.c.h.b16 %v422
    %v1697 = vunpack.c.l.b16 %v423
    %v1698 = vunpack.c.h.b16 %v423
    %v1699 = vunpack.c.l.b16 %v424
    %v1700 = vunpack.c.h.b16 %v424
    %v1701 = vunpack.c.l.b16 %v425
    %v1702 = vunpack.c.h.b16 %v425
    %v1703 = vunpack.c.l.b16 %v426
    %v1704 = vunpack.c.h.b16 %v426
    %v1705 = vunpack.c.l.b16 %v427
    %v1706 = vunpack.c.h.b16 %v427
    %v1707 = vunpack.c.l.b16 %v428
    %v1708 = vunpack.c.h.b16 %v428
    %v1709 = vunpack.c.l.b16 %v429
    %v1710 = vunpack.c.h.b16 %v429
    %v1711 = vunpack.c.l.b16 %v430
    %v1712 = vunpack.c.h.b16 %v430
    %v1713 = vunpack.c.l.b16 %v431
    %v1714 = vunpack.c.h.b16 %v431
    %v1715 = vunpack.c.l.b16 %v432
    %v1716 = vunpack.c.h.b16 %v432
    %v1717 = vunpack.c.l.b16 %v433
    %v1718 = vunpack.c.h.b16 %v433
    %v1719 = vunpack.c.l.b16 %v434
    %v1720 = vunpack.c.h.b16 %v434
    %v1721 = vunpack.c.l.b16 %v435
    %v1722 = vunpack.c.h.b16 %v435
    %v1723 = vunpack.c.l.b16 %v436
    %v1724 = vunpack.c.h.b16 %v436
    %v1725 = vunpack.c.l.b16 %v437
    %v1726 = vunpack.c.h.b16 %v437
    %v1727 = vunpack.c.l.b16 %v438
    %v1728 = vunpack.c.h.b16 %v438
    %v1729 = vunpack.c.l.b16 %v439
    %v1730 = vunpack.c.h.b16 %v439
    %v1731 = vunpack.c.l.b16 %v440
    %v1732 = vunpack.c.h.b16 %v440
    %v1733 = vunpack.c.l.b16 %v441
    %v1734 = vunpack.c.h.b16 %v441
    %v1735 = vunpack.c.l.b16 %v442
    %v1736 = vunpack.c.h.b16 %v442
    %v1737 = vunpack.c.l.b16 %v443
    %v1738 = vunpack.c.h.b16 %v443
    %v1739 = vunpack.c.l.b16 %v444
    %v1740 = vunpack.c.h.b16 %v444
    %v1741 = vunpack.c.l.b16 %v445
    %v1742 = vunpack.c.h.b16 %v445
    %v1743 = vunpack.c.l.b16 %v446
    %v1744 = vunpack.c.h.b16 %v446
    %v1745 = vunpack.c.l.b16 %v447
    %v1746 = vunpack.c.h.b16 %v447
    %v1747 = vunpack.c.l.b16 %v448
    %v1748 = vunpack.c.h.b16 %v448
    %v1749 = vunpack.c.l.b16 %v449
    %v1750 = vunpack.c.h.b16 %v449
    %v1751 = vunpack.c.l.b16 %v450
    %v1752 = vunpack.c.h.b16 %v450
    %v1753 = vunpack.c.l.b16 %v451
    %v1754 = vunpack.c.h.b16 %v451
    %v1755 = vunpack.c.l.b16 %v452
    %v1756 = vunpack.c.h.b16 %v452
    %v1757 = vunpack.c.l.b16 %v453
    %v1758 = vunpack.c.h.b16 %v453
    %v1759 = vunpack.c.l.b16 %v454
    %v1760 = vunpack.c.h.b16 %v454
    %v1761 = vunpack.c.l.b16 %v455
    %v1762 = vunpack.c.h.b16 %v455
    %v1763 = vunpack.c.l.b16 %v456
    %v1764 = vunpack.c.h.b16 %v456
    %v1765 = vunpack.c.l.b16 %v457
    %v1766 = vunpack.c.h.b16 %v457
    %v1767 = vunpack.c.l.b16 %v458
    %v1768 = vunpack.c.h.b16 %v458
    %v1769 = vunpack.c.l.b16 %v459
    %v1770 = vunpack.c.h.b16 %v459
    %v1771 = vunpack.c.l.b16 %v460
    %v1772 = vunpack.c.h.b16 %v460
    %v1773 = vunpack.c.l.b16 %v461
    %v1774 = vunpack.c.h.b16 %v461
    %v1775 = vunpack.c.l.b16 %v462
    %v1776 = vunpack.c.h.b16 %v462
    %v1777 = vunpack.c.l.b16 %v463
    %v1778 = vunpack.c.h.b16 %v463
    %v1779 = vunpack.c.l.b16 %v464
    %v1780 = vunpack.c.h.b16 %v464
    %v1781 = vunpack.c.l.b16 %v465
    %v1782 = vunpack.c.h.b16 %v465
    %v1783 = vunpack.c.l.b16 %v466
    %v1784 = vunpack.c.h.b16 %v466
    %v1785 = vunpack.c.l.b16 %v467
    %v1786 = vunpack.c.h.b16 %v467
    %v1787 = vunpack.c.l.b16 %v468
    %v1788 = vunpack.c.h.b16 %v468
    %v1789 = vunpack.c.l.b16 %v469
    %v1790 = vunpack.c.h.b16 %v469
    %v1791 = vunpack.c.l.b16 %v470
    %v1792 = vunpack.c.h.b16 %v470
    %v1793 = vunpack.c.l.b16 %v471
    %v1794 = vunpack.c.h.b16 %v471
    %v1795 = vunpack.c.l.b16 %v472
    %v1796 = vunpack.c.h.b16 %v472
    %v1797 = vunpack.c.l.b16 %v473
    %v1798 = vunpack.c.h.b16 %v473
    %v1799 = vunpack.c.l.b16 %v474
    %v1800 = vunpack.c.h.b16 %v474
    %v1801 = vunpack.c.l.b16 %v475
    %v1802 = vunpack.c.h.b16 %v475
    %v1803 = vunpack.c.l.b16 %v476
    %v1804 = vunpack.c.h.b16 %v476
    %v1805 = vunpack.c.l.b16 %v477
    %v1806 = vunpack.c.h.b16 %v477
    %v1807 = vunpack.c.l.b16 %v478
    %v1808 = vunpack.c.h.b16 %v478
    %v1809 = vunpack.c.l.b16 %v479
    %v1810 = vunpack.c.h.b16 %v479
    %v1811 = vunpack.c.l.b16 %v480
    %v1812 = vunpack.c.h.b16 %v480
    %v1813 = vunpack.c.l.b16 %v481
    %v1814 = vunpack.c.h.b16 %v481
    %v1815 = vunpack.c.l.b16 %v482
    %v1816 = vunpack.c.h.b16 %v482
    %v1817 = vunpack.c.l.b16 %v483
    %v1818 = vunpack.c.h.b16 %v483
    %v1819 = vunpack.c.l.b16 %v484
    %v1820 = vunpack.c.h.b16 %v484
    %v1821 = vunpack.c.l.b16 %v485
    %v1822 = vunpack.c.h.b16 %v485
    %v1823 = vunpack.c.l.b16 %v486
    %v1824 = vunpack.c.h.b16 %v486
    %v1825 = vunpack.c.l.b16 %v487
    %v1826 = vunpack.c.h.b16 %v487
    %v1827 = vunpack.c.l.b16 %v488
    %v1828 = vunpack.c.h.b16 %v488
    %v1829 = vunpack.c.l.b16 %v489
    %v1830 = vunpack.c.h.b16 %v489
    %v1831 = vunpack.c.l.b16 %v490
    %v1832 = vunpack.c.h.b16 %v490
    %v1833 = vunpack.c.l.b16 %v491
    %v1834 = vunpack.c.h.b16 %v491
    %v1835 = vunpack.c.l.b16 %v492
    %v1836 = vunpack.c.h.b16 %v492
    %v1837 = vunpack.c.l.b16 %v493
    %v1838 = vunpack.c.h.b16 %v493
    %v1839 = vunpack.c.l.b16 %v494
    %v1840 = vunpack.c.h.b16 %v494
    %v1841 = vunpack.c.l.b16 %v495
    %v1842 = vunpack.c.h.b16 %v495
    %v1843 = vunpack.c.l.b16 %v496
    %v1844 = vunpack.c.h.b16 %v496
    %v1845 = vunpack.c.l.b16 %v497
    %v1846 = vunpack.c.h.b16 %v497
    %v1847 = vunpack.c.l.b16 %v498
    %v1848 = vunpack.c.h.b16 %v498
    %v1849 = vunpack.c.l.b16 %v499
    %v1850 = vunpack.c.h.b16 %v499
    %v1851 = vunpack.c.l.b16 %v500
    %v1852 = vunpack.c.h.b16 %v500
    %v1853 = vunpack.c.l.b16 %v501
    %v1854 = vunpack.c.h.b16 %v501
    %v1855 = vunpack.c.l.b16 %v502
    %v1856 = vunpack.c.h.b16 %v502
    %v1857 = vunpack.c.l.b16 %v503
    %v1858 = vunpack.c.h.b16 %v503
    %v1859 = vunpack.c.l.b16 %v504
    %v1860 = vunpack.c.h.b16 %v504
    %v1861 = vunpack.c.l.b16 %v505
    %v1862 = vunpack.c.h.b16 %v505
    %v1863 = vunpack.c.l.b16 %v506
    %v1864 = vunpack.c.h.b16 %v506
    %v1865 = vunpack.c.l.b16 %v507
    %v1866 = vunpack.c.h.b16 %v507
    %v1867 = vunpack.c.l.b16 %v508
    %v1868 = vunpack.c.h.b16 %v508
    %v1869 = vunpack.c.l.b16 %v509
    %v1870 = vunpack.c.h.b16 %v509
    %v1871 = vunpack.c.l.b16 %v510
    %v1872 = vunpack.c.h.b16 %v510
    %v1873 = vunpack.c.l.b16 %v511
    %v1874 = vunpack.c.h.b16 %v511
    %v1875 = vunpack.c.l.b16 %v512
    %v1876 = vunpack.c.h.b16 %v512
    %v1877 = vunpack.c.l.b16 %v513
    %v1878 = vunpack.c.h.b16 %v513
    %v1879 = vunpack.c.l.b16 %v514
    %v1880 = vunpack.c.h.b16 %v514
    %v1881 = vunpack.c.l.b16 %v515
    %v1882 = vunpack.c.h.b16 %v515
    %v1883 = vunpack.c.l.b16 %v516
    %v1884 = vunpack.c.h.b16 %v516
    %v1885 = vunpack.c.l.b16 %v517
    %v1886 = vunpack.c.h.b16 %v517
    %v1887 = vunpack.c.l.b16 %v518
    %v1888 = vunpack.c.h.b16 %v518
    %v1889 = vunpack.c.l.b16 %v519
    %v1890 = vunpack.c.h.b16 %v519
    %v1891 = vunpack.c.l.b16 %v520
    %v1892 = vunpack.c.h.b16 %v520
    %v1893 = vunpack.c.l.b16 %v521
    %v1894 = vunpack.c.h.b16 %v521
    %v1895 = vunpack.c.l.b16 %v522
    %v1896 = vunpack.c.h.b16 %v522
    %v1897 = vunpack.c.l.b16 %v523
    %v1898 = vunpack.c.h.b16 %v523
    %v1899 = vunpack.c.l.b16 %v524
    %v1900 = vunpack.c.h.b16 %v524
    %v1901 = vunpack.c.l.b16 %v525
    %v1902 = vunpack.c.h.b16 %v525
    %v1903 = vunpack.c.l.b16 %v526
    %v1904 = vunpack.c.h.b16 %v526
    %v1905 = vunpack.c.l.b16 %v527
    %v1906 = vunpack.c.h.b16 %v527
    %v1907 = vunpack.c.l.b16 %v528
    %v1908 = vunpack.c.h.b16 %v528
    %v1909 = vunpack.c.l.b16 %v529
    %v1910 = vunpack.c.h.b16 %v529
    %v1911 = vunpack.c.l.b16 %v530
    %v1912 = vunpack.c.h.b16 %v530
    %v1913 = vunpack.c.l.b16 %v531
    %v1914 = vunpack.c.h.b16 %v531
    %v1915 = vunpack.c.l.b16 %v532
    %v1916 = vunpack.c.h.b16 %v532
    %v1917 = vunpack.c.l.b16 %v533
    %v1918 = vunpack.c.h.b16 %v533
    %v1919 = vunpack.c.l.b16 %v534
    %v1920 = vunpack.c.h.b16 %v534
    %v1921 = vunpack.c.l.b16 %v535
    %v1922 = vunpack.c.h.b16 %v535
    %v1923 = vunpack.c.l.b16 %v536
    %v1924 = vunpack.c.h.b16 %v536
    %v1925 = vunpack.c.l.b16 %v537
    %v1926 = vunpack.c.h.b16 %v537
    %v1927 = vunpack.c.l.b16 %v538
    %v1928 = vunpack.c.h.b16 %v538
    %v1929 = vunpack.c.l.b16 %v539
    %v1930 = vunpack.c.h.b16 %v539
    %v1931 = vunpack.c.l.b16 %v540
    %v1932 = vunpack.c.h.b16 %v540
    %v1933 = vunpack.c.l.b16 %v541
    %v1934 = vunpack.c.h.b16 %v541
    %v1935 = vunpack.c.l.b16 %v542
    %v1936 = vunpack.c.h.b16 %v542
    %v1937 = vunpack.c.l.b16 %v543
    %v1938 = vunpack.c.h.b16 %v543
    %v1939 = vunpack.c.l.b16 %v544
    %v1940 = vunpack.c.h.b16 %v544
    %v1941 = vunpack.c.l.b16 %v545
    %v1942 = vunpack.c.h.b16 %v545
    %v1943 = vunpack.c.l.b16 %v546
    %v1944 = vunpack.c.h.b16 %v546
    %v1945 = vunpack.c.l.b16 %v547
    %v1946 = vunpack.c.h.b16 %v547
    %v1947 = vunpack.c.l.b16 %v548
    %v1948 = vunpack.c.h.b16 %v548
    %v1949 = vunpack.c.l.b16 %v549
    %v1950 = vunpack.c.h.b16 %v549
    %v1951 = vunpack.c.l.b16 %v550
    %v1952 = vunpack.c.h.b16 %v550
    %v1953 = vunpack.c.l.b16 %v551
    %v1954 = vunpack.c.h.b16 %v551
    %v1955 = vunpack.c.l.b16 %v552
    %v1956 = vunpack.c.h.b16 %v552
    %v1957 = vunpack.c.l.b16 %v553
    %v1958 = vunpack.c.h.b16 %v553
    %v1959 = vunpack.c.l.b16 %v554
    %v1960 = vunpack.c.h.b16 %v554
    %v1961 = vunpack.c.l.b16 %v555
    %v1962 = vunpack.c.h.b16 %v555
    %v1963 = vunpack.c.l.b16 %v556
    %v1964 = vunpack.c.h.b16 %v556
    %v1965 = vunpack.c.l.b16 %v557
    %v1966 = vunpack.c.h.b16 %v557
    %v1967 = vunpack.c.l.b16 %v558
    %v1968 = vunpack.c.h.b16 %v558
    %v1969 = vunpack.c.l.b16 %v559
    %v1970 = vunpack.c.h.b16 %v559
    %v1971 = vunpack.c.l.b16 %v560
    %v1972 = vunpack.c.h.b16 %v560
    %v1973 = vunpack.c.l.b16 %v561
    %v1974 = vunpack.c.h.b16 %v561
    %v1975 = vunpack.c.l.b16 %v562
    %v1976 = vunpack.c.h.b16 %v562
    %v1977 = vunpack.c.l.b16 %v563
    %v1978 = vunpack.c.h.b16 %v563
    %v1979 = vunpack.c.l.b16 %v564
    %v1980 = vunpack.c.h.b16 %v564
    %v1981 = vunpack.c.l.b16 %v565
    %v1982 = vunpack.c.h.b16 %v565
    %v1983 = vunpack.c.l.b16 %v566
    %v1984 = vunpack.c.h.b16 %v566
    %v1985 = vunpack.c.l.b16 %v567
    %v1986 = vunpack.c.h.b16 %v567
    %v1987 = vunpack.c.l.b16 %v568
    %v1988 = vunpack.c.h.b16 %v568
    %v1989 = vunpack.c.l.b16 %v569
    %v1990 = vunpack.c.h.b16 %v569
    %v1991 = vunpack.c.l.b16 %v570
    %v1992 = vunpack.c.h.b16 %v570
    %v1993 = vunpack.c.l.b16 %v571
    %v1994 = vunpack.c.h.b16 %v571
    %v1995 = vunpack.c.l.b16 %v572
    %v1996 = vunpack.c.h.b16 %v572
    %v1997 = vunpack.c.l.b16 %v573
    %v1998 = vunpack.c.h.b16 %v573
    %v1999 = vunpack.c.l.b16 %v574
    %v2000 = vunpack.c.h.b16 %v574
    %v2001 = vunpack.c.l.b16 %v575
    %v2002 = vunpack.c.h.b16 %v575
    %v2003 = vunpack.c.l.b16 %v576
    %v2004 = vunpack.c.h.b16 %v576
    %v2005 = vunpack.c.l.b16 %v577
    %v2006 = vunpack.c.h.b16 %v577
    %v2007 = vunpack.c.l.b16 %v578
    %v2008 = vunpack.c.h.b16 %v578
    %v2009 = vunpack.c.l.b16 %v579
    %v2010 = vunpack.c.h.b16 %v579
    %v2011 = vunpack.c.l.b16 %v580
    %v2012 = vunpack.c.h.b16 %v580
    %v2013 = vunpack.c.l.b16 %v581
    %v2014 = vunpack.c.h.b16 %v581
    %v2015 = vunpack.c.l.b16 %v582
    %v2016 = vunpack.c.h.b16 %v582
    %v2017 = vunpack.c.l.b16 %v583
    %v2018 = vunpack.c.h.b16 %v583
    %v2019 = vunpack.c.l.b16 %v584
    %v2020 = vunpack.c.h.b16 %v584
    %v2021 = vunpack.c.l.b16 %v585
    %v2022 = vunpack.c.h.b16 %v585
    %v2023 = vunpack.c.l.b16 %v586
    %v2024 = vunpack.c.h.b16 %v586
    %v2025 = vunpack.c.l.b16 %v587
    %v2026 = vunpack.c.h.b16 %v587
    %v2027 = vunpack.c.l.b16 %v588
    %v2028 = vunpack.c.h.b16 %v588
    %v2029 = vunpack.c.l.b16 %v589
    %v2030 = vunpack.c.h.b16 %v589
    %v2031 = vunpack.c.l.b16 %v590
    %v2032 = vunpack.c.h.b16 %v590
    %v2033 = vunpack.c.l.b16 %v591
    %v2034 = vunpack.c.h.b16 %v591
    %v2035 = vunpack.c.l.b16 %v592
    %v2036 = vunpack.c.h.b16 %v592
    %v2037 = vunpack.c.l.b16 %v593
    %v2038 = vunpack.c.h.b16 %v593
    %v2039 = vunpack.c.l.b16 %v594
    %v2040 = vunpack.c.h.b16 %v594
    %v2041 = vunpack.c.l.b16 %v595
    %v2042 = vunpack.c.h.b16 %v595
    %v2043 = vunpack.c.l.b16 %v596
    %v2044 = vunpack.c.h.b16 %v596
    %v2045 = vunpack.c.l.b16 %v597
    %v2046 = vunpack.c.h.b16 %v597
    %v2047 = vunpack.c.l.b16 %v598
    %v2048 = vunpack.c.h.b16 %v598
    %v2049 = vunpack.c.l.b16 %v599
    %v2050 = vunpack.c.h.b16 %v599
    %v2051 = vunpack.c.l.b16 %v600
    %v2052 = vunpack.c.h.b16 %v600
    %v2053 = vunpack.c.l.b16 %v601
    %v2054 = vunpack.c.h.b16 %v601
    %v2055 = vunpack.c.l.b16 %v602
    %v2056 = vunpack.c.h.b16 %v602
    %v2057 = vunpack.c.l.b16 %v603
    %v2058 = vunpack.c.h.b16 %v603
    %v2059 = vunpack.c.l.b16 %v604
    %v2060 = vunpack.c.h.b16 %v604
    %v2061 = vunpack.c.l.b16 %v605
    %v2062 = vunpack.c.h.b16 %v605
    %v2063 = vunpack.c.l.b16 %v606
    %v2064 = vunpack.c.h.b16 %v606
    %v2065 = vunpack.c.l.b16 %v607
    %v2066 = vunpack.c.h.b16 %v607
    %v2067 = vunpack.c.l.b16 %v608
    %v2068 = vunpack.c.h.b16 %v608
    %v2069 = vunpack.c.l.b16 %v609
    %v2070 = vunpack.c.h.b16 %v609
    %v2071 = vunpack.c.l.b16 %v610
    %v2072 = vunpack.c.h.b16 %v610
    %v2073 = vunpack.c.l.b16 %v611
    %v2074 = vunpack.c.h.b16 %v611
    %v2075 = vunpack.c.l.b16 %v612
    %v2076 = vunpack.c.h.b16 %v612
    %v2077 = vunpack.c.l.b16 %v613
    %v2078 = vunpack.c.h.b16 %v613
    %v2079 = vunpack.c.l.b16 %v614
    %v2080 = vunpack.c.h.b16 %v614
    %v2081 = vunpack.c.l.b16 %v615
    %v2082 = vunpack.c.h.b16 %v615
    %v2083 = vunpack.c.l.b16 %v616
    %v2084 = vunpack.c.h.b16 %v616
    %v2085 = vunpack.c.l.b16 %v617
    %v2086 = vunpack.c.h.b16 %v617
    %v2087 = vunpack.c.l.b16 %v618
    %v2088 = vunpack.c.h.b16 %v618
    %v2089 = vunpack.c.l.b16 %v619
    %v2090 = vunpack.c.h.b16 %v619
    %v2091 = vunpack.c.l.b16 %v620
    %v2092 = vunpack.c.h.b16 %v620
    %v2093 = vunpack.c.l.b16 %v621
    %v2094 = vunpack.c.h.b16 %v621
    %v2095 = vunpack.c.l.b16 %v622
    %v2096 = vunpack.c.h.b16 %v622
    %v2097 = vunpack.c.l.b16 %v623
    %v2098 = vunpack.c.h.b16 %v623
    %v2099 = vunpack.c.l.b16 %v624
    %v2100 = vunpack.c.h.b16 %v624
    %v2101 = vunpack.c.l.b16 %v625
    %v2102 = vunpack.c.h.b16 %v625
    %v2103 = vunpack.c.l.b16 %v626
    %v2104 = vunpack.c.h.b16 %v626
    %v2105 = vunpack.c.l.b16 %v627
    %v2106 = vunpack.c.h.b16 %v627
    %v2107 = vunpack.c.l.b16 %v628
    %v2108 = vunpack.c.h.b16 %v628
    %v2109 = vunpack.c.l.b16 %v629
    %v2110 = vunpack.c.h.b16 %v629
    %v2111 = vunpack.c.l.b16 %v630
    %v2112 = vunpack.c.h.b16 %v630
    %v2113 = vunpack.c.l.b16 %v631
    %v2114 = vunpack.c.h.b16 %v631
    %v2115 = vunpack.c.l.b16 %v632
    %v2116 = vunpack.c.h.b16 %v632
    %v2117 = vunpack.c.l.b16 %v633
    %v2118 = vunpack.c.h.b16 %v633
    %v2119 = vunpack.c.l.b16 %v634
    %v2120 = vunpack.c.h.b16 %v634
    %v2121 = vunpack.c.l.b16 %v635
    %v2122 = vunpack.c.h.b16 %v635
    %v2123 = vunpack.c.l.b16 %v636
    %v2124 = vunpack.c.h.b16 %v636
    %v2125 = vunpack.c.l.b16 %v637
    %v2126 = vunpack.c.h.b16 %v637
    %v2127 = vunpack.c.l.b16 %v638
    %v2128 = vunpack.c.h.b16 %v638
    %v2129 = vunpack.c.l.b16 %v639
    %v2130 = vunpack.c.h.b16 %v639
    %v2131 = vunpack.c.l.b16 %v640
    %v2132 = vunpack.c.h.b16 %v640
    %v2133 = vunpack.c.l.b16 %v641
    %v2134 = vunpack.c.h.b16 %v641
    %v2135 = vunpack.c.l.b16 %v642
    %v2136 = vunpack.c.h.b16 %v642
    %v2137 = vunpack.c.l.b16 %v643
    %v2138 = vunpack.c.h.b16 %v643
    %v2139 = vunpack.c.l.b16 %v644
    %v2140 = vunpack.c.h.b16 %v644
    %v2141 = vunpack.c.l.b16 %v645
    %v2142 = vunpack.c.h.b16 %v645
    %v2143 = vunpack.c.l.b16 %v646
    %v2144 = vunpack.c.h.b16 %v646
    %v2145 = vunpack.c.l.b16 %v647
    %v2146 = vunpack.c.h.b16 %v647
    %v2147 = vunpack.c.l.b16 %v648
    %v2148 = vunpack.c.h.b16 %v648
    %v2149 = vunpack.c.l.b16 %v649
    %v2150 = vunpack.c.h.b16 %v649
    %v2151 = vunpack.c.l.b16 %v650
    %v2152 = vunpack.c.h.b16 %v650
    %v2153 = vunpack.c.l.b16 %v651
    %v2154 = vunpack.c.h.b16 %v651
    %v2155 = vunpack.c.l.b16 %v652
    %v2156 = vunpack.c.h.b16 %v652
    %v2157 = vunpack.c.l.b16 %v653
    %v2158 = vunpack.c.h.b16 %v653
    %v2159 = vunpack.c.l.b16 %v654
    %v2160 = vunpack.c.h.b16 %v654
    %v2161 = vunpack.c.l.b16 %v655
    %v2162 = vunpack.c.h.b16 %v655
    %v2163 = vunpack.c.l.b16 %v656
    %v2164 = vunpack.c.h.b16 %v656
    %v2165 = vunpack.c.l.b16 %v657
    %v2166 = vunpack.c.h.b16 %v657
    %v2167 = vunpack.c.l.b16 %v658
    %v2168 = vunpack.c.h.b16 %v658
    %v2169 = vunpack.c.l.b16 %v659
    %v2170 = vunpack.c.h.b16 %v659
    %v2171 = vunpack.c.l.b16 %v660
    %v2172 = vunpack.c.h.b16 %v660
    %v2173 = vunpack.c.l.b16 %v661
    %v2174 = vunpack.c.h.b16 %v661
    %v2175 = vunpack.c.l.b16 %v662
    %v2176 = vunpack.c.h.b16 %v662
    %v2177 = vunpack.c.l.b16 %v663
    %v2178 = vunpack.c.h.b16 %v663
    %v2179 = vunpack.c.l.b16 %v664
    %v2180 = vunpack.c.h.b16 %v664
    %v2181 = vunpack.c.l.b16 %v665
    %v2182 = vunpack.c.h.b16 %v665
    %v2183 = vunpack.c.l.b16 %v666
    %v2184 = vunpack.c.h.b16 %v666
    %v2185 = vunpack.c.l.b16 %v667
    %v2186 = vunpack.c.h.b16 %v667
    %v2187 = vunpack.c.l.b16 %v668
    %v2188 = vunpack.c.h.b16 %v668
    %v2189 = vunpack.c.l.b16 %v669
    %v2190 = vunpack.c.h.b16 %v669
    %v2191 = vunpack.c.l.b16 %v670
    %v2192 = vunpack.c.h.b16 %v670
    %v2193 = vunpack.c.l.b16 %v671
    %v2194 = vunpack.c.h.b16 %v671
    %v2195 = vunpack.c.l.b16 %v672
    %v2196 = vunpack.c.h.b16 %v672
    %v2197 = vunpack.c.l.b16 %v673
    %v2198 = vunpack.c.h.b16 %v673
    %v2199 = vunpack.c.l.b16 %v674
    %v2200 = vunpack.c.h.b16 %v674
    %v2201 = vunpack.c.l.b16 %v675
    %v2202 = vunpack.c.h.b16 %v675
    %v2203 = vunpack.c.l.b16 %v676
    %v2204 = vunpack.c.h.b16 %v676
    %v2205 = vunpack.c.l.b16 %v677
    %v2206 = vunpack.c.h.b16 %v677
    %v2207 = vunpack.c.l.b16 %v678
    %v2208 = vunpack.c.h.b16 %v678
    %v2209 = vunpack.c.l.b16 %v679
    %v2210 = vunpack.c.h.b16 %v679
    %v2211 = vunpack.c.l.b16 %v680
    %v2212 = vunpack.c.h.b16 %v680
    %v2213 = vunpack.c.l.b16 %v681
    %v2214 = vunpack.c.h.b16 %v681
    %v2215 = vunpack.c.l.b16 %v682
    %v2216 = vunpack.c.h.b16 %v682
    %v2217 = vunpack.c.l.b16 %v683
    %v2218 = vunpack.c.h.b16 %v683
    %v2219 = vunpack.c.l.b16 %v684
    %v2220 = vunpack.c.h.b16 %v684
    %v2221 = vunpack.c.l.b16 %v685
    %v2222 = vunpack.c.h.b16 %v685
    %v2223 = vunpack.c.l.b16 %v686
    %v2224 = vunpack.c.h.b16 %v686
    %v2225 = vunpack.c.l.b16 %v687
    %v2226 = vunpack.c.h.b16 %v687
    %v2227 = vunpack.c.l.b16 %v688
    %v2228 = vunpack.c.h.b16 %v688
    %v2229 = vunpack.c.l.b16 %v689
    %v2230 = vunpack.c.h.b16 %v689
    %v2231 = vunpack.c.l.b16 %v690
    %v2232 = vunpack.c.h.b16 %v690
    %v2233 = vunpack.c.l.b16 %v691
    %v2234 = vunpack.c.h.b16 %v691
    %v2235 = vunpack.c.l.b16 %v692
    %v2236 = vunpack.c.h.b16 %v692
    %v2237 = vunpack.c.l.b16 %v693
    %v2238 = vunpack.c.h.b16 %v693
    %v2239 = vunpack.c.l.b16 %v694
    %v2240 = vunpack.c.h.b16 %v694
    %v2241 = vunpack.c.l.b16 %v695
    %v2242 = vunpack.c.h.b16 %v695
    %v2243 = vunpack.c.l.b16 %v696
    %v2244 = vunpack.c.h.b16 %v696
    %v2245 = vunpack.c.l.b16 %v697
    %v2246 = vunpack.c.h.b16 %v697
    %v2247 = vunpack.c.l.b16 %v698
    %v2248 = vunpack.c.h.b16 %v698
    %v2249 = vunpack.c.l.b16 %v699
    %v2250 = vunpack.c.h.b16 %v699
    %v2251 = vunpack.c.l.b16 %v700
    %v2252 = vunpack.c.h.b16 %v700
    %v2253 = vunpack.c.l.b16 %v701
    %v2254 = vunpack.c.h.b16 %v701
    %v2255 = vunpack.c.l.b16 %v702
    %v2256 = vunpack.c.h.b16 %v702
    %v2257 = vunpack.c.l.b16 %v703
    %v2258 = vunpack.c.h.b16 %v703
    %v2259 = vunpack.c.l.b16 %v704
    %v2260 = vunpack.c.h.b16 %v704
    %v2261 = vunpack.c.l.b16 %v705
    %v2262 = vunpack.c.h.b16 %v705
    %v2263 = vunpack.c.l.b16 %v706
    %v2264 = vunpack.c.h.b16 %v706
    %v2265 = vunpack.c.l.b16 %v707
    %v2266 = vunpack.c.h.b16 %v707
    %v2267 = vunpack.c.l.b16 %v708
    %v2268 = vunpack.c.h.b16 %v708
    %v2269 = vunpack.c.l.b16 %v709
    %v2270 = vunpack.c.h.b16 %v709
    %v2271 = vunpack.c.l.b16 %v710
    %v2272 = vunpack.c.h.b16 %v710
    %v2273 = vunpack.c.l.b16 %v711
    %v2274 = vunpack.c.h.b16 %v711
    %v2275 = vunpack.c.l.b16 %v712
    %v2276 = vunpack.c.h.b16 %v712
    %v2277 = vpack.c.b16 %v1261, %v1253
    %v2278 = vpack.c.b16 %v1262, %v1254
    %v2279 = vpack.c.b16 %v1263, %v1255
    %v2280 = vpack.c.b16 %v1264, %v1256
    %v2281 = vpack.c.b16 %v1265, %v1257
    %v2282 = vpack.c.b16 %v1266, %v1258
    %v2283 = vpack.c.b16 %v1267, %v1259
    %v2284 = vpack.c.b16 %v1268, %v1260
    %v2285 = vpack.c.b16 %v1277, %v1269
    %v2286 = vpack.c.b16 %v1278, %v1270
    %v2287 = vpack.c.b16 %v1279, %v1271
    %v2288 = vpack.c.b16 %v1280, %v1272
    %v2289 = vpack.c.b16 %v1281, %v1273
    %v2290 = vpack.c.b16 %v1282, %v1274
    %v2291 = vpack.c.b16 %v1283, %v1275
    %v2292 = vpack.c.b16 %v1284, %v1276
    %v2293 = vpack.c.b16 %v1293, %v1285
    %v2294 = vpack.c.b16 %v1294, %v1286
    %v2295 = vpack.c.b16 %v1295, %v1287
    %v2296 = vpack.c.b16 %v1296, %v1288
    %v2297 = vpack.c.b16 %v1297, %v1289
    %v2298 = vpack.c.b16 %v1298, %v1290
    %v2299 = vpack.c.b16 %v1299, %v1291
    %v2300 = vpack.c.b16 %v1300, %v1292
    %v2301 = vpack.c.b16 %v1309, %v1301
    %v2302 = vpack.c.b16 %v1310, %v1302
    %v2303 = vpack.c.b16 %v1311, %v1303
    %v2304 = vpack.c.b16 %v1312, %v1304
    %v2305 = vpack.c.b16 %v1313, %v1305
    %v2306 = vpack.c.b16 %v1314, %v1306
    %v2307 = vpack.c.b16 %v1315, %v1307
    %v2308 = vpack.c.b16 %v1316, %v1308
    %v2309 = vpack.c.b16 %v1325, %v1317
    %v2310 = vpack.c.b16 %v1326, %v1318
    %v2311 = vpack.c.b16 %v1327, %v1319
    %v2312 = vpack.c.b16 %v1328, %v1320
    %v2313 = vpack.c.b16 %v1329, %v1321
    %v2314 = vpack.c.b16 %v1330, %v1322
    %v2315 = vpack.c.b16 %v1331, %v1323
    %v2316 = vpack.c.b16 %v1332, %v1324
    %v2317 = vpack.c.b16 %v1341, %v1333
    %v2318 = vpack.c.b16 %v1342, %v1334
    %v2319 = vpack.c.b16 %v1343, %v1335
    %v2320 = vpack.c.b16 %v1344, %v1336
    %v2321 = vpack.c.b16 %v1345, %v1337
    %v2322 = vpack.c.b16 %v1346, %v1338
    %v2323 = vpack.c.b16 %v1347, %v1339
    %v2324 = vpack.c.b16 %v1348, %v1340
    %v2325 = vpack.c.b16 %v1357, %v1349
    %v2326 = vpack.c.b16 %v1358, %v1350
    %v2327 = vpack.c.b16 %v1359, %v1351
    %v2328 = vpack.c.b16 %v1360, %v1352
    %v2329 = vpack.c.b16 %v1361, %v1353
    %v2330 = vpack.c.b16 %v1362, %v1354
    %v2331 = vpack.c.b16 %v1363, %v1355
    %v2332 = vpack.c.b16 %v1364, %v1356
    %v2333 = vpack.c.b16 %v1373, %v1365
    %v2334 = vpack.c.b16 %v1374, %v1366
    %v2335 = vpack.c.b16 %v1375, %v1367
    %v2336 = vpack.c.b16 %v1376, %v1368
    %v2337 = vpack.c.b16 %v1377, %v1369
    %v2338 = vpack.c.b16 %v1378, %v1370
    %v2339 = vpack.c.b16 %v1379, %v1371
    %v2340 = vpack.c.b16 %v1380, %v1372
    %v2341 = vpack.c.b16 %v1389, %v1381
    %v2342 = vpack.c.b16 %v1390, %v1382
    %v2343 = vpack.c.b16 %v1391, %v1383
    %v2344 = vpack.c.b16 %v1392, %v1384
    %v2345 = vpack.c.b16 %v1393, %v1385
    %v2346 = vpack.c.b16 %v1394, %v1386
    %v2347 = vpack.c.b16 %v1395, %v1387
    %v2348 = vpack.c.b16 %v1396, %v1388
    %v2349 = vpack.c.b16 %v1405, %v1397
    %v2350 = vpack.c.b16 %v1406, %v1398
    %v2351 = vpack.c.b16 %v1407, %v1399
    %v2352 = vpack.c.b16 %v1408, %v1400
    %v2353 = vpack.c.b16 %v1409, %v1401
    %v2354 = vpack.c.b16 %v1410, %v1402
    %v2355 = vpack.c.b16 %v1411, %v1403
    %v2356 = vpack.c.b16 %v1412, %v1404
    %v2357 = vpack.c.b16 %v1421, %v1413
    %v2358 = vpack.c.b16 %v1422, %v1414
    %v2359 = vpack.c.b16 %v1423, %v1415
    %v2360 = vpack.c.b16 %v1424, %v1416
    %v2361 = vpack.c.b16 %v1425, %v1417
    %v2362 = vpack.c.b16 %v1426, %v1418
    %v2363 = vpack.c.b16 %v1427, %v1419
    %v2364 = vpack.c.b16 %v1428, %v1420
    %v2365 = vpack.c.b16 %v1437, %v1429
    %v2366 = vpack.c.b16 %v1438, %v1430
    %v2367 = vpack.c.b16 %v1439, %v1431
    %v2368 = vpack.c.b16 %v1440, %v1432
    %v2369 = vpack.c.b16 %v1441, %v1433
    %v2370 = vpack.c.b16 %v1442, %v1434
    %v2371 = vpack.c.b16 %v1443, %v1435
    %v2372 = vpack.c.b16 %v1444, %v1436
    %v2373 = vpack.c.b16 %v1453, %v1445
    %v2374 = vpack.c.b16 %v1454, %v1446
    %v2375 = vpack.c.b16 %v1455, %v1447
    %v2376 = vpack.c.b16 %v1456, %v1448
    %v2377 = vpack.c.b16 %v1457, %v1449
    %v2378 = vpack.c.b16 %v1458, %v1450
    %v2379 = vpack.c.b16 %v1459, %v1451
    %v2380 = vpack.c.b16 %v1460, %v1452
    %v2381 = vpack.c.b16 %v1469, %v1461
    %v2382 = vpack.c.b16 %v1470, %v1462
    %v2383 = vpack.c.b16 %v1471, %v1463
    %v2384 = vpack.c.b16 %v1472, %v1464
    %v2385 = vpack.c.b16 %v1473, %v1465
    %v2386 = vpack.c.b16 %v1474, %v1466
    %v2387 = vpack.c.b16 %v1475, %v1467
    %v2388 = vpack.c.b16 %v1476, %v1468
    %v2389 = vpack.c.b16 %v1485, %v1477
    %v2390 = vpack.c.b16 %v1486, %v1478
    %v2391 = vpack.c.b16 %v1487, %v1479
    %v2392 = vpack.c.b16 %v1488, %v1480
    %v2393 = vpack.c.b16 %v1489, %v1481
    %v2394 = vpack.c.b16 %v1490, %v1482
    %v2395 = vpack.c.b16 %v1491, %v1483
    %v2396 = vpack.c.b16 %v1492, %v1484
    %v2397 = vpack.c.b16 %v1501, %v1493
    %v2398 = vpack.c.b16 %v1502, %v1494
    %v2399 = vpack.c.b16 %v1503, %v1495
    %v2400 = vpack.c.b16 %v1504, %v1496
    %v2401 = vpack.c.b16 %v1505, %v1497
    %v2402 = vpack.c.b16 %v1506, %v1498
    %v2403 = vpack.c.b16 %v1507, %v1499
    %v2404 = vpack.c.b16 %v1508, %v1500
    %v2405 = vpack.c.b16 %v1517, %v1509
    %v2406 = vpack.c.b16 %v1518, %v1510
    %v2407 = vpack.c.b16 %v1519, %v1511
    %v2408 = vpack.c.b16 %v1520, %v1512
    %v2409 = vpack.c.b16 %v1521, %v1513
    %v2410 = vpack.c.b16 %v1522, %v1514
    %v2411 = vpack.c.b16 %v1523, %v1515
    %v2412 = vpack.c.b16 %v1524, %v1516
    %v2413 = vpack.c.b16 %v1533, %v1525
    %v2414 = vpack.c.b16 %v1534, %v1526
    %v2415 = vpack.c.b16 %v1535, %v1527
    %v2416 = vpack.c.b16 %v1536, %v1528
    %v2417 = vpack.c.b16 %v1537, %v1529
    %v2418 = vpack.c.b16 %v1538, %v1530
    %v2419 = vpack.c.b16 %v1539, %v1531
    %v2420 = vpack.c.b16 %v1540, %v1532
    %v2421 = vpack.c.b16 %v1549, %v1541
    %v2422 = vpack.c.b16 %v1550, %v1542
    %v2423 = vpack.c.b16 %v1551, %v1543
    %v2424 = vpack.c.b16 %v1552, %v1544
    %v2425 = vpack.c.b16 %v1553, %v1545
    %v2426 = vpack.c.b16 %v1554, %v1546
    %v2427 = vpack.c.b16 %v1555, %v1547
    %v2428 = vpack.c.b16 %v1556, %v1548
    %v2429 = vpack.c.b16 %v1565, %v1557
    %v2430 = vpack.c.b16 %v1566, %v1558
    %v2431 = vpack.c.b16 %v1567, %v1559
    %v2432 = vpack.c.b16 %v1568, %v1560
    %v2433 = vpack.c.b16 %v1569, %v1561
    %v2434 = vpack.c.b16 %v1570, %v1562
    %v2435 = vpack.c.b16 %v1571, %v1563
    %v2436 = vpack.c.b16 %v1572, %v1564
    %v2437 = vpack.c.b16 %v1581, %v1573
    %v2438 = vpack.c.b16 %v1582, %v1574
    %v2439 = vpack.c.b16 %v1583, %v1575
    %v2440 = vpack.c.b16 %v1584, %v1576
    %v2441 = vpack.c.b16 %v1585, %v1577
    %v2442 = vpack.c.b16 %v1586, %v1578
    %v2443 = vpack.c.b16 %v1587, %v1579
    %v2444 = vpack.c.b16 %v1588, %v1580
    %v2445 = vpack.c.b16 %v1597, %v1589
    %v2446 = vpack.c.b16 %v1598, %v1590
    %v2447 = vpack.c.b16 %v1599, %v1591
    %v2448 = vpack.c.b16 %v1600, %v1592
    %v2449 = vpack.c.b16 %v1601, %v1593
    %v2450 = vpack.c.b16 %v1602, %v1594
    %v2451 = vpack.c.b16 %v1603, %v1595
    %v2452 = vpack.c.b16 %v1604, %v1596
    %v2453 = vpack.c.b16 %v1613, %v1605
    %v2454 = vpack.c.b16 %v1614, %v1606
    %v2455 = vpack.c.b16 %v1615, %v1607
    %v2456 = vpack.c.b16 %v1616, %v1608
    %v2457 = vpack.c.b16 %v1617, %v1609
    %v2458 = vpack.c.b16 %v1618, %v1610
    %v2459 = vpack.c.b16 %v1619, %v1611
    %v2460 = vpack.c.b16 %v1620, %v1612
    %v2461 = vpack.c.b16 %v1629, %v1621
    %v2462 = vpack.c.b16 %v1630, %v1622
    %v2463 = vpack.c.b16 %v1631, %v1623
    %v2464 = vpack.c.b16 %v1632, %v1624
    %v2465 = vpack.c.b16 %v1633, %v1625
    %v2466 = vpack.c.b16 %v1634, %v1626
    %v2467 = vpack.c.b16 %v1635, %v1627
    %v2468 = vpack.c.b16 %v1636, %v1628
    %v2469 = vpack.c.b16 %v1645, %v1637
    %v2470 = vpack.c.b16 %v1646, %v1638
    %v2471 = vpack.c.b16 %v1647, %v1639
    %v2472 = vpack.c.b16 %v1648, %v1640
    %v2473 = vpack.c.b16 %v1649, %v1641
    %v2474 = vpack.c.b16 %v1650, %v1642
    %v2475 = vpack.c.b16 %v1651, %v1643
    %v2476 = vpack.c.b16 %v1652, %v1644
    %v2477 = vpack.c.b16 %v1661, %v1653
    %v2478 = vpack.c.b16 %v1662, %v1654
    %v2479 = vpack.c.b16 %v1663, %v1655
    %v2480 = vpack.c.b16 %v1664, %v1656
    %v2481 = vpack.c.b16 %v1665, %v1657
    %v2482 = vpack.c.b16 %v1666, %v1658
    %v2483 = vpack.c.b16 %v1667, %v1659
    %v2484 = vpack.c.b16 %v1668, %v1660
    %v2485 = vpack.c.b16 %v1677, %v1669
    %v2486 = vpack.c.b16 %v1678, %v1670
    %v2487 = vpack.c.b16 %v1679, %v1671
    %v2488 = vpack.c.b16 %v1680, %v1672
    %v2489 = vpack.c.b16 %v1681, %v1673
    %v2490 = vpack.c.b16 %v1682, %v1674
    %v2491 = vpack.c.b16 %v1683, %v1675
    %v2492 = vpack.c.b16 %v1684, %v1676
    %v2493 = vpack.c.b16 %v1693, %v1685
    %v2494 = vpack.c.b16 %v1694, %v1686
    %v2495 = vpack.c.b16 %v1695, %v1687
    %v2496 = vpack.c.b16 %v1696, %v1688
    %v2497 = vpack.c.b16 %v1697, %v1689
    %v2498 = vpack.c.b16 %v1698, %v1690
    %v2499 = vpack.c.b16 %v1699, %v1691
    %v2500 = vpack.c.b16 %v1700, %v1692
    %v2501 = vpack.c.b16 %v1709, %v1701
    %v2502 = vpack.c.b16 %v1710, %v1702
    %v2503 = vpack.c.b16 %v1711, %v1703
    %v2504 = vpack.c.b16 %v1712, %v1704
    %v2505 = vpack.c.b16 %v1713, %v1705
    %v2506 = vpack.c.b16 %v1714, %v1706
    %v2507 = vpack.c.b16 %v1715, %v1707
    %v2508 = vpack.c.b16 %v1716, %v1708
    %v2509 = vpack.c.b16 %v1725, %v1717
    %v2510 = vpack.c.b16 %v1726, %v1718
    %v2511 = vpack.c.b16 %v1727, %v1719
    %v2512 = vpack.c.b16 %v1728, %v1720
    %v2513 = vpack.c.b16 %v1729, %v1721
    %v2514 = vpack.c.b16 %v1730, %v1722
    %v2515 = vpack.c.b16 %v1731, %v1723
    %v2516 = vpack.c.b16 %v1732, %v1724
    %v2517 = vpack.c.b16 %v1741, %v1733
    %v2518 = vpack.c.b16 %v1742, %v1734
    %v2519 = vpack.c.b16 %v1743, %v1735
    %v2520 = vpack.c.b16 %v1744, %v1736
    %v2521 = vpack.c.b16 %v1745, %v1737
    %v2522 = vpack.c.b16 %v1746, %v1738
    %v2523 = vpack.c.b16 %v1747, %v1739
    %v2524 = vpack.c.b16 %v1748, %v1740
    %v2525 = vpack.c.b16 %v1757, %v1749
    %v2526 = vpack.c.b16 %v1758, %v1750
    %v2527 = vpack.c.b16 %v1759, %v1751
    %v2528 = vpack.c.b16 %v1760, %v1752
    %v2529 = vpack.c.b16 %v1761, %v1753
    %v2530 = vpack.c.b16 %v1762, %v1754
    %v2531 = vpack.c.b16 %v1763, %v1755
    %v2532 = vpack.c.b16 %v1764, %v1756
    %v2533 = vpack.c.b16 %v1773, %v1765
    %v2534 = vpack.c.b16 %v1774, %v1766
    %v2535 = vpack.c.b16 %v1775, %v1767
    %v2536 = vpack.c.b16 %v1776, %v1768
    %v2537 = vpack.c.b16 %v1777, %v1769
    %v2538 = vpack.c.b16 %v1778, %v1770
    %v2539 = vpack.c.b16 %v1779, %v1771
    %v2540 = vpack.c.b16 %v1780, %v1772
    %v2541 = vpack.c.b16 %v1789, %v1781
    %v2542 = vpack.c.b16 %v1790, %v1782
    %v2543 = vpack.c.b16 %v1791, %v1783
    %v2544 = vpack.c.b16 %v1792, %v1784
    %v2545 = vpack.c.b16 %v1793, %v1785
    %v2546 = vpack.c.b16 %v1794, %v1786
    %v2547 = vpack.c.b16 %v1795, %v1787
    %v2548 = vpack.c.b16 %v1796, %v1788
    %v2549 = vpack.c.b16 %v1805, %v1797
    %v2550 = vpack.c.b16 %v1806, %v1798
    %v2551 = vpack.c.b16 %v1807, %v1799
    %v2552 = vpack.c.b16 %v1808, %v1800
    %v2553 = vpack.c.b16 %v1809, %v1801
    %v2554 = vpack.c.b16 %v1810, %v1802
    %v2555 = vpack.c.b16 %v1811, %v1803
    %v2556 = vpack.c.b16 %v1812, %v1804
    %v2557 = vpack.c.b16 %v1821, %v1813
    %v2558 = vpack.c.b16 %v1822, %v1814
    %v2559 = vpack.c.b16 %v1823, %v1815
    %v2560 = vpack.c.b16 %v1824, %v1816
    %v2561 = vpack.c.b16 %v1825, %v1817
    %v2562 = vpack.c.b16 %v1826, %v1818
    %v2563 = vpack.c.b16 %v1827, %v1819
    %v2564 = vpack.c.b16 %v1828, %v1820
    %v2565 = vpack.c.b16 %v1837, %v1829
    %v2566 = vpack.c.b16 %v1838, %v1830
    %v2567 = vpack.c.b16 %v1839, %v1831
    %v2568 = vpack.c.b16 %v1840, %v1832
    %v2569 = vpack.c.b16 %v1841, %v1833
    %v2570 = vpack.c.b16 %v1842, %v1834
    %v2571 = vpack.c.b16 %v1843, %v1835
    %v2572 = vpack.c.b16 %v1844, %v1836
    %v2573 = vpack.c.b16 %v1853, %v1845
    %v2574 = vpack.c.b16 %v1854, %v1846
    %v2575 = vpack.c.b16 %v1855, %v1847
    %v2576 = vpack.c.b16 %v1856, %v1848
    %v2577 = vpack.c.b16 %v1857, %v1849
    %v2578 = vpack.c.b16 %v1858, %v1850
    %v2579 = vpack.c.b16 %v1859, %v1851
    %v2580 = vpack.c.b16 %v1860, %v1852
    %v2581 = vpack.c.b16 %v1869, %v1861
    %v2582 = vpack.c.b16 %v1870, %v1862
    %v2583 = vpack.c.b16 %v1871, %v1863
    %v2584 = vpack.c.b16 %v1872, %v1864
    %v2585 = vpack.c.b16 %v1873, %v1865
    %v2586 = vpack.c.b16 %v1874, %v1866
    %v2587 = vpack.c.b16 %v1875, %v1867
    %v2588 = vpack.c.b16 %v1876, %v1868
    %v2589 = vpack.c.b16 %v1885, %v1877
    %v2590 = vpack.c.b16 %v1886, %v1878
    %v2591 = vpack.c.b16 %v1887, %v1879
    %v2592 = vpack.c.b16 %v1888, %v1880
    %v2593 = vpack.c.b16 %v1889, %v1881
    %v2594 = vpack.c.b16 %v1890, %v1882
    %v2595 = vpack.c.b16 %v1891, %v1883
    %v2596 = vpack.c.b16 %v1892, %v1884
    %v2597 = vpack.c.b16 %v1901, %v1893
    %v2598 = vpack.c.b16 %v1902, %v1894
    %v2599 = vpack.c.b16 %v1903, %v1895
    %v2600 = vpack.c.b16 %v1904, %v1896
    %v2601 = vpack.c.b16 %v1905, %v1897
    %v2602 = vpack.c.b16 %v1906, %v1898
    %v2603 = vpack.c.b16 %v1907, %v1899
    %v2604 = vpack.c.b16 %v1908, %v1900
    %v2605 = vpack.c.b16 %v1917, %v1909
    %v2606 = vpack.c.b16 %v1918, %v1910
    %v2607 = vpack.c.b16 %v1919, %v1911
    %v2608 = vpack.c.b16 %v1920, %v1912
    %v2609 = vpack.c.b16 %v1921, %v1913
    %v2610 = vpack.c.b16 %v1922, %v1914
    %v2611 = vpack.c.b16 %v1923, %v1915
    %v2612 = vpack.c.b16 %v1924, %v1916
    %v2613 = vpack.c.b16 %v1933, %v1925
    %v2614 = vpack.c.b16 %v1934, %v1926
    %v2615 = vpack.c.b16 %v1935, %v1927
    %v2616 = vpack.c.b16 %v1936, %v1928
    %v2617 = vpack.c.b16 %v1937, %v1929
    %v2618 = vpack.c.b16 %v1938, %v1930
    %v2619 = vpack.c.b16 %v1939, %v1931
    %v2620 = vpack.c.b16 %v1940, %v1932
    %v2621 = vpack.c.b16 %v1949, %v1941
    %v2622 = vpack.c.b16 %v1950, %v1942
    %v2623 = vpack.c.b16 %v1951, %v1943
    %v2624 = vpack.c.b16 %v1952, %v1944
    %v2625 = vpack.c.b16 %v1953, %v1945
    %v2626 = vpack.c.b16 %v1954, %v1946
    %v2627 = vpack.c.b16 %v1955, %v1947
    %v2628 = vpack.c.b16 %v1956, %v1948
    %v2629 = vpack.c.b16 %v1965, %v1957
    %v2630 = vpack.c.b16 %v1966, %v1958
    %v2631 = vpack.c.b16 %v1967, %v1959
    %v2632 = vpack.c.b16 %v1968, %v1960
    %v2633 = vpack.c.b16 %v1969, %v1961
    %v2634 = vpack.c.b16 %v1970, %v1962
    %v2635 = vpack.c.b16 %v1971, %v1963
    %v2636 = vpack.c.b16 %v1972, %v1964
    %v2637 = vpack.c.b16 %v1981, %v1973
    %v2638 = vpack.c.b16 %v1982, %v1974
    %v2639 = vpack.c.b16 %v1983, %v1975
    %v2640 = vpack.c.b16 %v1984, %v1976
    %v2641 = vpack.c.b16 %v1985, %v1977
    %v2642 = vpack.c.b16 %v1986, %v1978
    %v2643 = vpack.c.b16 %v1987, %v1979
    %v2644 = vpack.c.b16 %v1988, %v1980
    %v2645 = vpack.c.b16 %v1997, %v1989
    %v2646 = vpack.c.b16 %v1998, %v1990
    %v2647 = vpack.c.b16 %v1999, %v1991
    %v2648 = vpack.c.b16 %v2000, %v1992
    %v2649 = vpack.c.b16 %v2001, %v1993
    %v2650 = vpack.c.b16 %v2002, %v1994
    %v2651 = vpack.c.b16 %v2003, %v1995
    %v2652 = vpack.c.b16 %v2004, %v1996
    %v2653 = vpack.c.b16 %v2013, %v2005
    %v2654 = vpack.c.b16 %v2014, %v2006
    %v2655 = vpack.c.b16 %v2015, %v2007
    %v2656 = vpack.c.b16 %v2016, %v2008
    %v2657 = vpack.c.b16 %v2017, %v2009
    %v2658 = vpack.c.b16 %v2018, %v2010
    %v2659 = vpack.c.b16 %v2019, %v2011
    %v2660 = vpack.c.b16 %v2020, %v2012
    %v2661 = vpack.c.b16 %v2029, %v2021
    %v2662 = vpack.c.b16 %v2030, %v2022
    %v2663 = vpack.c.b16 %v2031, %v2023
    %v2664 = vpack.c.b16 %v2032, %v2024
    %v2665 = vpack.c.b16 %v2033, %v2025
    %v2666 = vpack.c.b16 %v2034, %v2026
    %v2667 = vpack.c.b16 %v2035, %v2027
    %v2668 = vpack.c.b16 %v2036, %v2028
    %v2669 = vpack.c.b16 %v2045, %v2037
    %v2670 = vpack.c.b16 %v2046, %v2038
    %v2671 = vpack.c.b16 %v2047, %v2039
    %v2672 = vpack.c.b16 %v2048, %v2040
    %v2673 = vpack.c.b16 %v2049, %v2041
    %v2674 = vpack.c.b16 %v2050, %v2042
    %v2675 = vpack.c.b16 %v2051, %v2043
    %v2676 = vpack.c.b16 %v2052, %v2044
    %v2677 = vpack.c.b16 %v2061, %v2053
    %v2678 = vpack.c.b16 %v2062, %v2054
    %v2679 = vpack.c.b16 %v2063, %v2055
    %v2680 = vpack.c.b16 %v2064, %v2056
    %v2681 = vpack.c.b16 %v2065, %v2057
    %v2682 = vpack.c.b16 %v2066, %v2058
    %v2683 = vpack.c.b16 %v2067, %v2059
    %v2684 = vpack.c.b16 %v2068, %v2060
    %v2685 = vpack.c.b16 %v2077, %v2069
    %v2686 = vpack.c.b16 %v2078, %v2070
    %v2687 = vpack.c.b16 %v2079, %v2071
    %v2688 = vpack.c.b16 %v2080, %v2072
    %v2689 = vpack.c.b16 %v2081, %v2073
    %v2690 = vpack.c.b16 %v2082, %v2074
    %v2691 = vpack.c.b16 %v2083, %v2075
    %v2692 = vpack.c.b16 %v2084, %v2076
    %v2693 = vpack.c.b16 %v2093, %v2085
    %v2694 = vpack.c.b16 %v2094, %v2086
    %v2695 = vpack.c.b16 %v2095, %v2087
    %v2696 = vpack.c.b16 %v2096, %v2088
    %v2697 = vpack.c.b16 %v2097, %v2089
    %v2698 = vpack.c.b16 %v2098, %v2090
    %v2699 = vpack.c.b16 %v2099, %v2091
    %v2700 = vpack.c.b16 %v2100, %v2092
    %v2701 = vpack.c.b16 %v2109, %v2101
    %v2702 = vpack.c.b16 %v2110, %v2102
    %v2703 = vpack.c.b16 %v2111, %v2103
    %v2704 = vpack.c.b16 %v2112, %v2104
    %v2705 = vpack.c.b16 %v2113, %v2105
    %v2706 = vpack.c.b16 %v2114, %v2106
    %v2707 = vpack.c.b16 %v2115, %v2107
    %v2708 = vpack.c.b16 %v2116, %v2108
    %v2709 = vpack.c.b16 %v2125, %v2117
    %v2710 = vpack.c.b16 %v2126, %v2118
    %v2711 = vpack.c.b16 %v2127, %v2119
    %v2712 = vpack.c.b16 %v2128, %v2120
    %v2713 = vpack.c.b16 %v2129, %v2121
    %v2714 = vpack.c.b16 %v2130, %v2122
    %v2715 = vpack.c.b16 %v2131, %v2123
    %v2716 = vpack.c.b16 %v2132, %v2124
    %v2717 = vpack.c.b16 %v2141, %v2133
    %v2718 = vpack.c.b16 %v2142, %v2134
    %v2719 = vpack.c.b16 %v2143, %v2135
    %v2720 = vpack.c.b16 %v2144, %v2136
    %v2721 = vpack.c.b16 %v2145, %v2137
    %v2722 = vpack.c.b16 %v2146, %v2138
    %v2723 = vpack.c.b16 %v2147, %v2139
    %v2724 = vpack.c.b16 %v2148, %v2140
    %v2725 = vpack.c.b16 %v2157, %v2149
    %v2726 = vpack.c.b16 %v2158, %v2150
    %v2727 = vpack.c.b16 %v2159, %v2151
    %v2728 = vpack.c.b16 %v2160, %v2152
    %v2729 = vpack.c.b16 %v2161, %v2153
    %v2730 = vpack.c.b16 %v2162, %v2154
    %v2731 = vpack.c.b16 %v2163, %v2155
    %v2732 = vpack.c.b16 %v2164, %v2156
    %v2733 = vpack.c.b16 %v2173, %v2165
    %v2734 = vpack.c.b16 %v2174, %v2166
    %v2735 = vpack.c.b16 %v2175, %v2167
    %v2736 = vpack.c.b16 %v2176, %v2168
    %v2737 = vpack.c.b16 %v2177, %v2169
    %v2738 = vpack.c.b16 %v2178, %v2170
    %v2739 = vpack.c.b16 %v2179, %v2171
    %v2740 = vpack.c.b16 %v2180, %v2172
    %v2741 = vpack.c.b16 %v2189, %v2181
    %v2742 = vpack.c.b16 %v2190, %v2182
    %v2743 = vpack.c.b16 %v2191, %v2183
    %v2744 = vpack.c.b16 %v2192, %v2184
    %v2745 = vpack.c.b16 %v2193, %v2185
    %v2746 = vpack.c.b16 %v2194, %v2186
    %v2747 = vpack.c.b16 %v2195, %v2187
    %v2748 = vpack.c.b16 %v2196, %v2188
    %v2749 = vpack.c.b16 %v2205, %v2197
    %v2750 = vpack.c.b16 %v2206, %v2198
    %v2751 = vpack.c.b16 %v2207, %v2199
    %v2752 = vpack.c.b16 %v2208, %v2200
    %v2753 = vpack.c.b16 %v2209, %v2201
    %v2754 = vpack.c.b16 %v2210, %v2202
    %v2755 = vpack.c.b16 %v2211, %v2203
    %v2756 = vpack.c.b16 %v2212, %v2204
    %v2757 = vpack.c.b16 %v2221, %v2213
    %v2758 = vpack.c.b16 %v2222, %v2214
    %v2759 = vpack.c.b16 %v2223, %v2215
    %v2760 = vpack.c.b16 %v2224, %v2216
    %v2761 = vpack.c.b16 %v2225, %v2217
    %v2762 = vpack.c.b16 %v2226, %v2218
    %v2763 = vpack.c.b16 %v2227, %v2219
    %v2764 = vpack.c.b16 %v2228, %v2220
    %v2765 = vpack.c.b16 %v2237, %v2229
    %v2766 = vpack.c.b16 %v2238, %v2230
    %v2767 = vpack.c.b16 %v2239, %v2231
    %v2768 = vpack.c.b16 %v2240, %v2232
    %v2769 = vpack.c.b16 %v2241, %v2233
    %v2770 = vpack.c.b16 %v2242, %v2234
    %v2771 = vpack.c.b16 %v2243, %v2235
    %v2772 = vpack.c.b16 %v2244, %v2236
    %v2773 = vpack.c.b16 %v2253, %v2245
    %v2774 = vpack.c.b16 %v2254, %v2246
    %v2775 = vpack.c.b16 %v2255, %v2247
    %v2776 = vpack.c.b16 %v2256, %v2248
    %v2777 = vpack.c.b16 %v2257, %v2249
    %v2778 = vpack.c.b16 %v2258, %v2250
    %v2779 = vpack.c.b16 %v2259, %v2251
    %v2780 = vpack.c.b16 %v2260, %v2252
    %v2781 = vpack.c.b16 %v2269, %v2261
    %v2782 = vpack.c.b16 %v2270, %v2262
    %v2783 = vpack.c.b16 %v2271, %v2263
    %v2784 = vpack.c.b16 %v2272, %v2264
    %v2785 = vpack.c.b16 %v2273, %v2265
    %v2786 = vpack.c.b16 %v2274, %v2266
    %v2787 = vpack.c.b16 %v2275, %v2267
    %v2788 = vpack.c.b16 %v2276, %v2268
    %3301 = vmatprep.subr.bf16.mxu0 %v2278
    %3302 = vmatpush1.bf16.msra.mxu0 %v2277
    %3303 = vmatprep.subr.bf16.mxu0 %v2286
    %3304 = vmatpush1.bf16.msra.mxu0 %v2285
    %3305 = vmatprep.subr.bf16.mxu0 %v2294
    %3306 = vmatpush1.bf16.msra.mxu0 %v2293
    %3307 = vmatprep.subr.bf16.mxu0 %v2302
    %3308 = vmatpush1.bf16.msra.mxu0 %v2301
    %3309 = vmatprep.subr.bf16.mxu0 %v2310
    %3310 = vmatpush1.bf16.msra.mxu0 %v2309
    %3311 = vmatprep.subr.bf16.mxu0 %v2318
    %3312 = vmatpush1.bf16.msra.mxu0 %v2317
    %3313 = vmatprep.subr.bf16.mxu0 %v2326
    %3314 = vmatpush1.bf16.msra.mxu0 %v2325
    %3315 = vmatprep.subr.bf16.mxu0 %v2334
    %3316 = vmatpush1.bf16.msra.mxu0 %v2333
    %3317 = vmatprep.subr.bf16.mxu0 %v2342
    %3318 = vmatpush1.bf16.msra.mxu0 %v2341
    %3319 = vmatprep.subr.bf16.mxu0 %v2350
    %3320 = vmatpush1.bf16.msra.mxu0 %v2349
    %3321 = vmatprep.subr.bf16.mxu0 %v2358
    %3322 = vmatpush1.bf16.msra.mxu0 %v2357
    %3323 = vmatprep.subr.bf16.mxu0 %v2366
    %3324 = vmatpush1.bf16.msra.mxu0 %v2365
    %3325 = vmatprep.subr.bf16.mxu0 %v2374
    %3326 = vmatpush1.bf16.msra.mxu0 %v2373
    %3327 = vmatprep.subr.bf16.mxu0 %v2382
    %3328 = vmatpush1.bf16.msra.mxu0 %v2381
    %3329 = vmatprep.subr.bf16.mxu0 %v2390
    %3330 = vmatpush1.bf16.msra.mxu0 %v2389
    %3331 = vmatprep.subr.bf16.mxu0 %v2398
    %3332 = vmatpush1.bf16.msra.mxu0 %v2397
    %3333 = vmatprep.mubr.bf16.mxu0 %v726
    %3334 = vmatmul.mubr.bf16.gmra.mrb[0].mxu0 %v725
    %v3335 = vpop.f32.mrb[0].mxu0
    %v3336 = vadd.f32 0.0, %v3335
    %v3337 = vpop.f32.mrb[0].mxu0
    %v3338 = vadd.f32 0.0, %v3337
    %v3339 = vpop.f32.mrb[0].mxu0
    %v3340 = vpop.f32.mrb[0].mxu0
    %3341 = vdwg.mxu0
    %3342 = vmatprep.subr.bf16.mxu0 %v2406
    %3343 = vmatpush1.bf16.msra.mxu0 %v2405
    %3344 = vmatprep.subr.bf16.mxu0 %v2414
    %3345 = vmatpush1.bf16.msra.mxu0 %v2413
    %3346 = vmatprep.subr.bf16.mxu0 %v2422
    %3347 = vmatpush1.bf16.msra.mxu0 %v2421
    %3348 = vmatprep.subr.bf16.mxu0 %v2430
    %3349 = vmatpush1.bf16.msra.mxu0 %v2429
    %3350 = vmatprep.subr.bf16.mxu0 %v2438
    %3351 = vmatpush1.bf16.msra.mxu0 %v2437
    %3352 = vmatprep.subr.bf16.mxu0 %v2446
    %3353 = vmatpush1.bf16.msra.mxu0 %v2445
    %3354 = vmatprep.subr.bf16.mxu0 %v2454
    %3355 = vmatpush1.bf16.msra.mxu0 %v2453
    %3356 = vmatprep.subr.bf16.mxu0 %v2462
    %3357 = vmatpush1.bf16.msra.mxu0 %v2461
    %3358 = vmatprep.subr.bf16.mxu0 %v2470
    %3359 = vmatpush1.bf16.msra.mxu0 %v2469
    %3360 = vmatprep.subr.bf16.mxu0 %v2478
    %3361 = vmatpush1.bf16.msra.mxu0 %v2477
    %3362 = vmatprep.subr.bf16.mxu0 %v2486
    %3363 = vmatpush1.bf16.msra.mxu0 %v2485
    %3364 = vmatprep.subr.bf16.mxu0 %v2494
    %3365 = vmatpush1.bf16.msra.mxu0 %v2493
    %3366 = vmatprep.subr.bf16.mxu0 %v2502
    %3367 = vmatpush1.bf16.msra.mxu0 %v2501
    %3368 = vmatprep.subr.bf16.mxu0 %v2510
    %3369 = vmatpush1.bf16.msra.mxu0 %v2509
    %3370 = vmatprep.subr.bf16.mxu0 %v2518
    %3371 = vmatpush1.bf16.msra.mxu0 %v2517
    %3372 = vmatprep.subr.bf16.mxu0 %v2526
    %3373 = vmatpush1.bf16.msra.mxu0 %v2525
    %3374 = vmatprep.mubr.bf16.mxu0 %v728
    %3375 = vmatmul.mubr.bf16.gmra.mrb[0].mxu0 %v727
    %v3376 = vpop.f32.mrb[0].mxu0
    %v3377 = vadd.f32 %v3336, %v3376
    %v3378 = vpop.f32.mrb[0].mxu0
    %v3379 = vadd.f32 %v3338, %v3378
    %v3380 = vpop.f32.mrb[0].mxu0
    %v3381 = vpop.f32.mrb[0].mxu0
    %3382 = vdwg.mxu0
    %3383 = vmatprep.subr.bf16.mxu0 %v2534
    %3384 = vmatpush1.bf16.msra.mxu0 %v2533
    %3385 = vmatprep.subr.bf16.mxu0 %v2542
    %3386 = vmatpush1.bf16.msra.mxu0 %v2541
    %3387 = vmatprep.subr.bf16.mxu0 %v2550
    %3388 = vmatpush1.bf16.msra.mxu0 %v2549
    %3389 = vmatprep.subr.bf16.mxu0 %v2558
    %3390 = vmatpush1.bf16.msra.mxu0 %v2557
    %3391 = vmatprep.subr.bf16.mxu0 %v2566
    %3392 = vmatpush1.bf16.msra.mxu0 %v2565
    %3393 = vmatprep.subr.bf16.mxu0 %v2574
    %3394 = vmatpush1.bf16.msra.mxu0 %v2573
    %3395 = vmatprep.subr.bf16.mxu0 %v2582
    %3396 = vmatpush1.bf16.msra.mxu0 %v2581
    %3397 = vmatprep.subr.bf16.mxu0 %v2590
    %3398 = vmatpush1.bf16.msra.mxu0 %v2589
    %3399 = vmatprep.subr.bf16.mxu0 %v2598
    %3400 = vmatpush1.bf16.msra.mxu0 %v2597
    %3401 = vmatprep.subr.bf16.mxu0 %v2606
    %3402 = vmatpush1.bf16.msra.mxu0 %v2605
    %3403 = vmatprep.subr.bf16.mxu0 %v2614
    %3404 = vmatpush1.bf16.msra.mxu0 %v2613
    %3405 = vmatprep.subr.bf16.mxu0 %v2622
    %3406 = vmatpush1.bf16.msra.mxu0 %v2621
    %3407 = vmatprep.subr.bf16.mxu0 %v2630
    %3408 = vmatpush1.bf16.msra.mxu0 %v2629
    %3409 = vmatprep.subr.bf16.mxu0 %v2638
    %3410 = vmatpush1.bf16.msra.mxu0 %v2637
    %3411 = vmatprep.subr.bf16.mxu0 %v2646
    %3412 = vmatpush1.bf16.msra.mxu0 %v2645
    %3413 = vmatprep.subr.bf16.mxu0 %v2654
    %3414 = vmatpush1.bf16.msra.mxu0 %v2653
    %3415 = vmatprep.mubr.bf16.mxu0 %v730
    %3416 = vmatmul.mubr.bf16.gmra.mrb[0].mxu0 %v729
    %v3417 = vpop.f32.mrb[0].mxu0
    %v3418 = vadd.f32 %v3377, %v3417
    %v3419 = vpop.f32.mrb[0].mxu0
    %v3420 = vadd.f32 %v3379, %v3419
    %v3421 = vpop.f32.mrb[0].mxu0
    %v3422 = vpop.f32.mrb[0].mxu0
    %3423 = vdwg.mxu0
    %3424 = vmatprep.subr.bf16.mxu0 %v2662
    %3425 = vmatpush1.bf16.msra.mxu0 %v2661
    %3426 = vmatprep.subr.bf16.mxu0 %v2670
    %3427 = vmatpush1.bf16.msra.mxu0 %v2669
    %3428 = vmatprep.subr.bf16.mxu0 %v2678
    %3429 = vmatpush1.bf16.msra.mxu0 %v2677
    %3430 = vmatprep.subr.bf16.mxu0 %v2686
    %3431 = vmatpush1.bf16.msra.mxu0 %v2685
    %3432 = vmatprep.subr.bf16.mxu0 %v2694
    %3433 = vmatpush1.bf16.msra.mxu0 %v2693
    %3434 = vmatprep.subr.bf16.mxu0 %v2702
    %3435 = vmatpush1.bf16.msra.mxu0 %v2701
    %3436 = vmatprep.subr.bf16.mxu0 %v2710
    %3437 = vmatpush1.bf16.msra.mxu0 %v2709
    %3438 = vmatprep.subr.bf16.mxu0 %v2718
    %3439 = vmatpush1.bf16.msra.mxu0 %v2717
    %3440 = vmatprep.subr.bf16.mxu0 %v2726
    %3441 = vmatpush1.bf16.msra.mxu0 %v2725
    %3442 = vmatprep.subr.bf16.mxu0 %v2734
    %3443 = vmatpush1.bf16.msra.mxu0 %v2733
    %3444 = vmatprep.subr.bf16.mxu0 %v2742
    %3445 = vmatpush1.bf16.msra.mxu0 %v2741
    %3446 = vmatprep.subr.bf16.mxu0 %v2750
    %3447 = vmatpush1.bf16.msra.mxu0 %v2749
    %3448 = vmatprep.subr.bf16.mxu0 %v2758
    %3449 = vmatpush1.bf16.msra.mxu0 %v2757
    %3450 = vmatprep.subr.bf16.mxu0 %v2766
    %3451 = vmatpush1.bf16.msra.mxu0 %v2765
    %3452 = vmatprep.subr.bf16.mxu0 %v2774
    %3453 = vmatpush1.bf16.msra.mxu0 %v2773
    %3454 = vmatprep.subr.bf16.mxu0 %v2782
    %3455 = vmatpush1.bf16.msra.mxu0 %v2781
    %3456 = vmatprep.mubr.bf16.mxu0 %v732
    %3457 = vmatmul.mubr.bf16.gmra.mrb[0].mxu0 %v731
    %v3458 = vpop.f32.mrb[0].mxu0
    %v3459 = vadd.f32 %v3418, %v3458
    %v3460 = vpop.f32.mrb[0].mxu0
    %v3461 = vadd.f32 %v3420, %v3460
    %v3462 = vpop.f32.mrb[0].mxu0
    %v3463 = vpop.f32.mrb[0].mxu0
    %3464 = vdwg.mxu0
    %3465 = vmatprep.subr.bf16.mxu0 %v2280
    %3466 = vmatpush1.bf16.msra.mxu0 %v2279
    %3467 = vmatprep.subr.bf16.mxu0 %v2288
    %3468 = vmatpush1.bf16.msra.mxu0 %v2287
    %3469 = vmatprep.subr.bf16.mxu0 %v2296
    %3470 = vmatpush1.bf16.msra.mxu0 %v2295
    %3471 = vmatprep.subr.bf16.mxu0 %v2304
    %3472 = vmatpush1.bf16.msra.mxu0 %v2303
    %3473 = vmatprep.subr.bf16.mxu0 %v2312
    %3474 = vmatpush1.bf16.msra.mxu0 %v2311
    %3475 = vmatprep.subr.bf16.mxu0 %v2320
    %3476 = vmatpush1.bf16.msra.mxu0 %v2319
    %3477 = vmatprep.subr.bf16.mxu0 %v2328
    %3478 = vmatpush1.bf16.msra.mxu0 %v2327
    %3479 = vmatprep.subr.bf16.mxu0 %v2336
    %3480 = vmatpush1.bf16.msra.mxu0 %v2335
    %3481 = vmatprep.subr.bf16.mxu0 %v2344
    %3482 = vmatpush1.bf16.msra.mxu0 %v2343
    %3483 = vmatprep.subr.bf16.mxu0 %v2352
    %3484 = vmatpush1.bf16.msra.mxu0 %v2351
    %3485 = vmatprep.subr.bf16.mxu0 %v2360
    %3486 = vmatpush1.bf16.msra.mxu0 %v2359
    %3487 = vmatprep.subr.bf16.mxu0 %v2368
    %3488 = vmatpush1.bf16.msra.mxu0 %v2367
    %3489 = vmatprep.subr.bf16.mxu0 %v2376
    %3490 = vmatpush1.bf16.msra.mxu0 %v2375
    %3491 = vmatprep.subr.bf16.mxu0 %v2384
    %3492 = vmatpush1.bf16.msra.mxu0 %v2383
    %3493 = vmatprep.subr.bf16.mxu0 %v2392
    %3494 = vmatpush1.bf16.msra.mxu0 %v2391
    %3495 = vmatprep.subr.bf16.mxu0 %v2400
    %3496 = vmatpush1.bf16.msra.mxu0 %v2399
    %3497 = vmatprep.mubr.bf16.mxu0 %v726
    %3498 = vmatmul.mubr.bf16.gmra.mrb[0].mxu0 %v725
    %v3499 = vpop.f32.mrb[0].mxu0
    %v3500 = vadd.f32 0.0, %v3499
    %v3501 = vpop.f32.mrb[0].mxu0
    %v3502 = vadd.f32 0.0, %v3501
    %v3503 = vpop.f32.mrb[0].mxu0
    %v3504 = vpop.f32.mrb[0].mxu0
    %3505 = vdwg.mxu0
    %3506 = vmatprep.subr.bf16.mxu0 %v2408
    %3507 = vmatpush1.bf16.msra.mxu0 %v2407
    %3508 = vmatprep.subr.bf16.mxu0 %v2416
    %3509 = vmatpush1.bf16.msra.mxu0 %v2415
    %3510 = vmatprep.subr.bf16.mxu0 %v2424
    %3511 = vmatpush1.bf16.msra.mxu0 %v2423
    %3512 = vmatprep.subr.bf16.mxu0 %v2432
    %3513 = vmatpush1.bf16.msra.mxu0 %v2431
    %3514 = vmatprep.subr.bf16.mxu0 %v2440
    %3515 = vmatpush1.bf16.msra.mxu0 %v2439
    %3516 = vmatprep.subr.bf16.mxu0 %v2448
    %3517 = vmatpush1.bf16.msra.mxu0 %v2447
    %3518 = vmatprep.subr.bf16.mxu0 %v2456
    %3519 = vmatpush1.bf16.msra.mxu0 %v2455
    %3520 = vmatprep.subr.bf16.mxu0 %v2464
    %3521 = vmatpush1.bf16.msra.mxu0 %v2463
    %3522 = vmatprep.subr.bf16.mxu0 %v2472
    %3523 = vmatpush1.bf16.msra.mxu0 %v2471
    %3524 = vmatprep.subr.bf16.mxu0 %v2480
    %3525 = vmatpush1.bf16.msra.mxu0 %v2479
    %3526 = vmatprep.subr.bf16.mxu0 %v2488
    %3527 = vmatpush1.bf16.msra.mxu0 %v2487
    %3528 = vmatprep.subr.bf16.mxu0 %v2496
    %3529 = vmatpush1.bf16.msra.mxu0 %v2495
    %3530 = vmatprep.subr.bf16.mxu0 %v2504
    %3531 = vmatpush1.bf16.msra.mxu0 %v2503
    %3532 = vmatprep.subr.bf16.mxu0 %v2512
    %3533 = vmatpush1.bf16.msra.mxu0 %v2511
    %3534 = vmatprep.subr.bf16.mxu0 %v2520
    %3535 = vmatpush1.bf16.msra.mxu0 %v2519
    %3536 = vmatprep.subr.bf16.mxu0 %v2528
    %3537 = vmatpush1.bf16.msra.mxu0 %v2527
    %3538 = vmatprep.mubr.bf16.mxu0 %v728
    %3539 = vmatmul.mubr.bf16.gmra.mrb[0].mxu0 %v727
    %v3540 = vpop.f32.mrb[0].mxu0
    %v3541 = vadd.f32 %v3500, %v3540
    %v3542 = vpop.f32.mrb[0].mxu0
    %v3543 = vadd.f32 %v3502, %v3542
    %v3544 = vpop.f32.mrb[0].mxu0
    %v3545 = vpop.f32.mrb[0].mxu0
    %3546 = vdwg.mxu0
    %3547 = vmatprep.subr.bf16.mxu0 %v2536
    %3548 = vmatpush1.bf16.msra.mxu0 %v2535
    %3549 = vmatprep.subr.bf16.mxu0 %v2544
    %3550 = vmatpush1.bf16.msra.mxu0 %v2543
    %3551 = vmatprep.subr.bf16.mxu0 %v2552
    %3552 = vmatpush1.bf16.msra.mxu0 %v2551
    %3553 = vmatprep.subr.bf16.mxu0 %v2560
    %3554 = vmatpush1.bf16.msra.mxu0 %v2559
    %3555 = vmatprep.subr.bf16.mxu0 %v2568
    %3556 = vmatpush1.bf16.msra.mxu0 %v2567
    %3557 = vmatprep.subr.bf16.mxu0 %v2576
    %3558 = vmatpush1.bf16.msra.mxu0 %v2575
    %3559 = vmatprep.subr.bf16.mxu0 %v2584
    %3560 = vmatpush1.bf16.msra.mxu0 %v2583
    %3561 = vmatprep.subr.bf16.mxu0 %v2592
    %3562 = vmatpush1.bf16.msra.mxu0 %v2591
    %3563 = vmatprep.subr.bf16.mxu0 %v2600
    %3564 = vmatpush1.bf16.msra.mxu0 %v2599
    %3565 = vmatprep.subr.bf16.mxu0 %v2608
    %3566 = vmatpush1.bf16.msra.mxu0 %v2607
    %3567 = vmatprep.subr.bf16.mxu0 %v2616
    %3568 = vmatpush1.bf16.msra.mxu0 %v2615
    %3569 = vmatprep.subr.bf16.mxu0 %v2624
    %3570 = vmatpush1.bf16.msra.mxu0 %v2623
    %3571 = vmatprep.subr.bf16.mxu0 %v2632
    %3572 = vmatpush1.bf16.msra.mxu0 %v2631
    %3573 = vmatprep.subr.bf16.mxu0 %v2640
    %3574 = vmatpush1.bf16.msra.mxu0 %v2639
    %3575 = vmatprep.subr.bf16.mxu0 %v2648
    %3576 = vmatpush1.bf16.msra.mxu0 %v2647
    %3577 = vmatprep.subr.bf16.mxu0 %v2656
    %3578 = vmatpush1.bf16.msra.mxu0 %v2655
    %3579 = vmatprep.mubr.bf16.mxu0 %v730
    %3580 = vmatmul.mubr.bf16.gmra.mrb[0].mxu0 %v729
    %v3581 = vpop.f32.mrb[0].mxu0
    %v3582 = vadd.f32 %v3541, %v3581
    %v3583 = vpop.f32.mrb[0].mxu0
    %v3584 = vadd.f32 %v3543, %v3583
    %v3585 = vpop.f32.mrb[0].mxu0
    %v3586 = vpop.f32.mrb[0].mxu0
    %3587 = vdwg.mxu0
    %3588 = vmatprep.subr.bf16.mxu0 %v2664
    %3589 = vmatpush1.bf16.msra.mxu0 %v2663
    %3590 = vmatprep.subr.bf16.mxu0 %v2672
    %3591 = vmatpush1.bf16.msra.mxu0 %v2671
    %3592 = vmatprep.subr.bf16.mxu0 %v2680
    %3593 = vmatpush1.bf16.msra.mxu0 %v2679
    %3594 = vmatprep.subr.bf16.mxu0 %v2688
    %3595 = vmatpush1.bf16.msra.mxu0 %v2687
    %3596 = vmatprep.subr.bf16.mxu0 %v2696
    %3597 = vmatpush1.bf16.msra.mxu0 %v2695
    %3598 = vmatprep.subr.bf16.mxu0 %v2704
    %3599 = vmatpush1.bf16.msra.mxu0 %v2703
    %3600 = vmatprep.subr.bf16.mxu0 %v2712
    %3601 = vmatpush1.bf16.msra.mxu0 %v2711
    %3602 = vmatprep.subr.bf16.mxu0 %v2720
    %3603 = vmatpush1.bf16.msra.mxu0 %v2719
    %3604 = vmatprep.subr.bf16.mxu0 %v2728
    %3605 = vmatpush1.bf16.msra.mxu0 %v2727
    %3606 = vmatprep.subr.bf16.mxu0 %v2736
    %3607 = vmatpush1.bf16.msra.mxu0 %v2735
    %3608 = vmatprep.subr.bf16.mxu0 %v2744
    %3609 = vmatpush1.bf16.msra.mxu0 %v2743
    %3610 = vmatprep.subr.bf16.mxu0 %v2752
    %3611 = vmatpush1.bf16.msra.mxu0 %v2751
    %3612 = vmatprep.subr.bf16.mxu0 %v2760
    %3613 = vmatpush1.bf16.msra.mxu0 %v2759
    %3614 = vmatprep.subr.bf16.mxu0 %v2768
    %3615 = vmatpush1.bf16.msra.mxu0 %v2767
    %3616 = vmatprep.subr.bf16.mxu0 %v2776
    %3617 = vmatpush1.bf16.msra.mxu0 %v2775
    %3618 = vmatprep.subr.bf16.mxu0 %v2784
    %3619 = vmatpush1.bf16.msra.mxu0 %v2783
    %3620 = vmatprep.mubr.bf16.mxu0 %v732
    %3621 = vmatmul.mubr.bf16.gmra.mrb[0].mxu0 %v731
    %v3622 = vpop.f32.mrb[0].mxu0
    %v3623 = vadd.f32 %v3582, %v3622
    %v3624 = vpop.f32.mrb[0].mxu0
    %v3625 = vadd.f32 %v3584, %v3624
    %v3626 = vpop.f32.mrb[0].mxu0
    %v3627 = vpop.f32.mrb[0].mxu0
    %3628 = vdwg.mxu0
    %3629 = vmatprep.subr.bf16.mxu0 %v2282
    %3630 = vmatpush1.bf16.msra.mxu0 %v2281
    %3631 = vmatprep.subr.bf16.mxu0 %v2290
    %3632 = vmatpush1.bf16.msra.mxu0 %v2289
    %3633 = vmatprep.subr.bf16.mxu0 %v2298
    %3634 = vmatpush1.bf16.msra.mxu0 %v2297
    %3635 = vmatprep.subr.bf16.mxu0 %v2306
    %3636 = vmatpush1.bf16.msra.mxu0 %v2305
    %3637 = vmatprep.subr.bf16.mxu0 %v2314
    %3638 = vmatpush1.bf16.msra.mxu0 %v2313
    %3639 = vmatprep.subr.bf16.mxu0 %v2322
    %3640 = vmatpush1.bf16.msra.mxu0 %v2321
    %3641 = vmatprep.subr.bf16.mxu0 %v2330
    %3642 = vmatpush1.bf16.msra.mxu0 %v2329
    %3643 = vmatprep.subr.bf16.mxu0 %v2338
    %3644 = vmatpush1.bf16.msra.mxu0 %v2337
    %3645 = vmatprep.subr.bf16.mxu0 %v2346
    %3646 = vmatpush1.bf16.msra.mxu0 %v2345
    %3647 = vmatprep.subr.bf16.mxu0 %v2354
    %3648 = vmatpush1.bf16.msra.mxu0 %v2353
    %3649 = vmatprep.subr.bf16.mxu0 %v2362
    %3650 = vmatpush1.bf16.msra.mxu0 %v2361
    %3651 = vmatprep.subr.bf16.mxu0 %v2370
    %3652 = vmatpush1.bf16.msra.mxu0 %v2369
    %3653 = vmatprep.subr.bf16.mxu0 %v2378
    %3654 = vmatpush1.bf16.msra.mxu0 %v2377
    %3655 = vmatprep.subr.bf16.mxu0 %v2386
    %3656 = vmatpush1.bf16.msra.mxu0 %v2385
    %3657 = vmatprep.subr.bf16.mxu0 %v2394
    %3658 = vmatpush1.bf16.msra.mxu0 %v2393
    %3659 = vmatprep.subr.bf16.mxu0 %v2402
    %3660 = vmatpush1.bf16.msra.mxu0 %v2401
    %3661 = vmatprep.mubr.bf16.mxu0 %v726
    %3662 = vmatmul.mubr.bf16.gmra.mrb[0].mxu0 %v725
    %v3663 = vpop.f32.mrb[0].mxu0
    %v3664 = vadd.f32 0.0, %v3663
    %v3665 = vpop.f32.mrb[0].mxu0
    %v3666 = vadd.f32 0.0, %v3665
    %v3667 = vpop.f32.mrb[0].mxu0
    %v3668 = vpop.f32.mrb[0].mxu0
    %3669 = vdwg.mxu0
    %3670 = vmatprep.subr.bf16.mxu0 %v2410
    %3671 = vmatpush1.bf16.msra.mxu0 %v2409
    %3672 = vmatprep.subr.bf16.mxu0 %v2418
    %3673 = vmatpush1.bf16.msra.mxu0 %v2417
    %3674 = vmatprep.subr.bf16.mxu0 %v2426
    %3675 = vmatpush1.bf16.msra.mxu0 %v2425
    %3676 = vmatprep.subr.bf16.mxu0 %v2434
    %3677 = vmatpush1.bf16.msra.mxu0 %v2433
    %3678 = vmatprep.subr.bf16.mxu0 %v2442
    %3679 = vmatpush1.bf16.msra.mxu0 %v2441
    %3680 = vmatprep.subr.bf16.mxu0 %v2450
    %3681 = vmatpush1.bf16.msra.mxu0 %v2449
    %3682 = vmatprep.subr.bf16.mxu0 %v2458
    %3683 = vmatpush1.bf16.msra.mxu0 %v2457
    %3684 = vmatprep.subr.bf16.mxu0 %v2466
    %3685 = vmatpush1.bf16.msra.mxu0 %v2465
    %3686 = vmatprep.subr.bf16.mxu0 %v2474
    %3687 = vmatpush1.bf16.msra.mxu0 %v2473
    %3688 = vmatprep.subr.bf16.mxu0 %v2482
    %3689 = vmatpush1.bf16.msra.mxu0 %v2481
    %3690 = vmatprep.subr.bf16.mxu0 %v2490
    %3691 = vmatpush1.bf16.msra.mxu0 %v2489
    %3692 = vmatprep.subr.bf16.mxu0 %v2498
    %3693 = vmatpush1.bf16.msra.mxu0 %v2497
    %3694 = vmatprep.subr.bf16.mxu0 %v2506
    %3695 = vmatpush1.bf16.msra.mxu0 %v2505
    %3696 = vmatprep.subr.bf16.mxu0 %v2514
    %3697 = vmatpush1.bf16.msra.mxu0 %v2513
    %3698 = vmatprep.subr.bf16.mxu0 %v2522
    %3699 = vmatpush1.bf16.msra.mxu0 %v2521
    %3700 = vmatprep.subr.bf16.mxu0 %v2530
    %3701 = vmatpush1.bf16.msra.mxu0 %v2529
    %3702 = vmatprep.mubr.bf16.mxu0 %v728
    %3703 = vmatmul.mubr.bf16.gmra.mrb[0].mxu0 %v727
    %v3704 = vpop.f32.mrb[0].mxu0
    %v3705 = vadd.f32 %v3664, %v3704
    %v3706 = vpop.f32.mrb[0].mxu0
    %v3707 = vadd.f32 %v3666, %v3706
    %v3708 = vpop.f32.mrb[0].mxu0
    %v3709 = vpop.f32.mrb[0].mxu0
    %3710 = vdwg.mxu0
    %3711 = vmatprep.subr.bf16.mxu0 %v2538
    %3712 = vmatpush1.bf16.msra.mxu0 %v2537
    %3713 = vmatprep.subr.bf16.mxu0 %v2546
    %3714 = vmatpush1.bf16.msra.mxu0 %v2545
    %3715 = vmatprep.subr.bf16.mxu0 %v2554
    %3716 = vmatpush1.bf16.msra.mxu0 %v2553
    %3717 = vmatprep.subr.bf16.mxu0 %v2562
    %3718 = vmatpush1.bf16.msra.mxu0 %v2561
    %3719 = vmatprep.subr.bf16.mxu0 %v2570
    %3720 = vmatpush1.bf16.msra.mxu0 %v2569
    %3721 = vmatprep.subr.bf16.mxu0 %v2578
    %3722 = vmatpush1.bf16.msra.mxu0 %v2577
    %3723 = vmatprep.subr.bf16.mxu0 %v2586
    %3724 = vmatpush1.bf16.msra.mxu0 %v2585
    %3725 = vmatprep.subr.bf16.mxu0 %v2594
    %3726 = vmatpush1.bf16.msra.mxu0 %v2593
    %3727 = vmatprep.subr.bf16.mxu0 %v2602
    %3728 = vmatpush1.bf16.msra.mxu0 %v2601
    %3729 = vmatprep.subr.bf16.mxu0 %v2610
    %3730 = vmatpush1.bf16.msra.mxu0 %v2609
    %3731 = vmatprep.subr.bf16.mxu0 %v2618
    %3732 = vmatpush1.bf16.msra.mxu0 %v2617
    %3733 = vmatprep.subr.bf16.mxu0 %v2626
    %3734 = vmatpush1.bf16.msra.mxu0 %v2625
    %3735 = vmatprep.subr.bf16.mxu0 %v2634
    %3736 = vmatpush1.bf16.msra.mxu0 %v2633
    %3737 = vmatprep.subr.bf16.mxu0 %v2642
    %3738 = vmatpush1.bf16.msra.mxu0 %v2641
    %3739 = vmatprep.subr.bf16.mxu0 %v2650
    %3740 = vmatpush1.bf16.msra.mxu0 %v2649
    %3741 = vmatprep.subr.bf16.mxu0 %v2658
    %3742 = vmatpush1.bf16.msra.mxu0 %v2657
    %3743 = vmatprep.mubr.bf16.mxu0 %v730
    %3744 = vmatmul.mubr.bf16.gmra.mrb[0].mxu0 %v729
    %v3745 = vpop.f32.mrb[0].mxu0
    %v3746 = vadd.f32 %v3705, %v3745
    %v3747 = vpop.f32.mrb[0].mxu0
    %v3748 = vadd.f32 %v3707, %v3747
    %v3749 = vpop.f32.mrb[0].mxu0
    %v3750 = vpop.f32.mrb[0].mxu0
    %3751 = vdwg.mxu0
    %3752 = vmatprep.subr.bf16.mxu0 %v2666
    %3753 = vmatpush1.bf16.msra.mxu0 %v2665
    %3754 = vmatprep.subr.bf16.mxu0 %v2674
    %3755 = vmatpush1.bf16.msra.mxu0 %v2673
    %3756 = vmatprep.subr.bf16.mxu0 %v2682
    %3757 = vmatpush1.bf16.msra.mxu0 %v2681
    %3758 = vmatprep.subr.bf16.mxu0 %v2690
    %3759 = vmatpush1.bf16.msra.mxu0 %v2689
    %3760 = vmatprep.subr.bf16.mxu0 %v2698
    %3761 = vmatpush1.bf16.msra.mxu0 %v2697
    %3762 = vmatprep.subr.bf16.mxu0 %v2706
    %3763 = vmatpush1.bf16.msra.mxu0 %v2705
    %3764 = vmatprep.subr.bf16.mxu0 %v2714
    %3765 = vmatpush1.bf16.msra.mxu0 %v2713
    %3766 = vmatprep.subr.bf16.mxu0 %v2722
    %3767 = vmatpush1.bf16.msra.mxu0 %v2721
    %3768 = vmatprep.subr.bf16.mxu0 %v2730
    %3769 = vmatpush1.bf16.msra.mxu0 %v2729
    %3770 = vmatprep.subr.bf16.mxu0 %v2738
    %3771 = vmatpush1.bf16.msra.mxu0 %v2737
    %3772 = vmatprep.subr.bf16.mxu0 %v2746
    %3773 = vmatpush1.bf16.msra.mxu0 %v2745
    %3774 = vmatprep.subr.bf16.mxu0 %v2754
    %3775 = vmatpush1.bf16.msra.mxu0 %v2753
    %3776 = vmatprep.subr.bf16.mxu0 %v2762
    %3777 = vmatpush1.bf16.msra.mxu0 %v2761
    %3778 = vmatprep.subr.bf16.mxu0 %v2770
    %3779 = vmatpush1.bf16.msra.mxu0 %v2769
    %3780 = vmatprep.subr.bf16.mxu0 %v2778
    %3781 = vmatpush1.bf16.msra.mxu0 %v2777
    %3782 = vmatprep.subr.bf16.mxu0 %v2786
    %3783 = vmatpush1.bf16.msra.mxu0 %v2785
    %3784 = vmatprep.mubr.bf16.mxu0 %v732
    %3785 = vmatmul.mubr.bf16.gmra.mrb[0].mxu0 %v731
    %v3786 = vpop.f32.mrb[0].mxu0
    %v3787 = vadd.f32 %v3746, %v3786
    %v3788 = vpop.f32.mrb[0].mxu0
    %v3789 = vadd.f32 %v3748, %v3788
    %v3790 = vpop.f32.mrb[0].mxu0
    %v3791 = vpop.f32.mrb[0].mxu0
    %3792 = vdwg.mxu0
    %3793 = vmatprep.subr.bf16.mxu0 %v2284
    %3794 = vmatpush1.bf16.msra.mxu0 %v2283
    %3795 = vmatprep.subr.bf16.mxu0 %v2292
    %3796 = vmatpush1.bf16.msra.mxu0 %v2291
    %3797 = vmatprep.subr.bf16.mxu0 %v2300
    %3798 = vmatpush1.bf16.msra.mxu0 %v2299
    %3799 = vmatprep.subr.bf16.mxu0 %v2308
    %3800 = vmatpush1.bf16.msra.mxu0 %v2307
    %3801 = vmatprep.subr.bf16.mxu0 %v2316
    %3802 = vmatpush1.bf16.msra.mxu0 %v2315
    %3803 = vmatprep.subr.bf16.mxu0 %v2324
    %3804 = vmatpush1.bf16.msra.mxu0 %v2323
    %3805 = vmatprep.subr.bf16.mxu0 %v2332
    %3806 = vmatpush1.bf16.msra.mxu0 %v2331
    %3807 = vmatprep.subr.bf16.mxu0 %v2340
    %3808 = vmatpush1.bf16.msra.mxu0 %v2339
    %3809 = vmatprep.subr.bf16.mxu0 %v2348
    %3810 = vmatpush1.bf16.msra.mxu0 %v2347
    %3811 = vmatprep.subr.bf16.mxu0 %v2356
    %3812 = vmatpush1.bf16.msra.mxu0 %v2355
    %3813 = vmatprep.subr.bf16.mxu0 %v2364
    %3814 = vmatpush1.bf16.msra.mxu0 %v2363
    %3815 = vmatprep.subr.bf16.mxu0 %v2372
    %3816 = vmatpush1.bf16.msra.mxu0 %v2371
    %3817 = vmatprep.subr.bf16.mxu0 %v2380
    %3818 = vmatpush1.bf16.msra.mxu0 %v2379
    %3819 = vmatprep.subr.bf16.mxu0 %v2388
    %3820 = vmatpush1.bf16.msra.mxu0 %v2387
    %3821 = vmatprep.subr.bf16.mxu0 %v2396
    %3822 = vmatpush1.bf16.msra.mxu0 %v2395
    %3823 = vmatprep.subr.bf16.mxu0 %v2404
    %3824 = vmatpush1.bf16.msra.mxu0 %v2403
    %3825 = vmatprep.mubr.bf16.mxu0 %v726
    %3826 = vmatmul.mubr.bf16.gmra.mrb[0].mxu0 %v725
    %v3827 = vpop.f32.mrb[0].mxu0
    %v3828 = vadd.f32 0.0, %v3827
    %v3829 = vpop.f32.mrb[0].mxu0
    %v3830 = vadd.f32 0.0, %v3829
    %v3831 = vpop.f32.mrb[0].mxu0
    %v3832 = vpop.f32.mrb[0].mxu0
    %3833 = vdwg.mxu0
    %3834 = vmatprep.subr.bf16.mxu0 %v2412
    %3835 = vmatpush1.bf16.msra.mxu0 %v2411
    %3836 = vmatprep.subr.bf16.mxu0 %v2420
    %3837 = vmatpush1.bf16.msra.mxu0 %v2419
    %3838 = vmatprep.subr.bf16.mxu0 %v2428
    %3839 = vmatpush1.bf16.msra.mxu0 %v2427
    %3840 = vmatprep.subr.bf16.mxu0 %v2436
    %3841 = vmatpush1.bf16.msra.mxu0 %v2435
    %3842 = vmatprep.subr.bf16.mxu0 %v2444
    %3843 = vmatpush1.bf16.msra.mxu0 %v2443
    %3844 = vmatprep.subr.bf16.mxu0 %v2452
    %3845 = vmatpush1.bf16.msra.mxu0 %v2451
    %3846 = vmatprep.subr.bf16.mxu0 %v2460
    %3847 = vmatpush1.bf16.msra.mxu0 %v2459
    %3848 = vmatprep.subr.bf16.mxu0 %v2468
    %3849 = vmatpush1.bf16.msra.mxu0 %v2467
    %3850 = vmatprep.subr.bf16.mxu0 %v2476
    %3851 = vmatpush1.bf16.msra.mxu0 %v2475
    %3852 = vmatprep.subr.bf16.mxu0 %v2484
    %3853 = vmatpush1.bf16.msra.mxu0 %v2483
    %3854 = vmatprep.subr.bf16.mxu0 %v2492
    %3855 = vmatpush1.bf16.msra.mxu0 %v2491
    %3856 = vmatprep.subr.bf16.mxu0 %v2500
    %3857 = vmatpush1.bf16.msra.mxu0 %v2499
    %3858 = vmatprep.subr.bf16.mxu0 %v2508
    %3859 = vmatpush1.bf16.msra.mxu0 %v2507
    %3860 = vmatprep.subr.bf16.mxu0 %v2516
    %3861 = vmatpush1.bf16.msra.mxu0 %v2515
    %3862 = vmatprep.subr.bf16.mxu0 %v2524
    %3863 = vmatpush1.bf16.msra.mxu0 %v2523
    %3864 = vmatprep.subr.bf16.mxu0 %v2532
    %3865 = vmatpush1.bf16.msra.mxu0 %v2531
    %3866 = vmatprep.mubr.bf16.mxu0 %v728
    %3867 = vmatmul.mubr.bf16.gmra.mrb[0].mxu0 %v727
    %v3868 = vpop.f32.mrb[0].mxu0
    %v3869 = vadd.f32 %v3828, %v3868
    %v3870 = vpop.f32.mrb[0].mxu0
    %v3871 = vadd.f32 %v3830, %v3870
    %v3872 = vpop.f32.mrb[0].mxu0
    %v3873 = vpop.f32.mrb[0].mxu0
    %3874 = vdwg.mxu0
    %3875 = vmatprep.subr.bf16.mxu0 %v2540
    %3876 = vmatpush1.bf16.msra.mxu0 %v2539
    %3877 = vmatprep.subr.bf16.mxu0 %v2548
    %3878 = vmatpush1.bf16.msra.mxu0 %v2547
    %3879 = vmatprep.subr.bf16.mxu0 %v2556
    %3880 = vmatpush1.bf16.msra.mxu0 %v2555
    %3881 = vmatprep.subr.bf16.mxu0 %v2564
    %3882 = vmatpush1.bf16.msra.mxu0 %v2563
    %3883 = vmatprep.subr.bf16.mxu0 %v2572
    %3884 = vmatpush1.bf16.msra.mxu0 %v2571
    %3885 = vmatprep.subr.bf16.mxu0 %v2580
    %3886 = vmatpush1.bf16.msra.mxu0 %v2579
    %3887 = vmatprep.subr.bf16.mxu0 %v2588
    %3888 = vmatpush1.bf16.msra.mxu0 %v2587
    %3889 = vmatprep.subr.bf16.mxu0 %v2596
    %3890 = vmatpush1.bf16.msra.mxu0 %v2595
    %3891 = vmatprep.subr.bf16.mxu0 %v2604
    %3892 = vmatpush1.bf16.msra.mxu0 %v2603
    %3893 = vmatprep.subr.bf16.mxu0 %v2612
    %3894 = vmatpush1.bf16.msra.mxu0 %v2611
    %3895 = vmatprep.subr.bf16.mxu0 %v2620
    %3896 = vmatpush1.bf16.msra.mxu0 %v2619
    %3897 = vmatprep.subr.bf16.mxu0 %v2628
    %3898 = vmatpush1.bf16.msra.mxu0 %v2627
    %3899 = vmatprep.subr.bf16.mxu0 %v2636
    %3900 = vmatpush1.bf16.msra.mxu0 %v2635
    %3901 = vmatprep.subr.bf16.mxu0 %v2644
    %3902 = vmatpush1.bf16.msra.mxu0 %v2643
    %3903 = vmatprep.subr.bf16.mxu0 %v2652
    %3904 = vmatpush1.bf16.msra.mxu0 %v2651
    %3905 = vmatprep.subr.bf16.mxu0 %v2660
    %3906 = vmatpush1.bf16.msra.mxu0 %v2659
    %3907 = vmatprep.mubr.bf16.mxu0 %v730
    %3908 = vmatmul.mubr.bf16.gmra.mrb[0].mxu0 %v729
    %v3909 = vpop.f32.mrb[0].mxu0
    %v3910 = vadd.f32 %v3869, %v3909
    %v3911 = vpop.f32.mrb[0].mxu0
    %v3912 = vadd.f32 %v3871, %v3911
    %v3913 = vpop.f32.mrb[0].mxu0
    %v3914 = vpop.f32.mrb[0].mxu0
    %3915 = vdwg.mxu0
    %3916 = vmatprep.subr.bf16.mxu0 %v2668
    %3917 = vmatpush1.bf16.msra.mxu0 %v2667
    %3918 = vmatprep.subr.bf16.mxu0 %v2676
    %3919 = vmatpush1.bf16.msra.mxu0 %v2675
    %3920 = vmatprep.subr.bf16.mxu0 %v2684
    %3921 = vmatpush1.bf16.msra.mxu0 %v2683
    %3922 = vmatprep.subr.bf16.mxu0 %v2692
    %3923 = vmatpush1.bf16.msra.mxu0 %v2691
    %3924 = vmatprep.subr.bf16.mxu0 %v2700
    %3925 = vmatpush1.bf16.msra.mxu0 %v2699
    %3926 = vmatprep.subr.bf16.mxu0 %v2708
    %3927 = vmatpush1.bf16.msra.mxu0 %v2707
    %3928 = vmatprep.subr.bf16.mxu0 %v2716
    %3929 = vmatpush1.bf16.msra.mxu0 %v2715
    %3930 = vmatprep.subr.bf16.mxu0 %v2724
    %3931 = vmatpush1.bf16.msra.mxu0 %v2723
    %3932 = vmatprep.subr.bf16.mxu0 %v2732
    %3933 = vmatpush1.bf16.msra.mxu0 %v2731
    %3934 = vmatprep.subr.bf16.mxu0 %v2740
    %3935 = vmatpush1.bf16.msra.mxu0 %v2739
    %3936 = vmatprep.subr.bf16.mxu0 %v2748
    %3937 = vmatpush1.bf16.msra.mxu0 %v2747
    %3938 = vmatprep.subr.bf16.mxu0 %v2756
    %3939 = vmatpush1.bf16.msra.mxu0 %v2755
    %3940 = vmatprep.subr.bf16.mxu0 %v2764
    %3941 = vmatpush1.bf16.msra.mxu0 %v2763
    %3942 = vmatprep.subr.bf16.mxu0 %v2772
    %3943 = vmatpush1.bf16.msra.mxu0 %v2771
    %3944 = vmatprep.subr.bf16.mxu0 %v2780
    %3945 = vmatpush1.bf16.msra.mxu0 %v2779
    %3946 = vmatprep.subr.bf16.mxu0 %v2788
    %3947 = vmatpush1.bf16.msra.mxu0 %v2787
    %3948 = vmatprep.mubr.bf16.mxu0 %v732
    %3949 = vmatmul.mubr.bf16.gmra.mrb[0].mxu0 %v731
    %v3950 = vpop.f32.mrb[0].mxu0
    %v3951 = vadd.f32 %v3910, %v3950
    %v3952 = vpop.f32.mrb[0].mxu0
    %v3953 = vadd.f32 %v3912, %v3952
    %v3954 = vpop.f32.mrb[0].mxu0
    %v3955 = vpop.f32.mrb[0].mxu0
    %3956 = vdwg.mxu0
    %v3957 = vadd.f32 %v189, %v3459
    %v3958 = vadd.f32 %v190, %v3461
    %v3959 = vadd.f32 %v191, %v3623
    %v3960 = vadd.f32 %v192, %v3625
    %v3961 = vadd.f32 %v193, %v3787
    %v3962 = vadd.f32 %v194, %v3789
    %v3963 = vadd.f32 %v195, %v3951
    %v3964 = vadd.f32 %v196, %v3953
    %3965 = vst [vmem:[#allocation2] sm:$0xff] %v3957
    %3966 = vst [vmem:[#allocation2 + $0x8] sm:$0xff] %v3958
    %3967 = vst [vmem:[#allocation2 + $0x10] sm:$0xff] %v3959
    %3968 = vst [vmem:[#allocation2 + $0x18] sm:$0xff] %v3960
    %3969 = vst [vmem:[#allocation2 + $0x20] sm:$0xff] %v3961
    %3970 = vst [vmem:[#allocation2 + $0x28] sm:$0xff] %v3962
    %3971 = vst [vmem:[#allocation2 + $0x30] sm:$0xff] %v3963
    %3972 = vst [vmem:[#allocation2 + $0x38] sm:$0xff] %v3964
    // Predicated region
    $region94: #{tpu_custom_call.1} parent=1 // pred_check
      %p3973 = pneg %p177
    $region95: #{tpu_custom_call.1} parent=1 // pred_check_branch
      %3975 = sbr.rel (%p3973) target = $region97
    $region96: #{tpu_custom_call.1} parent=1 // pred_region
      %v3976 = vld [vmem:[#allocation2] sm:$0xff]
      %v3977 = vld [vmem:[#allocation2 + $0x8] sm:$0xff]
      %v3978 = vld [vmem:[#allocation2 + $0x10] sm:$0xff]
      %v3979 = vld [vmem:[#allocation2 + $0x18] sm:$0xff]
      %v3980 = vld [vmem:[#allocation2 + $0x20] sm:$0xff]
      %v3981 = vld [vmem:[#allocation2 + $0x28] sm:$0xff]
      %v3982 = vld [vmem:[#allocation2 + $0x30] sm:$0xff]
      %v3983 = vld [vmem:[#allocation2 + $0x38] sm:$0xff]
      %v3984 = vld [vmem:[#allocation8] sm:$0xff]
      %v3986 = vlaneseq
      %v3987 = vshrl.u32 %v3986, 7
      %v3988 = vsub.s32 0, %v3987
      %v3989 = vrot.slane %v3984, %v3988
      %v3990 = vlaneseq
      %v3991 = vshrl.u32 %v3990, 7
      %v3992 = vsub.s32 1, %v3991
      %v3993 = vrot.slane %v3984, %v3992
      %v3994 = vlaneseq
      %v3995 = vshrl.u32 %v3994, 7
      %v3996 = vsub.s32 2, %v3995
      %v3997 = vrot.slane %v3984, %v3996
      %v3998 = vlaneseq
      %v3999 = vshrl.u32 %v3998, 7
      %v4000 = vsub.s32 3, %v3999
      %v4001 = vrot.slane %v3984, %v4000
      %v4002 = vlaneseq
      %v4003 = vshrl.u32 %v4002, 7
      %v4004 = vsub.s32 4, %v4003
      %v4005 = vrot.slane %v3984, %v4004
      %v4006 = vlaneseq
      %v4007 = vshrl.u32 %v4006, 7
      %v4008 = vsub.s32 5, %v4007
      %v4009 = vrot.slane %v3984, %v4008
      %v4010 = vlaneseq
      %v4011 = vshrl.u32 %v4010, 7
      %v4012 = vsub.s32 6, %v4011
      %v4013 = vrot.slane %v3984, %v4012
      %v4014 = vlaneseq
      %v4015 = vshrl.u32 %v4014, 7
      %v4016 = vsub.s32 7, %v4015
      %v4017 = vrot.slane %v3984, %v4016
      %v4026 = vadd.f32 %v3976, %v3989
      %v4027 = vadd.f32 %v3977, %v3993
      %v4028 = vadd.f32 %v3978, %v3997
      %v4029 = vadd.f32 %v3979, %v4001
      %v4030 = vadd.f32 %v3980, %v4005
      %v4031 = vadd.f32 %v3981, %v4009
      %v4032 = vadd.f32 %v3982, %v4013
      %v4033 = vadd.f32 %v3983, %v4017
      %v4034 = vpack.c.bf16 %v4026, %v4026
      %v4035 = vpack.c.bf16 %v4027, %v4027
      %v4036 = vpack.c.bf16 %v4028, %v4028
      %v4037 = vpack.c.bf16 %v4029, %v4029
      %v4038 = vpack.c.bf16 %v4030, %v4030
      %v4039 = vpack.c.bf16 %v4031, %v4031
      %v4040 = vpack.c.bf16 %v4032, %v4032
      %v4041 = vpack.c.bf16 %v4033, %v4033
      %v4042 = vld [vmem:[#allocation9] sm:$0xff]
      %v4043 = vld [vmem:[#allocation9 + $0x8] sm:$0xff]
      %v4044 = vld [vmem:[#allocation9 + $0x10] sm:$0xff]
      %v4045 = vld [vmem:[#allocation9 + $0x18] sm:$0xff]
      %v4046 = vld [vmem:[#allocation9 + $0x20] sm:$0xff]
      %v4047 = vld [vmem:[#allocation9 + $0x28] sm:$0xff]
      %v4048 = vld [vmem:[#allocation9 + $0x30] sm:$0xff]
      %v4049 = vld [vmem:[#allocation9 + $0x38] sm:$0xff]
      %v4050 = vld [vmem:[#allocation9 + $0x40] sm:$0xff]
      %v4051 = vld [vmem:[#allocation9 + $0x48] sm:$0xff]
      %v4052 = vld [vmem:[#allocation9 + $0x50] sm:$0xff]
      %v4053 = vld [vmem:[#allocation9 + $0x58] sm:$0xff]
      %v4054 = vld [vmem:[#allocation9 + $0x60] sm:$0xff]
      %v4055 = vld [vmem:[#allocation9 + $0x68] sm:$0xff]
      %v4056 = vld [vmem:[#allocation9 + $0x70] sm:$0xff]
      %v4057 = vld [vmem:[#allocation9 + $0x78] sm:$0xff]
      %v4058 = vld [vmem:[#allocation9 + $0x80] sm:$0xff]
      %v4059 = vld [vmem:[#allocation9 + $0x88] sm:$0xff]
      %v4060 = vld [vmem:[#allocation9 + $0x90] sm:$0xff]
      %v4061 = vld [vmem:[#allocation9 + $0x98] sm:$0xff]
      %v4062 = vld [vmem:[#allocation9 + $0xa0] sm:$0xff]
      %v4063 = vld [vmem:[#allocation9 + $0xa8] sm:$0xff]
      %v4064 = vld [vmem:[#allocation9 + $0xb0] sm:$0xff]
      %v4065 = vld [vmem:[#allocation9 + $0xb8] sm:$0xff]
      %v4066 = vld [vmem:[#allocation9 + $0xc0] sm:$0xff]
      %v4067 = vld [vmem:[#allocation9 + $0xc8] sm:$0xff]
      %v4068 = vld [vmem:[#allocation9 + $0xd0] sm:$0xff]
      %v4069 = vld [vmem:[#allocation9 + $0xd8] sm:$0xff]
      %v4070 = vld [vmem:[#allocation9 + $0xe0] sm:$0xff]
      %v4071 = vld [vmem:[#allocation9 + $0xe8] sm:$0xff]
      %v4072 = vld [vmem:[#allocation9 + $0xf0] sm:$0xff]
      %v4073 = vld [vmem:[#allocation9 + $0xf8] sm:$0xff]
      %v4074 = vld [vmem:[#allocation9 + $0x100] sm:$0xff]
      %v4075 = vld [vmem:[#allocation9 + $0x108] sm:$0xff]
      %v4076 = vld [vmem:[#allocation9 + $0x110] sm:$0xff]
      %v4077 = vld [vmem:[#allocation9 + $0x118] sm:$0xff]
      %v4078 = vld [vmem:[#allocation9 + $0x120] sm:$0xff]
      %v4079 = vld [vmem:[#allocation9 + $0x128] sm:$0xff]
      %v4080 = vld [vmem:[#allocation9 + $0x130] sm:$0xff]
      %v4081 = vld [vmem:[#allocation9 + $0x138] sm:$0xff]
      %v4082 = vld [vmem:[#allocation9 + $0x140] sm:$0xff]
      %v4083 = vld [vmem:[#allocation9 + $0x148] sm:$0xff]
      %v4084 = vld [vmem:[#allocation9 + $0x150] sm:$0xff]
      %v4085 = vld [vmem:[#allocation9 + $0x158] sm:$0xff]
      %v4086 = vld [vmem:[#allocation9 + $0x160] sm:$0xff]
      %v4087 = vld [vmem:[#allocation9 + $0x168] sm:$0xff]
      %v4088 = vld [vmem:[#allocation9 + $0x170] sm:$0xff]
      %v4089 = vld [vmem:[#allocation9 + $0x178] sm:$0xff]
      %v4090 = vld [vmem:[#allocation9 + $0x180] sm:$0xff]
      %v4091 = vld [vmem:[#allocation9 + $0x188] sm:$0xff]
      %v4092 = vld [vmem:[#allocation9 + $0x190] sm:$0xff]
      %v4093 = vld [vmem:[#allocation9 + $0x198] sm:$0xff]
      %v4094 = vld [vmem:[#allocation9 + $0x1a0] sm:$0xff]
      %v4095 = vld [vmem:[#allocation9 + $0x1a8] sm:$0xff]
      %v4096 = vld [vmem:[#allocation9 + $0x1b0] sm:$0xff]
      %v4097 = vld [vmem:[#allocation9 + $0x1b8] sm:$0xff]
      %v4098 = vld [vmem:[#allocation9 + $0x1c0] sm:$0xff]
      %v4099 = vld [vmem:[#allocation9 + $0x1c8] sm:$0xff]
      %v4100 = vld [vmem:[#allocation9 + $0x1d0] sm:$0xff]
      %v4101 = vld [vmem:[#allocation9 + $0x1d8] sm:$0xff]
      %v4102 = vld [vmem:[#allocation9 + $0x1e0] sm:$0xff]
      %v4103 = vld [vmem:[#allocation9 + $0x1e8] sm:$0xff]
      %v4104 = vld [vmem:[#allocation9 + $0x1f0] sm:$0xff]
      %v4105 = vld [vmem:[#allocation9 + $0x1f8] sm:$0xff]
      %v4106 = vld [vmem:[#allocation9 + $0x200] sm:$0xff]
      %v4107 = vld [vmem:[#allocation9 + $0x208] sm:$0xff]
      %v4108 = vld [vmem:[#allocation9 + $0x210] sm:$0xff]
      %v4109 = vld [vmem:[#allocation9 + $0x218] sm:$0xff]
      %v4110 = vld [vmem:[#allocation9 + $0x220] sm:$0xff]
      %v4111 = vld [vmem:[#allocation9 + $0x228] sm:$0xff]
      %v4112 = vld [vmem:[#allocation9 + $0x230] sm:$0xff]
      %v4113 = vld [vmem:[#allocation9 + $0x238] sm:$0xff]
      %v4114 = vld [vmem:[#allocation9 + $0x240] sm:$0xff]
      %v4115 = vld [vmem:[#allocation9 + $0x248] sm:$0xff]
      %v4116 = vld [vmem:[#allocation9 + $0x250] sm:$0xff]
      %v4117 = vld [vmem:[#allocation9 + $0x258] sm:$0xff]
      %v4118 = vld [vmem:[#allocation9 + $0x260] sm:$0xff]
      %v4119 = vld [vmem:[#allocation9 + $0x268] sm:$0xff]
      %v4120 = vld [vmem:[#allocation9 + $0x270] sm:$0xff]
      %v4121 = vld [vmem:[#allocation9 + $0x278] sm:$0xff]
      %v4122 = vld [vmem:[#allocation9 + $0x280] sm:$0xff]
      %v4123 = vld [vmem:[#allocation9 + $0x288] sm:$0xff]
      %v4124 = vld [vmem:[#allocation9 + $0x290] sm:$0xff]
      %v4125 = vld [vmem:[#allocation9 + $0x298] sm:$0xff]
      %v4126 = vld [vmem:[#allocation9 + $0x2a0] sm:$0xff]
      %v4127 = vld [vmem:[#allocation9 + $0x2a8] sm:$0xff]
      %v4128 = vld [vmem:[#allocation9 + $0x2b0] sm:$0xff]
      %v4129 = vld [vmem:[#allocation9 + $0x2b8] sm:$0xff]
      %v4130 = vld [vmem:[#allocation9 + $0x2c0] sm:$0xff]
      %v4131 = vld [vmem:[#allocation9 + $0x2c8] sm:$0xff]
      %v4132 = vld [vmem:[#allocation9 + $0x2d0] sm:$0xff]
      %v4133 = vld [vmem:[#allocation9 + $0x2d8] sm:$0xff]
      %v4134 = vld [vmem:[#allocation9 + $0x2e0] sm:$0xff]
      %v4135 = vld [vmem:[#allocation9 + $0x2e8] sm:$0xff]
      %v4136 = vld [vmem:[#allocation9 + $0x2f0] sm:$0xff]
      %v4137 = vld [vmem:[#allocation9 + $0x2f8] sm:$0xff]
      %v4138 = vld [vmem:[#allocation9 + $0x300] sm:$0xff]
      %v4139 = vld [vmem:[#allocation9 + $0x308] sm:$0xff]
      %v4140 = vld [vmem:[#allocation9 + $0x310] sm:$0xff]
      %v4141 = vld [vmem:[#allocation9 + $0x318] sm:$0xff]
      %v4142 = vld [vmem:[#allocation9 + $0x320] sm:$0xff]
      %v4143 = vld [vmem:[#allocation9 + $0x328] sm:$0xff]
      %v4144 = vld [vmem:[#allocation9 + $0x330] sm:$0xff]
      %v4145 = vld [vmem:[#allocation9 + $0x338] sm:$0xff]
      %v4146 = vld [vmem:[#allocation9 + $0x340] sm:$0xff]
      %v4147 = vld [vmem:[#allocation9 + $0x348] sm:$0xff]
      %v4148 = vld [vmem:[#allocation9 + $0x350] sm:$0xff]
      %v4149 = vld [vmem:[#allocation9 + $0x358] sm:$0xff]
      %v4150 = vld [vmem:[#allocation9 + $0x360] sm:$0xff]
      %v4151 = vld [vmem:[#allocation9 + $0x368] sm:$0xff]
      %v4152 = vld [vmem:[#allocation9 + $0x370] sm:$0xff]
      %v4153 = vld [vmem:[#allocation9 + $0x378] sm:$0xff]
      %v4154 = vld [vmem:[#allocation9 + $0x380] sm:$0xff]
      %v4155 = vld [vmem:[#allocation9 + $0x388] sm:$0xff]
      %v4156 = vld [vmem:[#allocation9 + $0x390] sm:$0xff]
      %v4157 = vld [vmem:[#allocation9 + $0x398] sm:$0xff]
      %v4158 = vld [vmem:[#allocation9 + $0x3a0] sm:$0xff]
      %v4159 = vld [vmem:[#allocation9 + $0x3a8] sm:$0xff]
      %v4160 = vld [vmem:[#allocation9 + $0x3b0] sm:$0xff]
      %v4161 = vld [vmem:[#allocation9 + $0x3b8] sm:$0xff]
      %v4162 = vld [vmem:[#allocation9 + $0x3c0] sm:$0xff]
      %v4163 = vld [vmem:[#allocation9 + $0x3c8] sm:$0xff]
      %v4164 = vld [vmem:[#allocation9 + $0x3d0] sm:$0xff]
      %v4165 = vld [vmem:[#allocation9 + $0x3d8] sm:$0xff]
      %v4166 = vld [vmem:[#allocation9 + $0x3e0] sm:$0xff]
      %v4167 = vld [vmem:[#allocation9 + $0x3e8] sm:$0xff]
      %v4168 = vld [vmem:[#allocation9 + $0x3f0] sm:$0xff]
      %v4169 = vld [vmem:[#allocation9 + $0x3f8] sm:$0xff]
      %v4170 = vld [vmem:[#allocation9 + $0x400] sm:$0xff]
      %v4171 = vld [vmem:[#allocation9 + $0x408] sm:$0xff]
      %v4172 = vld [vmem:[#allocation9 + $0x410] sm:$0xff]
      %v4173 = vld [vmem:[#allocation9 + $0x418] sm:$0xff]
      %v4174 = vld [vmem:[#allocation9 + $0x420] sm:$0xff]
      %v4175 = vld [vmem:[#allocation9 + $0x428] sm:$0xff]
      %v4176 = vld [vmem:[#allocation9 + $0x430] sm:$0xff]
      %v4177 = vld [vmem:[#allocation9 + $0x438] sm:$0xff]
      %v4178 = vld [vmem:[#allocation9 + $0x440] sm:$0xff]
      %v4179 = vld [vmem:[#allocation9 + $0x448] sm:$0xff]
      %v4180 = vld [vmem:[#allocation9 + $0x450] sm:$0xff]
      %v4181 = vld [vmem:[#allocation9 + $0x458] sm:$0xff]
      %v4182 = vld [vmem:[#allocation9 + $0x460] sm:$0xff]
      %v4183 = vld [vmem:[#allocation9 + $0x468] sm:$0xff]
      %v4184 = vld [vmem:[#allocation9 + $0x470] sm:$0xff]
      %v4185 = vld [vmem:[#allocation9 + $0x478] sm:$0xff]
      %v4186 = vld [vmem:[#allocation9 + $0x480] sm:$0xff]
      %v4187 = vld [vmem:[#allocation9 + $0x488] sm:$0xff]
      %v4188 = vld [vmem:[#allocation9 + $0x490] sm:$0xff]
      %v4189 = vld [vmem:[#allocation9 + $0x498] sm:$0xff]
      %v4190 = vld [vmem:[#allocation9 + $0x4a0] sm:$0xff]
      %v4191 = vld [vmem:[#allocation9 + $0x4a8] sm:$0xff]
      %v4192 = vld [vmem:[#allocation9 + $0x4b0] sm:$0xff]
      %v4193 = vld [vmem:[#allocation9 + $0x4b8] sm:$0xff]
      %v4194 = vld [vmem:[#allocation9 + $0x4c0] sm:$0xff]
      %v4195 = vld [vmem:[#allocation9 + $0x4c8] sm:$0xff]
      %v4196 = vld [vmem:[#allocation9 + $0x4d0] sm:$0xff]
      %v4197 = vld [vmem:[#allocation9 + $0x4d8] sm:$0xff]
      %v4198 = vld [vmem:[#allocation9 + $0x4e0] sm:$0xff]
      %v4199 = vld [vmem:[#allocation9 + $0x4e8] sm:$0xff]
      %v4200 = vld [vmem:[#allocation9 + $0x4f0] sm:$0xff]
      %v4201 = vld [vmem:[#allocation9 + $0x4f8] sm:$0xff]
      %v4202 = vld [vmem:[#allocation9 + $0x500] sm:$0xff]
      %v4203 = vld [vmem:[#allocation9 + $0x508] sm:$0xff]
      %v4204 = vld [vmem:[#allocation9 + $0x510] sm:$0xff]
      %v4205 = vld [vmem:[#allocation9 + $0x518] sm:$0xff]
      %v4206 = vld [vmem:[#allocation9 + $0x520] sm:$0xff]
      %v4207 = vld [vmem:[#allocation9 + $0x528] sm:$0xff]
      %v4208 = vld [vmem:[#allocation9 + $0x530] sm:$0xff]
      %v4209 = vld [vmem:[#allocation9 + $0x538] sm:$0xff]
      %v4210 = vld [vmem:[#allocation9 + $0x540] sm:$0xff]
      %v4211 = vld [vmem:[#allocation9 + $0x548] sm:$0xff]
      %v4212 = vld [vmem:[#allocation9 + $0x550] sm:$0xff]
      %v4213 = vld [vmem:[#allocation9 + $0x558] sm:$0xff]
      %v4214 = vld [vmem:[#allocation9 + $0x560] sm:$0xff]
      %v4215 = vld [vmem:[#allocation9 + $0x568] sm:$0xff]
      %v4216 = vld [vmem:[#allocation9 + $0x570] sm:$0xff]
      %v4217 = vld [vmem:[#allocation9 + $0x578] sm:$0xff]
      %v4218 = vld [vmem:[#allocation9 + $0x580] sm:$0xff]
      %v4219 = vld [vmem:[#allocation9 + $0x588] sm:$0xff]
      %v4220 = vld [vmem:[#allocation9 + $0x590] sm:$0xff]
      %v4221 = vld [vmem:[#allocation9 + $0x598] sm:$0xff]
      %v4222 = vld [vmem:[#allocation9 + $0x5a0] sm:$0xff]
      %v4223 = vld [vmem:[#allocation9 + $0x5a8] sm:$0xff]
      %v4224 = vld [vmem:[#allocation9 + $0x5b0] sm:$0xff]
      %v4225 = vld [vmem:[#allocation9 + $0x5b8] sm:$0xff]
      %v4226 = vld [vmem:[#allocation9 + $0x5c0] sm:$0xff]
      %v4227 = vld [vmem:[#allocation9 + $0x5c8] sm:$0xff]
      %v4228 = vld [vmem:[#allocation9 + $0x5d0] sm:$0xff]
      %v4229 = vld [vmem:[#allocation9 + $0x5d8] sm:$0xff]
      %v4230 = vld [vmem:[#allocation9 + $0x5e0] sm:$0xff]
      %v4231 = vld [vmem:[#allocation9 + $0x5e8] sm:$0xff]
      %v4232 = vld [vmem:[#allocation9 + $0x5f0] sm:$0xff]
      %v4233 = vld [vmem:[#allocation9 + $0x5f8] sm:$0xff]
      %v4234 = vld [vmem:[#allocation9 + $0x600] sm:$0xff]
      %v4235 = vld [vmem:[#allocation9 + $0x608] sm:$0xff]
      %v4236 = vld [vmem:[#allocation9 + $0x610] sm:$0xff]
      %v4237 = vld [vmem:[#allocation9 + $0x618] sm:$0xff]
      %v4238 = vld [vmem:[#allocation9 + $0x620] sm:$0xff]
      %v4239 = vld [vmem:[#allocation9 + $0x628] sm:$0xff]
      %v4240 = vld [vmem:[#allocation9 + $0x630] sm:$0xff]
      %v4241 = vld [vmem:[#allocation9 + $0x638] sm:$0xff]
      %v4242 = vld [vmem:[#allocation9 + $0x640] sm:$0xff]
      %v4243 = vld [vmem:[#allocation9 + $0x648] sm:$0xff]
      %v4244 = vld [vmem:[#allocation9 + $0x650] sm:$0xff]
      %v4245 = vld [vmem:[#allocation9 + $0x658] sm:$0xff]
      %v4246 = vld [vmem:[#allocation9 + $0x660] sm:$0xff]
      %v4247 = vld [vmem:[#allocation9 + $0x668] sm:$0xff]
      %v4248 = vld [vmem:[#allocation9 + $0x670] sm:$0xff]
      %v4249 = vld [vmem:[#allocation9 + $0x678] sm:$0xff]
      %v4250 = vld [vmem:[#allocation9 + $0x680] sm:$0xff]
      %v4251 = vld [vmem:[#allocation9 + $0x688] sm:$0xff]
      %v4252 = vld [vmem:[#allocation9 + $0x690] sm:$0xff]
      %v4253 = vld [vmem:[#allocation9 + $0x698] sm:$0xff]
      %v4254 = vld [vmem:[#allocation9 + $0x6a0] sm:$0xff]
      %v4255 = vld [vmem:[#allocation9 + $0x6a8] sm:$0xff]
      %v4256 = vld [vmem:[#allocation9 + $0x6b0] sm:$0xff]
      %v4257 = vld [vmem:[#allocation9 + $0x6b8] sm:$0xff]
      %v4258 = vld [vmem:[#allocation9 + $0x6c0] sm:$0xff]
      %v4259 = vld [vmem:[#allocation9 + $0x6c8] sm:$0xff]
      %v4260 = vld [vmem:[#allocation9 + $0x6d0] sm:$0xff]
      %v4261 = vld [vmem:[#allocation9 + $0x6d8] sm:$0xff]
      %v4262 = vld [vmem:[#allocation9 + $0x6e0] sm:$0xff]
      %v4263 = vld [vmem:[#allocation9 + $0x6e8] sm:$0xff]
      %v4264 = vld [vmem:[#allocation9 + $0x6f0] sm:$0xff]
      %v4265 = vld [vmem:[#allocation9 + $0x6f8] sm:$0xff]
      %v4266 = vld [vmem:[#allocation9 + $0x700] sm:$0xff]
      %v4267 = vld [vmem:[#allocation9 + $0x708] sm:$0xff]
      %v4268 = vld [vmem:[#allocation9 + $0x710] sm:$0xff]
      %v4269 = vld [vmem:[#allocation9 + $0x718] sm:$0xff]
      %v4270 = vld [vmem:[#allocation9 + $0x720] sm:$0xff]
      %v4271 = vld [vmem:[#allocation9 + $0x728] sm:$0xff]
      %v4272 = vld [vmem:[#allocation9 + $0x730] sm:$0xff]
      %v4273 = vld [vmem:[#allocation9 + $0x738] sm:$0xff]
      %v4274 = vld [vmem:[#allocation9 + $0x740] sm:$0xff]
      %v4275 = vld [vmem:[#allocation9 + $0x748] sm:$0xff]
      %v4276 = vld [vmem:[#allocation9 + $0x750] sm:$0xff]
      %v4277 = vld [vmem:[#allocation9 + $0x758] sm:$0xff]
      %v4278 = vld [vmem:[#allocation9 + $0x760] sm:$0xff]
      %v4279 = vld [vmem:[#allocation9 + $0x768] sm:$0xff]
      %v4280 = vld [vmem:[#allocation9 + $0x770] sm:$0xff]
      %v4281 = vld [vmem:[#allocation9 + $0x778] sm:$0xff]
      %v4282 = vld [vmem:[#allocation9 + $0x780] sm:$0xff]
      %v4283 = vld [vmem:[#allocation9 + $0x788] sm:$0xff]
      %v4284 = vld [vmem:[#allocation9 + $0x790] sm:$0xff]
      %v4285 = vld [vmem:[#allocation9 + $0x798] sm:$0xff]
      %v4286 = vld [vmem:[#allocation9 + $0x7a0] sm:$0xff]
      %v4287 = vld [vmem:[#allocation9 + $0x7a8] sm:$0xff]
      %v4288 = vld [vmem:[#allocation9 + $0x7b0] sm:$0xff]
      %v4289 = vld [vmem:[#allocation9 + $0x7b8] sm:$0xff]
      %v4290 = vld [vmem:[#allocation9 + $0x7c0] sm:$0xff]
      %v4291 = vld [vmem:[#allocation9 + $0x7c8] sm:$0xff]
      %v4292 = vld [vmem:[#allocation9 + $0x7d0] sm:$0xff]
      %v4293 = vld [vmem:[#allocation9 + $0x7d8] sm:$0xff]
      %v4294 = vld [vmem:[#allocation9 + $0x7e0] sm:$0xff]
      %v4295 = vld [vmem:[#allocation9 + $0x7e8] sm:$0xff]
      %v4296 = vld [vmem:[#allocation9 + $0x7f0] sm:$0xff]
      %v4297 = vld [vmem:[#allocation9 + $0x7f8] sm:$0xff]
      %v4298 = vld [vmem:[#allocation11] sm:$0xf]
      %v4300 = vlaneseq
      %v4301 = vshrl.u32 %v4300, 7
      %v4302 = vsub.s32 0, %v4301
      %v4303 = vrot.slane %v4298, %v4302
      %v4304 = vlaneseq
      %v4305 = vshrl.u32 %v4304, 7
      %v4306 = vsub.s32 1, %v4305
      %v4307 = vrot.slane %v4298, %v4306
      %v4308 = vlaneseq
      %v4309 = vshrl.u32 %v4308, 7
      %v4310 = vsub.s32 2, %v4309
      %v4311 = vrot.slane %v4298, %v4310
      %v4312 = vlaneseq
      %v4313 = vshrl.u32 %v4312, 7
      %v4314 = vsub.s32 3, %v4313
      %v4315 = vrot.slane %v4298, %v4314
      %v4576 = vunpack.c.l.b16 %v4042
      %v4577 = vunpack.c.h.b16 %v4042
      %v4578 = vunpack.c.l.b16 %v4043
      %v4579 = vunpack.c.h.b16 %v4043
      %v4580 = vunpack.c.l.b16 %v4044
      %v4581 = vunpack.c.h.b16 %v4044
      %v4582 = vunpack.c.l.b16 %v4045
      %v4583 = vunpack.c.h.b16 %v4045
      %v4584 = vunpack.c.l.b16 %v4046
      %v4585 = vunpack.c.h.b16 %v4046
      %v4586 = vunpack.c.l.b16 %v4047
      %v4587 = vunpack.c.h.b16 %v4047
      %v4588 = vunpack.c.l.b16 %v4048
      %v4589 = vunpack.c.h.b16 %v4048
      %v4590 = vunpack.c.l.b16 %v4049
      %v4591 = vunpack.c.h.b16 %v4049
      %v4592 = vunpack.c.l.b16 %v4050
      %v4593 = vunpack.c.h.b16 %v4050
      %v4594 = vunpack.c.l.b16 %v4051
      %v4595 = vunpack.c.h.b16 %v4051
      %v4596 = vunpack.c.l.b16 %v4052
      %v4597 = vunpack.c.h.b16 %v4052
      %v4598 = vunpack.c.l.b16 %v4053
      %v4599 = vunpack.c.h.b16 %v4053
      %v4600 = vunpack.c.l.b16 %v4054
      %v4601 = vunpack.c.h.b16 %v4054
      %v4602 = vunpack.c.l.b16 %v4055
      %v4603 = vunpack.c.h.b16 %v4055
      %v4604 = vunpack.c.l.b16 %v4056
      %v4605 = vunpack.c.h.b16 %v4056
      %v4606 = vunpack.c.l.b16 %v4057
      %v4607 = vunpack.c.h.b16 %v4057
      %v4608 = vunpack.c.l.b16 %v4058
      %v4609 = vunpack.c.h.b16 %v4058
      %v4610 = vunpack.c.l.b16 %v4059
      %v4611 = vunpack.c.h.b16 %v4059
      %v4612 = vunpack.c.l.b16 %v4060
      %v4613 = vunpack.c.h.b16 %v4060
      %v4614 = vunpack.c.l.b16 %v4061
      %v4615 = vunpack.c.h.b16 %v4061
      %v4616 = vunpack.c.l.b16 %v4062
      %v4617 = vunpack.c.h.b16 %v4062
      %v4618 = vunpack.c.l.b16 %v4063
      %v4619 = vunpack.c.h.b16 %v4063
      %v4620 = vunpack.c.l.b16 %v4064
      %v4621 = vunpack.c.h.b16 %v4064
      %v4622 = vunpack.c.l.b16 %v4065
      %v4623 = vunpack.c.h.b16 %v4065
      %v4624 = vunpack.c.l.b16 %v4066
      %v4625 = vunpack.c.h.b16 %v4066
      %v4626 = vunpack.c.l.b16 %v4067
      %v4627 = vunpack.c.h.b16 %v4067
      %v4628 = vunpack.c.l.b16 %v4068
      %v4629 = vunpack.c.h.b16 %v4068
      %v4630 = vunpack.c.l.b16 %v4069
      %v4631 = vunpack.c.h.b16 %v4069
      %v4632 = vunpack.c.l.b16 %v4070
      %v4633 = vunpack.c.h.b16 %v4070
      %v4634 = vunpack.c.l.b16 %v4071
      %v4635 = vunpack.c.h.b16 %v4071
      %v4636 = vunpack.c.l.b16 %v4072
      %v4637 = vunpack.c.h.b16 %v4072
      %v4638 = vunpack.c.l.b16 %v4073
      %v4639 = vunpack.c.h.b16 %v4073
      %v4640 = vunpack.c.l.b16 %v4074
      %v4641 = vunpack.c.h.b16 %v4074
      %v4642 = vunpack.c.l.b16 %v4075
      %v4643 = vunpack.c.h.b16 %v4075
      %v4644 = vunpack.c.l.b16 %v4076
      %v4645 = vunpack.c.h.b16 %v4076
      %v4646 = vunpack.c.l.b16 %v4077
      %v4647 = vunpack.c.h.b16 %v4077
      %v4648 = vunpack.c.l.b16 %v4078
      %v4649 = vunpack.c.h.b16 %v4078
      %v4650 = vunpack.c.l.b16 %v4079
      %v4651 = vunpack.c.h.b16 %v4079
      %v4652 = vunpack.c.l.b16 %v4080
      %v4653 = vunpack.c.h.b16 %v4080
      %v4654 = vunpack.c.l.b16 %v4081
      %v4655 = vunpack.c.h.b16 %v4081
      %v4656 = vunpack.c.l.b16 %v4082
      %v4657 = vunpack.c.h.b16 %v4082
      %v4658 = vunpack.c.l.b16 %v4083
      %v4659 = vunpack.c.h.b16 %v4083
      %v4660 = vunpack.c.l.b16 %v4084
      %v4661 = vunpack.c.h.b16 %v4084
      %v4662 = vunpack.c.l.b16 %v4085
      %v4663 = vunpack.c.h.b16 %v4085
      %v4664 = vunpack.c.l.b16 %v4086
      %v4665 = vunpack.c.h.b16 %v4086
      %v4666 = vunpack.c.l.b16 %v4087
      %v4667 = vunpack.c.h.b16 %v4087
      %v4668 = vunpack.c.l.b16 %v4088
      %v4669 = vunpack.c.h.b16 %v4088
      %v4670 = vunpack.c.l.b16 %v4089
      %v4671 = vunpack.c.h.b16 %v4089
      %v4672 = vunpack.c.l.b16 %v4090
      %v4673 = vunpack.c.h.b16 %v4090
      %v4674 = vunpack.c.l.b16 %v4091
      %v4675 = vunpack.c.h.b16 %v4091
      %v4676 = vunpack.c.l.b16 %v4092
      %v4677 = vunpack.c.h.b16 %v4092
      %v4678 = vunpack.c.l.b16 %v4093
      %v4679 = vunpack.c.h.b16 %v4093
      %v4680 = vunpack.c.l.b16 %v4094
      %v4681 = vunpack.c.h.b16 %v4094
      %v4682 = vunpack.c.l.b16 %v4095
      %v4683 = vunpack.c.h.b16 %v4095
      %v4684 = vunpack.c.l.b16 %v4096
      %v4685 = vunpack.c.h.b16 %v4096
      %v4686 = vunpack.c.l.b16 %v4097
      %v4687 = vunpack.c.h.b16 %v4097
      %v4688 = vunpack.c.l.b16 %v4098
      %v4689 = vunpack.c.h.b16 %v4098
      %v4690 = vunpack.c.l.b16 %v4099
      %v4691 = vunpack.c.h.b16 %v4099
      %v4692 = vunpack.c.l.b16 %v4100
      %v4693 = vunpack.c.h.b16 %v4100
      %v4694 = vunpack.c.l.b16 %v4101
      %v4695 = vunpack.c.h.b16 %v4101
      %v4696 = vunpack.c.l.b16 %v4102
      %v4697 = vunpack.c.h.b16 %v4102
      %v4698 = vunpack.c.l.b16 %v4103
      %v4699 = vunpack.c.h.b16 %v4103
      %v4700 = vunpack.c.l.b16 %v4104
      %v4701 = vunpack.c.h.b16 %v4104
      %v4702 = vunpack.c.l.b16 %v4105
      %v4703 = vunpack.c.h.b16 %v4105
      %v4704 = vunpack.c.l.b16 %v4106
      %v4705 = vunpack.c.h.b16 %v4106
      %v4706 = vunpack.c.l.b16 %v4107
      %v4707 = vunpack.c.h.b16 %v4107
      %v4708 = vunpack.c.l.b16 %v4108
      %v4709 = vunpack.c.h.b16 %v4108
      %v4710 = vunpack.c.l.b16 %v4109
      %v4711 = vunpack.c.h.b16 %v4109
      %v4712 = vunpack.c.l.b16 %v4110
      %v4713 = vunpack.c.h.b16 %v4110
      %v4714 = vunpack.c.l.b16 %v4111
      %v4715 = vunpack.c.h.b16 %v4111
      %v4716 = vunpack.c.l.b16 %v4112
      %v4717 = vunpack.c.h.b16 %v4112
      %v4718 = vunpack.c.l.b16 %v4113
      %v4719 = vunpack.c.h.b16 %v4113
      %v4720 = vunpack.c.l.b16 %v4114
      %v4721 = vunpack.c.h.b16 %v4114
      %v4722 = vunpack.c.l.b16 %v4115
      %v4723 = vunpack.c.h.b16 %v4115
      %v4724 = vunpack.c.l.b16 %v4116
      %v4725 = vunpack.c.h.b16 %v4116
      %v4726 = vunpack.c.l.b16 %v4117
      %v4727 = vunpack.c.h.b16 %v4117
      %v4728 = vunpack.c.l.b16 %v4118
      %v4729 = vunpack.c.h.b16 %v4118
      %v4730 = vunpack.c.l.b16 %v4119
      %v4731 = vunpack.c.h.b16 %v4119
      %v4732 = vunpack.c.l.b16 %v4120
      %v4733 = vunpack.c.h.b16 %v4120
      %v4734 = vunpack.c.l.b16 %v4121
      %v4735 = vunpack.c.h.b16 %v4121
      %v4736 = vunpack.c.l.b16 %v4122
      %v4737 = vunpack.c.h.b16 %v4122
      %v4738 = vunpack.c.l.b16 %v4123
      %v4739 = vunpack.c.h.b16 %v4123
      %v4740 = vunpack.c.l.b16 %v4124
      %v4741 = vunpack.c.h.b16 %v4124
      %v4742 = vunpack.c.l.b16 %v4125
      %v4743 = vunpack.c.h.b16 %v4125
      %v4744 = vunpack.c.l.b16 %v4126
      %v4745 = vunpack.c.h.b16 %v4126
      %v4746 = vunpack.c.l.b16 %v4127
      %v4747 = vunpack.c.h.b16 %v4127
      %v4748 = vunpack.c.l.b16 %v4128
      %v4749 = vunpack.c.h.b16 %v4128
      %v4750 = vunpack.c.l.b16 %v4129
      %v4751 = vunpack.c.h.b16 %v4129
      %v4752 = vunpack.c.l.b16 %v4130
      %v4753 = vunpack.c.h.b16 %v4130
      %v4754 = vunpack.c.l.b16 %v4131
      %v4755 = vunpack.c.h.b16 %v4131
      %v4756 = vunpack.c.l.b16 %v4132
      %v4757 = vunpack.c.h.b16 %v4132
      %v4758 = vunpack.c.l.b16 %v4133
      %v4759 = vunpack.c.h.b16 %v4133
      %v4760 = vunpack.c.l.b16 %v4134
      %v4761 = vunpack.c.h.b16 %v4134
      %v4762 = vunpack.c.l.b16 %v4135
      %v4763 = vunpack.c.h.b16 %v4135
      %v4764 = vunpack.c.l.b16 %v4136
      %v4765 = vunpack.c.h.b16 %v4136
      %v4766 = vunpack.c.l.b16 %v4137
      %v4767 = vunpack.c.h.b16 %v4137
      %v4768 = vunpack.c.l.b16 %v4138
      %v4769 = vunpack.c.h.b16 %v4138
      %v4770 = vunpack.c.l.b16 %v4139
      %v4771 = vunpack.c.h.b16 %v4139
      %v4772 = vunpack.c.l.b16 %v4140
      %v4773 = vunpack.c.h.b16 %v4140
      %v4774 = vunpack.c.l.b16 %v4141
      %v4775 = vunpack.c.h.b16 %v4141
      %v4776 = vunpack.c.l.b16 %v4142
      %v4777 = vunpack.c.h.b16 %v4142
      %v4778 = vunpack.c.l.b16 %v4143
      %v4779 = vunpack.c.h.b16 %v4143
      %v4780 = vunpack.c.l.b16 %v4144
      %v4781 = vunpack.c.h.b16 %v4144
      %v4782 = vunpack.c.l.b16 %v4145
      %v4783 = vunpack.c.h.b16 %v4145
      %v4784 = vunpack.c.l.b16 %v4146
      %v4785 = vunpack.c.h.b16 %v4146
      %v4786 = vunpack.c.l.b16 %v4147
      %v4787 = vunpack.c.h.b16 %v4147
      %v4788 = vunpack.c.l.b16 %v4148
      %v4789 = vunpack.c.h.b16 %v4148
      %v4790 = vunpack.c.l.b16 %v4149
      %v4791 = vunpack.c.h.b16 %v4149
      %v4792 = vunpack.c.l.b16 %v4150
      %v4793 = vunpack.c.h.b16 %v4150
      %v4794 = vunpack.c.l.b16 %v4151
      %v4795 = vunpack.c.h.b16 %v4151
      %v4796 = vunpack.c.l.b16 %v4152
      %v4797 = vunpack.c.h.b16 %v4152
      %v4798 = vunpack.c.l.b16 %v4153
      %v4799 = vunpack.c.h.b16 %v4153
      %v4800 = vunpack.c.l.b16 %v4154
      %v4801 = vunpack.c.h.b16 %v4154
      %v4802 = vunpack.c.l.b16 %v4155
      %v4803 = vunpack.c.h.b16 %v4155
      %v4804 = vunpack.c.l.b16 %v4156
      %v4805 = vunpack.c.h.b16 %v4156
      %v4806 = vunpack.c.l.b16 %v4157
      %v4807 = vunpack.c.h.b16 %v4157
      %v4808 = vunpack.c.l.b16 %v4158
      %v4809 = vunpack.c.h.b16 %v4158
      %v4810 = vunpack.c.l.b16 %v4159
      %v4811 = vunpack.c.h.b16 %v4159
      %v4812 = vunpack.c.l.b16 %v4160
      %v4813 = vunpack.c.h.b16 %v4160
      %v4814 = vunpack.c.l.b16 %v4161
      %v4815 = vunpack.c.h.b16 %v4161
      %v4816 = vunpack.c.l.b16 %v4162
      %v4817 = vunpack.c.h.b16 %v4162
      %v4818 = vunpack.c.l.b16 %v4163
      %v4819 = vunpack.c.h.b16 %v4163
      %v4820 = vunpack.c.l.b16 %v4164
      %v4821 = vunpack.c.h.b16 %v4164
      %v4822 = vunpack.c.l.b16 %v4165
      %v4823 = vunpack.c.h.b16 %v4165
      %v4824 = vunpack.c.l.b16 %v4166
      %v4825 = vunpack.c.h.b16 %v4166
      %v4826 = vunpack.c.l.b16 %v4167
      %v4827 = vunpack.c.h.b16 %v4167
      %v4828 = vunpack.c.l.b16 %v4168
      %v4829 = vunpack.c.h.b16 %v4168
      %v4830 = vunpack.c.l.b16 %v4169
      %v4831 = vunpack.c.h.b16 %v4169
      %v4832 = vunpack.c.l.b16 %v4170
      %v4833 = vunpack.c.h.b16 %v4170
      %v4834 = vunpack.c.l.b16 %v4171
      %v4835 = vunpack.c.h.b16 %v4171
      %v4836 = vunpack.c.l.b16 %v4172
      %v4837 = vunpack.c.h.b16 %v4172
      %v4838 = vunpack.c.l.b16 %v4173
      %v4839 = vunpack.c.h.b16 %v4173
      %v4840 = vunpack.c.l.b16 %v4174
      %v4841 = vunpack.c.h.b16 %v4174
      %v4842 = vunpack.c.l.b16 %v4175
      %v4843 = vunpack.c.h.b16 %v4175
      %v4844 = vunpack.c.l.b16 %v4176
      %v4845 = vunpack.c.h.b16 %v4176
      %v4846 = vunpack.c.l.b16 %v4177
      %v4847 = vunpack.c.h.b16 %v4177
      %v4848 = vunpack.c.l.b16 %v4178
      %v4849 = vunpack.c.h.b16 %v4178
      %v4850 = vunpack.c.l.b16 %v4179
      %v4851 = vunpack.c.h.b16 %v4179
      %v4852 = vunpack.c.l.b16 %v4180
      %v4853 = vunpack.c.h.b16 %v4180
      %v4854 = vunpack.c.l.b16 %v4181
      %v4855 = vunpack.c.h.b16 %v4181
      %v4856 = vunpack.c.l.b16 %v4182
      %v4857 = vunpack.c.h.b16 %v4182
      %v4858 = vunpack.c.l.b16 %v4183
      %v4859 = vunpack.c.h.b16 %v4183
      %v4860 = vunpack.c.l.b16 %v4184
      %v4861 = vunpack.c.h.b16 %v4184
      %v4862 = vunpack.c.l.b16 %v4185
      %v4863 = vunpack.c.h.b16 %v4185
      %v4864 = vunpack.c.l.b16 %v4186
      %v4865 = vunpack.c.h.b16 %v4186
      %v4866 = vunpack.c.l.b16 %v4187
      %v4867 = vunpack.c.h.b16 %v4187
      %v4868 = vunpack.c.l.b16 %v4188
      %v4869 = vunpack.c.h.b16 %v4188
      %v4870 = vunpack.c.l.b16 %v4189
      %v4871 = vunpack.c.h.b16 %v4189
      %v4872 = vunpack.c.l.b16 %v4190
      %v4873 = vunpack.c.h.b16 %v4190
      %v4874 = vunpack.c.l.b16 %v4191
      %v4875 = vunpack.c.h.b16 %v4191
      %v4876 = vunpack.c.l.b16 %v4192
      %v4877 = vunpack.c.h.b16 %v4192
      %v4878 = vunpack.c.l.b16 %v4193
      %v4879 = vunpack.c.h.b16 %v4193
      %v4880 = vunpack.c.l.b16 %v4194
      %v4881 = vunpack.c.h.b16 %v4194
      %v4882 = vunpack.c.l.b16 %v4195
      %v4883 = vunpack.c.h.b16 %v4195
      %v4884 = vunpack.c.l.b16 %v4196
      %v4885 = vunpack.c.h.b16 %v4196
      %v4886 = vunpack.c.l.b16 %v4197
      %v4887 = vunpack.c.h.b16 %v4197
      %v4888 = vunpack.c.l.b16 %v4198
      %v4889 = vunpack.c.h.b16 %v4198
      %v4890 = vunpack.c.l.b16 %v4199
      %v4891 = vunpack.c.h.b16 %v4199
      %v4892 = vunpack.c.l.b16 %v4200
      %v4893 = vunpack.c.h.b16 %v4200
      %v4894 = vunpack.c.l.b16 %v4201
      %v4895 = vunpack.c.h.b16 %v4201
      %v4896 = vunpack.c.l.b16 %v4202
      %v4897 = vunpack.c.h.b16 %v4202
      %v4898 = vunpack.c.l.b16 %v4203
      %v4899 = vunpack.c.h.b16 %v4203
      %v4900 = vunpack.c.l.b16 %v4204
      %v4901 = vunpack.c.h.b16 %v4204
      %v4902 = vunpack.c.l.b16 %v4205
      %v4903 = vunpack.c.h.b16 %v4205
      %v4904 = vunpack.c.l.b16 %v4206
      %v4905 = vunpack.c.h.b16 %v4206
      %v4906 = vunpack.c.l.b16 %v4207
      %v4907 = vunpack.c.h.b16 %v4207
      %v4908 = vunpack.c.l.b16 %v4208
      %v4909 = vunpack.c.h.b16 %v4208
      %v4910 = vunpack.c.l.b16 %v4209
      %v4911 = vunpack.c.h.b16 %v4209
      %v4912 = vunpack.c.l.b16 %v4210
      %v4913 = vunpack.c.h.b16 %v4210
      %v4914 = vunpack.c.l.b16 %v4211
      %v4915 = vunpack.c.h.b16 %v4211
      %v4916 = vunpack.c.l.b16 %v4212
      %v4917 = vunpack.c.h.b16 %v4212
      %v4918 = vunpack.c.l.b16 %v4213
      %v4919 = vunpack.c.h.b16 %v4213
      %v4920 = vunpack.c.l.b16 %v4214
      %v4921 = vunpack.c.h.b16 %v4214
      %v4922 = vunpack.c.l.b16 %v4215
      %v4923 = vunpack.c.h.b16 %v4215
      %v4924 = vunpack.c.l.b16 %v4216
      %v4925 = vunpack.c.h.b16 %v4216
      %v4926 = vunpack.c.l.b16 %v4217
      %v4927 = vunpack.c.h.b16 %v4217
      %v4928 = vunpack.c.l.b16 %v4218
      %v4929 = vunpack.c.h.b16 %v4218
      %v4930 = vunpack.c.l.b16 %v4219
      %v4931 = vunpack.c.h.b16 %v4219
      %v4932 = vunpack.c.l.b16 %v4220
      %v4933 = vunpack.c.h.b16 %v4220
      %v4934 = vunpack.c.l.b16 %v4221
      %v4935 = vunpack.c.h.b16 %v4221
      %v4936 = vunpack.c.l.b16 %v4222
      %v4937 = vunpack.c.h.b16 %v4222
      %v4938 = vunpack.c.l.b16 %v4223
      %v4939 = vunpack.c.h.b16 %v4223
      %v4940 = vunpack.c.l.b16 %v4224
      %v4941 = vunpack.c.h.b16 %v4224
      %v4942 = vunpack.c.l.b16 %v4225
      %v4943 = vunpack.c.h.b16 %v4225
      %v4944 = vunpack.c.l.b16 %v4226
      %v4945 = vunpack.c.h.b16 %v4226
      %v4946 = vunpack.c.l.b16 %v4227
      %v4947 = vunpack.c.h.b16 %v4227
      %v4948 = vunpack.c.l.b16 %v4228
      %v4949 = vunpack.c.h.b16 %v4228
      %v4950 = vunpack.c.l.b16 %v4229
      %v4951 = vunpack.c.h.b16 %v4229
      %v4952 = vunpack.c.l.b16 %v4230
      %v4953 = vunpack.c.h.b16 %v4230
      %v4954 = vunpack.c.l.b16 %v4231
      %v4955 = vunpack.c.h.b16 %v4231
      %v4956 = vunpack.c.l.b16 %v4232
      %v4957 = vunpack.c.h.b16 %v4232
      %v4958 = vunpack.c.l.b16 %v4233
      %v4959 = vunpack.c.h.b16 %v4233
      %v4960 = vunpack.c.l.b16 %v4234
      %v4961 = vunpack.c.h.b16 %v4234
      %v4962 = vunpack.c.l.b16 %v4235
      %v4963 = vunpack.c.h.b16 %v4235
      %v4964 = vunpack.c.l.b16 %v4236
      %v4965 = vunpack.c.h.b16 %v4236
      %v4966 = vunpack.c.l.b16 %v4237
      %v4967 = vunpack.c.h.b16 %v4237
      %v4968 = vunpack.c.l.b16 %v4238
      %v4969 = vunpack.c.h.b16 %v4238
      %v4970 = vunpack.c.l.b16 %v4239
      %v4971 = vunpack.c.h.b16 %v4239
      %v4972 = vunpack.c.l.b16 %v4240
      %v4973 = vunpack.c.h.b16 %v4240
      %v4974 = vunpack.c.l.b16 %v4241
      %v4975 = vunpack.c.h.b16 %v4241
      %v4976 = vunpack.c.l.b16 %v4242
      %v4977 = vunpack.c.h.b16 %v4242
      %v4978 = vunpack.c.l.b16 %v4243
      %v4979 = vunpack.c.h.b16 %v4243
      %v4980 = vunpack.c.l.b16 %v4244
      %v4981 = vunpack.c.h.b16 %v4244
      %v4982 = vunpack.c.l.b16 %v4245
      %v4983 = vunpack.c.h.b16 %v4245
      %v4984 = vunpack.c.l.b16 %v4246
      %v4985 = vunpack.c.h.b16 %v4246
      %v4986 = vunpack.c.l.b16 %v4247
      %v4987 = vunpack.c.h.b16 %v4247
      %v4988 = vunpack.c.l.b16 %v4248
      %v4989 = vunpack.c.h.b16 %v4248
      %v4990 = vunpack.c.l.b16 %v4249
      %v4991 = vunpack.c.h.b16 %v4249
      %v4992 = vunpack.c.l.b16 %v4250
      %v4993 = vunpack.c.h.b16 %v4250
      %v4994 = vunpack.c.l.b16 %v4251
      %v4995 = vunpack.c.h.b16 %v4251
      %v4996 = vunpack.c.l.b16 %v4252
      %v4997 = vunpack.c.h.b16 %v4252
      %v4998 = vunpack.c.l.b16 %v4253
      %v4999 = vunpack.c.h.b16 %v4253
      %v5000 = vunpack.c.l.b16 %v4254
      %v5001 = vunpack.c.h.b16 %v4254
      %v5002 = vunpack.c.l.b16 %v4255
      %v5003 = vunpack.c.h.b16 %v4255
      %v5004 = vunpack.c.l.b16 %v4256
      %v5005 = vunpack.c.h.b16 %v4256
      %v5006 = vunpack.c.l.b16 %v4257
      %v5007 = vunpack.c.h.b16 %v4257
      %v5008 = vunpack.c.l.b16 %v4258
      %v5009 = vunpack.c.h.b16 %v4258
      %v5010 = vunpack.c.l.b16 %v4259
      %v5011 = vunpack.c.h.b16 %v4259
      %v5012 = vunpack.c.l.b16 %v4260
      %v5013 = vunpack.c.h.b16 %v4260
      %v5014 = vunpack.c.l.b16 %v4261
      %v5015 = vunpack.c.h.b16 %v4261
      %v5016 = vunpack.c.l.b16 %v4262
      %v5017 = vunpack.c.h.b16 %v4262
      %v5018 = vunpack.c.l.b16 %v4263
      %v5019 = vunpack.c.h.b16 %v4263
      %v5020 = vunpack.c.l.b16 %v4264
      %v5021 = vunpack.c.h.b16 %v4264
      %v5022 = vunpack.c.l.b16 %v4265
      %v5023 = vunpack.c.h.b16 %v4265
      %v5024 = vunpack.c.l.b16 %v4266
      %v5025 = vunpack.c.h.b16 %v4266
      %v5026 = vunpack.c.l.b16 %v4267
      %v5027 = vunpack.c.h.b16 %v4267
      %v5028 = vunpack.c.l.b16 %v4268
      %v5029 = vunpack.c.h.b16 %v4268
      %v5030 = vunpack.c.l.b16 %v4269
      %v5031 = vunpack.c.h.b16 %v4269
      %v5032 = vunpack.c.l.b16 %v4270
      %v5033 = vunpack.c.h.b16 %v4270
      %v5034 = vunpack.c.l.b16 %v4271
      %v5035 = vunpack.c.h.b16 %v4271
      %v5036 = vunpack.c.l.b16 %v4272
      %v5037 = vunpack.c.h.b16 %v4272
      %v5038 = vunpack.c.l.b16 %v4273
      %v5039 = vunpack.c.h.b16 %v4273
      %v5040 = vunpack.c.l.b16 %v4274
      %v5041 = vunpack.c.h.b16 %v4274
      %v5042 = vunpack.c.l.b16 %v4275
      %v5043 = vunpack.c.h.b16 %v4275
      %v5044 = vunpack.c.l.b16 %v4276
      %v5045 = vunpack.c.h.b16 %v4276
      %v5046 = vunpack.c.l.b16 %v4277
      %v5047 = vunpack.c.h.b16 %v4277
      %v5048 = vunpack.c.l.b16 %v4278
      %v5049 = vunpack.c.h.b16 %v4278
      %v5050 = vunpack.c.l.b16 %v4279
      %v5051 = vunpack.c.h.b16 %v4279
      %v5052 = vunpack.c.l.b16 %v4280
      %v5053 = vunpack.c.h.b16 %v4280
      %v5054 = vunpack.c.l.b16 %v4281
      %v5055 = vunpack.c.h.b16 %v4281
      %v5056 = vunpack.c.l.b16 %v4282
      %v5057 = vunpack.c.h.b16 %v4282
      %v5058 = vunpack.c.l.b16 %v4283
      %v5059 = vunpack.c.h.b16 %v4283
      %v5060 = vunpack.c.l.b16 %v4284
      %v5061 = vunpack.c.h.b16 %v4284
      %v5062 = vunpack.c.l.b16 %v4285
      %v5063 = vunpack.c.h.b16 %v4285
      %v5064 = vunpack.c.l.b16 %v4286
      %v5065 = vunpack.c.h.b16 %v4286
      %v5066 = vunpack.c.l.b16 %v4287
      %v5067 = vunpack.c.h.b16 %v4287
      %v5068 = vunpack.c.l.b16 %v4288
      %v5069 = vunpack.c.h.b16 %v4288
      %v5070 = vunpack.c.l.b16 %v4289
      %v5071 = vunpack.c.h.b16 %v4289
      %v5072 = vunpack.c.l.b16 %v4290
      %v5073 = vunpack.c.h.b16 %v4290
      %v5074 = vunpack.c.l.b16 %v4291
      %v5075 = vunpack.c.h.b16 %v4291
      %v5076 = vunpack.c.l.b16 %v4292
      %v5077 = vunpack.c.h.b16 %v4292
      %v5078 = vunpack.c.l.b16 %v4293
      %v5079 = vunpack.c.h.b16 %v4293
      %v5080 = vunpack.c.l.b16 %v4294
      %v5081 = vunpack.c.h.b16 %v4294
      %v5082 = vunpack.c.l.b16 %v4295
      %v5083 = vunpack.c.h.b16 %v4295
      %v5084 = vunpack.c.l.b16 %v4296
      %v5085 = vunpack.c.h.b16 %v4296
      %v5086 = vunpack.c.l.b16 %v4297
      %v5087 = vunpack.c.h.b16 %v4297
      %v5088 = vpack.c.b16 %v4580, %v4576
      %v5089 = vpack.c.b16 %v4581, %v4577
      %v5090 = vpack.c.b16 %v4582, %v4578
      %v5091 = vpack.c.b16 %v4583, %v4579
      %v5092 = vpack.c.b16 %v4588, %v4584
      %v5093 = vpack.c.b16 %v4589, %v4585
      %v5094 = vpack.c.b16 %v4590, %v4586
      %v5095 = vpack.c.b16 %v4591, %v4587
      %v5096 = vpack.c.b16 %v4596, %v4592
      %v5097 = vpack.c.b16 %v4597, %v4593
      %v5098 = vpack.c.b16 %v4598, %v4594
      %v5099 = vpack.c.b16 %v4599, %v4595
      %v5100 = vpack.c.b16 %v4604, %v4600
      %v5101 = vpack.c.b16 %v4605, %v4601
      %v5102 = vpack.c.b16 %v4606, %v4602
      %v5103 = vpack.c.b16 %v4607, %v4603
      %v5104 = vpack.c.b16 %v4612, %v4608
      %v5105 = vpack.c.b16 %v4613, %v4609
      %v5106 = vpack.c.b16 %v4614, %v4610
      %v5107 = vpack.c.b16 %v4615, %v4611
      %v5108 = vpack.c.b16 %v4620, %v4616
      %v5109 = vpack.c.b16 %v4621, %v4617
      %v5110 = vpack.c.b16 %v4622, %v4618
      %v5111 = vpack.c.b16 %v4623, %v4619
      %v5112 = vpack.c.b16 %v4628, %v4624
      %v5113 = vpack.c.b16 %v4629, %v4625
      %v5114 = vpack.c.b16 %v4630, %v4626
      %v5115 = vpack.c.b16 %v4631, %v4627
      %v5116 = vpack.c.b16 %v4636, %v4632
      %v5117 = vpack.c.b16 %v4637, %v4633
      %v5118 = vpack.c.b16 %v4638, %v4634
      %v5119 = vpack.c.b16 %v4639, %v4635
      %v5120 = vpack.c.b16 %v4644, %v4640
      %v5121 = vpack.c.b16 %v4645, %v4641
      %v5122 = vpack.c.b16 %v4646, %v4642
      %v5123 = vpack.c.b16 %v4647, %v4643
      %v5124 = vpack.c.b16 %v4652, %v4648
      %v5125 = vpack.c.b16 %v4653, %v4649
      %v5126 = vpack.c.b16 %v4654, %v4650
      %v5127 = vpack.c.b16 %v4655, %v4651
      %v5128 = vpack.c.b16 %v4660, %v4656
      %v5129 = vpack.c.b16 %v4661, %v4657
      %v5130 = vpack.c.b16 %v4662, %v4658
      %v5131 = vpack.c.b16 %v4663, %v4659
      %v5132 = vpack.c.b16 %v4668, %v4664
      %v5133 = vpack.c.b16 %v4669, %v4665
      %v5134 = vpack.c.b16 %v4670, %v4666
      %v5135 = vpack.c.b16 %v4671, %v4667
      %v5136 = vpack.c.b16 %v4676, %v4672
      %v5137 = vpack.c.b16 %v4677, %v4673
      %v5138 = vpack.c.b16 %v4678, %v4674
      %v5139 = vpack.c.b16 %v4679, %v4675
      %v5140 = vpack.c.b16 %v4684, %v4680
      %v5141 = vpack.c.b16 %v4685, %v4681
      %v5142 = vpack.c.b16 %v4686, %v4682
      %v5143 = vpack.c.b16 %v4687, %v4683
      %v5144 = vpack.c.b16 %v4692, %v4688
      %v5145 = vpack.c.b16 %v4693, %v4689
      %v5146 = vpack.c.b16 %v4694, %v4690
      %v5147 = vpack.c.b16 %v4695, %v4691
      %v5148 = vpack.c.b16 %v4700, %v4696
      %v5149 = vpack.c.b16 %v4701, %v4697
      %v5150 = vpack.c.b16 %v4702, %v4698
      %v5151 = vpack.c.b16 %v4703, %v4699
      %v5152 = vpack.c.b16 %v4708, %v4704
      %v5153 = vpack.c.b16 %v4709, %v4705
      %v5154 = vpack.c.b16 %v4710, %v4706
      %v5155 = vpack.c.b16 %v4711, %v4707
      %v5156 = vpack.c.b16 %v4716, %v4712
      %v5157 = vpack.c.b16 %v4717, %v4713
      %v5158 = vpack.c.b16 %v4718, %v4714
      %v5159 = vpack.c.b16 %v4719, %v4715
      %v5160 = vpack.c.b16 %v4724, %v4720
      %v5161 = vpack.c.b16 %v4725, %v4721
      %v5162 = vpack.c.b16 %v4726, %v4722
      %v5163 = vpack.c.b16 %v4727, %v4723
      %v5164 = vpack.c.b16 %v4732, %v4728
      %v5165 = vpack.c.b16 %v4733, %v4729
      %v5166 = vpack.c.b16 %v4734, %v4730
      %v5167 = vpack.c.b16 %v4735, %v4731
      %v5168 = vpack.c.b16 %v4740, %v4736
      %v5169 = vpack.c.b16 %v4741, %v4737
      %v5170 = vpack.c.b16 %v4742, %v4738
      %v5171 = vpack.c.b16 %v4743, %v4739
      %v5172 = vpack.c.b16 %v4748, %v4744
      %v5173 = vpack.c.b16 %v4749, %v4745
      %v5174 = vpack.c.b16 %v4750, %v4746
      %v5175 = vpack.c.b16 %v4751, %v4747
      %v5176 = vpack.c.b16 %v4756, %v4752
      %v5177 = vpack.c.b16 %v4757, %v4753
      %v5178 = vpack.c.b16 %v4758, %v4754
      %v5179 = vpack.c.b16 %v4759, %v4755
      %v5180 = vpack.c.b16 %v4764, %v4760
      %v5181 = vpack.c.b16 %v4765, %v4761
      %v5182 = vpack.c.b16 %v4766, %v4762
      %v5183 = vpack.c.b16 %v4767, %v4763
      %v5184 = vpack.c.b16 %v4772, %v4768
      %v5185 = vpack.c.b16 %v4773, %v4769
      %v5186 = vpack.c.b16 %v4774, %v4770
      %v5187 = vpack.c.b16 %v4775, %v4771
      %v5188 = vpack.c.b16 %v4780, %v4776
      %v5189 = vpack.c.b16 %v4781, %v4777
      %v5190 = vpack.c.b16 %v4782, %v4778
      %v5191 = vpack.c.b16 %v4783, %v4779
      %v5192 = vpack.c.b16 %v4788, %v4784
      %v5193 = vpack.c.b16 %v4789, %v4785
      %v5194 = vpack.c.b16 %v4790, %v4786
      %v5195 = vpack.c.b16 %v4791, %v4787
      %v5196 = vpack.c.b16 %v4796, %v4792
      %v5197 = vpack.c.b16 %v4797, %v4793
      %v5198 = vpack.c.b16 %v4798, %v4794
      %v5199 = vpack.c.b16 %v4799, %v4795
      %v5200 = vpack.c.b16 %v4804, %v4800
      %v5201 = vpack.c.b16 %v4805, %v4801
      %v5202 = vpack.c.b16 %v4806, %v4802
      %v5203 = vpack.c.b16 %v4807, %v4803
      %v5204 = vpack.c.b16 %v4812, %v4808
      %v5205 = vpack.c.b16 %v4813, %v4809
      %v5206 = vpack.c.b16 %v4814, %v4810
      %v5207 = vpack.c.b16 %v4815, %v4811
      %v5208 = vpack.c.b16 %v4820, %v4816
      %v5209 = vpack.c.b16 %v4821, %v4817
      %v5210 = vpack.c.b16 %v4822, %v4818
      %v5211 = vpack.c.b16 %v4823, %v4819
      %v5212 = vpack.c.b16 %v4828, %v4824
      %v5213 = vpack.c.b16 %v4829, %v4825
      %v5214 = vpack.c.b16 %v4830, %v4826
      %v5215 = vpack.c.b16 %v4831, %v4827
      %v5216 = vpack.c.b16 %v4836, %v4832
      %v5217 = vpack.c.b16 %v4837, %v4833
      %v5218 = vpack.c.b16 %v4838, %v4834
      %v5219 = vpack.c.b16 %v4839, %v4835
      %v5220 = vpack.c.b16 %v4844, %v4840
      %v5221 = vpack.c.b16 %v4845, %v4841
      %v5222 = vpack.c.b16 %v4846, %v4842
      %v5223 = vpack.c.b16 %v4847, %v4843
      %v5224 = vpack.c.b16 %v4852, %v4848
      %v5225 = vpack.c.b16 %v4853, %v4849
      %v5226 = vpack.c.b16 %v4854, %v4850
      %v5227 = vpack.c.b16 %v4855, %v4851
      %v5228 = vpack.c.b16 %v4860, %v4856
      %v5229 = vpack.c.b16 %v4861, %v4857
      %v5230 = vpack.c.b16 %v4862, %v4858
      %v5231 = vpack.c.b16 %v4863, %v4859
      %v5232 = vpack.c.b16 %v4868, %v4864
      %v5233 = vpack.c.b16 %v4869, %v4865
      %v5234 = vpack.c.b16 %v4870, %v4866
      %v5235 = vpack.c.b16 %v4871, %v4867
      %v5236 = vpack.c.b16 %v4876, %v4872
      %v5237 = vpack.c.b16 %v4877, %v4873
      %v5238 = vpack.c.b16 %v4878, %v4874
      %v5239 = vpack.c.b16 %v4879, %v4875
      %v5240 = vpack.c.b16 %v4884, %v4880
      %v5241 = vpack.c.b16 %v4885, %v4881
      %v5242 = vpack.c.b16 %v4886, %v4882
      %v5243 = vpack.c.b16 %v4887, %v4883
      %v5244 = vpack.c.b16 %v4892, %v4888
      %v5245 = vpack.c.b16 %v4893, %v4889
      %v5246 = vpack.c.b16 %v4894, %v4890
      %v5247 = vpack.c.b16 %v4895, %v4891
      %v5248 = vpack.c.b16 %v4900, %v4896
      %v5249 = vpack.c.b16 %v4901, %v4897
      %v5250 = vpack.c.b16 %v4902, %v4898
      %v5251 = vpack.c.b16 %v4903, %v4899
      %v5252 = vpack.c.b16 %v4908, %v4904
      %v5253 = vpack.c.b16 %v4909, %v4905
      %v5254 = vpack.c.b16 %v4910, %v4906
      %v5255 = vpack.c.b16 %v4911, %v4907
      %v5256 = vpack.c.b16 %v4916, %v4912
      %v5257 = vpack.c.b16 %v4917, %v4913
      %v5258 = vpack.c.b16 %v4918, %v4914
      %v5259 = vpack.c.b16 %v4919, %v4915
      %v5260 = vpack.c.b16 %v4924, %v4920
      %v5261 = vpack.c.b16 %v4925, %v4921
      %v5262 = vpack.c.b16 %v4926, %v4922
      %v5263 = vpack.c.b16 %v4927, %v4923
      %v5264 = vpack.c.b16 %v4932, %v4928
      %v5265 = vpack.c.b16 %v4933, %v4929
      %v5266 = vpack.c.b16 %v4934, %v4930
      %v5267 = vpack.c.b16 %v4935, %v4931
      %v5268 = vpack.c.b16 %v4940, %v4936
      %v5269 = vpack.c.b16 %v4941, %v4937
      %v5270 = vpack.c.b16 %v4942, %v4938
      %v5271 = vpack.c.b16 %v4943, %v4939
      %v5272 = vpack.c.b16 %v4948, %v4944
      %v5273 = vpack.c.b16 %v4949, %v4945
      %v5274 = vpack.c.b16 %v4950, %v4946
      %v5275 = vpack.c.b16 %v4951, %v4947
      %v5276 = vpack.c.b16 %v4956, %v4952
      %v5277 = vpack.c.b16 %v4957, %v4953
      %v5278 = vpack.c.b16 %v4958, %v4954
      %v5279 = vpack.c.b16 %v4959, %v4955
      %v5280 = vpack.c.b16 %v4964, %v4960
      %v5281 = vpack.c.b16 %v4965, %v4961
      %v5282 = vpack.c.b16 %v4966, %v4962
      %v5283 = vpack.c.b16 %v4967, %v4963
      %v5284 = vpack.c.b16 %v4972, %v4968
      %v5285 = vpack.c.b16 %v4973, %v4969
      %v5286 = vpack.c.b16 %v4974, %v4970
      %v5287 = vpack.c.b16 %v4975, %v4971
      %v5288 = vpack.c.b16 %v4980, %v4976
      %v5289 = vpack.c.b16 %v4981, %v4977
      %v5290 = vpack.c.b16 %v4982, %v4978
      %v5291 = vpack.c.b16 %v4983, %v4979
      %v5292 = vpack.c.b16 %v4988, %v4984
      %v5293 = vpack.c.b16 %v4989, %v4985
      %v5294 = vpack.c.b16 %v4990, %v4986
      %v5295 = vpack.c.b16 %v4991, %v4987
      %v5296 = vpack.c.b16 %v4996, %v4992
      %v5297 = vpack.c.b16 %v4997, %v4993
      %v5298 = vpack.c.b16 %v4998, %v4994
      %v5299 = vpack.c.b16 %v4999, %v4995
      %v5300 = vpack.c.b16 %v5004, %v5000
      %v5301 = vpack.c.b16 %v5005, %v5001
      %v5302 = vpack.c.b16 %v5006, %v5002
      %v5303 = vpack.c.b16 %v5007, %v5003
      %v5304 = vpack.c.b16 %v5012, %v5008
      %v5305 = vpack.c.b16 %v5013, %v5009
      %v5306 = vpack.c.b16 %v5014, %v5010
      %v5307 = vpack.c.b16 %v5015, %v5011
      %v5308 = vpack.c.b16 %v5020, %v5016
      %v5309 = vpack.c.b16 %v5021, %v5017
      %v5310 = vpack.c.b16 %v5022, %v5018
      %v5311 = vpack.c.b16 %v5023, %v5019
      %v5312 = vpack.c.b16 %v5028, %v5024
      %v5313 = vpack.c.b16 %v5029, %v5025
      %v5314 = vpack.c.b16 %v5030, %v5026
      %v5315 = vpack.c.b16 %v5031, %v5027
      %v5316 = vpack.c.b16 %v5036, %v5032
      %v5317 = vpack.c.b16 %v5037, %v5033
      %v5318 = vpack.c.b16 %v5038, %v5034
      %v5319 = vpack.c.b16 %v5039, %v5035
      %v5320 = vpack.c.b16 %v5044, %v5040
      %v5321 = vpack.c.b16 %v5045, %v5041
      %v5322 = vpack.c.b16 %v5046, %v5042
      %v5323 = vpack.c.b16 %v5047, %v5043
      %v5324 = vpack.c.b16 %v5052, %v5048
      %v5325 = vpack.c.b16 %v5053, %v5049
      %v5326 = vpack.c.b16 %v5054, %v5050
      %v5327 = vpack.c.b16 %v5055, %v5051
      %v5328 = vpack.c.b16 %v5060, %v5056
      %v5329 = vpack.c.b16 %v5061, %v5057
      %v5330 = vpack.c.b16 %v5062, %v5058
      %v5331 = vpack.c.b16 %v5063, %v5059
      %v5332 = vpack.c.b16 %v5068, %v5064
      %v5333 = vpack.c.b16 %v5069, %v5065
      %v5334 = vpack.c.b16 %v5070, %v5066
      %v5335 = vpack.c.b16 %v5071, %v5067
      %v5336 = vpack.c.b16 %v5076, %v5072
      %v5337 = vpack.c.b16 %v5077, %v5073
      %v5338 = vpack.c.b16 %v5078, %v5074
      %v5339 = vpack.c.b16 %v5079, %v5075
      %v5340 = vpack.c.b16 %v5084, %v5080
      %v5341 = vpack.c.b16 %v5085, %v5081
      %v5342 = vpack.c.b16 %v5086, %v5082
      %v5343 = vpack.c.b16 %v5087, %v5083
      %5600 = vmatprep.subr.bf16.mxu0 %v5089
      %5601 = vmatpush1.bf16.msra.mxu0 %v5088
      %5602 = vmatprep.subr.bf16.mxu0 %v5093
      %5603 = vmatpush1.bf16.msra.mxu0 %v5092
      %5604 = vmatprep.subr.bf16.mxu0 %v5097
      %5605 = vmatpush1.bf16.msra.mxu0 %v5096
      %5606 = vmatprep.subr.bf16.mxu0 %v5101
      %5607 = vmatpush1.bf16.msra.mxu0 %v5100
      %5608 = vmatprep.subr.bf16.mxu0 %v5105
      %5609 = vmatpush1.bf16.msra.mxu0 %v5104
      %5610 = vmatprep.subr.bf16.mxu0 %v5109
      %5611 = vmatpush1.bf16.msra.mxu0 %v5108
      %5612 = vmatprep.subr.bf16.mxu0 %v5113
      %5613 = vmatpush1.bf16.msra.mxu0 %v5112
      %5614 = vmatprep.subr.bf16.mxu0 %v5117
      %5615 = vmatpush1.bf16.msra.mxu0 %v5116
      %5616 = vmatprep.subr.bf16.mxu0 %v5121
      %5617 = vmatpush1.bf16.msra.mxu0 %v5120
      %5618 = vmatprep.subr.bf16.mxu0 %v5125
      %5619 = vmatpush1.bf16.msra.mxu0 %v5124
      %5620 = vmatprep.subr.bf16.mxu0 %v5129
      %5621 = vmatpush1.bf16.msra.mxu0 %v5128
      %5622 = vmatprep.subr.bf16.mxu0 %v5133
      %5623 = vmatpush1.bf16.msra.mxu0 %v5132
      %5624 = vmatprep.subr.bf16.mxu0 %v5137
      %5625 = vmatpush1.bf16.msra.mxu0 %v5136
      %5626 = vmatprep.subr.bf16.mxu0 %v5141
      %5627 = vmatpush1.bf16.msra.mxu0 %v5140
      %5628 = vmatprep.subr.bf16.mxu0 %v5145
      %5629 = vmatpush1.bf16.msra.mxu0 %v5144
      %5630 = vmatprep.subr.bf16.mxu0 %v5149
      %5631 = vmatpush1.bf16.msra.mxu0 %v5148
      %5632 = vmatprep.mubr.bf16.mxu0 %v4035
      %5633 = vmatmul.mubr.bf16.gmra.mrb[0].mxu0 %v4034
      %v5634 = vpop.f32.mrb[0].mxu0
      %v5635 = vadd.f32 %v4303, %v5634
      %v5636 = vpop.f32.mrb[0].mxu0
      %v5637 = vadd.f32 %v4307, %v5636
      %v5638 = vpop.f32.mrb[0].mxu0
      %v5639 = vpop.f32.mrb[0].mxu0
      %5640 = vdwg.mxu0
      %5641 = vmatprep.subr.bf16.mxu0 %v5153
      %5642 = vmatpush1.bf16.msra.mxu0 %v5152
      %5643 = vmatprep.subr.bf16.mxu0 %v5157
      %5644 = vmatpush1.bf16.msra.mxu0 %v5156
      %5645 = vmatprep.subr.bf16.mxu0 %v5161
      %5646 = vmatpush1.bf16.msra.mxu0 %v5160
      %5647 = vmatprep.subr.bf16.mxu0 %v5165
      %5648 = vmatpush1.bf16.msra.mxu0 %v5164
      %5649 = vmatprep.subr.bf16.mxu0 %v5169
      %5650 = vmatpush1.bf16.msra.mxu0 %v5168
      %5651 = vmatprep.subr.bf16.mxu0 %v5173
      %5652 = vmatpush1.bf16.msra.mxu0 %v5172
      %5653 = vmatprep.subr.bf16.mxu0 %v5177
      %5654 = vmatpush1.bf16.msra.mxu0 %v5176
      %5655 = vmatprep.subr.bf16.mxu0 %v5181
      %5656 = vmatpush1.bf16.msra.mxu0 %v5180
      %5657 = vmatprep.subr.bf16.mxu0 %v5185
      %5658 = vmatpush1.bf16.msra.mxu0 %v5184
      %5659 = vmatprep.subr.bf16.mxu0 %v5189
      %5660 = vmatpush1.bf16.msra.mxu0 %v5188
      %5661 = vmatprep.subr.bf16.mxu0 %v5193
      %5662 = vmatpush1.bf16.msra.mxu0 %v5192
      %5663 = vmatprep.subr.bf16.mxu0 %v5197
      %5664 = vmatpush1.bf16.msra.mxu0 %v5196
      %5665 = vmatprep.subr.bf16.mxu0 %v5201
      %5666 = vmatpush1.bf16.msra.mxu0 %v5200
      %5667 = vmatprep.subr.bf16.mxu0 %v5205
      %5668 = vmatpush1.bf16.msra.mxu0 %v5204
      %5669 = vmatprep.subr.bf16.mxu0 %v5209
      %5670 = vmatpush1.bf16.msra.mxu0 %v5208
      %5671 = vmatprep.subr.bf16.mxu0 %v5213
      %5672 = vmatpush1.bf16.msra.mxu0 %v5212
      %5673 = vmatprep.mubr.bf16.mxu0 %v4037
      %5674 = vmatmul.mubr.bf16.gmra.mrb[0].mxu0 %v4036
      %v5675 = vpop.f32.mrb[0].mxu0
      %v5676 = vadd.f32 %v5635, %v5675
      %v5677 = vpop.f32.mrb[0].mxu0
      %v5678 = vadd.f32 %v5637, %v5677
      %v5679 = vpop.f32.mrb[0].mxu0
      %v5680 = vpop.f32.mrb[0].mxu0
      %5681 = vdwg.mxu0
      %5682 = vmatprep.subr.bf16.mxu0 %v5217
      %5683 = vmatpush1.bf16.msra.mxu0 %v5216
      %5684 = vmatprep.subr.bf16.mxu0 %v5221
      %5685 = vmatpush1.bf16.msra.mxu0 %v5220
      %5686 = vmatprep.subr.bf16.mxu0 %v5225
      %5687 = vmatpush1.bf16.msra.mxu0 %v5224
      %5688 = vmatprep.subr.bf16.mxu0 %v5229
      %5689 = vmatpush1.bf16.msra.mxu0 %v5228
      %5690 = vmatprep.subr.bf16.mxu0 %v5233
      %5691 = vmatpush1.bf16.msra.mxu0 %v5232
      %5692 = vmatprep.subr.bf16.mxu0 %v5237
      %5693 = vmatpush1.bf16.msra.mxu0 %v5236
      %5694 = vmatprep.subr.bf16.mxu0 %v5241
      %5695 = vmatpush1.bf16.msra.mxu0 %v5240
      %5696 = vmatprep.subr.bf16.mxu0 %v5245
      %5697 = vmatpush1.bf16.msra.mxu0 %v5244
      %5698 = vmatprep.subr.bf16.mxu0 %v5249
      %5699 = vmatpush1.bf16.msra.mxu0 %v5248
      %5700 = vmatprep.subr.bf16.mxu0 %v5253
      %5701 = vmatpush1.bf16.msra.mxu0 %v5252
      %5702 = vmatprep.subr.bf16.mxu0 %v5257
      %5703 = vmatpush1.bf16.msra.mxu0 %v5256
      %5704 = vmatprep.subr.bf16.mxu0 %v5261
      %5705 = vmatpush1.bf16.msra.mxu0 %v5260
      %5706 = vmatprep.subr.bf16.mxu0 %v5265
      %5707 = vmatpush1.bf16.msra.mxu0 %v5264
      %5708 = vmatprep.subr.bf16.mxu0 %v5269
      %5709 = vmatpush1.bf16.msra.mxu0 %v5268
      %5710 = vmatprep.subr.bf16.mxu0 %v5273
      %5711 = vmatpush1.bf16.msra.mxu0 %v5272
      %5712 = vmatprep.subr.bf16.mxu0 %v5277
      %5713 = vmatpush1.bf16.msra.mxu0 %v5276
      %5714 = vmatprep.mubr.bf16.mxu0 %v4039
      %5715 = vmatmul.mubr.bf16.gmra.mrb[0].mxu0 %v4038
      %v5716 = vpop.f32.mrb[0].mxu0
      %v5717 = vadd.f32 %v5676, %v5716
      %v5718 = vpop.f32.mrb[0].mxu0
      %v5719 = vadd.f32 %v5678, %v5718
      %v5720 = vpop.f32.mrb[0].mxu0
      %v5721 = vpop.f32.mrb[0].mxu0
      %5722 = vdwg.mxu0
      %5723 = vmatprep.subr.bf16.mxu0 %v5281
      %5724 = vmatpush1.bf16.msra.mxu0 %v5280
      %5725 = vmatprep.subr.bf16.mxu0 %v5285
      %5726 = vmatpush1.bf16.msra.mxu0 %v5284
      %5727 = vmatprep.subr.bf16.mxu0 %v5289
      %5728 = vmatpush1.bf16.msra.mxu0 %v5288
      %5729 = vmatprep.subr.bf16.mxu0 %v5293
      %5730 = vmatpush1.bf16.msra.mxu0 %v5292
      %5731 = vmatprep.subr.bf16.mxu0 %v5297
      %5732 = vmatpush1.bf16.msra.mxu0 %v5296
      %5733 = vmatprep.subr.bf16.mxu0 %v5301
      %5734 = vmatpush1.bf16.msra.mxu0 %v5300
      %5735 = vmatprep.subr.bf16.mxu0 %v5305
      %5736 = vmatpush1.bf16.msra.mxu0 %v5304
      %5737 = vmatprep.subr.bf16.mxu0 %v5309
      %5738 = vmatpush1.bf16.msra.mxu0 %v5308
      %5739 = vmatprep.subr.bf16.mxu0 %v5313
      %5740 = vmatpush1.bf16.msra.mxu0 %v5312
      %5741 = vmatprep.subr.bf16.mxu0 %v5317
      %5742 = vmatpush1.bf16.msra.mxu0 %v5316
      %5743 = vmatprep.subr.bf16.mxu0 %v5321
      %5744 = vmatpush1.bf16.msra.mxu0 %v5320
      %5745 = vmatprep.subr.bf16.mxu0 %v5325
      %5746 = vmatpush1.bf16.msra.mxu0 %v5324
      %5747 = vmatprep.subr.bf16.mxu0 %v5329
      %5748 = vmatpush1.bf16.msra.mxu0 %v5328
      %5749 = vmatprep.subr.bf16.mxu0 %v5333
      %5750 = vmatpush1.bf16.msra.mxu0 %v5332
      %5751 = vmatprep.subr.bf16.mxu0 %v5337
      %5752 = vmatpush1.bf16.msra.mxu0 %v5336
      %5753 = vmatprep.subr.bf16.mxu0 %v5341
      %5754 = vmatpush1.bf16.msra.mxu0 %v5340
      %5755 = vmatprep.mubr.bf16.mxu0 %v4041
      %5756 = vmatmul.mubr.bf16.gmra.mrb[0].mxu0 %v4040
      %v5757 = vpop.f32.mrb[0].mxu0
      %v5758 = vadd.f32 %v5717, %v5757
      %v5759 = vpop.f32.mrb[0].mxu0
      %v5760 = vadd.f32 %v5719, %v5759
      %v5761 = vpop.f32.mrb[0].mxu0
      %v5762 = vpop.f32.mrb[0].mxu0
      %5763 = vdwg.mxu0
      %5764 = vmatprep.subr.bf16.mxu0 %v5091
      %5765 = vmatpush1.bf16.msra.mxu0 %v5090
      %5766 = vmatprep.subr.bf16.mxu0 %v5095
      %5767 = vmatpush1.bf16.msra.mxu0 %v5094
      %5768 = vmatprep.subr.bf16.mxu0 %v5099
      %5769 = vmatpush1.bf16.msra.mxu0 %v5098
      %5770 = vmatprep.subr.bf16.mxu0 %v5103
      %5771 = vmatpush1.bf16.msra.mxu0 %v5102
      %5772 = vmatprep.subr.bf16.mxu0 %v5107
      %5773 = vmatpush1.bf16.msra.mxu0 %v5106
      %5774 = vmatprep.subr.bf16.mxu0 %v5111
      %5775 = vmatpush1.bf16.msra.mxu0 %v5110
      %5776 = vmatprep.subr.bf16.mxu0 %v5115
      %5777 = vmatpush1.bf16.msra.mxu0 %v5114
      %5778 = vmatprep.subr.bf16.mxu0 %v5119
      %5779 = vmatpush1.bf16.msra.mxu0 %v5118
      %5780 = vmatprep.subr.bf16.mxu0 %v5123
      %5781 = vmatpush1.bf16.msra.mxu0 %v5122
      %5782 = vmatprep.subr.bf16.mxu0 %v5127
      %5783 = vmatpush1.bf16.msra.mxu0 %v5126
      %5784 = vmatprep.subr.bf16.mxu0 %v5131
      %5785 = vmatpush1.bf16.msra.mxu0 %v5130
      %5786 = vmatprep.subr.bf16.mxu0 %v5135
      %5787 = vmatpush1.bf16.msra.mxu0 %v5134
      %5788 = vmatprep.subr.bf16.mxu0 %v5139
      %5789 = vmatpush1.bf16.msra.mxu0 %v5138
      %5790 = vmatprep.subr.bf16.mxu0 %v5143
      %5791 = vmatpush1.bf16.msra.mxu0 %v5142
      %5792 = vmatprep.subr.bf16.mxu0 %v5147
      %5793 = vmatpush1.bf16.msra.mxu0 %v5146
      %5794 = vmatprep.subr.bf16.mxu0 %v5151
      %5795 = vmatpush1.bf16.msra.mxu0 %v5150
      %5796 = vmatprep.mubr.bf16.mxu0 %v4035
      %5797 = vmatmul.mubr.bf16.gmra.mrb[0].mxu0 %v4034
      %v5798 = vpop.f32.mrb[0].mxu0
      %v5799 = vadd.f32 %v4311, %v5798
      %v5800 = vpop.f32.mrb[0].mxu0
      %v5801 = vadd.f32 %v4315, %v5800
      %v5802 = vpop.f32.mrb[0].mxu0
      %v5803 = vpop.f32.mrb[0].mxu0
      %5804 = vdwg.mxu0
      %5805 = vmatprep.subr.bf16.mxu0 %v5155
      %5806 = vmatpush1.bf16.msra.mxu0 %v5154
      %5807 = vmatprep.subr.bf16.mxu0 %v5159
      %5808 = vmatpush1.bf16.msra.mxu0 %v5158
      %5809 = vmatprep.subr.bf16.mxu0 %v5163
      %5810 = vmatpush1.bf16.msra.mxu0 %v5162
      %5811 = vmatprep.subr.bf16.mxu0 %v5167
      %5812 = vmatpush1.bf16.msra.mxu0 %v5166
      %5813 = vmatprep.subr.bf16.mxu0 %v5171
      %5814 = vmatpush1.bf16.msra.mxu0 %v5170
      %5815 = vmatprep.subr.bf16.mxu0 %v5175
      %5816 = vmatpush1.bf16.msra.mxu0 %v5174
      %5817 = vmatprep.subr.bf16.mxu0 %v5179
      %5818 = vmatpush1.bf16.msra.mxu0 %v5178
      %5819 = vmatprep.subr.bf16.mxu0 %v5183
      %5820 = vmatpush1.bf16.msra.mxu0 %v5182
      %5821 = vmatprep.subr.bf16.mxu0 %v5187
      %5822 = vmatpush1.bf16.msra.mxu0 %v5186
      %5823 = vmatprep.subr.bf16.mxu0 %v5191
      %5824 = vmatpush1.bf16.msra.mxu0 %v5190
      %5825 = vmatprep.subr.bf16.mxu0 %v5195
      %5826 = vmatpush1.bf16.msra.mxu0 %v5194
      %5827 = vmatprep.subr.bf16.mxu0 %v5199
      %5828 = vmatpush1.bf16.msra.mxu0 %v5198
      %5829 = vmatprep.subr.bf16.mxu0 %v5203
      %5830 = vmatpush1.bf16.msra.mxu0 %v5202
      %5831 = vmatprep.subr.bf16.mxu0 %v5207
      %5832 = vmatpush1.bf16.msra.mxu0 %v5206
      %5833 = vmatprep.subr.bf16.mxu0 %v5211
      %5834 = vmatpush1.bf16.msra.mxu0 %v5210
      %5835 = vmatprep.subr.bf16.mxu0 %v5215
      %5836 = vmatpush1.bf16.msra.mxu0 %v5214
      %5837 = vmatprep.mubr.bf16.mxu0 %v4037
      %5838 = vmatmul.mubr.bf16.gmra.mrb[0].mxu0 %v4036
      %v5839 = vpop.f32.mrb[0].mxu0
      %v5840 = vadd.f32 %v5799, %v5839
      %v5841 = vpop.f32.mrb[0].mxu0
      %v5842 = vadd.f32 %v5801, %v5841
      %v5843 = vpop.f32.mrb[0].mxu0
      %v5844 = vpop.f32.mrb[0].mxu0
      %5845 = vdwg.mxu0
      %5846 = vmatprep.subr.bf16.mxu0 %v5219
      %5847 = vmatpush1.bf16.msra.mxu0 %v5218
      %5848 = vmatprep.subr.bf16.mxu0 %v5223
      %5849 = vmatpush1.bf16.msra.mxu0 %v5222
      %5850 = vmatprep.subr.bf16.mxu0 %v5227
      %5851 = vmatpush1.bf16.msra.mxu0 %v5226
      %5852 = vmatprep.subr.bf16.mxu0 %v5231
      %5853 = vmatpush1.bf16.msra.mxu0 %v5230
      %5854 = vmatprep.subr.bf16.mxu0 %v5235
      %5855 = vmatpush1.bf16.msra.mxu0 %v5234
      %5856 = vmatprep.subr.bf16.mxu0 %v5239
      %5857 = vmatpush1.bf16.msra.mxu0 %v5238
      %5858 = vmatprep.subr.bf16.mxu0 %v5243
      %5859 = vmatpush1.bf16.msra.mxu0 %v5242
      %5860 = vmatprep.subr.bf16.mxu0 %v5247
      %5861 = vmatpush1.bf16.msra.mxu0 %v5246
      %5862 = vmatprep.subr.bf16.mxu0 %v5251
      %5863 = vmatpush1.bf16.msra.mxu0 %v5250
      %5864 = vmatprep.subr.bf16.mxu0 %v5255
      %5865 = vmatpush1.bf16.msra.mxu0 %v5254
      %5866 = vmatprep.subr.bf16.mxu0 %v5259
      %5867 = vmatpush1.bf16.msra.mxu0 %v5258
      %5868 = vmatprep.subr.bf16.mxu0 %v5263
      %5869 = vmatpush1.bf16.msra.mxu0 %v5262
      %5870 = vmatprep.subr.bf16.mxu0 %v5267
      %5871 = vmatpush1.bf16.msra.mxu0 %v5266
      %5872 = vmatprep.subr.bf16.mxu0 %v5271
      %5873 = vmatpush1.bf16.msra.mxu0 %v5270
      %5874 = vmatprep.subr.bf16.mxu0 %v5275
      %5875 = vmatpush1.bf16.msra.mxu0 %v5274
      %5876 = vmatprep.subr.bf16.mxu0 %v5279
      %5877 = vmatpush1.bf16.msra.mxu0 %v5278
      %5878 = vmatprep.mubr.bf16.mxu0 %v4039
      %5879 = vmatmul.mubr.bf16.gmra.mrb[0].mxu0 %v4038
      %v5880 = vpop.f32.mrb[0].mxu0
      %v5881 = vadd.f32 %v5840, %v5880
      %v5882 = vpop.f32.mrb[0].mxu0
      %v5883 = vadd.f32 %v5842, %v5882
      %v5884 = vpop.f32.mrb[0].mxu0
      %v5885 = vpop.f32.mrb[0].mxu0
      %5886 = vdwg.mxu0
      %5887 = vmatprep.subr.bf16.mxu0 %v5283
      %5888 = vmatpush1.bf16.msra.mxu0 %v5282
      %5889 = vmatprep.subr.bf16.mxu0 %v5287
      %5890 = vmatpush1.bf16.msra.mxu0 %v5286
      %5891 = vmatprep.subr.bf16.mxu0 %v5291
      %5892 = vmatpush1.bf16.msra.mxu0 %v5290
      %5893 = vmatprep.subr.bf16.mxu0 %v5295
      %5894 = vmatpush1.bf16.msra.mxu0 %v5294
      %5895 = vmatprep.subr.bf16.mxu0 %v5299
      %5896 = vmatpush1.bf16.msra.mxu0 %v5298
      %5897 = vmatprep.subr.bf16.mxu0 %v5303
      %5898 = vmatpush1.bf16.msra.mxu0 %v5302
      %5899 = vmatprep.subr.bf16.mxu0 %v5307
      %5900 = vmatpush1.bf16.msra.mxu0 %v5306
      %5901 = vmatprep.subr.bf16.mxu0 %v5311
      %5902 = vmatpush1.bf16.msra.mxu0 %v5310
      %5903 = vmatprep.subr.bf16.mxu0 %v5315
      %5904 = vmatpush1.bf16.msra.mxu0 %v5314
      %5905 = vmatprep.subr.bf16.mxu0 %v5319
      %5906 = vmatpush1.bf16.msra.mxu0 %v5318
      %5907 = vmatprep.subr.bf16.mxu0 %v5323
      %5908 = vmatpush1.bf16.msra.mxu0 %v5322
      %5909 = vmatprep.subr.bf16.mxu0 %v5327
      %5910 = vmatpush1.bf16.msra.mxu0 %v5326
      %5911 = vmatprep.subr.bf16.mxu0 %v5331
      %5912 = vmatpush1.bf16.msra.mxu0 %v5330
      %5913 = vmatprep.subr.bf16.mxu0 %v5335
      %5914 = vmatpush1.bf16.msra.mxu0 %v5334
      %5915 = vmatprep.subr.bf16.mxu0 %v5339
      %5916 = vmatpush1.bf16.msra.mxu0 %v5338
      %5917 = vmatprep.subr.bf16.mxu0 %v5343
      %5918 = vmatpush1.bf16.msra.mxu0 %v5342
      %5919 = vmatprep.mubr.bf16.mxu0 %v4041
      %5920 = vmatmul.mubr.bf16.gmra.mrb[0].mxu0 %v4040
      %v5921 = vpop.f32.mrb[0].mxu0
      %v5922 = vadd.f32 %v5881, %v5921
      %v5923 = vpop.f32.mrb[0].mxu0
      %v5924 = vadd.f32 %v5883, %v5923
      %v5925 = vpop.f32.mrb[0].mxu0
      %v5926 = vpop.f32.mrb[0].mxu0
      %5927 = vdwg.mxu0
      %v5928 = vmul.f32 %v5758, 0.2
      %v5929 = vmul.f32 %v5760, 0.2
      %v5930 = vmul.f32 %v5922, 0.2
      %v5931 = vmul.f32 %v5924, 0.2
      %v5932 = vmax.f32 %v5758, %v5928
      %v5933 = vmax.f32 %v5760, %v5929
      %v5934 = vmax.f32 %v5922, %v5930
      %v5935 = vmax.f32 %v5924, %v5931
      %v5936 = vpack.c.bf16 %v5932, %v5932
      %v5937 = vpack.c.bf16 %v5933, %v5933
      %v5938 = vpack.c.bf16 %v5934, %v5934
      %v5939 = vpack.c.bf16 %v5935, %v5935
      %v5940 = vld [vmem:[#allocation12] sm:$0xff]
      %v5941 = vld [vmem:[#allocation12 + $0x8] sm:$0xff]
      %v5942 = vld [vmem:[#allocation12 + $0x10] sm:$0xff]
      %v5943 = vld [vmem:[#allocation12 + $0x18] sm:$0xff]
      %v5944 = vld [vmem:[#allocation12 + $0x20] sm:$0xff]
      %v5945 = vld [vmem:[#allocation12 + $0x28] sm:$0xff]
      %v5946 = vld [vmem:[#allocation12 + $0x30] sm:$0xff]
      %v5947 = vld [vmem:[#allocation12 + $0x38] sm:$0xff]
      %v5948 = vld [vmem:[#allocation12 + $0x40] sm:$0xff]
      %v5949 = vld [vmem:[#allocation12 + $0x48] sm:$0xff]
      %v5950 = vld [vmem:[#allocation12 + $0x50] sm:$0xff]
      %v5951 = vld [vmem:[#allocation12 + $0x58] sm:$0xff]
      %v5952 = vld [vmem:[#allocation12 + $0x60] sm:$0xff]
      %v5953 = vld [vmem:[#allocation12 + $0x68] sm:$0xff]
      %v5954 = vld [vmem:[#allocation12 + $0x70] sm:$0xff]
      %v5955 = vld [vmem:[#allocation12 + $0x78] sm:$0xff]
      %v5956 = vld [vmem:[#allocation12 + $0x80] sm:$0xff]
      %v5957 = vld [vmem:[#allocation12 + $0x88] sm:$0xff]
      %v5958 = vld [vmem:[#allocation12 + $0x90] sm:$0xff]
      %v5959 = vld [vmem:[#allocation12 + $0x98] sm:$0xff]
      %v5960 = vld [vmem:[#allocation12 + $0xa0] sm:$0xff]
      %v5961 = vld [vmem:[#allocation12 + $0xa8] sm:$0xff]
      %v5962 = vld [vmem:[#allocation12 + $0xb0] sm:$0xff]
      %v5963 = vld [vmem:[#allocation12 + $0xb8] sm:$0xff]
      %v5964 = vld [vmem:[#allocation12 + $0xc0] sm:$0xff]
      %v5965 = vld [vmem:[#allocation12 + $0xc8] sm:$0xff]
      %v5966 = vld [vmem:[#allocation12 + $0xd0] sm:$0xff]
      %v5967 = vld [vmem:[#allocation12 + $0xd8] sm:$0xff]
      %v5968 = vld [vmem:[#allocation12 + $0xe0] sm:$0xff]
      %v5969 = vld [vmem:[#allocation12 + $0xe8] sm:$0xff]
      %v5970 = vld [vmem:[#allocation12 + $0xf0] sm:$0xff]
      %v5971 = vld [vmem:[#allocation12 + $0xf8] sm:$0xff]
      %v5972 = vld [vmem:[#allocation12 + $0x100] sm:$0xff]
      %v5973 = vld [vmem:[#allocation12 + $0x108] sm:$0xff]
      %v5974 = vld [vmem:[#allocation12 + $0x110] sm:$0xff]
      %v5975 = vld [vmem:[#allocation12 + $0x118] sm:$0xff]
      %v5976 = vld [vmem:[#allocation12 + $0x120] sm:$0xff]
      %v5977 = vld [vmem:[#allocation12 + $0x128] sm:$0xff]
      %v5978 = vld [vmem:[#allocation12 + $0x130] sm:$0xff]
      %v5979 = vld [vmem:[#allocation12 + $0x138] sm:$0xff]
      %v5980 = vld [vmem:[#allocation12 + $0x140] sm:$0xff]
      %v5981 = vld [vmem:[#allocation12 + $0x148] sm:$0xff]
      %v5982 = vld [vmem:[#allocation12 + $0x150] sm:$0xff]
      %v5983 = vld [vmem:[#allocation12 + $0x158] sm:$0xff]
      %v5984 = vld [vmem:[#allocation12 + $0x160] sm:$0xff]
      %v5985 = vld [vmem:[#allocation12 + $0x168] sm:$0xff]
      %v5986 = vld [vmem:[#allocation12 + $0x170] sm:$0xff]
      %v5987 = vld [vmem:[#allocation12 + $0x178] sm:$0xff]
      %v5988 = vld [vmem:[#allocation12 + $0x180] sm:$0xff]
      %v5989 = vld [vmem:[#allocation12 + $0x188] sm:$0xff]
      %v5990 = vld [vmem:[#allocation12 + $0x190] sm:$0xff]
      %v5991 = vld [vmem:[#allocation12 + $0x198] sm:$0xff]
      %v5992 = vld [vmem:[#allocation12 + $0x1a0] sm:$0xff]
      %v5993 = vld [vmem:[#allocation12 + $0x1a8] sm:$0xff]
      %v5994 = vld [vmem:[#allocation12 + $0x1b0] sm:$0xff]
      %v5995 = vld [vmem:[#allocation12 + $0x1b8] sm:$0xff]
      %v5996 = vld [vmem:[#allocation12 + $0x1c0] sm:$0xff]
      %v5997 = vld [vmem:[#allocation12 + $0x1c8] sm:$0xff]
      %v5998 = vld [vmem:[#allocation12 + $0x1d0] sm:$0xff]
      %v5999 = vld [vmem:[#allocation12 + $0x1d8] sm:$0xff]
      %v6000 = vld [vmem:[#allocation12 + $0x1e0] sm:$0xff]
      %v6001 = vld [vmem:[#allocation12 + $0x1e8] sm:$0xff]
      %v6002 = vld [vmem:[#allocation12 + $0x1f0] sm:$0xff]
      %v6003 = vld [vmem:[#allocation12 + $0x1f8] sm:$0xff]
      %v6004 = vld [vmem:[#allocation14] sm:$0x3]
      %v6006 = vlaneseq
      %v6007 = vshrl.u32 %v6006, 7
      %v6008 = vsub.s32 0, %v6007
      %v6009 = vrot.slane %v6004, %v6008
      %v6010 = vlaneseq
      %v6011 = vshrl.u32 %v6010, 7
      %v6012 = vsub.s32 1, %v6011
      %v6013 = vrot.slane %v6004, %v6012
      %v6080 = vunpack.c.l.b16 %v5940
      %v6081 = vunpack.c.h.b16 %v5940
      %v6082 = vunpack.c.l.b16 %v5941
      %v6083 = vunpack.c.h.b16 %v5941
      %v6084 = vunpack.c.l.b16 %v5942
      %v6085 = vunpack.c.h.b16 %v5942
      %v6086 = vunpack.c.l.b16 %v5943
      %v6087 = vunpack.c.h.b16 %v5943
      %v6088 = vunpack.c.l.b16 %v5944
      %v6089 = vunpack.c.h.b16 %v5944
      %v6090 = vunpack.c.l.b16 %v5945
      %v6091 = vunpack.c.h.b16 %v5945
      %v6092 = vunpack.c.l.b16 %v5946
      %v6093 = vunpack.c.h.b16 %v5946
      %v6094 = vunpack.c.l.b16 %v5947
      %v6095 = vunpack.c.h.b16 %v5947
      %v6096 = vunpack.c.l.b16 %v5948
      %v6097 = vunpack.c.h.b16 %v5948
      %v6098 = vunpack.c.l.b16 %v5949
      %v6099 = vunpack.c.h.b16 %v5949
      %v6100 = vunpack.c.l.b16 %v5950
      %v6101 = vunpack.c.h.b16 %v5950
      %v6102 = vunpack.c.l.b16 %v5951
      %v6103 = vunpack.c.h.b16 %v5951
      %v6104 = vunpack.c.l.b16 %v5952
      %v6105 = vunpack.c.h.b16 %v5952
      %v6106 = vunpack.c.l.b16 %v5953
      %v6107 = vunpack.c.h.b16 %v5953
      %v6108 = vunpack.c.l.b16 %v5954
      %v6109 = vunpack.c.h.b16 %v5954
      %v6110 = vunpack.c.l.b16 %v5955
      %v6111 = vunpack.c.h.b16 %v5955
      %v6112 = vunpack.c.l.b16 %v5956
      %v6113 = vunpack.c.h.b16 %v5956
      %v6114 = vunpack.c.l.b16 %v5957
      %v6115 = vunpack.c.h.b16 %v5957
      %v6116 = vunpack.c.l.b16 %v5958
      %v6117 = vunpack.c.h.b16 %v5958
      %v6118 = vunpack.c.l.b16 %v5959
      %v6119 = vunpack.c.h.b16 %v5959
      %v6120 = vunpack.c.l.b16 %v5960
      %v6121 = vunpack.c.h.b16 %v5960
      %v6122 = vunpack.c.l.b16 %v5961
      %v6123 = vunpack.c.h.b16 %v5961
      %v6124 = vunpack.c.l.b16 %v5962
      %v6125 = vunpack.c.h.b16 %v5962
      %v6126 = vunpack.c.l.b16 %v5963
      %v6127 = vunpack.c.h.b16 %v5963
      %v6128 = vunpack.c.l.b16 %v5964
      %v6129 = vunpack.c.h.b16 %v5964
      %v6130 = vunpack.c.l.b16 %v5965
      %v6131 = vunpack.c.h.b16 %v5965
      %v6132 = vunpack.c.l.b16 %v5966
      %v6133 = vunpack.c.h.b16 %v5966
      %v6134 = vunpack.c.l.b16 %v5967
      %v6135 = vunpack.c.h.b16 %v5967
      %v6136 = vunpack.c.l.b16 %v5968
      %v6137 = vunpack.c.h.b16 %v5968
      %v6138 = vunpack.c.l.b16 %v5969
      %v6139 = vunpack.c.h.b16 %v5969
      %v6140 = vunpack.c.l.b16 %v5970
      %v6141 = vunpack.c.h.b16 %v5970
      %v6142 = vunpack.c.l.b16 %v5971
      %v6143 = vunpack.c.h.b16 %v5971
      %v6144 = vunpack.c.l.b16 %v5972
      %v6145 = vunpack.c.h.b16 %v5972
      %v6146 = vunpack.c.l.b16 %v5973
      %v6147 = vunpack.c.h.b16 %v5973
      %v6148 = vunpack.c.l.b16 %v5974
      %v6149 = vunpack.c.h.b16 %v5974
      %v6150 = vunpack.c.l.b16 %v5975
      %v6151 = vunpack.c.h.b16 %v5975
      %v6152 = vunpack.c.l.b16 %v5976
      %v6153 = vunpack.c.h.b16 %v5976
      %v6154 = vunpack.c.l.b16 %v5977
      %v6155 = vunpack.c.h.b16 %v5977
      %v6156 = vunpack.c.l.b16 %v5978
      %v6157 = vunpack.c.h.b16 %v5978
      %v6158 = vunpack.c.l.b16 %v5979
      %v6159 = vunpack.c.h.b16 %v5979
      %v6160 = vunpack.c.l.b16 %v5980
      %v6161 = vunpack.c.h.b16 %v5980
      %v6162 = vunpack.c.l.b16 %v5981
      %v6163 = vunpack.c.h.b16 %v5981
      %v6164 = vunpack.c.l.b16 %v5982
      %v6165 = vunpack.c.h.b16 %v5982
      %v6166 = vunpack.c.l.b16 %v5983
      %v6167 = vunpack.c.h.b16 %v5983
      %v6168 = vunpack.c.l.b16 %v5984
      %v6169 = vunpack.c.h.b16 %v5984
      %v6170 = vunpack.c.l.b16 %v5985
      %v6171 = vunpack.c.h.b16 %v5985
      %v6172 = vunpack.c.l.b16 %v5986
      %v6173 = vunpack.c.h.b16 %v5986
      %v6174 = vunpack.c.l.b16 %v5987
      %v6175 = vunpack.c.h.b16 %v5987
      %v6176 = vunpack.c.l.b16 %v5988
      %v6177 = vunpack.c.h.b16 %v5988
      %v6178 = vunpack.c.l.b16 %v5989
      %v6179 = vunpack.c.h.b16 %v5989
      %v6180 = vunpack.c.l.b16 %v5990
      %v6181 = vunpack.c.h.b16 %v5990
      %v6182 = vunpack.c.l.b16 %v5991
      %v6183 = vunpack.c.h.b16 %v5991
      %v6184 = vunpack.c.l.b16 %v5992
      %v6185 = vunpack.c.h.b16 %v5992
      %v6186 = vunpack.c.l.b16 %v5993
      %v6187 = vunpack.c.h.b16 %v5993
      %v6188 = vunpack.c.l.b16 %v5994
      %v6189 = vunpack.c.h.b16 %v5994
      %v6190 = vunpack.c.l.b16 %v5995
      %v6191 = vunpack.c.h.b16 %v5995
      %v6192 = vunpack.c.l.b16 %v5996
      %v6193 = vunpack.c.h.b16 %v5996
      %v6194 = vunpack.c.l.b16 %v5997
      %v6195 = vunpack.c.h.b16 %v5997
      %v6196 = vunpack.c.l.b16 %v5998
      %v6197 = vunpack.c.h.b16 %v5998
      %v6198 = vunpack.c.l.b16 %v5999
      %v6199 = vunpack.c.h.b16 %v5999
      %v6200 = vunpack.c.l.b16 %v6000
      %v6201 = vunpack.c.h.b16 %v6000
      %v6202 = vunpack.c.l.b16 %v6001
      %v6203 = vunpack.c.h.b16 %v6001
      %v6204 = vunpack.c.l.b16 %v6002
      %v6205 = vunpack.c.h.b16 %v6002
      %v6206 = vunpack.c.l.b16 %v6003
      %v6207 = vunpack.c.h.b16 %v6003
      %v6208 = vpack.c.b16 %v6082, %v6080
      %v6209 = vpack.c.b16 %v6083, %v6081
      %v6210 = vpack.c.b16 %v6086, %v6084
      %v6211 = vpack.c.b16 %v6087, %v6085
      %v6212 = vpack.c.b16 %v6090, %v6088
      %v6213 = vpack.c.b16 %v6091, %v6089
      %v6214 = vpack.c.b16 %v6094, %v6092
      %v6215 = vpack.c.b16 %v6095, %v6093
      %v6216 = vpack.c.b16 %v6098, %v6096
      %v6217 = vpack.c.b16 %v6099, %v6097
      %v6218 = vpack.c.b16 %v6102, %v6100
      %v6219 = vpack.c.b16 %v6103, %v6101
      %v6220 = vpack.c.b16 %v6106, %v6104
      %v6221 = vpack.c.b16 %v6107, %v6105
      %v6222 = vpack.c.b16 %v6110, %v6108
      %v6223 = vpack.c.b16 %v6111, %v6109
      %v6224 = vpack.c.b16 %v6114, %v6112
      %v6225 = vpack.c.b16 %v6115, %v6113
      %v6226 = vpack.c.b16 %v6118, %v6116
      %v6227 = vpack.c.b16 %v6119, %v6117
      %v6228 = vpack.c.b16 %v6122, %v6120
      %v6229 = vpack.c.b16 %v6123, %v6121
      %v6230 = vpack.c.b16 %v6126, %v6124
      %v6231 = vpack.c.b16 %v6127, %v6125
      %v6232 = vpack.c.b16 %v6130, %v6128
      %v6233 = vpack.c.b16 %v6131, %v6129
      %v6234 = vpack.c.b16 %v6134, %v6132
      %v6235 = vpack.c.b16 %v6135, %v6133
      %v6236 = vpack.c.b16 %v6138, %v6136
      %v6237 = vpack.c.b16 %v6139, %v6137
      %v6238 = vpack.c.b16 %v6142, %v6140
      %v6239 = vpack.c.b16 %v6143, %v6141
      %v6240 = vpack.c.b16 %v6146, %v6144
      %v6241 = vpack.c.b16 %v6147, %v6145
      %v6242 = vpack.c.b16 %v6150, %v6148
      %v6243 = vpack.c.b16 %v6151, %v6149
      %v6244 = vpack.c.b16 %v6154, %v6152
      %v6245 = vpack.c.b16 %v6155, %v6153
      %v6246 = vpack.c.b16 %v6158, %v6156
      %v6247 = vpack.c.b16 %v6159, %v6157
      %v6248 = vpack.c.b16 %v6162, %v6160
      %v6249 = vpack.c.b16 %v6163, %v6161
      %v6250 = vpack.c.b16 %v6166, %v6164
      %v6251 = vpack.c.b16 %v6167, %v6165
      %v6252 = vpack.c.b16 %v6170, %v6168
      %v6253 = vpack.c.b16 %v6171, %v6169
      %v6254 = vpack.c.b16 %v6174, %v6172
      %v6255 = vpack.c.b16 %v6175, %v6173
      %v6256 = vpack.c.b16 %v6178, %v6176
      %v6257 = vpack.c.b16 %v6179, %v6177
      %v6258 = vpack.c.b16 %v6182, %v6180
      %v6259 = vpack.c.b16 %v6183, %v6181
      %v6260 = vpack.c.b16 %v6186, %v6184
      %v6261 = vpack.c.b16 %v6187, %v6185
      %v6262 = vpack.c.b16 %v6190, %v6188
      %v6263 = vpack.c.b16 %v6191, %v6189
      %v6264 = vpack.c.b16 %v6194, %v6192
      %v6265 = vpack.c.b16 %v6195, %v6193
      %v6266 = vpack.c.b16 %v6198, %v6196
      %v6267 = vpack.c.b16 %v6199, %v6197
      %v6268 = vpack.c.b16 %v6202, %v6200
      %v6269 = vpack.c.b16 %v6203, %v6201
      %v6270 = vpack.c.b16 %v6206, %v6204
      %v6271 = vpack.c.b16 %v6207, %v6205
      %6336 = vmatprep.subr.bf16.mxu0 %v6209
      %6337 = vmatpush1.bf16.msra.mxu0 %v6208
      %6338 = vmatprep.subr.bf16.mxu0 %v6211
      %6339 = vmatpush1.bf16.msra.mxu0 %v6210
      %6340 = vmatprep.subr.bf16.mxu0 %v6213
      %6341 = vmatpush1.bf16.msra.mxu0 %v6212
      %6342 = vmatprep.subr.bf16.mxu0 %v6215
      %6343 = vmatpush1.bf16.msra.mxu0 %v6214
      %6344 = vmatprep.subr.bf16.mxu0 %v6217
      %6345 = vmatpush1.bf16.msra.mxu0 %v6216
      %6346 = vmatprep.subr.bf16.mxu0 %v6219
      %6347 = vmatpush1.bf16.msra.mxu0 %v6218
      %6348 = vmatprep.subr.bf16.mxu0 %v6221
      %6349 = vmatpush1.bf16.msra.mxu0 %v6220
      %6350 = vmatprep.subr.bf16.mxu0 %v6223
      %6351 = vmatpush1.bf16.msra.mxu0 %v6222
      %6352 = vmatprep.subr.bf16.mxu0 %v6225
      %6353 = vmatpush1.bf16.msra.mxu0 %v6224
      %6354 = vmatprep.subr.bf16.mxu0 %v6227
      %6355 = vmatpush1.bf16.msra.mxu0 %v6226
      %6356 = vmatprep.subr.bf16.mxu0 %v6229
      %6357 = vmatpush1.bf16.msra.mxu0 %v6228
      %6358 = vmatprep.subr.bf16.mxu0 %v6231
      %6359 = vmatpush1.bf16.msra.mxu0 %v6230
      %6360 = vmatprep.subr.bf16.mxu0 %v6233
      %6361 = vmatpush1.bf16.msra.mxu0 %v6232
      %6362 = vmatprep.subr.bf16.mxu0 %v6235
      %6363 = vmatpush1.bf16.msra.mxu0 %v6234
      %6364 = vmatprep.subr.bf16.mxu0 %v6237
      %6365 = vmatpush1.bf16.msra.mxu0 %v6236
      %6366 = vmatprep.subr.bf16.mxu0 %v6239
      %6367 = vmatpush1.bf16.msra.mxu0 %v6238
      %6368 = vmatprep.mubr.bf16.mxu0 %v5937
      %6369 = vmatmul.mubr.bf16.gmra.mrb[0].mxu0 %v5936
      %v6370 = vpop.f32.mrb[0].mxu0
      %v6371 = vadd.f32 %v6009, %v6370
      %v6372 = vpop.f32.mrb[0].mxu0
      %v6373 = vadd.f32 %v6013, %v6372
      %v6374 = vpop.f32.mrb[0].mxu0
      %v6375 = vpop.f32.mrb[0].mxu0
      %6376 = vdwg.mxu0
      %6377 = vmatprep.subr.bf16.mxu0 %v6241
      %6378 = vmatpush1.bf16.msra.mxu0 %v6240
      %6379 = vmatprep.subr.bf16.mxu0 %v6243
      %6380 = vmatpush1.bf16.msra.mxu0 %v6242
      %6381 = vmatprep.subr.bf16.mxu0 %v6245
      %6382 = vmatpush1.bf16.msra.mxu0 %v6244
      %6383 = vmatprep.subr.bf16.mxu0 %v6247
      %6384 = vmatpush1.bf16.msra.mxu0 %v6246
      %6385 = vmatprep.subr.bf16.mxu0 %v6249
      %6386 = vmatpush1.bf16.msra.mxu0 %v6248
      %6387 = vmatprep.subr.bf16.mxu0 %v6251
      %6388 = vmatpush1.bf16.msra.mxu0 %v6250
      %6389 = vmatprep.subr.bf16.mxu0 %v6253
      %6390 = vmatpush1.bf16.msra.mxu0 %v6252
      %6391 = vmatprep.subr.bf16.mxu0 %v6255
      %6392 = vmatpush1.bf16.msra.mxu0 %v6254
      %6393 = vmatprep.subr.bf16.mxu0 %v6257
      %6394 = vmatpush1.bf16.msra.mxu0 %v6256
      %6395 = vmatprep.subr.bf16.mxu0 %v6259
      %6396 = vmatpush1.bf16.msra.mxu0 %v6258
      %6397 = vmatprep.subr.bf16.mxu0 %v6261
      %6398 = vmatpush1.bf16.msra.mxu0 %v6260
      %6399 = vmatprep.subr.bf16.mxu0 %v6263
      %6400 = vmatpush1.bf16.msra.mxu0 %v6262
      %6401 = vmatprep.subr.bf16.mxu0 %v6265
      %6402 = vmatpush1.bf16.msra.mxu0 %v6264
      %6403 = vmatprep.subr.bf16.mxu0 %v6267
      %6404 = vmatpush1.bf16.msra.mxu0 %v6266
      %6405 = vmatprep.subr.bf16.mxu0 %v6269
      %6406 = vmatpush1.bf16.msra.mxu0 %v6268
      %6407 = vmatprep.subr.bf16.mxu0 %v6271
      %6408 = vmatpush1.bf16.msra.mxu0 %v6270
      %6409 = vmatprep.mubr.bf16.mxu0 %v5939
      %6410 = vmatmul.mubr.bf16.gmra.mrb[0].mxu0 %v5938
      %v6411 = vpop.f32.mrb[0].mxu0
      %v6412 = vadd.f32 %v6371, %v6411
      %v6413 = vpop.f32.mrb[0].mxu0
      %v6414 = vadd.f32 %v6373, %v6413
      %v6415 = vpop.f32.mrb[0].mxu0
      %v6416 = vpop.f32.mrb[0].mxu0
      %6417 = vdwg.mxu0
      %v6418 = vmul.f32 %v6412, 0.2
      %v6419 = vmul.f32 %v6414, 0.2
      %v6420 = vmax.f32 %v6412, %v6418
      %v6421 = vmax.f32 %v6414, %v6419
      %v6422 = vpack.c.bf16 %v6420, %v6420
      %v6423 = vpack.c.bf16 %v6421, %v6421
      %v6424 = vld [vmem:[#allocation15] sm:$0xf]
      %v6425 = vld [vmem:[#allocation15 + $0x4] sm:$0xf]
      %v6426 = vld [vmem:[#allocation15 + $0x8] sm:$0xf]
      %v6427 = vld [vmem:[#allocation15 + $0xc] sm:$0xf]
      %v6428 = vld [vmem:[#allocation15 + $0x10] sm:$0xf]
      %v6429 = vld [vmem:[#allocation15 + $0x14] sm:$0xf]
      %v6430 = vld [vmem:[#allocation15 + $0x18] sm:$0xf]
      %v6431 = vld [vmem:[#allocation15 + $0x1c] sm:$0xf]
      %v6432 = vld [vmem:[#allocation15 + $0x20] sm:$0xf]
      %v6433 = vld [vmem:[#allocation15 + $0x24] sm:$0xf]
      %v6434 = vld [vmem:[#allocation15 + $0x28] sm:$0xf]
      %v6435 = vld [vmem:[#allocation15 + $0x2c] sm:$0xf]
      %v6436 = vld [vmem:[#allocation15 + $0x30] sm:$0xf]
      %v6437 = vld [vmem:[#allocation15 + $0x34] sm:$0xf]
      %v6438 = vld [vmem:[#allocation15 + $0x38] sm:$0xf]
      %v6439 = vld [vmem:[#allocation15 + $0x3c] sm:$0xf]
      %v6440 = vld [vmem:[#allocation15 + $0x40] sm:$0xf]
      %v6441 = vld [vmem:[#allocation15 + $0x44] sm:$0xf]
      %v6442 = vld [vmem:[#allocation15 + $0x48] sm:$0xf]
      %v6443 = vld [vmem:[#allocation15 + $0x4c] sm:$0xf]
      %v6444 = vld [vmem:[#allocation15 + $0x50] sm:$0xf]
      %v6445 = vld [vmem:[#allocation15 + $0x54] sm:$0xf]
      %v6446 = vld [vmem:[#allocation15 + $0x58] sm:$0xf]
      %v6447 = vld [vmem:[#allocation15 + $0x5c] sm:$0xf]
      %v6448 = vld [vmem:[#allocation15 + $0x60] sm:$0xf]
      %v6449 = vld [vmem:[#allocation15 + $0x64] sm:$0xf]
      %v6450 = vld [vmem:[#allocation15 + $0x68] sm:$0xf]
      %v6451 = vld [vmem:[#allocation15 + $0x6c] sm:$0xf]
      %v6452 = vld [vmem:[#allocation15 + $0x70] sm:$0xf]
      %v6453 = vld [vmem:[#allocation15 + $0x74] sm:$0xf]
      %v6454 = vld [vmem:[#allocation15 + $0x78] sm:$0xf]
      %v6455 = vld [vmem:[#allocation15 + $0x7c] sm:$0xf]
      %v6456 = vld [vmem:[#allocation17] sm:$0x1]
      %v6458 = vlaneseq
      %v6459 = vshrl.u32 %v6458, 7
      %v6460 = vsub.s32 0, %v6459
      %v6461 = vrot.slane %v6456, %v6460
      %v6495 = vunpack.c.l.b16 %v6424
      %v6496 = vunpack.c.l.b16 %v6425
      %v6497 = vunpack.c.l.b16 %v6426
      %v6498 = vunpack.c.l.b16 %v6427
      %v6499 = vunpack.c.l.b16 %v6428
      %v6500 = vunpack.c.l.b16 %v6429
      %v6501 = vunpack.c.l.b16 %v6430
      %v6502 = vunpack.c.l.b16 %v6431
      %v6503 = vunpack.c.l.b16 %v6432
      %v6504 = vunpack.c.l.b16 %v6433
      %v6505 = vunpack.c.l.b16 %v6434
      %v6506 = vunpack.c.l.b16 %v6435
      %v6507 = vunpack.c.l.b16 %v6436
      %v6508 = vunpack.c.l.b16 %v6437
      %v6509 = vunpack.c.l.b16 %v6438
      %v6510 = vunpack.c.l.b16 %v6439
      %v6511 = vunpack.c.l.b16 %v6440
      %v6512 = vunpack.c.l.b16 %v6441
      %v6513 = vunpack.c.l.b16 %v6442
      %v6514 = vunpack.c.l.b16 %v6443
      %v6515 = vunpack.c.l.b16 %v6444
      %v6516 = vunpack.c.l.b16 %v6445
      %v6517 = vunpack.c.l.b16 %v6446
      %v6518 = vunpack.c.l.b16 %v6447
      %v6519 = vunpack.c.l.b16 %v6448
      %v6520 = vunpack.c.l.b16 %v6449
      %v6521 = vunpack.c.l.b16 %v6450
      %v6522 = vunpack.c.l.b16 %v6451
      %v6523 = vunpack.c.l.b16 %v6452
      %v6524 = vunpack.c.l.b16 %v6453
      %v6525 = vunpack.c.l.b16 %v6454
      %v6526 = vunpack.c.l.b16 %v6455
      %v6527 = vpack.c.b16 %v6496, %v6495
      %v6528 = vpack.c.b16 %v6498, %v6497
      %v6529 = vpack.c.b16 %v6500, %v6499
      %v6530 = vpack.c.b16 %v6502, %v6501
      %v6531 = vpack.c.b16 %v6504, %v6503
      %v6532 = vpack.c.b16 %v6506, %v6505
      %v6533 = vpack.c.b16 %v6508, %v6507
      %v6534 = vpack.c.b16 %v6510, %v6509
      %v6535 = vpack.c.b16 %v6512, %v6511
      %v6536 = vpack.c.b16 %v6514, %v6513
      %v6537 = vpack.c.b16 %v6516, %v6515
      %v6538 = vpack.c.b16 %v6518, %v6517
      %v6539 = vpack.c.b16 %v6520, %v6519
      %v6540 = vpack.c.b16 %v6522, %v6521
      %v6541 = vpack.c.b16 %v6524, %v6523
      %v6542 = vpack.c.b16 %v6526, %v6525
      %6559 = vmatprep.subr.bf16.mxu0 0
      %6560 = vmatpush1.bf16.msra.mxu0 %v6527
      %6561 = vmatprep.subr.bf16.mxu0 0
      %6562 = vmatpush1.bf16.msra.mxu0 %v6528
      %6563 = vmatprep.subr.bf16.mxu0 0
      %6564 = vmatpush1.bf16.msra.mxu0 %v6529
      %6565 = vmatprep.subr.bf16.mxu0 0
      %6566 = vmatpush1.bf16.msra.mxu0 %v6530
      %6567 = vmatprep.subr.bf16.mxu0 0
      %6568 = vmatpush1.bf16.msra.mxu0 %v6531
      %6569 = vmatprep.subr.bf16.mxu0 0
      %6570 = vmatpush1.bf16.msra.mxu0 %v6532
      %6571 = vmatprep.subr.bf16.mxu0 0
      %6572 = vmatpush1.bf16.msra.mxu0 %v6533
      %6573 = vmatprep.subr.bf16.mxu0 0
      %6574 = vmatpush1.bf16.msra.mxu0 %v6534
      %6575 = vmatprep.subr.bf16.mxu0 0
      %6576 = vmatpush1.bf16.msra.mxu0 %v6535
      %6577 = vmatprep.subr.bf16.mxu0 0
      %6578 = vmatpush1.bf16.msra.mxu0 %v6536
      %6579 = vmatprep.subr.bf16.mxu0 0
      %6580 = vmatpush1.bf16.msra.mxu0 %v6537
      %6581 = vmatprep.subr.bf16.mxu0 0
      %6582 = vmatpush1.bf16.msra.mxu0 %v6538
      %6583 = vmatprep.subr.bf16.mxu0 0
      %6584 = vmatpush1.bf16.msra.mxu0 %v6539
      %6585 = vmatprep.subr.bf16.mxu0 0
      %6586 = vmatpush1.bf16.msra.mxu0 %v6540
      %6587 = vmatprep.subr.bf16.mxu0 0
      %6588 = vmatpush1.bf16.msra.mxu0 %v6541
      %6589 = vmatprep.subr.bf16.mxu0 0
      %6590 = vmatpush1.bf16.msra.mxu0 %v6542
      %6591 = vmatprep.mubr.bf16.mxu0 %v6423
      %6592 = vmatmul.mubr.bf16.gmra.mrb[0].mxu0 %v6422
      %v6593 = vpop.f32.mrb[0].mxu0
      %v6594 = vadd.f32 %v6461, %v6593
      %v6595 = vpop.f32.mrb[0].mxu0
      %v6596 = vpop.f32.mrb[0].mxu0
      %v6597 = vpop.f32.mrb[0].mxu0
      %6598 = vdwg.mxu0
      %v6599 = vmul.f32 %v6594, 0.2
      %v6600 = vmax.f32 %v6594, %v6599
      %v6601 = vpack.c.bf16 %v6600, %v6600
      %v6602 = vld [vmem:[#allocation18] sm:$0xf]
      %v6603 = vld [vmem:[#allocation18 + $0x4] sm:$0xf]
      %v6604 = vld [vmem:[#allocation18 + $0x8] sm:$0xf]
      %v6605 = vld [vmem:[#allocation18 + $0xc] sm:$0xf]
      %v6606 = vld [vmem:[#allocation18 + $0x10] sm:$0xf]
      %v6607 = vld [vmem:[#allocation18 + $0x14] sm:$0xf]
      %v6608 = vld [vmem:[#allocation18 + $0x18] sm:$0xf]
      %v6609 = vld [vmem:[#allocation18 + $0x1c] sm:$0xf]
      %v6610 = vld [vmem:[#allocation18 + $0x20] sm:$0xf]
      %v6611 = vld [vmem:[#allocation18 + $0x24] sm:$0xf]
      %v6612 = vld [vmem:[#allocation18 + $0x28] sm:$0xf]
      %v6613 = vld [vmem:[#allocation18 + $0x2c] sm:$0xf]
      %v6614 = vld [vmem:[#allocation18 + $0x30] sm:$0xf]
      %v6615 = vld [vmem:[#allocation18 + $0x34] sm:$0xf]
      %v6616 = vld [vmem:[#allocation18 + $0x38] sm:$0xf]
      %v6617 = vld [vmem:[#allocation18 + $0x3c] sm:$0xf]
      %v6618 = vld [vmem:[#allocation20] sm:$0x1]
      %v6620 = vlaneseq
      %v6621 = vshrl.u32 %v6620, 7
      %v6622 = vsub.s32 0, %v6621
      %v6623 = vrot.slane %v6618, %v6622
      %v6641 = vunpack.c.l.b16 %v6602
      %v6642 = vunpack.c.l.b16 %v6603
      %v6643 = vunpack.c.l.b16 %v6604
      %v6644 = vunpack.c.l.b16 %v6605
      %v6645 = vunpack.c.l.b16 %v6606
      %v6646 = vunpack.c.l.b16 %v6607
      %v6647 = vunpack.c.l.b16 %v6608
      %v6648 = vunpack.c.l.b16 %v6609
      %v6649 = vunpack.c.l.b16 %v6610
      %v6650 = vunpack.c.l.b16 %v6611
      %v6651 = vunpack.c.l.b16 %v6612
      %v6652 = vunpack.c.l.b16 %v6613
      %v6653 = vunpack.c.l.b16 %v6614
      %v6654 = vunpack.c.l.b16 %v6615
      %v6655 = vunpack.c.l.b16 %v6616
      %v6656 = vunpack.c.l.b16 %v6617
      %v6657 = vpack.c.b16 %v6642, %v6641
      %v6658 = vpack.c.b16 %v6644, %v6643
      %v6659 = vpack.c.b16 %v6646, %v6645
      %v6660 = vpack.c.b16 %v6648, %v6647
      %v6661 = vpack.c.b16 %v6650, %v6649
      %v6662 = vpack.c.b16 %v6652, %v6651
      %v6663 = vpack.c.b16 %v6654, %v6653
      %v6664 = vpack.c.b16 %v6656, %v6655
      %6673 = vmatprep.subr.bf16.mxu0 0
      %6674 = vmatpush1.bf16.msra.mxu0 %v6657
      %6675 = vmatprep.subr.bf16.mxu0 0
      %6676 = vmatpush1.bf16.msra.mxu0 %v6658
      %6677 = vmatprep.subr.bf16.mxu0 0
      %6678 = vmatpush1.bf16.msra.mxu0 %v6659
      %6679 = vmatprep.subr.bf16.mxu0 0
      %6680 = vmatpush1.bf16.msra.mxu0 %v6660
      %6681 = vmatprep.subr.bf16.mxu0 0
      %6682 = vmatpush1.bf16.msra.mxu0 %v6661
      %6683 = vmatprep.subr.bf16.mxu0 0
      %6684 = vmatpush1.bf16.msra.mxu0 %v6662
      %6685 = vmatprep.subr.bf16.mxu0 0
      %6686 = vmatpush1.bf16.msra.mxu0 %v6663
      %6687 = vmatprep.subr.bf16.mxu0 0
      %6688 = vmatpush1.bf16.msra.mxu0 %v6664
      %6689 = vmatprep.subr.bf16.mxu0 0
      %6690 = vmatpush1.bf16.msra.mxu0 0
      %6691 = vmatprep.subr.bf16.mxu0 0
      %6692 = vmatpush1.bf16.msra.mxu0 0
      %6693 = vmatprep.subr.bf16.mxu0 0
      %6694 = vmatpush1.bf16.msra.mxu0 0
      %6695 = vmatprep.subr.bf16.mxu0 0
      %6696 = vmatpush1.bf16.msra.mxu0 0
      %6697 = vmatprep.subr.bf16.mxu0 0
      %6698 = vmatpush1.bf16.msra.mxu0 0
      %6699 = vmatprep.subr.bf16.mxu0 0
      %6700 = vmatpush1.bf16.msra.mxu0 0
      %6701 = vmatprep.subr.bf16.mxu0 0
      %6702 = vmatpush1.bf16.msra.mxu0 0
      %6703 = vmatprep.subr.bf16.mxu0 0
      %6704 = vmatpush1.bf16.msra.mxu0 0
      %6705 = vmatprep.mubr.bf16.mxu0 0
      %6706 = vmatmul.mubr.bf16.gmra.mrb[0].mxu0 %v6601
      %v6707 = vpop.f32.mrb[0].mxu0
      %v6708 = vadd.f32 %v6623, %v6707
      %v6709 = vpop.f32.mrb[0].mxu0
      %v6710 = vpop.f32.mrb[0].mxu0
      %v6711 = vpop.f32.mrb[0].mxu0
      %6712 = vdwg.mxu0
      %v6713 = vmul.f32 %v6708, 0.2
      %v6714 = vmax.f32 %v6708, %v6713
      %v6715 = vtanh.pop %v6714
      %6716 = vst [vmem:[#allocation21] sm:$0xff] %v6715
    $region97: #{tpu_custom_call.1} parent=1 // pred_fallthru
      _
    // Predicated region
    $region98: #{tpu_custom_call.1} parent=1 // pred_check
      _
    $region99: #{tpu_custom_call.1} parent=1 // pred_check_branch
      %6718 = sbr.rel (0) target = $region101
    $region100: #{tpu_custom_call.1} parent=1 // pred_region
      %s6720 = ssub.s32 128, 128
      %6721 = vsyncadd [#allocation5], %s6720
      %s6723 = sshll.u32 [#allocation21], 4
      %s6724 = int_to_ptr.vmem [resolvable:$true] %s6723
      %6726 = dma.vmem_to_hbm [thread:$0]  %s6724, 128, %s11, [#allocation5]
    $region101: #{tpu_custom_call.1} parent=1 // pred_fallthru
      _
    // Predicated region
    $region102: #{tpu_custom_call.1} parent=1 // pred_check
      _
    $region103: #{tpu_custom_call.1} parent=1 // pred_check_branch
      %6728 = sbr.rel (0) target = $region105
    $region104: #{tpu_custom_call.1} parent=1 // pred_region
      %6729 = dma.done [#allocation5], 128
    $region105: #{tpu_custom_call.1} parent=1 // pred_fallthru
      _
    %6730 = vsyncpa [#allocation4], 1
    %6731 = vsyncpa [#allocation7], 1
    %6732 = vsyncpa [#allocation10], 1
    %6733 = vsyncpa [#allocation13], 1
    %6734 = vsyncpa [#allocation16], 1
    %6735 = vsyncpa [#allocation19], 1
    %6736 = vsyncpa [#allocation5], 1

// kernel: tpu_custom_call.1
$region0: #{tpu_custom_call.1}
  #allocation0 [shape = 'u32[]', space=smem, size = 0x4, offset = 0x4, fixed_abs, tag = 'smem constant byte address 0x4 - core index']
  #allocation1 [shape = 'u32[144,128]{1,0:T(1,128)}', space=vmem, size = 0x12000, scoped, tag = 'internal scratch']
  #allocation2 [shape = 'f32[8,1024]{1,0:T(8,128)}', space=vmem, size = 0x8000, scoped, tag = 'scratch operand']
  %s0 = inlined_call_operand.hbm [shape: bf16[8,1024], index: 0, kind: input, shape index: {}]
  %s1 = inlined_call_operand.hbm [shape: bf16[1024,1024], index: 1, kind: input, shape index: {}]
  %s2 = inlined_call_operand.hbm [shape: f32[1,1024], index: 2, kind: input, shape index: {}]
  %s3 = inlined_call_operand.hbm [shape: bf16[1024,512], index: 3, kind: input, shape index: {}]
  %s4 = inlined_call_operand.hbm [shape: f32[1,512], index: 4, kind: input, shape index: {}]
  %s5 = inlined_call_operand.hbm [shape: bf16[512,256], index: 5, kind: input, shape index: {}]
  %s6 = inlined_call_operand.hbm [shape: f32[1,256], index: 6, kind: input, shape index: {}]
  %s7 = inlined_call_operand.hbm [shape: bf16[256,128], index: 7, kind: input, shape index: {}]
  %s8 = inlined_call_operand.hbm [shape: f32[1,128], index: 8, kind: input, shape index: {}]
  %s9 = inlined_call_operand.hbm [shape: bf16[128,128], index: 9, kind: input, shape index: {}]
  %s10 = inlined_call_operand.hbm [shape: f32[1,128], index: 10, kind: input, shape index: {}]
  %s11 = inlined_call_operand.hbm [shape: f32[8,128], index: 11, kind: output, shape index: {}]
  %s12 = sld [smem:[#allocation0]]
  $region106: #{tpu_custom_call.1} parent=0
    _
  %s14 = ssub.s32 1, %s12
  %s15 = scalar_select 0, %s14, %s12
  $region1: #{tpu_custom_call.1} parent=0
    #allocation3 [shape = 'u8[16384]{0}', space=vmem, size = 0x4000, scoped, tag = 'input window, operand 0, single buffered']
    #allocation4 [shape = 's32[1]{0}', space=sflag, size = 0x4, scoped, tag = 'scoped memory for tpu_custom_call.1']
    #allocation5 [shape = 's32[1]{0}', space=sflag, size = 0x4, scoped, tag = 'scoped memory for tpu_custom_call.1']
    #allocation6 [shape = 'u8[2097152]{0}', space=vmem, size = 0x200000, scoped, tag = 'input window, operand 1, single buffered']
    #allocation7 [shape = 's32[1]{0}', space=sflag, size = 0x4, scoped, tag = 'scoped memory for tpu_custom_call.1']
    #allocation8 [shape = 'u8[4096]{0}', space=vmem, size = 0x1000, scoped, tag = 'input window, operand 2, single buffered']
    #allocation9 [shape = 'u8[1048576]{0}', space=vmem, size = 0x100000, scoped, tag = 'input window, operand 3, single buffered']
    #allocation10 [shape = 's32[1]{0}', space=sflag, size = 0x4, scoped, tag = 'scoped memory for tpu_custom_call.1']
    #allocation11 [shape = 'u8[2048]{0}', space=vmem, size = 0x800, scoped, tag = 'input window, operand 4, single buffered']
    #allocation12 [shape = 'u8[262144]{0}', space=vmem, size = 0x40000, scoped, tag = 'input window, operand 5, single buffered']
    #allocation13 [shape = 's32[1]{0}', space=sflag, size = 0x4, scoped, tag = 'scoped memory for tpu_custom_call.1']
    #allocation14 [shape = 'u8[1024]{0}', space=vmem, size = 0x400, scoped, tag = 'input window, operand 6, single buffered']
    #allocation15 [shape = 'u8[65536]{0}', space=vmem, size = 0x10000, scoped, tag = 'input window, operand 7, single buffered']
    #allocation16 [shape = 's32[1]{0}', space=sflag, size = 0x4, scoped, tag = 'scoped memory for tpu_custom_call.1']
    #allocation17 [shape = 'u8[512]{0}', space=vmem, size = 0x400, scoped, tag = 'input window, operand 8, single buffered']
    #allocation18 [shape = 'u8[32768]{0}', space=vmem, size = 0x8000, scoped, tag = 'input window, operand 9, single buffered']
    #allocation19 [shape = 's32[1]{0}', space=sflag, size = 0x4, scoped, tag = 'scoped memory for tpu_custom_call.1']
    #allocation20 [shape = 'u8[512]{0}', space=vmem, size = 0x400, scoped, tag = 'input window, operand 10, single buffered']
    #allocation21 [shape = 'u8[4096]{0}', space=vmem, size = 0x1000, scoped, tag = 'output window, operand 0, single buffered']
    %16 = vsyncpa [#allocation4], 0
    %17 = vsyncpa [#allocation7], 0
    %18 = vsyncpa [#allocation10], 0
    %19 = vsyncpa [#allocation13], 0
    %20 = vsyncpa [#allocation16], 0
    %21 = vsyncpa [#allocation19], 0
    %22 = vsyncpa [#allocation5], 0
    // Predicated region
    $region2: #{tpu_custom_call.1} parent=1 // pred_check
      _
    $region3: #{tpu_custom_call.1} parent=1 // pred_check_branch
      %24 = sbr.rel (0) target = $region5
    $region4: #{tpu_custom_call.1} parent=1 // pred_region
      %s26 = ssub.s32 512, 512
      %27 = vsyncadd [#allocation4], %s26
      %s29 = sshll.u32 [#allocation3], 4
      %s30 = int_to_ptr.vmem [resolvable:$true] %s29
      %32 = dma.hbm_to_vmem [thread:$0]  %s0, 512, %s30, [#allocation4]
    $region5: #{tpu_custom_call.1} parent=1 // pred_fallthru
      _
    // Predicated region
    $region6: #{tpu_custom_call.1} parent=1 // pred_check
      _
    $region7: #{tpu_custom_call.1} parent=1 // pred_check_branch
      %34 = sbr.rel (0) target = $region9
    $region8: #{tpu_custom_call.1} parent=1 // pred_region
      %s36 = ssub.s32 65536, 65536
      %37 = vsyncadd [#allocation7], %s36
      %s38 = sshll.u32 [#allocation6], 4
      %s39 = int_to_ptr.vmem [resolvable:$true] %s38
      %44 = dma.hbm_to_vmem [thread:$0]  %s1, 65536, %s39, [#allocation7], 512, 512, 32
    $region9: #{tpu_custom_call.1} parent=1 // pred_fallthru
      _
    // Predicated region
    $region10: #{tpu_custom_call.1} parent=1 // pred_check
      _
    $region11: #{tpu_custom_call.1} parent=1 // pred_check_branch
      %46 = sbr.rel (0) target = $region13
    $region12: #{tpu_custom_call.1} parent=1 // pred_region
      %s48 = ssub.s32 128, 128
      %49 = vsyncadd [#allocation7], %s48
      %s51 = sshll.u32 [#allocation8], 4
      %s52 = int_to_ptr.vmem [resolvable:$true] %s51
      %54 = dma.hbm_to_vmem [thread:$0]  %s2, 128, %s52, [#allocation7]
    $region13: #{tpu_custom_call.1} parent=1 // pred_fallthru
      _
    // Predicated region
    $region14: #{tpu_custom_call.1} parent=1 // pred_check
      _
    $region15: #{tpu_custom_call.1} parent=1 // pred_check_branch
      %56 = sbr.rel (0) target = $region17
    $region16: #{tpu_custom_call.1} parent=1 // pred_region
      %s58 = ssub.s32 32768, 32768
      %59 = vsyncadd [#allocation10], %s58
      %s60 = sshll.u32 [#allocation9], 4
      %s61 = int_to_ptr.vmem [resolvable:$true] %s60
      %66 = dma.hbm_to_vmem [thread:$0]  %s3, 32768, %s61, [#allocation10], 256, 256, 16
    $region17: #{tpu_custom_call.1} parent=1 // pred_fallthru
      _
    // Predicated region
    $region18: #{tpu_custom_call.1} parent=1 // pred_check
      _
    $region19: #{tpu_custom_call.1} parent=1 // pred_check_branch
      %68 = sbr.rel (0) target = $region21
    $region20: #{tpu_custom_call.1} parent=1 // pred_region
      %s70 = ssub.s32 64, 64
      %71 = vsyncadd [#allocation10], %s70
      %s73 = sshll.u32 [#allocation11], 4
      %s74 = int_to_ptr.vmem [resolvable:$true] %s73
      %76 = dma.hbm_to_vmem [thread:$0]  %s4, 64, %s74, [#allocation10]
    $region21: #{tpu_custom_call.1} parent=1 // pred_fallthru
      _
    // Predicated region
    $region22: #{tpu_custom_call.1} parent=1 // pred_check
      _
    $region23: #{tpu_custom_call.1} parent=1 // pred_check_branch
      %78 = sbr.rel (0) target = $region25
    $region24: #{tpu_custom_call.1} parent=1 // pred_region
      %s80 = ssub.s32 8192, 8192
      %81 = vsyncadd [#allocation13], %s80
      %s82 = sshll.u32 [#allocation12], 4
      %s83 = int_to_ptr.vmem [resolvable:$true] %s82
      %88 = dma.hbm_to_vmem [thread:$0]  %s5, 8192, %s83, [#allocation13], 128, 128, 8
    $region25: #{tpu_custom_call.1} parent=1 // pred_fallthru
      _
    // Predicated region
    $region26: #{tpu_custom_call.1} parent=1 // pred_check
      _
    $region27: #{tpu_custom_call.1} parent=1 // pred_check_branch
      %90 = sbr.rel (0) target = $region29
    $region28: #{tpu_custom_call.1} parent=1 // pred_region
      %s92 = ssub.s32 32, 32
      %93 = vsyncadd [#allocation13], %s92
      %s95 = sshll.u32 [#allocation14], 4
      %s96 = int_to_ptr.vmem [resolvable:$true] %s95
      %98 = dma.hbm_to_vmem [thread:$0]  %s6, 32, %s96, [#allocation13]
    $region29: #{tpu_custom_call.1} parent=1 // pred_fallthru
      _
    // Predicated region
    $region30: #{tpu_custom_call.1} parent=1 // pred_check
      _
    $region31: #{tpu_custom_call.1} parent=1 // pred_check_branch
      %100 = sbr.rel (0) target = $region33
    $region32: #{tpu_custom_call.1} parent=1 // pred_region
      %s102 = ssub.s32 2048, 2048
      %103 = vsyncadd [#allocation16], %s102
      %s104 = sshll.u32 [#allocation15], 4
      %s105 = int_to_ptr.vmem [resolvable:$true] %s104
      %110 = dma.hbm_to_vmem [thread:$0]  %s7, 2048, %s105, [#allocation16], 64, 64, 4
    $region33: #{tpu_custom_call.1} parent=1 // pred_fallthru
      _
    // Predicated region
    $region34: #{tpu_custom_call.1} parent=1 // pred_check
      _
    $region35: #{tpu_custom_call.1} parent=1 // pred_check_branch
      %112 = sbr.rel (0) target = $region37
    $region36: #{tpu_custom_call.1} parent=1 // pred_region
      %s114 = ssub.s32 16, 16
      %115 = vsyncadd [#allocation16], %s114
      %s117 = sshll.u32 [#allocation17], 4
      %s118 = int_to_ptr.vmem [resolvable:$true] %s117
      %120 = dma.hbm_to_vmem [thread:$0]  %s8, 16, %s118, [#allocation16]
    $region37: #{tpu_custom_call.1} parent=1 // pred_fallthru
      _
    // Predicated region
    $region38: #{tpu_custom_call.1} parent=1 // pred_check
      _
    $region39: #{tpu_custom_call.1} parent=1 // pred_check_branch
      %122 = sbr.rel (0) target = $region41
    $region40: #{tpu_custom_call.1} parent=1 // pred_region
      %s124 = ssub.s32 1024, 1024
      %125 = vsyncadd [#allocation19], %s124
      %s126 = sshll.u32 [#allocation18], 4
      %s127 = int_to_ptr.vmem [resolvable:$true] %s126
      %132 = dma.hbm_to_vmem [thread:$0]  %s9, 1024, %s127, [#allocation19], 64, 64, 4
    $region41: #{tpu_custom_call.1} parent=1 // pred_fallthru
      _
    // Predicated region
    $region42: #{tpu_custom_call.1} parent=1 // pred_check
      _
    $region43: #{tpu_custom_call.1} parent=1 // pred_check_branch
      %134 = sbr.rel (0) target = $region45
    $region44: #{tpu_custom_call.1} parent=1 // pred_region
      %s136 = ssub.s32 16, 16
      %137 = vsyncadd [#allocation19], %s136
      %s139 = sshll.u32 [#allocation20], 4
      %s140 = int_to_ptr.vmem [resolvable:$true] %s139
      %142 = dma.hbm_to_vmem [thread:$0]  %s10, 16, %s140, [#allocation19]
    $region45: #{tpu_custom_call.1} parent=1 // pred_fallthru
      _
    // Predicated region
    $region46: #{tpu_custom_call.1} parent=1 // pred_check
      _
    $region47: #{tpu_custom_call.1} parent=1 // pred_check_branch
      %144 = sbr.rel (0) target = $region49
    $region48: #{tpu_custom_call.1} parent=1 // pred_region
      %145 = dma.done [#allocation4], 512
    $region49: #{tpu_custom_call.1} parent=1 // pred_fallthru
      _
    // Predicated region
    $region50: #{tpu_custom_call.1} parent=1 // pred_check
      _
    $region51: #{tpu_custom_call.1} parent=1 // pred_check_branch
      %147 = sbr.rel (0) target = $region53
    $region52: #{tpu_custom_call.1} parent=1 // pred_region
      %148 = dma.done [#allocation7], 65536
    $region53: #{tpu_custom_call.1} parent=1 // pred_fallthru
      _
    // Predicated region
    $region54: #{tpu_custom_call.1} parent=1 // pred_check
      _
    $region55: #{tpu_custom_call.1} parent=1 // pred_check_branch
      %150 = sbr.rel (0) target = $region57
    $region56: #{tpu_custom_call.1} parent=1 // pred_region
      %151 = dma.done [#allocation7], 128
    $region57: #{tpu_custom_call.1} parent=1 // pred_fallthru
      _
    // Predicated region
    $region58: #{tpu_custom_call.1} parent=1 // pred_check
      _
    $region59: #{tpu_custom_call.1} parent=1 // pred_check_branch
      %153 = sbr.rel (0) target = $region61
    $region60: #{tpu_custom_call.1} parent=1 // pred_region
      %154 = dma.done [#allocation10], 32768
    $region61: #{tpu_custom_call.1} parent=1 // pred_fallthru
      _
    // Predicated region
    $region62: #{tpu_custom_call.1} parent=1 // pred_check
      _
    $region63: #{tpu_custom_call.1} parent=1 // pred_check_branch
      %156 = sbr.rel (0) target = $region65
    $region64: #{tpu_custom_call.1} parent=1 // pred_region
      %157 = dma.done [#allocation10], 64
    $region65: #{tpu_custom_call.1} parent=1 // pred_fallthru
      _
    // Predicated region
    $region66: #{tpu_custom_call.1} parent=1 // pred_check
      _
    $region67: #{tpu_custom_call.1} parent=1 // pred_check_branch
      %159 = sbr.rel (0) target = $region69
    $region68: #{tpu_custom_call.1} parent=1 // pred_region
      %160 = dma.done [#allocation13], 8192
    $region69: #{tpu_custom_call.1} parent=1 // pred_fallthru
      _
    // Predicated region
    $region70: #{tpu_custom_call.1} parent=1 // pred_check
      _
    $region71: #{tpu_custom_call.1} parent=1 // pred_check_branch
      %162 = sbr.rel (0) target = $region73
    $region72: #{tpu_custom_call.1} parent=1 // pred_region
      %163 = dma.done [#allocation13], 32
    $region73: #{tpu_custom_call.1} parent=1 // pred_fallthru
      _
    // Predicated region
    $region74: #{tpu_custom_call.1} parent=1 // pred_check
      _
    $region75: #{tpu_custom_call.1} parent=1 // pred_check_branch
      %165 = sbr.rel (0) target = $region77
    $region76: #{tpu_custom_call.1} parent=1 // pred_region
      %166 = dma.done [#allocation16], 2048
    $region77: #{tpu_custom_call.1} parent=1 // pred_fallthru
      _
    // Predicated region
    $region78: #{tpu_custom_call.1} parent=1 // pred_check
      _
    $region79: #{tpu_custom_call.1} parent=1 // pred_check_branch
      %168 = sbr.rel (0) target = $region81
    $region80: #{tpu_custom_call.1} parent=1 // pred_region
      %169 = dma.done [#allocation16], 16
    $region81: #{tpu_custom_call.1} parent=1 // pred_fallthru
      _
    // Predicated region
    $region82: #{tpu_custom_call.1} parent=1 // pred_check
      _
    $region83: #{tpu_custom_call.1} parent=1 // pred_check_branch
      %171 = sbr.rel (0) target = $region85
    $region84: #{tpu_custom_call.1} parent=1 // pred_region
      %172 = dma.done [#allocation19], 1024
    $region85: #{tpu_custom_call.1} parent=1 // pred_fallthru
      _
    // Predicated region
    $region86: #{tpu_custom_call.1} parent=1 // pred_check
      _
    $region87: #{tpu_custom_call.1} parent=1 // pred_check_branch
      %174 = sbr.rel (0) target = $region89
    $region88: #{tpu_custom_call.1} parent=1 // pred_region
      %175 = dma.done [#allocation19], 16
    $region89: #{tpu_custom_call.1} parent=1 // pred_fallthru
      _
    %p177 = scmp.eq.s32.totalorder 0, 0
    // Predicated region
    $region90: #{tpu_custom_call.1} parent=1 // pred_check
      %p178 = pneg %p177
    $region91: #{tpu_custom_call.1} parent=1 // pred_check_branch
      %180 = sbr.rel (%p178) target = $region93
    $region92: #{tpu_custom_call.1} parent=1 // pred_region
      %181 = vst [vmem:[#allocation2] sm:$0xff] 0.0
      %182 = vst [vmem:[#allocation2 + $0x8] sm:$0xff] 0.0
      %183 = vst [vmem:[#allocation2 + $0x10] sm:$0xff] 0.0
      %184 = vst [vmem:[#allocation2 + $0x18] sm:$0xff] 0.0
      %185 = vst [vmem:[#allocation2 + $0x20] sm:$0xff] 0.0
      %186 = vst [vmem:[#allocation2 + $0x28] sm:$0xff] 0.0
      %187 = vst [vmem:[#allocation2 + $0x30] sm:$0xff] 0.0
      %188 = vst [vmem:[#allocation2 + $0x38] sm:$0xff] 0.0
    $region93: #{tpu_custom_call.1} parent=1 // pred_fallthru
      _
    %v189 = vld [vmem:[#allocation2] sm:$0xff]
    %v190 = vld [vmem:[#allocation2 + $0x8] sm:$0xff]
    %v191 = vld [vmem:[#allocation2 + $0x10] sm:$0xff]
    %v192 = vld [vmem:[#allocation2 + $0x18] sm:$0xff]
    %v193 = vld [vmem:[#allocation2 + $0x20] sm:$0xff]
    %v194 = vld [vmem:[#allocation2 + $0x28] sm:$0xff]
    %v195 = vld [vmem:[#allocation2 + $0x30] sm:$0xff]
    %v196 = vld [vmem:[#allocation2 + $0x38] sm:$0xff]
    %v197 = vld [vmem:[#allocation3] sm:$0xff]
    %v198 = vld [vmem:[#allocation3 + $0x8] sm:$0xff]
    %v199 = vld [vmem:[#allocation3 + $0x10] sm:$0xff]
    %v200 = vld [vmem:[#allocation3 + $0x18] sm:$0xff]
    %v201 = vld [vmem:[#allocation6] sm:$0xff]
    %v202 = vld [vmem:[#allocation6 + $0x8] sm:$0xff]
    %v203 = vld [vmem:[#allocation6 + $0x10] sm:$0xff]
    %v204 = vld [vmem:[#allocation6 + $0x18] sm:$0xff]
    %v205 = vld [vmem:[#allocation6 + $0x20] sm:$0xff]
    %v206 = vld [vmem:[#allocation6 + $0x28] sm:$0xff]
    %v207 = vld [vmem:[#allocation6 + $0x30] sm:$0xff]
    %v208 = vld [vmem:[#allocation6 + $0x38] sm:$0xff]
    %v209 = vld [vmem:[#allocation6 + $0x40] sm:$0xff]
    %v210 = vld [vmem:[#allocation6 + $0x48] sm:$0xff]
    %v211 = vld [vmem:[#allocation6 + $0x50] sm:$0xff]
    %v212 = vld [vmem:[#allocation6 + $0x58] sm:$0xff]
    %v213 = vld [vmem:[#allocation6 + $0x60] sm:$0xff]
    %v214 = vld [vmem:[#allocation6 + $0x68] sm:$0xff]
    %v215 = vld [vmem:[#allocation6 + $0x70] sm:$0xff]
    %v216 = vld [vmem:[#allocation6 + $0x78] sm:$0xff]
    %v217 = vld [vmem:[#allocation6 + $0x80] sm:$0xff]
    %v218 = vld [vmem:[#allocation6 + $0x88] sm:$0xff]
    %v219 = vld [vmem:[#allocation6 + $0x90] sm:$0xff]
    %v220 = vld [vmem:[#allocation6 + $0x98] sm:$0xff]
    %v221 = vld [vmem:[#allocation6 + $0xa0] sm:$0xff]
    %v222 = vld [vmem:[#allocation6 + $0xa8] sm:$0xff]
    %v223 = vld [vmem:[#allocation6 + $0xb0] sm:$0xff]
    %v224 = vld [vmem:[#allocation6 + $0xb8] sm:$0xff]
    %v225 = vld [vmem:[#allocation6 + $0xc0] sm:$0xff]
    %v226 = vld [vmem:[#allocation6 + $0xc8] sm:$0xff]
    %v227 = vld [vmem:[#allocation6 + $0xd0] sm:$0xff]
    %v228 = vld [vmem:[#allocation6 + $0xd8] sm:$0xff]
    %v229 = vld [vmem:[#allocation6 + $0xe0] sm:$0xff]
    %v230 = vld [vmem:[#allocation6 + $0xe8] sm:$0xff]
    %v231 = vld [vmem:[#allocation6 + $0xf0] sm:$0xff]
    %v232 = vld [vmem:[#allocation6 + $0xf8] sm:$0xff]
    %v233 = vld [vmem:[#allocation6 + $0x100] sm:$0xff]
    %v234 = vld [vmem:[#allocation6 + $0x108] sm:$0xff]
    %v235 = vld [vmem:[#allocation6 + $0x110] sm:$0xff]
    %v236 = vld [vmem:[#allocation6 + $0x118] sm:$0xff]
    %v237 = vld [vmem:[#allocation6 + $0x120] sm:$0xff]
    %v238 = vld [vmem:[#allocation6 + $0x128] sm:$0xff]
    %v239 = vld [vmem:[#allocation6 + $0x130] sm:$0xff]
    %v240 = vld [vmem:[#allocation6 + $0x138] sm:$0xff]
    %v241 = vld [vmem:[#allocation6 + $0x140] sm:$0xff]
    %v242 = vld [vmem:[#allocation6 + $0x148] sm:$0xff]
    %v243 = vld [vmem:[#allocation6 + $0x150] sm:$0xff]
    %v244 = vld [vmem:[#allocation6 + $0x158] sm:$0xff]
    %v245 = vld [vmem:[#allocation6 + $0x160] sm:$0xff]
    %v246 = vld [vmem:[#allocation6 + $0x168] sm:$0xff]
    %v247 = vld [vmem:[#allocation6 + $0x170] sm:$0xff]
    %v248 = vld [vmem:[#allocation6 + $0x178] sm:$0xff]
    %v249 = vld [vmem:[#allocation6 + $0x180] sm:$0xff]
    %v250 = vld [vmem:[#allocation6 + $0x188] sm:$0xff]
    %v251 = vld [vmem:[#allocation6 + $0x190] sm:$0xff]
    %v252 = vld [vmem:[#allocation6 + $0x198] sm:$0xff]
    %v253 = vld [vmem:[#allocation6 + $0x1a0] sm:$0xff]
    %v254 = vld [vmem:[#allocation6 + $0x1a8] sm:$0xff]
    %v255 = vld [vmem:[#allocation6 + $0x1b0] sm:$0xff]
    %v256 = vld [vmem:[#allocation6 + $0x1b8] sm:$0xff]
    %v257 = vld [vmem:[#allocation6 + $0x1c0] sm:$0xff]
    %v258 = vld [vmem:[#allocation6 + $0x1c8] sm:$0xff]
    %v259 = vld [vmem:[#allocation6 + $0x1d0] sm:$0xff]
    %v260 = vld [vmem:[#allocation6 + $0x1d8] sm:$0xff]
    %v261 = vld [vmem:[#allocation6 + $0x1e0] sm:$0xff]
    %v262 = vld [vmem:[#allocation6 + $0x1e8] sm:$0xff]
    %v263 = vld [vmem:[#allocation6 + $0x1f0] sm:$0xff]
    %v264 = vld [vmem:[#allocation6 + $0x1f8] sm:$0xff]
    %v265 = vld [vmem:[#allocation6 + $0x200] sm:$0xff]
    %v266 = vld [vmem:[#allocation6 + $0x208] sm:$0xff]
    %v267 = vld [vmem:[#allocation6 + $0x210] sm:$0xff]
    %v268 = vld [vmem:[#allocation6 + $0x218] sm:$0xff]
    %v269 = vld [vmem:[#allocation6 + $0x220] sm:$0xff]
    %v270 = vld [vmem:[#allocation6 + $0x228] sm:$0xff]
    %v271 = vld [vmem:[#allocation6 + $0x230] sm:$0xff]
    %v272 = vld [vmem:[#allocation6 + $0x238] sm:$0xff]
    %v273 = vld [vmem:[#allocation6 + $0x240] sm:$0xff]
    %v274 = vld [vmem:[#allocation6 + $0x248] sm:$0xff]
    %v275 = vld [vmem:[#allocation6 + $0x250] sm:$0xff]
    %v276 = vld [vmem:[#allocation6 + $0x258] sm:$0xff]
    %v277 = vld [vmem:[#allocation6 + $0x260] sm:$0xff]
    %v278 = vld [vmem:[#allocation6 + $0x268] sm:$0xff]
    %v279 = vld [vmem:[#allocation6 + $0x270] sm:$0xff]
    %v280 = vld [vmem:[#allocation6 + $0x278] sm:$0xff]
    %v281 = vld [vmem:[#allocation6 + $0x280] sm:$0xff]
    %v282 = vld [vmem:[#allocation6 + $0x288] sm:$0xff]
    %v283 = vld [vmem:[#allocation6 + $0x290] sm:$0xff]
    %v284 = vld [vmem:[#allocation6 + $0x298] sm:$0xff]
    %v285 = vld [vmem:[#allocation6 + $0x2a0] sm:$0xff]
    %v286 = vld [vmem:[#allocation6 + $0x2a8] sm:$0xff]
    %v287 = vld [vmem:[#allocation6 + $0x2b0] sm:$0xff]
    %v288 = vld [vmem:[#allocation6 + $0x2b8] sm:$0xff]
    %v289 = vld [vmem:[#allocation6 + $0x2c0] sm:$0xff]
    %v290 = vld [vmem:[#allocation6 + $0x2c8] sm:$0xff]
    %v291 = vld [vmem:[#allocation6 + $0x2d0] sm:$0xff]
    %v292 = vld [vmem:[#allocation6 + $0x2d8] sm:$0xff]
    %v293 = vld [vmem:[#allocation6 + $0x2e0] sm:$0xff]
    %v294 = vld [vmem:[#allocation6 + $0x2e8] sm:$0xff]
    %v295 = vld [vmem:[#allocation6 + $0x2f0] sm:$0xff]
    %v296 = vld [vmem:[#allocation6 + $0x2f8] sm:$0xff]
    %v297 = vld [vmem:[#allocation6 + $0x300] sm:$0xff]
    %v298 = vld [vmem:[#allocation6 + $0x308] sm:$0xff]
    %v299 = vld [vmem:[#allocation6 + $0x310] sm:$0xff]
    %v300 = vld [vmem:[#allocation6 + $0x318] sm:$0xff]
    %v301 = vld [vmem:[#allocation6 + $0x320] sm:$0xff]
    %v302 = vld [vmem:[#allocation6 + $0x328] sm:$0xff]
    %v303 = vld [vmem:[#allocation6 + $0x330] sm:$0xff]
    %v304 = vld [vmem:[#allocation6 + $0x338] sm:$0xff]
    %v305 = vld [vmem:[#allocation6 + $0x340] sm:$0xff]
    %v306 = vld [vmem:[#allocation6 + $0x348] sm:$0xff]
    %v307 = vld [vmem:[#allocation6 + $0x350] sm:$0xff]
    %v308 = vld [vmem:[#allocation6 + $0x358] sm:$0xff]
    %v309 = vld [vmem:[#allocation6 + $0x360] sm:$0xff]
    %v310 = vld [vmem:[#allocation6 + $0x368] sm:$0xff]
    %v311 = vld [vmem:[#allocation6 + $0x370] sm:$0xff]
    %v312 = vld [vmem:[#allocation6 + $0x378] sm:$0xff]
    %v313 = vld [vmem:[#allocation6 + $0x380] sm:$0xff]
    %v314 = vld [vmem:[#allocation6 + $0x388] sm:$0xff]
    %v315 = vld [vmem:[#allocation6 + $0x390] sm:$0xff]
    %v316 = vld [vmem:[#allocation6 + $0x398] sm:$0xff]
    %v317 = vld [vmem:[#allocation6 + $0x3a0] sm:$0xff]
    %v318 = vld [vmem:[#allocation6 + $0x3a8] sm:$0xff]
    %v319 = vld [vmem:[#allocation6 + $0x3b0] sm:$0xff]
    %v320 = vld [vmem:[#allocation6 + $0x3b8] sm:$0xff]
    %v321 = vld [vmem:[#allocation6 + $0x3c0] sm:$0xff]
    %v322 = vld [vmem:[#allocation6 + $0x3c8] sm:$0xff]
    %v323 = vld [vmem:[#allocation6 + $0x3d0] sm:$0xff]
    %v324 = vld [vmem:[#allocation6 + $0x3d8] sm:$0xff]
    %v325 = vld [vmem:[#allocation6 + $0x3e0] sm:$0xff]
    %v326 = vld [vmem:[#allocation6 + $0x3e8] sm:$0xff]
    %v327 = vld [vmem:[#allocation6 + $0x3f0] sm:$0xff]
    %v328 = vld [vmem:[#allocation6 + $0x3f8] sm:$0xff]
    %v329 = vld [vmem:[#allocation6 + $0x400] sm:$0xff]
    %v330 = vld [vmem:[#allocation6 + $0x408] sm:$0xff]
    %v331 = vld [vmem:[#allocation6 + $0x410] sm:$0xff]
    %v332 = vld [vmem:[#allocation6 + $0x418] sm:$0xff]
    %v333 = vld [vmem:[#allocation6 + $0x420] sm:$0xff]
    %v334 = vld [vmem:[#allocation6 + $0x428] sm:$0xff]
    %v335 = vld [vmem:[#allocation6 + $0x430] sm:$0xff]
    %v336 = vld [vmem:[#allocation6 + $0x438] sm:$0xff]
    %v337 = vld [vmem:[#allocation6 + $0x440] sm:$0xff]
    %v338 = vld [vmem:[#allocation6 + $0x448] sm:$0xff]
    %v339 = vld [vmem:[#allocation6 + $0x450] sm:$0xff]
    %v340 = vld [vmem:[#allocation6 + $0x458] sm:$0xff]
    %v341 = vld [vmem:[#allocation6 + $0x460] sm:$0xff]
    %v342 = vld [vmem:[#allocation6 + $0x468] sm:$0xff]
    %v343 = vld [vmem:[#allocation6 + $0x470] sm:$0xff]
    %v344 = vld [vmem:[#allocation6 + $0x478] sm:$0xff]
    %v345 = vld [vmem:[#allocation6 + $0x480] sm:$0xff]
    %v346 = vld [vmem:[#allocation6 + $0x488] sm:$0xff]
    %v347 = vld [vmem:[#allocation6 + $0x490] sm:$0xff]
    %v348 = vld [vmem:[#allocation6 + $0x498] sm:$0xff]
    %v349 = vld [vmem:[#allocation6 + $0x4a0] sm:$0xff]
    %v350 = vld [vmem:[#allocation6 + $0x4a8] sm:$0xff]
    %v351 = vld [vmem:[#allocation6 + $0x4b0] sm:$0xff]
    %v352 = vld [vmem:[#allocation6 + $0x4b8] sm:$0xff]
    %v353 = vld [vmem:[#allocation6 + $0x4c0] sm:$0xff]
    %v354 = vld [vmem:[#allocation6 + $0x4c8] sm:$0xff]
    %v355 = vld [vmem:[#allocation6 + $0x4d0] sm:$0xff]
    %v356 = vld [vmem:[#allocation6 + $0x4d8] sm:$0xff]
    %v357 = vld [vmem:[#allocation6 + $0x4e0] sm:$0xff]
    %v358 = vld [vmem:[#allocation6 + $0x4e8] sm:$0xff]
    %v359 = vld [vmem:[#allocation6 + $0x4f0] sm:$0xff]
    %v360 = vld [vmem:[#allocation6 + $0x4f8] sm:$0xff]
    %v361 = vld [vmem:[#allocation6 + $0x500] sm:$0xff]
    %v362 = vld [vmem:[#allocation6 + $0x508] sm:$0xff]
    %v363 = vld [vmem:[#allocation6 + $0x510] sm:$0xff]
    %v364 = vld [vmem:[#allocation6 + $0x518] sm:$0xff]
    %v365 = vld [vmem:[#allocation6 + $0x520] sm:$0xff]
    %v366 = vld [vmem:[#allocation6 + $0x528] sm:$0xff]
    %v367 = vld [vmem:[#allocation6 + $0x530] sm:$0xff]
    %v368 = vld [vmem:[#allocation6 + $0x538] sm:$0xff]
    %v369 = vld [vmem:[#allocation6 + $0x540] sm:$0xff]
    %v370 = vld [vmem:[#allocation6 + $0x548] sm:$0xff]
    %v371 = vld [vmem:[#allocation6 + $0x550] sm:$0xff]
    %v372 = vld [vmem:[#allocation6 + $0x558] sm:$0xff]
    %v373 = vld [vmem:[#allocation6 + $0x560] sm:$0xff]
    %v374 = vld [vmem:[#allocation6 + $0x568] sm:$0xff]
    %v375 = vld [vmem:[#allocation6 + $0x570] sm:$0xff]
    %v376 = vld [vmem:[#allocation6 + $0x578] sm:$0xff]
    %v377 = vld [vmem:[#allocation6 + $0x580] sm:$0xff]
    %v378 = vld [vmem:[#allocation6 + $0x588] sm:$0xff]
    %v379 = vld [vmem:[#allocation6 + $0x590] sm:$0xff]
    %v380 = vld [vmem:[#allocation6 + $0x598] sm:$0xff]
    %v381 = vld [vmem:[#allocation6 + $0x5a0] sm:$0xff]
    %v382 = vld [vmem:[#allocation6 + $0x5a8] sm:$0xff]
    %v383 = vld [vmem:[#allocation6 + $0x5b0] sm:$0xff]
    %v384 = vld [vmem:[#allocation6 + $0x5b8] sm:$0xff]
    %v385 = vld [vmem:[#allocation6 + $0x5c0] sm:$0xff]
    %v386 = vld [vmem:[#allocation6 + $0x5c8] sm:$0xff]
    %v387 = vld [vmem:[#allocation6 + $0x5d0] sm:$0xff]
    %v388 = vld [vmem:[#allocation6 + $0x5d8] sm:$0xff]
    %v389 = vld [vmem:[#allocation6 + $0x5e0] sm:$0xff]
    %v390 = vld [vmem:[#allocation6 + $0x5e8] sm:$0xff]
    %v391 = vld [vmem:[#allocation6 + $0x5f0] sm:$0xff]
    %v392 = vld [vmem:[#allocation6 + $0x5f8] sm:$0xff]
    %v393 = vld [vmem:[#allocation6 + $0x600] sm:$0xff]
    %v394 = vld [vmem:[#allocation6 + $0x608] sm:$0xff]
    %v395 = vld [vmem:[#allocation6 + $0x610] sm:$0xff]
    %v396 = vld [vmem:[#allocation6 + $0x618] sm:$0xff]
    %v397 = vld [vmem:[#allocation6 + $0x620] sm:$0xff]
    %v398 = vld [vmem:[#allocation6 + $0x628] sm:$0xff]
    %v399 = vld [vmem:[#allocation6 + $0x630] sm:$0xff]
    %v400 = vld [vmem:[#allocation6 + $0x638] sm:$0xff]
    %v401 = vld [vmem:[#allocation6 + $0x640] sm:$0xff]
    %v402 = vld [vmem:[#allocation6 + $0x648] sm:$0xff]
    %v403 = vld [vmem:[#allocation6 + $0x650] sm:$0xff]
    %v404 = vld [vmem:[#allocation6 + $0x658] sm:$0xff]
    %v405 = vld [vmem:[#allocation6 + $0x660] sm:$0xff]
    %v406 = vld [vmem:[#allocation6 + $0x668] sm:$0xff]
    %v407 = vld [vmem:[#allocation6 + $0x670] sm:$0xff]
    %v408 = vld [vmem:[#allocation6 + $0x678] sm:$0xff]
    %v409 = vld [vmem:[#allocation6 + $0x680] sm:$0xff]
    %v410 = vld [vmem:[#allocation6 + $0x688] sm:$0xff]
    %v411 = vld [vmem:[#allocation6 + $0x690] sm:$0xff]
    %v412 = vld [vmem:[#allocation6 + $0x698] sm:$0xff]
    %v413 = vld [vmem:[#allocation6 + $0x6a0] sm:$0xff]
    %v414 = vld [vmem:[#allocation6 + $0x6a8] sm:$0xff]
    %v415 = vld [vmem:[#allocation6 + $0x6b0] sm:$0xff]
    %v416 = vld [vmem:[#allocation6 + $0x6b8] sm:$0xff]
    %v417 = vld [vmem:[#allocation6 + $0x6c0] sm:$0xff]
    %v418 = vld [vmem:[#allocation6 + $0x6c8] sm:$0xff]
    %v419 = vld [vmem:[#allocation6 + $0x6d0] sm:$0xff]
    %v420 = vld [vmem:[#allocation6 + $0x6d8] sm:$0xff]
    %v421 = vld [vmem:[#allocation6 + $0x6e0] sm:$0xff]
    %v422 = vld [vmem:[#allocation6 + $0x6e8] sm:$0xff]
    %v423 = vld [vmem:[#allocation6 + $0x6f0] sm:$0xff]
    %v424 = vld [vmem:[#allocation6 + $0x6f8] sm:$0xff]
    %v425 = vld [vmem:[#allocation6 + $0x700] sm:$0xff]
    %v426 = vld [vmem:[#allocation6 + $0x708] sm:$0xff]
    %v427 = vld [vmem:[#allocation6 + $0x710] sm:$0xff]
    %v428 = vld [vmem:[#allocation6 + $0x718] sm:$0xff]
    %v429 = vld [vmem:[#allocation6 + $0x720] sm:$0xff]
    %v430 = vld [vmem:[#allocation6 + $0x728] sm:$0xff]
    %v431 = vld [vmem:[#allocation6 + $0x730] sm:$0xff]
    %v432 = vld [vmem:[#allocation6 + $0x738] sm:$0xff]
    %v433 = vld [vmem:[#allocation6 + $0x740] sm:$0xff]
    %v434 = vld [vmem:[#allocation6 + $0x748] sm:$0xff]
    %v435 = vld [vmem:[#allocation6 + $0x750] sm:$0xff]
    %v436 = vld [vmem:[#allocation6 + $0x758] sm:$0xff]
    %v437 = vld [vmem:[#allocation6 + $0x760] sm:$0xff]
    %v438 = vld [vmem:[#allocation6 + $0x768] sm:$0xff]
    %v439 = vld [vmem:[#allocation6 + $0x770] sm:$0xff]
    %v440 = vld [vmem:[#allocation6 + $0x778] sm:$0xff]
    %v441 = vld [vmem:[#allocation6 + $0x780] sm:$0xff]
    %v442 = vld [vmem:[#allocation6 + $0x788] sm:$0xff]
    %v443 = vld [vmem:[#allocation6 + $0x790] sm:$0xff]
    %v444 = vld [vmem:[#allocation6 + $0x798] sm:$0xff]
    %v445 = vld [vmem:[#allocation6 + $0x7a0] sm:$0xff]
    %v446 = vld [vmem:[#allocation6 + $0x7a8] sm:$0xff]
    %v447 = vld [vmem:[#allocation6 + $0x7b0] sm:$0xff]
    %v448 = vld [vmem:[#allocation6 + $0x7b8] sm:$0xff]
    %v449 = vld [vmem:[#allocation6 + $0x7c0] sm:$0xff]
    %v450 = vld [vmem:[#allocation6 + $0x7c8] sm:$0xff]
    %v451 = vld [vmem:[#allocation6 + $0x7d0] sm:$0xff]
    %v452 = vld [vmem:[#allocation6 + $0x7d8] sm:$0xff]
    %v453 = vld [vmem:[#allocation6 + $0x7e0] sm:$0xff]
    %v454 = vld [vmem:[#allocation6 + $0x7e8] sm:$0xff]
    %v455 = vld [vmem:[#allocation6 + $0x7f0] sm:$0xff]
    %v456 = vld [vmem:[#allocation6 + $0x7f8] sm:$0xff]
    %v457 = vld [vmem:[#allocation6 + $0x800] sm:$0xff]
    %v458 = vld [vmem:[#allocation6 + $0x808] sm:$0xff]
    %v459 = vld [vmem:[#allocation6 + $0x810] sm:$0xff]
    %v460 = vld [vmem:[#allocation6 + $0x818] sm:$0xff]
    %v461 = vld [vmem:[#allocation6 + $0x820] sm:$0xff]
    %v462 = vld [vmem:[#allocation6 + $0x828] sm:$0xff]
    %v463 = vld [vmem:[#allocation6 + $0x830] sm:$0xff]
    %v464 = vld [vmem:[#allocation6 + $0x838] sm:$0xff]
    %v465 = vld [vmem:[#allocation6 + $0x840] sm:$0xff]
    %v466 = vld [vmem:[#allocation6 + $0x848] sm:$0xff]
    %v467 = vld [vmem:[#allocation6 + $0x850] sm:$0xff]
    %v468 = vld [vmem:[#allocation6 + $0x858] sm:$0xff]
    %v469 = vld [vmem:[#allocation6 + $0x860] sm:$0xff]
    %v470 = vld [vmem:[#allocation6 + $0x868] sm:$0xff]
    %v471 = vld [vmem:[#allocation6 + $0x870] sm:$0xff]
    %v472 = vld [vmem:[#allocation6 + $0x878] sm:$0xff]
    %v473 = vld [vmem:[#allocation6 + $0x880] sm:$0xff]
    %v474 = vld [vmem:[#allocation6 + $0x888] sm:$0xff]
    %v475 = vld [vmem:[#allocation6 + $0x890] sm:$0xff]
    %v476 = vld [vmem:[#allocation6 + $0x898] sm:$0xff]
    %v477 = vld [vmem:[#allocation6 + $0x8a0] sm:$0xff]
    %v478 = vld [vmem:[#allocation6 + $0x8a8] sm:$0xff]
    %v479 = vld [vmem:[#allocation6 + $0x8b0] sm:$0xff]
    %v480 = vld [vmem:[#allocation6 + $0x8b8] sm:$0xff]
    %v481 = vld [vmem:[#allocation6 + $0x8c0] sm:$0xff]
    %v482 = vld [vmem:[#allocation6 + $0x8c8] sm:$0xff]
    %v483 = vld [vmem:[#allocation6 + $0x8d0] sm:$0xff]
    %v484 = vld [vmem:[#allocation6 + $0x8d8] sm:$0xff]
    %v485 = vld [vmem:[#allocation6 + $0x8e0] sm:$0xff]
    %v486 = vld [vmem:[#allocation6 + $0x8e8] sm:$0xff]
    %v487 = vld [vmem:[#allocation6 + $0x8f0] sm:$0xff]
    %v488 = vld [vmem:[#allocation6 + $0x8f8] sm:$0xff]
    %v489 = vld [vmem:[#allocation6 + $0x900] sm:$0xff]
    %v490 = vld [vmem:[#allocation6 + $0x908] sm:$0xff]
    %v491 = vld [vmem:[#allocation6 + $0x910] sm:$0xff]
    %v492 = vld [vmem:[#allocation6 + $0x918] sm:$0xff]
    %v493 = vld [vmem:[#allocation6 + $0x920] sm:$0xff]
    %v494 = vld [vmem:[#allocation6 + $0x928] sm:$0xff]
    %v495 = vld [vmem:[#allocation6 + $0x930] sm:$0xff]
    %v496 = vld [vmem:[#allocation6 + $0x938] sm:$0xff]
    %v497 = vld [vmem:[#allocation6 + $0x940] sm:$0xff]
    %v498 = vld [vmem:[#allocation6 + $0x948] sm:$0xff]
    %v499 = vld [vmem:[#allocation6 + $0x950] sm:$0xff]
    %v500 = vld [vmem:[#allocation6 + $0x958] sm:$0xff]
    %v501 = vld [vmem:[#allocation6 + $0x960] sm:$0xff]
    %v502 = vld [vmem:[#allocation6 + $0x968] sm:$0xff]
    %v503 = vld [vmem:[#allocation6 + $0x970] sm:$0xff]
    %v504 = vld [vmem:[#allocation6 + $0x978] sm:$0xff]
    %v505 = vld [vmem:[#allocation6 + $0x980] sm:$0xff]
    %v506 = vld [vmem:[#allocation6 + $0x988] sm:$0xff]
    %v507 = vld [vmem:[#allocation6 + $0x990] sm:$0xff]
    %v508 = vld [vmem:[#allocation6 + $0x998] sm:$0xff]
    %v509 = vld [vmem:[#allocation6 + $0x9a0] sm:$0xff]
    %v510 = vld [vmem:[#allocation6 + $0x9a8] sm:$0xff]
    %v511 = vld [vmem:[#allocation6 + $0x9b0] sm:$0xff]
    %v512 = vld [vmem:[#allocation6 + $0x9b8] sm:$0xff]
    %v513 = vld [vmem:[#allocation6 + $0x9c0] sm:$0xff]
    %v514 = vld [vmem:[#allocation6 + $0x9c8] sm:$0xff]
    %v515 = vld [vmem:[#allocation6 + $0x9d0] sm:$0xff]
    %v516 = vld [vmem:[#allocation6 + $0x9d8] sm:$0xff]
    %v517 = vld [vmem:[#allocation6 + $0x9e0] sm:$0xff]
    %v518 = vld [vmem:[#allocation6 + $0x9e8] sm:$0xff]
    %v519 = vld [vmem:[#allocation6 + $0x9f0] sm:$0xff]
    %v520 = vld [vmem:[#allocation6 + $0x9f8] sm:$0xff]
    %v521 = vld [vmem:[#allocation6 + $0xa00] sm:$0xff]
    %v522 = vld [vmem:[#allocation6 + $0xa08] sm:$0xff]
    %v523 = vld [vmem:[#allocation6 + $0xa10] sm:$0xff]
    %v524 = vld [vmem:[#allocation6 + $0xa18] sm:$0xff]
    %v525 = vld [vmem:[#allocation6 + $0xa20] sm:$0xff]
    %v526 = vld [vmem:[#allocation6 + $0xa28] sm:$0xff]
    %v527 = vld [vmem:[#allocation6 + $0xa30] sm:$0xff]
    %v528 = vld [vmem:[#allocation6 + $0xa38] sm:$0xff]
    %v529 = vld [vmem:[#allocation6 + $0xa40] sm:$0xff]
    %v530 = vld [vmem:[#allocation6 + $0xa48] sm:$0xff]
    %v531 = vld [vmem:[#allocation6 + $0xa50] sm:$0xff]
    %v532 = vld [vmem:[#allocation6 + $0xa58] sm:$0xff]
    %v533 = vld [vmem:[#allocation6 + $0xa60] sm:$0xff]
    %v534 = vld [vmem:[#allocation6 + $0xa68] sm:$0xff]
    %v535 = vld [vmem:[#allocation6 + $0xa70] sm:$0xff]
    %v536 = vld [vmem:[#allocation6 + $0xa78] sm:$0xff]
    %v537 = vld [vmem:[#allocation6 + $0xa80] sm:$0xff]
    %v538 = vld [vmem:[#allocation6 + $0xa88] sm:$0xff]
    %v539 = vld [vmem:[#allocation6 + $0xa90] sm:$0xff]
    %v540 = vld [vmem:[#allocation6 + $0xa98] sm:$0xff]
    %v541 = vld [vmem:[#allocation6 + $0xaa0] sm:$0xff]
    %v542 = vld [vmem:[#allocation6 + $0xaa8] sm:$0xff]
    %v543 = vld [vmem:[#allocation6 + $0xab0] sm:$0xff]
    %v544 = vld [vmem:[#allocation6 + $0xab8] sm:$0xff]
    %v545 = vld [vmem:[#allocation6 + $0xac0] sm:$0xff]
    %v546 = vld [vmem:[#allocation6 + $0xac8] sm:$0xff]
    %v547 = vld [vmem:[#allocation6 + $0xad0] sm:$0xff]
    %v548 = vld [vmem:[#allocation6 + $0xad8] sm:$0xff]
    %v549 = vld [vmem:[#allocation6 + $0xae0] sm:$0xff]
    %v550 = vld [vmem:[#allocation6 + $0xae8] sm:$0xff]
    %v551 = vld [vmem:[#allocation6 + $0xaf0] sm:$0xff]
    %v552 = vld [vmem:[#allocation6 + $0xaf8] sm:$0xff]
    %v553 = vld [vmem:[#allocation6 + $0xb00] sm:$0xff]
    %v554 = vld [vmem:[#allocation6 + $0xb08] sm:$0xff]
    %v555 = vld [vmem:[#allocation6 + $0xb10] sm:$0xff]
    %v556 = vld [vmem:[#allocation6 + $0xb18] sm:$0xff]
    %v557 = vld [vmem:[#allocation6 + $0xb20] sm:$0xff]
    %v558 = vld [vmem:[#allocation6 + $0xb28] sm:$0xff]
    %v559 = vld [vmem:[#allocation6 + $0xb30] sm:$0xff]
    %v560 = vld [vmem:[#allocation6 + $0xb38] sm:$0xff]
    %v561 = vld [vmem:[#allocation6 + $0xb40] sm:$0xff]
    %v562 = vld [vmem:[#allocation6 + $0xb48] sm:$0xff]
    %v563 = vld [vmem:[#allocation6 + $0xb50] sm:$0xff]
    %v564 = vld [vmem:[#allocation6 + $0xb58] sm:$0xff]
    %v565 = vld [vmem:[#allocation6 + $0xb60] sm:$0xff]
    %v566 = vld [vmem:[#allocation6 + $0xb68] sm:$0xff]
    %v567 = vld [vmem:[#allocation6 + $0xb70] sm:$0xff]
    %v568 = vld [vmem:[#allocation6 + $0xb78] sm:$0xff]
    %v569 = vld [vmem:[#allocation6 + $0xb80] sm:$0xff]
    %v570 = vld [vmem:[#allocation6 + $0xb88] sm:$0xff]
    %v571 = vld [vmem:[#allocation6 + $0xb90] sm:$0xff]
    %v572 = vld [vmem:[#allocation6 + $0xb98] sm:$0xff]
    %v573 = vld [vmem:[#allocation6 + $0xba0] sm:$0xff]
    %v574 = vld [vmem:[#allocation6 + $0xba8] sm:$0xff]
    %v575 = vld [vmem:[#allocation6 + $0xbb0] sm:$0xff]
    %v576 = vld [vmem:[#allocation6 + $0xbb8] sm:$0xff]
    %v577 = vld [vmem:[#allocation6 + $0xbc0] sm:$0xff]
    %v578 = vld [vmem:[#allocation6 + $0xbc8] sm:$0xff]
    %v579 = vld [vmem:[#allocation6 + $0xbd0] sm:$0xff]
    %v580 = vld [vmem:[#allocation6 + $0xbd8] sm:$0xff]
    %v581 = vld [vmem:[#allocation6 + $0xbe0] sm:$0xff]
    %v582 = vld [vmem:[#allocation6 + $0xbe8] sm:$0xff]
    %v583 = vld [vmem:[#allocation6 + $0xbf0] sm:$0xff]
    %v584 = vld [vmem:[#allocation6 + $0xbf8] sm:$0xff]
    %v585 = vld [vmem:[#allocation6 + $0xc00] sm:$0xff]
    %v586 = vld [vmem:[#allocation6 + $0xc08] sm:$0xff]
    %v587 = vld [vmem:[#allocation6 + $0xc10] sm:$0xff]
    %v588 = vld [vmem:[#allocation6 + $0xc18] sm:$0xff]
    %v589 = vld [vmem:[#allocation6 + $0xc20] sm:$0xff]
    %v590 = vld [vmem:[#allocation6 + $0xc28] sm:$0xff]
    %v591 = vld [vmem:[#allocation6 + $0xc30] sm:$0xff]
    %v592 = vld [vmem:[#allocation6 + $0xc38] sm:$0xff]
    %v593 = vld [vmem:[#allocation6 + $0xc40] sm:$0xff]
    %v594 = vld [vmem:[#allocation6 + $0xc48] sm:$0xff]
    %v595 = vld [vmem:[#allocation6 + $0xc50] sm:$0xff]
    %v596 = vld [vmem:[#allocation6 + $0xc58] sm:$0xff]
    %v597 = vld [vmem:[#allocation6 + $0xc60] sm:$0xff]
    %v598 = vld [vmem:[#allocation6 + $0xc68] sm:$0xff]
    %v599 = vld [vmem:[#allocation6 + $0xc70] sm:$0xff]
    %v600 = vld [vmem:[#allocation6 + $0xc78] sm:$0xff]
    %v601 = vld [vmem:[#allocation6 + $0xc80] sm:$0xff]
    %v602 = vld [vmem:[#allocation6 + $0xc88] sm:$0xff]
    %v603 = vld [vmem:[#allocation6 + $0xc90] sm:$0xff]
    %v604 = vld [vmem:[#allocation6 + $0xc98] sm:$0xff]
    %v605 = vld [vmem:[#allocation6 + $0xca0] sm:$0xff]
    %v606 = vld [vmem:[#allocation6 + $0xca8] sm:$0xff]
    %v607 = vld [vmem:[#allocation6 + $0xcb0] sm:$0xff]
    %v608 = vld [vmem:[#allocation6 + $0xcb8] sm:$0xff]
    %v609 = vld [vmem:[#allocation6 + $0xcc0] sm:$0xff]
    %v610 = vld [vmem:[#allocation6 + $0xcc8] sm:$0xff]
    %v611 = vld [vmem:[#allocation6 + $0xcd0] sm:$0xff]
    %v612 = vld [vmem:[#allocation6 + $0xcd8] sm:$0xff]
    %v613 = vld [vmem:[#allocation6 + $0xce0] sm:$0xff]
    %v614 = vld [vmem:[#allocation6 + $0xce8] sm:$0xff]
    %v615 = vld [vmem:[#allocation6 + $0xcf0] sm:$0xff]
    %v616 = vld [vmem:[#allocation6 + $0xcf8] sm:$0xff]
    %v617 = vld [vmem:[#allocation6 + $0xd00] sm:$0xff]
    %v618 = vld [vmem:[#allocation6 + $0xd08] sm:$0xff]
    %v619 = vld [vmem:[#allocation6 + $0xd10] sm:$0xff]
    %v620 = vld [vmem:[#allocation6 + $0xd18] sm:$0xff]
    %v621 = vld [vmem:[#allocation6 + $0xd20] sm:$0xff]
    %v622 = vld [vmem:[#allocation6 + $0xd28] sm:$0xff]
    %v623 = vld [vmem:[#allocation6 + $0xd30] sm:$0xff]
    %v624 = vld [vmem:[#allocation6 + $0xd38] sm:$0xff]
    %v625 = vld [vmem:[#allocation6 + $0xd40] sm:$0xff]
    %v626 = vld [vmem:[#allocation6 + $0xd48] sm:$0xff]
    %v627 = vld [vmem:[#allocation6 + $0xd50] sm:$0xff]
    %v628 = vld [vmem:[#allocation6 + $0xd58] sm:$0xff]
    %v629 = vld [vmem:[#allocation6 + $0xd60] sm:$0xff]
    %v630 = vld [vmem:[#allocation6 + $0xd68] sm:$0xff]
    %v631 = vld [vmem:[#allocation6 + $0xd70] sm:$0xff]
    %v632 = vld [vmem:[#allocation6 + $0xd78] sm:$0xff]
    %v633 = vld [vmem:[#allocation6 + $0xd80] sm:$0xff]
    %v634 = vld [vmem:[#allocation6 + $0xd88] sm:$0xff]
    %v635 = vld [vmem:[#allocation6 + $0xd90] sm:$0xff]
    %v636 = vld [vmem:[#allocation6 + $0xd98] sm:$0xff]
    %v637 = vld [vmem:[#allocation6 + $0xda0] sm:$0xff]
    %v638 = vld [vmem:[#allocation6 + $0xda8] sm:$0xff]
    %v639 = vld [vmem:[#allocation6 + $0xdb0] sm:$0xff]
    %v640 = vld [vmem:[#allocation6 + $0xdb8] sm:$0xff]
    %v641 = vld [vmem:[#allocation6 + $0xdc0] sm:$0xff]
    %v642 = vld [vmem:[#allocation6 + $0xdc8] sm:$0xff]
    %v643 = vld [vmem:[#allocation6 + $0xdd0] sm:$0xff]
    %v644 = vld [vmem:[#allocation6 + $0xdd8] sm:$0xff]
    %v645 = vld [vmem:[#allocation6 + $0xde0] sm:$0xff]
    %v646 = vld [vmem:[#allocation6 + $0xde8] sm:$0xff]
    %v647 = vld [vmem:[#allocation6 + $0xdf0] sm:$0xff]
    %v648 = vld [vmem:[#allocation6 + $0xdf8] sm:$0xff]
    %v649 = vld [vmem:[#allocation6 + $0xe00] sm:$0xff]
    %v650 = vld [vmem:[#allocation6 + $0xe08] sm:$0xff]
    %v651 = vld [vmem:[#allocation6 + $0xe10] sm:$0xff]
    %v652 = vld [vmem:[#allocation6 + $0xe18] sm:$0xff]
    %v653 = vld [vmem:[#allocation6 + $0xe20] sm:$0xff]
    %v654 = vld [vmem:[#allocation6 + $0xe28] sm:$0xff]
    %v655 = vld [vmem:[#allocation6 + $0xe30] sm:$0xff]
    %v656 = vld [vmem:[#allocation6 + $0xe38] sm:$0xff]
    %v657 = vld [vmem:[#allocation6 + $0xe40] sm:$0xff]
    %v658 = vld [vmem:[#allocation6 + $0xe48] sm:$0xff]
    %v659 = vld [vmem:[#allocation6 + $0xe50] sm:$0xff]
    %v660 = vld [vmem:[#allocation6 + $0xe58] sm:$0xff]
    %v661 = vld [vmem:[#allocation6 + $0xe60] sm:$0xff]
    %v662 = vld [vmem:[#allocation6 + $0xe68] sm:$0xff]
    %v663 = vld [vmem:[#allocation6 + $0xe70] sm:$0xff]
    %v664 = vld [vmem:[#allocation6 + $0xe78] sm:$0xff]
    %v665 = vld [vmem:[#allocation6 + $0xe80] sm:$0xff]
    %v666 = vld [vmem:[#allocation6 + $0xe88] sm:$0xff]
    %v667 = vld [vmem:[#allocation6 + $0xe90] sm:$0xff]
    %v668 = vld [vmem:[#allocation6 + $0xe98] sm:$0xff]
    %v669 = vld [vmem:[#allocation6 + $0xea0] sm:$0xff]
    %v670 = vld [vmem:[#allocation6 + $0xea8] sm:$0xff]
    %v671 = vld [vmem:[#allocation6 + $0xeb0] sm:$0xff]
    %v672 = vld [vmem:[#allocation6 + $0xeb8] sm:$0xff]
    %v673 = vld [vmem:[#allocation6 + $0xec0] sm:$0xff]
    %v674 = vld [vmem:[#allocation6 + $0xec8] sm:$0xff]
    %v675 = vld [vmem:[#allocation6 + $0xed0] sm:$0xff]
    %v676 = vld [vmem:[#allocation6 + $0xed8] sm:$0xff]
    %v677 = vld [vmem:[#allocation6 + $0xee0] sm:$0xff]
    %v678 = vld [vmem:[#allocation6 + $0xee8] sm:$0xff]
    %v679 = vld [vmem:[#allocation6 + $0xef0] sm:$0xff]
    %v680 = vld [vmem:[#allocation6 + $0xef8] sm:$0xff]
    %v681 = vld [vmem:[#allocation6 + $0xf00] sm:$0xff]
    %v682 = vld [vmem:[#allocation6 + $0xf08] sm:$0xff]
    %v683 = vld [vmem:[#allocation6 + $0xf10] sm:$0xff]
    %v684 = vld [vmem:[#allocation6 + $0xf18] sm:$0xff]
    %v685 = vld [vmem:[#allocation6 + $0xf20] sm:$0xff]
    %v686 = vld [vmem:[#allocation6 + $0xf28] sm:$0xff]
    %v687 = vld [vmem:[#allocation6 + $0xf30] sm:$0xff]
    %v688 = vld [vmem:[#allocation6 + $0xf38] sm:$0xff]
    %v689 = vld [vmem:[#allocation6 + $0xf40] sm:$0xff]
    %v690 = vld [vmem:[#allocation6 + $0xf48] sm:$0xff]
    %v691 = vld [vmem:[#allocation6 + $0xf50] sm:$0xff]
    %v692 = vld [vmem:[#allocation6 + $0xf58] sm:$0xff]
    %v693 = vld [vmem:[#allocation6 + $0xf60] sm:$0xff]
    %v694 = vld [vmem:[#allocation6 + $0xf68] sm:$0xff]
    %v695 = vld [vmem:[#allocation6 + $0xf70] sm:$0xff]
    %v696 = vld [vmem:[#allocation6 + $0xf78] sm:$0xff]
    %v697 = vld [vmem:[#allocation6 + $0xf80] sm:$0xff]
    %v698 = vld [vmem:[#allocation6 + $0xf88] sm:$0xff]
    %v699 = vld [vmem:[#allocation6 + $0xf90] sm:$0xff]
    %v700 = vld [vmem:[#allocation6 + $0xf98] sm:$0xff]
    %v701 = vld [vmem:[#allocation6 + $0xfa0] sm:$0xff]
    %v702 = vld [vmem:[#allocation6 + $0xfa8] sm:$0xff]
    %v703 = vld [vmem:[#allocation6 + $0xfb0] sm:$0xff]
    %v704 = vld [vmem:[#allocation6 + $0xfb8] sm:$0xff]
    %v705 = vld [vmem:[#allocation6 + $0xfc0] sm:$0xff]
    %v706 = vld [vmem:[#allocation6 + $0xfc8] sm:$0xff]
    %v707 = vld [vmem:[#allocation6 + $0xfd0] sm:$0xff]
    %v708 = vld [vmem:[#allocation6 + $0xfd8] sm:$0xff]
    %v709 = vld [vmem:[#allocation6 + $0xfe0] sm:$0xff]
    %v710 = vld [vmem:[#allocation6 + $0xfe8] sm:$0xff]
    %v711 = vld [vmem:[#allocation6 + $0xff0] sm:$0xff]
    %v712 = vld [vmem:[#allocation6 + $0xff8] sm:$0xff]
    %v717 = vunpack.c.l.b16 %v197
    %v718 = vunpack.c.h.b16 %v197
    %v719 = vunpack.c.l.b16 %v198
    %v720 = vunpack.c.h.b16 %v198
    %v721 = vunpack.c.l.b16 %v199
    %v722 = vunpack.c.h.b16 %v199
    %v723 = vunpack.c.l.b16 %v200
    %v724 = vunpack.c.h.b16 %v200
    %v725 = vpack.c.b16 %v717, %v717
    %v726 = vpack.c.b16 %v718, %v718
    %v727 = vpack.c.b16 %v719, %v719
    %v728 = vpack.c.b16 %v720, %v720
    %v729 = vpack.c.b16 %v721, %v721
    %v730 = vpack.c.b16 %v722, %v722
    %v731 = vpack.c.b16 %v723, %v723
    %v732 = vpack.c.b16 %v724, %v724
    %v1253 = vunpack.c.l.b16 %v201
    %v1254 = vunpack.c.h.b16 %v201
    %v1255 = vunpack.c.l.b16 %v202
    %v1256 = vunpack.c.h.b16 %v202
    %v1257 = vunpack.c.l.b16 %v203
    %v1258 = vunpack.c.h.b16 %v203
    %v1259 = vunpack.c.l.b16 %v204
    %v1260 = vunpack.c.h.b16 %v204
    %v1261 = vunpack.c.l.b16 %v205
    %v1262 = vunpack.c.h.b16 %v205
    %v1263 = vunpack.c.l.b16 %v206
    %v1264 = vunpack.c.h.b16 %v206
    %v1265 = vunpack.c.l.b16 %v207
    %v1266 = vunpack.c.h.b16 %v207
    %v1267 = vunpack.c.l.b16 %v208
    %v1268 = vunpack.c.h.b16 %v208
    %v1269 = vunpack.c.l.b16 %v209
    %v1270 = vunpack.c.h.b16 %v209
    %v1271 = vunpack.c.l.b16 %v210
    %v1272 = vunpack.c.h.b16 %v210
    %v1273 = vunpack.c.l.b16 %v211
    %v1274 = vunpack.c.h.b16 %v211
    %v1275 = vunpack.c.l.b16 %v212
    %v1276 = vunpack.c.h.b16 %v212
    %v1277 = vunpack.c.l.b16 %v213
    %v1278 = vunpack.c.h.b16 %v213
    %v1279 = vunpack.c.l.b16 %v214
    %v1280 = vunpack.c.h.b16 %v214
    %v1281 = vunpack.c.l.b16 %v215
    %v1282 = vunpack.c.h.b16 %v215
    %v1283 = vunpack.c.l.b16 %v216
    %v1284 = vunpack.c.h.b16 %v216
    %v1285 = vunpack.c.l.b16 %v217
    %v1286 = vunpack.c.h.b16 %v217
    %v1287 = vunpack.c.l.b16 %v218
    %v1288 = vunpack.c.h.b16 %v218
    %v1289 = vunpack.c.l.b16 %v219
    %v1290 = vunpack.c.h.b16 %v219
    %v1291 = vunpack.c.l.b16 %v220
    %v1292 = vunpack.c.h.b16 %v220
    %v1293 = vunpack.c.l.b16 %v221
    %v1294 = vunpack.c.h.b16 %v221
    %v1295 = vunpack.c.l.b16 %v222
    %v1296 = vunpack.c.h.b16 %v222
    %v1297 = vunpack.c.l.b16 %v223
    %v1298 = vunpack.c.h.b16 %v223
    %v1299 = vunpack.c.l.b16 %v224
    %v1300 = vunpack.c.h.b16 %v224
    %v1301 = vunpack.c.l.b16 %v225
    %v1302 = vunpack.c.h.b16 %v225
    %v1303 = vunpack.c.l.b16 %v226
    %v1304 = vunpack.c.h.b16 %v226
    %v1305 = vunpack.c.l.b16 %v227
    %v1306 = vunpack.c.h.b16 %v227
    %v1307 = vunpack.c.l.b16 %v228
    %v1308 = vunpack.c.h.b16 %v228
    %v1309 = vunpack.c.l.b16 %v229
    %v1310 = vunpack.c.h.b16 %v229
    %v1311 = vunpack.c.l.b16 %v230
    %v1312 = vunpack.c.h.b16 %v230
    %v1313 = vunpack.c.l.b16 %v231
    %v1314 = vunpack.c.h.b16 %v231
    %v1315 = vunpack.c.l.b16 %v232
    %v1316 = vunpack.c.h.b16 %v232
    %v1317 = vunpack.c.l.b16 %v233
    %v1318 = vunpack.c.h.b16 %v233
    %v1319 = vunpack.c.l.b16 %v234
    %v1320 = vunpack.c.h.b16 %v234
    %v1321 = vunpack.c.l.b16 %v235
    %v1322 = vunpack.c.h.b16 %v235
    %v1323 = vunpack.c.l.b16 %v236
    %v1324 = vunpack.c.h.b16 %v236
    %v1325 = vunpack.c.l.b16 %v237
    %v1326 = vunpack.c.h.b16 %v237
    %v1327 = vunpack.c.l.b16 %v238
    %v1328 = vunpack.c.h.b16 %v238
    %v1329 = vunpack.c.l.b16 %v239
    %v1330 = vunpack.c.h.b16 %v239
    %v1331 = vunpack.c.l.b16 %v240
    %v1332 = vunpack.c.h.b16 %v240
    %v1333 = vunpack.c.l.b16 %v241
    %v1334 = vunpack.c.h.b16 %v241
    %v1335 = vunpack.c.l.b16 %v242
    %v1336 = vunpack.c.h.b16 %v242
    %v1337 = vunpack.c.l.b16 %v243
    %v1338 = vunpack.c.h.b16 %v243
    %v1339 = vunpack.c.l.b16 %v244
    %v1340 = vunpack.c.h.b16 %v244
    %v1341 = vunpack.c.l.b16 %v245
    %v1342 = vunpack.c.h.b16 %v245
    %v1343 = vunpack.c.l.b16 %v246
    %v1344 = vunpack.c.h.b16 %v246
    %v1345 = vunpack.c.l.b16 %v247
    %v1346 = vunpack.c.h.b16 %v247
    %v1347 = vunpack.c.l.b16 %v248
    %v1348 = vunpack.c.h.b16 %v248
    %v1349 = vunpack.c.l.b16 %v249
    %v1350 = vunpack.c.h.b16 %v249
    %v1351 = vunpack.c.l.b16 %v250
    %v1352 = vunpack.c.h.b16 %v250
    %v1353 = vunpack.c.l.b16 %v251
    %v1354 = vunpack.c.h.b16 %v251
    %v1355 = vunpack.c.l.b16 %v252
    %v1356 = vunpack.c.h.b16 %v252
    %v1357 = vunpack.c.l.b16 %v253
    %v1358 = vunpack.c.h.b16 %v253
    %v1359 = vunpack.c.l.b16 %v254
    %v1360 = vunpack.c.h.b16 %v254
    %v1361 = vunpack.c.l.b16 %v255
    %v1362 = vunpack.c.h.b16 %v255
    %v1363 = vunpack.c.l.b16 %v256
    %v1364 = vunpack.c.h.b16 %v256
    %v1365 = vunpack.c.l.b16 %v257
    %v1366 = vunpack.c.h.b16 %v257
    %v1367 = vunpack.c.l.b16 %v258
    %v1368 = vunpack.c.h.b16 %v258
    %v1369 = vunpack.c.l.b16 %v259
    %v1370 = vunpack.c.h.b16 %v259
    %v1371 = vunpack.c.l.b16 %v260
    %v1372 = vunpack.c.h.b16 %v260
    %v1373 = vunpack.c.l.b16 %v261
    %v1374 = vunpack.c.h.b16 %v261
    %v1375 = vunpack.c.l.b16 %v262
    %v1376 = vunpack.c.h.b16 %v262
    %v1377 = vunpack.c.l.b16 %v263
    %v1378 = vunpack.c.h.b16 %v263
    %v1379 = vunpack.c.l.b16 %v264
    %v1380 = vunpack.c.h.b16 %v264
    %v1381 = vunpack.c.l.b16 %v265
    %v1382 = vunpack.c.h.b16 %v265
    %v1383 = vunpack.c.l.b16 %v266
    %v1384 = vunpack.c.h.b16 %v266
    %v1385 = vunpack.c.l.b16 %v267
    %v1386 = vunpack.c.h.b16 %v267
    %v1387 = vunpack.c.l.b16 %v268
    %v1388 = vunpack.c.h.b16 %v268
    %v1389 = vunpack.c.l.b16 %v269
    %v1390 = vunpack.c.h.b16 %v269
    %v1391 = vunpack.c.l.b16 %v270
    %v1392 = vunpack.c.h.b16 %v270
    %v1393 = vunpack.c.l.b16 %v271
    %v1394 = vunpack.c.h.b16 %v271
    %v1395 = vunpack.c.l.b16 %v272
    %v1396 = vunpack.c.h.b16 %v272
    %v1397 = vunpack.c.l.b16 %v273
    %v1398 = vunpack.c.h.b16 %v273
    %v1399 = vunpack.c.l.b16 %v274
    %v1400 = vunpack.c.h.b16 %v274
    %v1401 = vunpack.c.l.b16 %v275
    %v1402 = vunpack.c.h.b16 %v275
    %v1403 = vunpack.c.l.b16 %v276
    %v1404 = vunpack.c.h.b16 %v276
    %v1405 = vunpack.c.l.b16 %v277
    %v1406 = vunpack.c.h.b16 %v277
    %v1407 = vunpack.c.l.b16 %v278
    %v1408 = vunpack.c.h.b16 %v278
    %v1409 = vunpack.c.l.b16 %v279
    %v1410 = vunpack.c.h.b16 %v279
    %v1411 = vunpack.c.l.b16 %v280
    %v1412 = vunpack.c.h.b16 %v280
    %v1413 = vunpack.c.l.b16 %v281
    %v1414 = vunpack.c.h.b16 %v281
    %v1415 = vunpack.c.l.b16 %v282
    %v1416 = vunpack.c.h.b16 %v282
    %v1417 = vunpack.c.l.b16 %v283
    %v1418 = vunpack.c.h.b16 %v283
    %v1419 = vunpack.c.l.b16 %v284
    %v1420 = vunpack.c.h.b16 %v284
    %v1421 = vunpack.c.l.b16 %v285
    %v1422 = vunpack.c.h.b16 %v285
    %v1423 = vunpack.c.l.b16 %v286
    %v1424 = vunpack.c.h.b16 %v286
    %v1425 = vunpack.c.l.b16 %v287
    %v1426 = vunpack.c.h.b16 %v287
    %v1427 = vunpack.c.l.b16 %v288
    %v1428 = vunpack.c.h.b16 %v288
    %v1429 = vunpack.c.l.b16 %v289
    %v1430 = vunpack.c.h.b16 %v289
    %v1431 = vunpack.c.l.b16 %v290
    %v1432 = vunpack.c.h.b16 %v290
    %v1433 = vunpack.c.l.b16 %v291
    %v1434 = vunpack.c.h.b16 %v291
    %v1435 = vunpack.c.l.b16 %v292
    %v1436 = vunpack.c.h.b16 %v292
    %v1437 = vunpack.c.l.b16 %v293
    %v1438 = vunpack.c.h.b16 %v293
    %v1439 = vunpack.c.l.b16 %v294
    %v1440 = vunpack.c.h.b16 %v294
    %v1441 = vunpack.c.l.b16 %v295
    %v1442 = vunpack.c.h.b16 %v295
    %v1443 = vunpack.c.l.b16 %v296
    %v1444 = vunpack.c.h.b16 %v296
    %v1445 = vunpack.c.l.b16 %v297
    %v1446 = vunpack.c.h.b16 %v297
    %v1447 = vunpack.c.l.b16 %v298
    %v1448 = vunpack.c.h.b16 %v298
    %v1449 = vunpack.c.l.b16 %v299
    %v1450 = vunpack.c.h.b16 %v299
    %v1451 = vunpack.c.l.b16 %v300
    %v1452 = vunpack.c.h.b16 %v300
    %v1453 = vunpack.c.l.b16 %v301
    %v1454 = vunpack.c.h.b16 %v301
    %v1455 = vunpack.c.l.b16 %v302
    %v1456 = vunpack.c.h.b16 %v302
    %v1457 = vunpack.c.l.b16 %v303
    %v1458 = vunpack.c.h.b16 %v303
    %v1459 = vunpack.c.l.b16 %v304
    %v1460 = vunpack.c.h.b16 %v304
    %v1461 = vunpack.c.l.b16 %v305
    %v1462 = vunpack.c.h.b16 %v305
    %v1463 = vunpack.c.l.b16 %v306
    %v1464 = vunpack.c.h.b16 %v306
    %v1465 = vunpack.c.l.b16 %v307
    %v1466 = vunpack.c.h.b16 %v307
    %v1467 = vunpack.c.l.b16 %v308
    %v1468 = vunpack.c.h.b16 %v308
    %v1469 = vunpack.c.l.b16 %v309
    %v1470 = vunpack.c.h.b16 %v309
    %v1471 = vunpack.c.l.b16 %v310
    %v1472 = vunpack.c.h.b16 %v310
    %v1473 = vunpack.c.l.b16 %v311
    %v1474 = vunpack.c.h.b16 %v311
    %v1475 = vunpack.c.l.b16 %v312
    %v1476 = vunpack.c.h.b16 %v312
    %v1477 = vunpack.c.l.b16 %v313
    %v1478 = vunpack.c.h.b16 %v313
    %v1479 = vunpack.c.l.b16 %v314
    %v1480 = vunpack.c.h.b16 %v314
    %v1481 = vunpack.c.l.b16 %v315
    %v1482 = vunpack.c.h.b16 %v315
    %v1483 = vunpack.c.l.b16 %v316
    %v1484 = vunpack.c.h.b16 %v316
    %v1485 = vunpack.c.l.b16 %v317
    %v1486 = vunpack.c.h.b16 %v317
    %v1487 = vunpack.c.l.b16 %v318
    %v1488 = vunpack.c.h.b16 %v318
    %v1489 = vunpack.c.l.b16 %v319
    %v1490 = vunpack.c.h.b16 %v319
    %v1491 = vunpack.c.l.b16 %v320
    %v1492 = vunpack.c.h.b16 %v320
    %v1493 = vunpack.c.l.b16 %v321
    %v1494 = vunpack.c.h.b16 %v321
    %v1495 = vunpack.c.l.b16 %v322
    %v1496 = vunpack.c.h.b16 %v322
    %v1497 = vunpack.c.l.b16 %v323
    %v1498 = vunpack.c.h.b16 %v323
    %v1499 = vunpack.c.l.b16 %v324
    %v1500 = vunpack.c.h.b16 %v324
    %v1501 = vunpack.c.l.b16 %v325
    %v1502 = vunpack.c.h.b16 %v325
    %v1503 = vunpack.c.l.b16 %v326
    %v1504 = vunpack.c.h.b16 %v326
    %v1505 = vunpack.c.l.b16 %v327
    %v1506 = vunpack.c.h.b16 %v327
    %v1507 = vunpack.c.l.b16 %v328
    %v1508 = vunpack.c.h.b16 %v328
    %v1509 = vunpack.c.l.b16 %v329
    %v1510 = vunpack.c.h.b16 %v329
    %v1511 = vunpack.c.l.b16 %v330
    %v1512 = vunpack.c.h.b16 %v330
    %v1513 = vunpack.c.l.b16 %v331
    %v1514 = vunpack.c.h.b16 %v331
    %v1515 = vunpack.c.l.b16 %v332
    %v1516 = vunpack.c.h.b16 %v332
    %v1517 = vunpack.c.l.b16 %v333
    %v1518 = vunpack.c.h.b16 %v333
    %v1519 = vunpack.c.l.b16 %v334
    %v1520 = vunpack.c.h.b16 %v334
    %v1521 = vunpack.c.l.b16 %v335
    %v1522 = vunpack.c.h.b16 %v335
    %v1523 = vunpack.c.l.b16 %v336
    %v1524 = vunpack.c.h.b16 %v336
    %v1525 = vunpack.c.l.b16 %v337
    %v1526 = vunpack.c.h.b16 %v337
    %v1527 = vunpack.c.l.b16 %v338
    %v1528 = vunpack.c.h.b16 %v338
    %v1529 = vunpack.c.l.b16 %v339
    %v1530 = vunpack.c.h.b16 %v339
    %v1531 = vunpack.c.l.b16 %v340
    %v1532 = vunpack.c.h.b16 %v340
    %v1533 = vunpack.c.l.b16 %v341
    %v1534 = vunpack.c.h.b16 %v341
    %v1535 = vunpack.c.l.b16 %v342
    %v1536 = vunpack.c.h.b16 %v342
    %v1537 = vunpack.c.l.b16 %v343
    %v1538 = vunpack.c.h.b16 %v343
    %v1539 = vunpack.c.l.b16 %v344
    %v1540 = vunpack.c.h.b16 %v344
    %v1541 = vunpack.c.l.b16 %v345
    %v1542 = vunpack.c.h.b16 %v345
    %v1543 = vunpack.c.l.b16 %v346
    %v1544 = vunpack.c.h.b16 %v346
    %v1545 = vunpack.c.l.b16 %v347
    %v1546 = vunpack.c.h.b16 %v347
    %v1547 = vunpack.c.l.b16 %v348
    %v1548 = vunpack.c.h.b16 %v348
    %v1549 = vunpack.c.l.b16 %v349
    %v1550 = vunpack.c.h.b16 %v349
    %v1551 = vunpack.c.l.b16 %v350
    %v1552 = vunpack.c.h.b16 %v350
    %v1553 = vunpack.c.l.b16 %v351
    %v1554 = vunpack.c.h.b16 %v351
    %v1555 = vunpack.c.l.b16 %v352
    %v1556 = vunpack.c.h.b16 %v352
    %v1557 = vunpack.c.l.b16 %v353
    %v1558 = vunpack.c.h.b16 %v353
    %v1559 = vunpack.c.l.b16 %v354
    %v1560 = vunpack.c.h.b16 %v354
    %v1561 = vunpack.c.l.b16 %v355
    %v1562 = vunpack.c.h.b16 %v355
    %v1563 = vunpack.c.l.b16 %v356
    %v1564 = vunpack.c.h.b16 %v356
    %v1565 = vunpack.c.l.b16 %v357
    %v1566 = vunpack.c.h.b16 %v357
    %v1567 = vunpack.c.l.b16 %v358
    %v1568 = vunpack.c.h.b16 %v358
    %v1569 = vunpack.c.l.b16 %v359
    %v1570 = vunpack.c.h.b16 %v359
    %v1571 = vunpack.c.l.b16 %v360
    %v1572 = vunpack.c.h.b16 %v360
    %v1573 = vunpack.c.l.b16 %v361
    %v1574 = vunpack.c.h.b16 %v361
    %v1575 = vunpack.c.l.b16 %v362
    %v1576 = vunpack.c.h.b16 %v362
    %v1577 = vunpack.c.l.b16 %v363
    %v1578 = vunpack.c.h.b16 %v363
    %v1579 = vunpack.c.l.b16 %v364
    %v1580 = vunpack.c.h.b16 %v364
    %v1581 = vunpack.c.l.b16 %v365
    %v1582 = vunpack.c.h.b16 %v365
    %v1583 = vunpack.c.l.b16 %v366
    %v1584 = vunpack.c.h.b16 %v366
    %v1585 = vunpack.c.l.b16 %v367
    %v1586 = vunpack.c.h.b16 %v367
    %v1587 = vunpack.c.l.b16 %v368
    %v1588 = vunpack.c.h.b16 %v368
    %v1589 = vunpack.c.l.b16 %v369
    %v1590 = vunpack.c.h.b16 %v369
    %v1591 = vunpack.c.l.b16 %v370
    %v1592 = vunpack.c.h.b16 %v370
    %v1593 = vunpack.c.l.b16 %v371
    %v1594 = vunpack.c.h.b16 %v371
    %v1595 = vunpack.c.l.b16 %v372
    %v1596 = vunpack.c.h.b16 %v372
    %v1597 = vunpack.c.l.b16 %v373
    %v1598 = vunpack.c.h.b16 %v373
    %v1599 = vunpack.c.l.b16 %v374
    %v1600 = vunpack.c.h.b16 %v374
    %v1601 = vunpack.c.l.b16 %v375
    %v1602 = vunpack.c.h.b16 %v375
    %v1603 = vunpack.c.l.b16 %v376
    %v1604 = vunpack.c.h.b16 %v376
    %v1605 = vunpack.c.l.b16 %v377
    %v1606 = vunpack.c.h.b16 %v377
    %v1607 = vunpack.c.l.b16 %v378
    %v1608 = vunpack.c.h.b16 %v378
    %v1609 = vunpack.c.l.b16 %v379
    %v1610 = vunpack.c.h.b16 %v379
    %v1611 = vunpack.c.l.b16 %v380
    %v1612 = vunpack.c.h.b16 %v380
    %v1613 = vunpack.c.l.b16 %v381
    %v1614 = vunpack.c.h.b16 %v381
    %v1615 = vunpack.c.l.b16 %v382
    %v1616 = vunpack.c.h.b16 %v382
    %v1617 = vunpack.c.l.b16 %v383
    %v1618 = vunpack.c.h.b16 %v383
    %v1619 = vunpack.c.l.b16 %v384
    %v1620 = vunpack.c.h.b16 %v384
    %v1621 = vunpack.c.l.b16 %v385
    %v1622 = vunpack.c.h.b16 %v385
    %v1623 = vunpack.c.l.b16 %v386
    %v1624 = vunpack.c.h.b16 %v386
    %v1625 = vunpack.c.l.b16 %v387
    %v1626 = vunpack.c.h.b16 %v387
    %v1627 = vunpack.c.l.b16 %v388
    %v1628 = vunpack.c.h.b16 %v388
    %v1629 = vunpack.c.l.b16 %v389
    %v1630 = vunpack.c.h.b16 %v389
    %v1631 = vunpack.c.l.b16 %v390
    %v1632 = vunpack.c.h.b16 %v390
    %v1633 = vunpack.c.l.b16 %v391
    %v1634 = vunpack.c.h.b16 %v391
    %v1635 = vunpack.c.l.b16 %v392
    %v1636 = vunpack.c.h.b16 %v392
    %v1637 = vunpack.c.l.b16 %v393
    %v1638 = vunpack.c.h.b16 %v393
    %v1639 = vunpack.c.l.b16 %v394
    %v1640 = vunpack.c.h.b16 %v394
    %v1641 = vunpack.c.l.b16 %v395
    %v1642 = vunpack.c.h.b16 %v395
    %v1643 = vunpack.c.l.b16 %v396
    %v1644 = vunpack.c.h.b16 %v396
    %v1645 = vunpack.c.l.b16 %v397
    %v1646 = vunpack.c.h.b16 %v397
    %v1647 = vunpack.c.l.b16 %v398
    %v1648 = vunpack.c.h.b16 %v398
    %v1649 = vunpack.c.l.b16 %v399
    %v1650 = vunpack.c.h.b16 %v399
    %v1651 = vunpack.c.l.b16 %v400
    %v1652 = vunpack.c.h.b16 %v400
    %v1653 = vunpack.c.l.b16 %v401
    %v1654 = vunpack.c.h.b16 %v401
    %v1655 = vunpack.c.l.b16 %v402
    %v1656 = vunpack.c.h.b16 %v402
    %v1657 = vunpack.c.l.b16 %v403
    %v1658 = vunpack.c.h.b16 %v403
    %v1659 = vunpack.c.l.b16 %v404
    %v1660 = vunpack.c.h.b16 %v404
    %v1661 = vunpack.c.l.b16 %v405
    %v1662 = vunpack.c.h.b16 %v405
    %v1663 = vunpack.c.l.b16 %v406
    %v1664 = vunpack.c.h.b16 %v406
    %v1665 = vunpack.c.l.b16 %v407
    %v1666 = vunpack.c.h.b16 %v407
    %v1667 = vunpack.c.l.b16 %v408
    %v1668 = vunpack.c.h.b16 %v408
    %v1669 = vunpack.c.l.b16 %v409
    %v1670 = vunpack.c.h.b16 %v409
    %v1671 = vunpack.c.l.b16 %v410
    %v1672 = vunpack.c.h.b16 %v410
    %v1673 = vunpack.c.l.b16 %v411
    %v1674 = vunpack.c.h.b16 %v411
    %v1675 = vunpack.c.l.b16 %v412
    %v1676 = vunpack.c.h.b16 %v412
    %v1677 = vunpack.c.l.b16 %v413
    %v1678 = vunpack.c.h.b16 %v413
    %v1679 = vunpack.c.l.b16 %v414
    %v1680 = vunpack.c.h.b16 %v414
    %v1681 = vunpack.c.l.b16 %v415
    %v1682 = vunpack.c.h.b16 %v415
    %v1683 = vunpack.c.l.b16 %v416
    %v1684 = vunpack.c.h.b16 %v416
    %v1685 = vunpack.c.l.b16 %v417
    %v1686 = vunpack.c.h.b16 %v417
    %v1687 = vunpack.c.l.b16 %v418
    %v1688 = vunpack.c.h.b16 %v418
    %v1689 = vunpack.c.l.b16 %v419
    %v1690 = vunpack.c.h.b16 %v419
    %v1691 = vunpack.c.l.b16 %v420
    %v1692 = vunpack.c.h.b16 %v420
    %v1693 = vunpack.c.l.b16 %v421
    %v1694 = vunpack.c.h.b16 %v421
    %v1695 = vunpack.c.l.b16 %v422
    %v1696 = vunpack.c.h.b16 %v422
    %v1697 = vunpack.c.l.b16 %v423
    %v1698 = vunpack.c.h.b16 %v423
    %v1699 = vunpack.c.l.b16 %v424
    %v1700 = vunpack.c.h.b16 %v424
    %v1701 = vunpack.c.l.b16 %v425
    %v1702 = vunpack.c.h.b16 %v425
    %v1703 = vunpack.c.l.b16 %v426
    %v1704 = vunpack.c.h.b16 %v426
    %v1705 = vunpack.c.l.b16 %v427
    %v1706 = vunpack.c.h.b16 %v427
    %v1707 = vunpack.c.l.b16 %v428
    %v1708 = vunpack.c.h.b16 %v428
    %v1709 = vunpack.c.l.b16 %v429
    %v1710 = vunpack.c.h.b16 %v429
    %v1711 = vunpack.c.l.b16 %v430
    %v1712 = vunpack.c.h.b16 %v430
    %v1713 = vunpack.c.l.b16 %v431
    %v1714 = vunpack.c.h.b16 %v431
    %v1715 = vunpack.c.l.b16 %v432
    %v1716 = vunpack.c.h.b16 %v432
    %v1717 = vunpack.c.l.b16 %v433
    %v1718 = vunpack.c.h.b16 %v433
    %v1719 = vunpack.c.l.b16 %v434
    %v1720 = vunpack.c.h.b16 %v434
    %v1721 = vunpack.c.l.b16 %v435
    %v1722 = vunpack.c.h.b16 %v435
    %v1723 = vunpack.c.l.b16 %v436
    %v1724 = vunpack.c.h.b16 %v436
    %v1725 = vunpack.c.l.b16 %v437
    %v1726 = vunpack.c.h.b16 %v437
    %v1727 = vunpack.c.l.b16 %v438
    %v1728 = vunpack.c.h.b16 %v438
    %v1729 = vunpack.c.l.b16 %v439
    %v1730 = vunpack.c.h.b16 %v439
    %v1731 = vunpack.c.l.b16 %v440
    %v1732 = vunpack.c.h.b16 %v440
    %v1733 = vunpack.c.l.b16 %v441
    %v1734 = vunpack.c.h.b16 %v441
    %v1735 = vunpack.c.l.b16 %v442
    %v1736 = vunpack.c.h.b16 %v442
    %v1737 = vunpack.c.l.b16 %v443
    %v1738 = vunpack.c.h.b16 %v443
    %v1739 = vunpack.c.l.b16 %v444
    %v1740 = vunpack.c.h.b16 %v444
    %v1741 = vunpack.c.l.b16 %v445
    %v1742 = vunpack.c.h.b16 %v445
    %v1743 = vunpack.c.l.b16 %v446
    %v1744 = vunpack.c.h.b16 %v446
    %v1745 = vunpack.c.l.b16 %v447
    %v1746 = vunpack.c.h.b16 %v447
    %v1747 = vunpack.c.l.b16 %v448
    %v1748 = vunpack.c.h.b16 %v448
    %v1749 = vunpack.c.l.b16 %v449
    %v1750 = vunpack.c.h.b16 %v449
    %v1751 = vunpack.c.l.b16 %v450
    %v1752 = vunpack.c.h.b16 %v450
    %v1753 = vunpack.c.l.b16 %v451
    %v1754 = vunpack.c.h.b16 %v451
    %v1755 = vunpack.c.l.b16 %v452
    %v1756 = vunpack.c.h.b16 %v452
    %v1757 = vunpack.c.l.b16 %v453
    %v1758 = vunpack.c.h.b16 %v453
    %v1759 = vunpack.c.l.b16 %v454
    %v1760 = vunpack.c.h.b16 %v454
    %v1761 = vunpack.c.l.b16 %v455
    %v1762 = vunpack.c.h.b16 %v455
    %v1763 = vunpack.c.l.b16 %v456
    %v1764 = vunpack.c.h.b16 %v456
    %v1765 = vunpack.c.l.b16 %v457
    %v1766 = vunpack.c.h.b16 %v457
    %v1767 = vunpack.c.l.b16 %v458
    %v1768 = vunpack.c.h.b16 %v458
    %v1769 = vunpack.c.l.b16 %v459
    %v1770 = vunpack.c.h.b16 %v459
    %v1771 = vunpack.c.l.b16 %v460
    %v1772 = vunpack.c.h.b16 %v460
    %v1773 = vunpack.c.l.b16 %v461
    %v1774 = vunpack.c.h.b16 %v461
    %v1775 = vunpack.c.l.b16 %v462
    %v1776 = vunpack.c.h.b16 %v462
    %v1777 = vunpack.c.l.b16 %v463
    %v1778 = vunpack.c.h.b16 %v463
    %v1779 = vunpack.c.l.b16 %v464
    %v1780 = vunpack.c.h.b16 %v464
    %v1781 = vunpack.c.l.b16 %v465
    %v1782 = vunpack.c.h.b16 %v465
    %v1783 = vunpack.c.l.b16 %v466
    %v1784 = vunpack.c.h.b16 %v466
    %v1785 = vunpack.c.l.b16 %v467
    %v1786 = vunpack.c.h.b16 %v467
    %v1787 = vunpack.c.l.b16 %v468
    %v1788 = vunpack.c.h.b16 %v468
    %v1789 = vunpack.c.l.b16 %v469
    %v1790 = vunpack.c.h.b16 %v469
    %v1791 = vunpack.c.l.b16 %v470
    %v1792 = vunpack.c.h.b16 %v470
    %v1793 = vunpack.c.l.b16 %v471
    %v1794 = vunpack.c.h.b16 %v471
    %v1795 = vunpack.c.l.b16 %v472
    %v1796 = vunpack.c.h.b16 %v472
    %v1797 = vunpack.c.l.b16 %v473
    %v1798 = vunpack.c.h.b16 %v473
    %v1799 = vunpack.c.l.b16 %v474
    %v1800 = vunpack.c.h.b16 %v474
    %v1801 = vunpack.c.l.b16 %v475
    %v1802 = vunpack.c.h.b16 %v475
    %v1803 = vunpack.c.l.b16 %v476
    %v1804 = vunpack.c.h.b16 %v476
    %v1805 = vunpack.c.l.b16 %v477
    %v1806 = vunpack.c.h.b16 %v477
    %v1807 = vunpack.c.l.b16 %v478
    %v1808 = vunpack.c.h.b16 %v478
    %v1809 = vunpack.c.l.b16 %v479
    %v1810 = vunpack.c.h.b16 %v479
    %v1811 = vunpack.c.l.b16 %v480
    %v1812 = vunpack.c.h.b16 %v480
    %v1813 = vunpack.c.l.b16 %v481
    %v1814 = vunpack.c.h.b16 %v481
    %v1815 = vunpack.c.l.b16 %v482
    %v1816 = vunpack.c.h.b16 %v482
    %v1817 = vunpack.c.l.b16 %v483
    %v1818 = vunpack.c.h.b16 %v483
    %v1819 = vunpack.c.l.b16 %v484
    %v1820 = vunpack.c.h.b16 %v484
    %v1821 = vunpack.c.l.b16 %v485
    %v1822 = vunpack.c.h.b16 %v485
    %v1823 = vunpack.c.l.b16 %v486
    %v1824 = vunpack.c.h.b16 %v486
    %v1825 = vunpack.c.l.b16 %v487
    %v1826 = vunpack.c.h.b16 %v487
    %v1827 = vunpack.c.l.b16 %v488
    %v1828 = vunpack.c.h.b16 %v488
    %v1829 = vunpack.c.l.b16 %v489
    %v1830 = vunpack.c.h.b16 %v489
    %v1831 = vunpack.c.l.b16 %v490
    %v1832 = vunpack.c.h.b16 %v490
    %v1833 = vunpack.c.l.b16 %v491
    %v1834 = vunpack.c.h.b16 %v491
    %v1835 = vunpack.c.l.b16 %v492
    %v1836 = vunpack.c.h.b16 %v492
    %v1837 = vunpack.c.l.b16 %v493
    %v1838 = vunpack.c.h.b16 %v493
    %v1839 = vunpack.c.l.b16 %v494
    %v1840 = vunpack.c.h.b16 %v494
    %v1841 = vunpack.c.l.b16 %v495
    %v1842 = vunpack.c.h.b16 %v495
    %v1843 = vunpack.c.l.b16 %v496
    %v1844 = vunpack.c.h.b16 %v496
    %v1845 = vunpack.c.l.b16 %v497
    %v1846 = vunpack.c.h.b16 %v497
    %v1847 = vunpack.c.l.b16 %v498
    %v1848 = vunpack.c.h.b16 %v498
    %v1849 = vunpack.c.l.b16 %v499
    %v1850 = vunpack.c.h.b16 %v499
    %v1851 = vunpack.c.l.b16 %v500
    %v1852 = vunpack.c.h.b16 %v500
    %v1853 = vunpack.c.l.b16 %v501
    %v1854 = vunpack.c.h.b16 %v501
    %v1855 = vunpack.c.l.b16 %v502
    %v1856 = vunpack.c.h.b16 %v502
    %v1857 = vunpack.c.l.b16 %v503
    %v1858 = vunpack.c.h.b16 %v503
    %v1859 = vunpack.c.l.b16 %v504
    %v1860 = vunpack.c.h.b16 %v504
    %v1861 = vunpack.c.l.b16 %v505
    %v1862 = vunpack.c.h.b16 %v505
    %v1863 = vunpack.c.l.b16 %v506
    %v1864 = vunpack.c.h.b16 %v506
    %v1865 = vunpack.c.l.b16 %v507
    %v1866 = vunpack.c.h.b16 %v507
    %v1867 = vunpack.c.l.b16 %v508
    %v1868 = vunpack.c.h.b16 %v508
    %v1869 = vunpack.c.l.b16 %v509
    %v1870 = vunpack.c.h.b16 %v509
    %v1871 = vunpack.c.l.b16 %v510
    %v1872 = vunpack.c.h.b16 %v510
    %v1873 = vunpack.c.l.b16 %v511
    %v1874 = vunpack.c.h.b16 %v511
    %v1875 = vunpack.c.l.b16 %v512
    %v1876 = vunpack.c.h.b16 %v512
    %v1877 = vunpack.c.l.b16 %v513
    %v1878 = vunpack.c.h.b16 %v513
    %v1879 = vunpack.c.l.b16 %v514
    %v1880 = vunpack.c.h.b16 %v514
    %v1881 = vunpack.c.l.b16 %v515
    %v1882 = vunpack.c.h.b16 %v515
    %v1883 = vunpack.c.l.b16 %v516
    %v1884 = vunpack.c.h.b16 %v516
    %v1885 = vunpack.c.l.b16 %v517
    %v1886 = vunpack.c.h.b16 %v517
    %v1887 = vunpack.c.l.b16 %v518
    %v1888 = vunpack.c.h.b16 %v518
    %v1889 = vunpack.c.l.b16 %v519
    %v1890 = vunpack.c.h.b16 %v519
    %v1891 = vunpack.c.l.b16 %v520
    %v1892 = vunpack.c.h.b16 %v520
    %v1893 = vunpack.c.l.b16 %v521
    %v1894 = vunpack.c.h.b16 %v521
    %v1895 = vunpack.c.l.b16 %v522
    %v1896 = vunpack.c.h.b16 %v522
    %v1897 = vunpack.c.l.b16 %v523
    %v1898 = vunpack.c.h.b16 %v523
    %v1899 = vunpack.c.l.b16 %v524
    %v1900 = vunpack.c.h.b16 %v524
    %v1901 = vunpack.c.l.b16 %v525
    %v1902 = vunpack.c.h.b16 %v525
    %v1903 = vunpack.c.l.b16 %v526
    %v1904 = vunpack.c.h.b16 %v526
    %v1905 = vunpack.c.l.b16 %v527
    %v1906 = vunpack.c.h.b16 %v527
    %v1907 = vunpack.c.l.b16 %v528
    %v1908 = vunpack.c.h.b16 %v528
    %v1909 = vunpack.c.l.b16 %v529
    %v1910 = vunpack.c.h.b16 %v529
    %v1911 = vunpack.c.l.b16 %v530
    %v1912 = vunpack.c.h.b16 %v530
    %v1913 = vunpack.c.l.b16 %v531
    %v1914 = vunpack.c.h.b16 %v531
    %v1915 = vunpack.c.l.b16 %v532
    %v1916 = vunpack.c.h.b16 %v532
    %v1917 = vunpack.c.l.b16 %v533
    %v1918 = vunpack.c.h.b16 %v533
    %v1919 = vunpack.c.l.b16 %v534
    %v1920 = vunpack.c.h.b16 %v534
    %v1921 = vunpack.c.l.b16 %v535
    %v1922 = vunpack.c.h.b16 %v535
    %v1923 = vunpack.c.l.b16 %v536
    %v1924 = vunpack.c.h.b16 %v536
    %v1925 = vunpack.c.l.b16 %v537
    %v1926 = vunpack.c.h.b16 %v537
    %v1927 = vunpack.c.l.b16 %v538
    %v1928 = vunpack.c.h.b16 %v538
    %v1929 = vunpack.c.l.b16 %v539
    %v1930 = vunpack.c.h.b16 %v539
    %v1931 = vunpack.c.l.b16 %v540
    %v1932 = vunpack.c.h.b16 %v540
    %v1933 = vunpack.c.l.b16 %v541
    %v1934 = vunpack.c.h.b16 %v541
    %v1935 = vunpack.c.l.b16 %v542
    %v1936 = vunpack.c.h.b16 %v542
    %v1937 = vunpack.c.l.b16 %v543
    %v1938 = vunpack.c.h.b16 %v543
    %v1939 = vunpack.c.l.b16 %v544
    %v1940 = vunpack.c.h.b16 %v544
    %v1941 = vunpack.c.l.b16 %v545
    %v1942 = vunpack.c.h.b16 %v545
    %v1943 = vunpack.c.l.b16 %v546
    %v1944 = vunpack.c.h.b16 %v546
    %v1945 = vunpack.c.l.b16 %v547
    %v1946 = vunpack.c.h.b16 %v547
    %v1947 = vunpack.c.l.b16 %v548
    %v1948 = vunpack.c.h.b16 %v548
    %v1949 = vunpack.c.l.b16 %v549
    %v1950 = vunpack.c.h.b16 %v549
    %v1951 = vunpack.c.l.b16 %v550
    %v1952 = vunpack.c.h.b16 %v550
    %v1953 = vunpack.c.l.b16 %v551
    %v1954 = vunpack.c.h.b16 %v551
    %v1955 = vunpack.c.l.b16 %v552
    %v1956 = vunpack.c.h.b16 %v552
    %v1957 = vunpack.c.l.b16 %v553
    %v1958 = vunpack.c.h.b16 %v553
    %v1959 = vunpack.c.l.b16 %v554
    %v1960 = vunpack.c.h.b16 %v554
    %v1961 = vunpack.c.l.b16 %v555
    %v1962 = vunpack.c.h.b16 %v555
    %v1963 = vunpack.c.l.b16 %v556
    %v1964 = vunpack.c.h.b16 %v556
    %v1965 = vunpack.c.l.b16 %v557
    %v1966 = vunpack.c.h.b16 %v557
    %v1967 = vunpack.c.l.b16 %v558
    %v1968 = vunpack.c.h.b16 %v558
    %v1969 = vunpack.c.l.b16 %v559
    %v1970 = vunpack.c.h.b16 %v559
    %v1971 = vunpack.c.l.b16 %v560
    %v1972 = vunpack.c.h.b16 %v560
    %v1973 = vunpack.c.l.b16 %v561
    %v1974 = vunpack.c.h.b16 %v561
    %v1975 = vunpack.c.l.b16 %v562
    %v1976 = vunpack.c.h.b16 %v562
    %v1977 = vunpack.c.l.b16 %v563
    %v1978 = vunpack.c.h.b16 %v563
    %v1979 = vunpack.c.l.b16 %v564
    %v1980 = vunpack.c.h.b16 %v564
    %v1981 = vunpack.c.l.b16 %v565
    %v1982 = vunpack.c.h.b16 %v565
    %v1983 = vunpack.c.l.b16 %v566
    %v1984 = vunpack.c.h.b16 %v566
    %v1985 = vunpack.c.l.b16 %v567
    %v1986 = vunpack.c.h.b16 %v567
    %v1987 = vunpack.c.l.b16 %v568
    %v1988 = vunpack.c.h.b16 %v568
    %v1989 = vunpack.c.l.b16 %v569
    %v1990 = vunpack.c.h.b16 %v569
    %v1991 = vunpack.c.l.b16 %v570
    %v1992 = vunpack.c.h.b16 %v570
    %v1993 = vunpack.c.l.b16 %v571
    %v1994 = vunpack.c.h.b16 %v571
    %v1995 = vunpack.c.l.b16 %v572
    %v1996 = vunpack.c.h.b16 %v572
    %v1997 = vunpack.c.l.b16 %v573
    %v1998 = vunpack.c.h.b16 %v573
    %v1999 = vunpack.c.l.b16 %v574
    %v2000 = vunpack.c.h.b16 %v574
    %v2001 = vunpack.c.l.b16 %v575
    %v2002 = vunpack.c.h.b16 %v575
    %v2003 = vunpack.c.l.b16 %v576
    %v2004 = vunpack.c.h.b16 %v576
    %v2005 = vunpack.c.l.b16 %v577
    %v2006 = vunpack.c.h.b16 %v577
    %v2007 = vunpack.c.l.b16 %v578
    %v2008 = vunpack.c.h.b16 %v578
    %v2009 = vunpack.c.l.b16 %v579
    %v2010 = vunpack.c.h.b16 %v579
    %v2011 = vunpack.c.l.b16 %v580
    %v2012 = vunpack.c.h.b16 %v580
    %v2013 = vunpack.c.l.b16 %v581
    %v2014 = vunpack.c.h.b16 %v581
    %v2015 = vunpack.c.l.b16 %v582
    %v2016 = vunpack.c.h.b16 %v582
    %v2017 = vunpack.c.l.b16 %v583
    %v2018 = vunpack.c.h.b16 %v583
    %v2019 = vunpack.c.l.b16 %v584
    %v2020 = vunpack.c.h.b16 %v584
    %v2021 = vunpack.c.l.b16 %v585
    %v2022 = vunpack.c.h.b16 %v585
    %v2023 = vunpack.c.l.b16 %v586
    %v2024 = vunpack.c.h.b16 %v586
    %v2025 = vunpack.c.l.b16 %v587
    %v2026 = vunpack.c.h.b16 %v587
    %v2027 = vunpack.c.l.b16 %v588
    %v2028 = vunpack.c.h.b16 %v588
    %v2029 = vunpack.c.l.b16 %v589
    %v2030 = vunpack.c.h.b16 %v589
    %v2031 = vunpack.c.l.b16 %v590
    %v2032 = vunpack.c.h.b16 %v590
    %v2033 = vunpack.c.l.b16 %v591
    %v2034 = vunpack.c.h.b16 %v591
    %v2035 = vunpack.c.l.b16 %v592
    %v2036 = vunpack.c.h.b16 %v592
    %v2037 = vunpack.c.l.b16 %v593
    %v2038 = vunpack.c.h.b16 %v593
    %v2039 = vunpack.c.l.b16 %v594
    %v2040 = vunpack.c.h.b16 %v594
    %v2041 = vunpack.c.l.b16 %v595
    %v2042 = vunpack.c.h.b16 %v595
    %v2043 = vunpack.c.l.b16 %v596
    %v2044 = vunpack.c.h.b16 %v596
    %v2045 = vunpack.c.l.b16 %v597
    %v2046 = vunpack.c.h.b16 %v597
    %v2047 = vunpack.c.l.b16 %v598
    %v2048 = vunpack.c.h.b16 %v598
    %v2049 = vunpack.c.l.b16 %v599
    %v2050 = vunpack.c.h.b16 %v599
    %v2051 = vunpack.c.l.b16 %v600
    %v2052 = vunpack.c.h.b16 %v600
    %v2053 = vunpack.c.l.b16 %v601
    %v2054 = vunpack.c.h.b16 %v601
    %v2055 = vunpack.c.l.b16 %v602
    %v2056 = vunpack.c.h.b16 %v602
    %v2057 = vunpack.c.l.b16 %v603
    %v2058 = vunpack.c.h.b16 %v603
    %v2059 = vunpack.c.l.b16 %v604
    %v2060 = vunpack.c.h.b16 %v604
    %v2061 = vunpack.c.l.b16 %v605
    %v2062 = vunpack.c.h.b16 %v605
    %v2063 = vunpack.c.l.b16 %v606
    %v2064 = vunpack.c.h.b16 %v606
    %v2065 = vunpack.c.l.b16 %v607
    %v2066 = vunpack.c.h.b16 %v607
    %v2067 = vunpack.c.l.b16 %v608
    %v2068 = vunpack.c.h.b16 %v608
    %v2069 = vunpack.c.l.b16 %v609
    %v2070 = vunpack.c.h.b16 %v609
    %v2071 = vunpack.c.l.b16 %v610
    %v2072 = vunpack.c.h.b16 %v610
    %v2073 = vunpack.c.l.b16 %v611
    %v2074 = vunpack.c.h.b16 %v611
    %v2075 = vunpack.c.l.b16 %v612
    %v2076 = vunpack.c.h.b16 %v612
    %v2077 = vunpack.c.l.b16 %v613
    %v2078 = vunpack.c.h.b16 %v613
    %v2079 = vunpack.c.l.b16 %v614
    %v2080 = vunpack.c.h.b16 %v614
    %v2081 = vunpack.c.l.b16 %v615
    %v2082 = vunpack.c.h.b16 %v615
    %v2083 = vunpack.c.l.b16 %v616
    %v2084 = vunpack.c.h.b16 %v616
    %v2085 = vunpack.c.l.b16 %v617
    %v2086 = vunpack.c.h.b16 %v617
    %v2087 = vunpack.c.l.b16 %v618
    %v2088 = vunpack.c.h.b16 %v618
    %v2089 = vunpack.c.l.b16 %v619
    %v2090 = vunpack.c.h.b16 %v619
    %v2091 = vunpack.c.l.b16 %v620
    %v2092 = vunpack.c.h.b16 %v620
    %v2093 = vunpack.c.l.b16 %v621
    %v2094 = vunpack.c.h.b16 %v621
    %v2095 = vunpack.c.l.b16 %v622
    %v2096 = vunpack.c.h.b16 %v622
    %v2097 = vunpack.c.l.b16 %v623
    %v2098 = vunpack.c.h.b16 %v623
    %v2099 = vunpack.c.l.b16 %v624
    %v2100 = vunpack.c.h.b16 %v624
    %v2101 = vunpack.c.l.b16 %v625
    %v2102 = vunpack.c.h.b16 %v625
    %v2103 = vunpack.c.l.b16 %v626
    %v2104 = vunpack.c.h.b16 %v626
    %v2105 = vunpack.c.l.b16 %v627
    %v2106 = vunpack.c.h.b16 %v627
    %v2107 = vunpack.c.l.b16 %v628
    %v2108 = vunpack.c.h.b16 %v628
    %v2109 = vunpack.c.l.b16 %v629
    %v2110 = vunpack.c.h.b16 %v629
    %v2111 = vunpack.c.l.b16 %v630
    %v2112 = vunpack.c.h.b16 %v630
    %v2113 = vunpack.c.l.b16 %v631
    %v2114 = vunpack.c.h.b16 %v631
    %v2115 = vunpack.c.l.b16 %v632
    %v2116 = vunpack.c.h.b16 %v632
    %v2117 = vunpack.c.l.b16 %v633
    %v2118 = vunpack.c.h.b16 %v633
    %v2119 = vunpack.c.l.b16 %v634
    %v2120 = vunpack.c.h.b16 %v634
    %v2121 = vunpack.c.l.b16 %v635
    %v2122 = vunpack.c.h.b16 %v635
    %v2123 = vunpack.c.l.b16 %v636
    %v2124 = vunpack.c.h.b16 %v636
    %v2125 = vunpack.c.l.b16 %v637
    %v2126 = vunpack.c.h.b16 %v637
    %v2127 = vunpack.c.l.b16 %v638
    %v2128 = vunpack.c.h.b16 %v638
    %v2129 = vunpack.c.l.b16 %v639
    %v2130 = vunpack.c.h.b16 %v639
    %v2131 = vunpack.c.l.b16 %v640
    %v2132 = vunpack.c.h.b16 %v640
    %v2133 = vunpack.c.l.b16 %v641
    %v2134 = vunpack.c.h.b16 %v641
    %v2135 = vunpack.c.l.b16 %v642
    %v2136 = vunpack.c.h.b16 %v642
    %v2137 = vunpack.c.l.b16 %v643
    %v2138 = vunpack.c.h.b16 %v643
    %v2139 = vunpack.c.l.b16 %v644
    %v2140 = vunpack.c.h.b16 %v644
    %v2141 = vunpack.c.l.b16 %v645
    %v2142 = vunpack.c.h.b16 %v645
    %v2143 = vunpack.c.l.b16 %v646
    %v2144 = vunpack.c.h.b16 %v646
    %v2145 = vunpack.c.l.b16 %v647
    %v2146 = vunpack.c.h.b16 %v647
    %v2147 = vunpack.c.l.b16 %v648
    %v2148 = vunpack.c.h.b16 %v648
    %v2149 = vunpack.c.l.b16 %v649
    %v2150 = vunpack.c.h.b16 %v649
    %v2151 = vunpack.c.l.b16 %v650
    %v2152 = vunpack.c.h.b16 %v650
    %v2153 = vunpack.c.l.b16 %v651
    %v2154 = vunpack.c.h.b16 %v651
    %v2155 = vunpack.c.l.b16 %v652
    %v2156 = vunpack.c.h.b16 %v652
    %v2157 = vunpack.c.l.b16 %v653
    %v2158 = vunpack.c.h.b16 %v653
    %v2159 = vunpack.c.l.b16 %v654
    %v2160 = vunpack.c.h.b16 %v654
    %v2161 = vunpack.c.l.b16 %v655
    %v2162 = vunpack.c.h.b16 %v655
    %v2163 = vunpack.c.l.b16 %v656
    %v2164 = vunpack.c.h.b16 %v656
    %v2165 = vunpack.c.l.b16 %v657
    %v2166 = vunpack.c.h.b16 %v657
    %v2167 = vunpack.c.l.b16 %v658
    %v2168 = vunpack.c.h.b16 %v658
    %v2169 = vunpack.c.l.b16 %v659
    %v2170 = vunpack.c.h.b16 %v659
    %v2171 = vunpack.c.l.b16 %v660
    %v2172 = vunpack.c.h.b16 %v660
    %v2173 = vunpack.c.l.b16 %v661
    %v2174 = vunpack.c.h.b16 %v661
    %v2175 = vunpack.c.l.b16 %v662
    %v2176 = vunpack.c.h.b16 %v662
    %v2177 = vunpack.c.l.b16 %v663
    %v2178 = vunpack.c.h.b16 %v663
    %v2179 = vunpack.c.l.b16 %v664
    %v2180 = vunpack.c.h.b16 %v664
    %v2181 = vunpack.c.l.b16 %v665
    %v2182 = vunpack.c.h.b16 %v665
    %v2183 = vunpack.c.l.b16 %v666
    %v2184 = vunpack.c.h.b16 %v666
    %v2185 = vunpack.c.l.b16 %v667
    %v2186 = vunpack.c.h.b16 %v667
    %v2187 = vunpack.c.l.b16 %v668
    %v2188 = vunpack.c.h.b16 %v668
    %v2189 = vunpack.c.l.b16 %v669
    %v2190 = vunpack.c.h.b16 %v669
    %v2191 = vunpack.c.l.b16 %v670
    %v2192 = vunpack.c.h.b16 %v670
    %v2193 = vunpack.c.l.b16 %v671
    %v2194 = vunpack.c.h.b16 %v671
    %v2195 = vunpack.c.l.b16 %v672
    %v2196 = vunpack.c.h.b16 %v672
    %v2197 = vunpack.c.l.b16 %v673
    %v2198 = vunpack.c.h.b16 %v673
    %v2199 = vunpack.c.l.b16 %v674
    %v2200 = vunpack.c.h.b16 %v674
    %v2201 = vunpack.c.l.b16 %v675
    %v2202 = vunpack.c.h.b16 %v675
    %v2203 = vunpack.c.l.b16 %v676
    %v2204 = vunpack.c.h.b16 %v676
    %v2205 = vunpack.c.l.b16 %v677
    %v2206 = vunpack.c.h.b16 %v677
    %v2207 = vunpack.c.l.b16 %v678
    %v2208 = vunpack.c.h.b16 %v678
    %v2209 = vunpack.c.l.b16 %v679
    %v2210 = vunpack.c.h.b16 %v679
    %v2211 = vunpack.c.l.b16 %v680
    %v2212 = vunpack.c.h.b16 %v680
    %v2213 = vunpack.c.l.b16 %v681
    %v2214 = vunpack.c.h.b16 %v681
    %v2215 = vunpack.c.l.b16 %v682
    %v2216 = vunpack.c.h.b16 %v682
    %v2217 = vunpack.c.l.b16 %v683
    %v2218 = vunpack.c.h.b16 %v683
    %v2219 = vunpack.c.l.b16 %v684
    %v2220 = vunpack.c.h.b16 %v684
    %v2221 = vunpack.c.l.b16 %v685
    %v2222 = vunpack.c.h.b16 %v685
    %v2223 = vunpack.c.l.b16 %v686
    %v2224 = vunpack.c.h.b16 %v686
    %v2225 = vunpack.c.l.b16 %v687
    %v2226 = vunpack.c.h.b16 %v687
    %v2227 = vunpack.c.l.b16 %v688
    %v2228 = vunpack.c.h.b16 %v688
    %v2229 = vunpack.c.l.b16 %v689
    %v2230 = vunpack.c.h.b16 %v689
    %v2231 = vunpack.c.l.b16 %v690
    %v2232 = vunpack.c.h.b16 %v690
    %v2233 = vunpack.c.l.b16 %v691
    %v2234 = vunpack.c.h.b16 %v691
    %v2235 = vunpack.c.l.b16 %v692
    %v2236 = vunpack.c.h.b16 %v692
    %v2237 = vunpack.c.l.b16 %v693
    %v2238 = vunpack.c.h.b16 %v693
    %v2239 = vunpack.c.l.b16 %v694
    %v2240 = vunpack.c.h.b16 %v694
    %v2241 = vunpack.c.l.b16 %v695
    %v2242 = vunpack.c.h.b16 %v695
    %v2243 = vunpack.c.l.b16 %v696
    %v2244 = vunpack.c.h.b16 %v696
    %v2245 = vunpack.c.l.b16 %v697
    %v2246 = vunpack.c.h.b16 %v697
    %v2247 = vunpack.c.l.b16 %v698
    %v2248 = vunpack.c.h.b16 %v698
    %v2249 = vunpack.c.l.b16 %v699
    %v2250 = vunpack.c.h.b16 %v699
    %v2251 = vunpack.c.l.b16 %v700
    %v2252 = vunpack.c.h.b16 %v700
    %v2253 = vunpack.c.l.b16 %v701
    %v2254 = vunpack.c.h.b16 %v701
    %v2255 = vunpack.c.l.b16 %v702
    %v2256 = vunpack.c.h.b16 %v702
    %v2257 = vunpack.c.l.b16 %v703
    %v2258 = vunpack.c.h.b16 %v703
    %v2259 = vunpack.c.l.b16 %v704
    %v2260 = vunpack.c.h.b16 %v704
    %v2261 = vunpack.c.l.b16 %v705
    %v2262 = vunpack.c.h.b16 %v705
    %v2263 = vunpack.c.l.b16 %v706
    %v2264 = vunpack.c.h.b16 %v706
    %v2265 = vunpack.c.l.b16 %v707
    %v2266 = vunpack.c.h.b16 %v707
    %v2267 = vunpack.c.l.b16 %v708
    %v2268 = vunpack.c.h.b16 %v708
    %v2269 = vunpack.c.l.b16 %v709
    %v2270 = vunpack.c.h.b16 %v709
    %v2271 = vunpack.c.l.b16 %v710
    %v2272 = vunpack.c.h.b16 %v710
    %v2273 = vunpack.c.l.b16 %v711
    %v2274 = vunpack.c.h.b16 %v711
    %v2275 = vunpack.c.l.b16 %v712
    %v2276 = vunpack.c.h.b16 %v712
    %v2277 = vpack.c.b16 %v1261, %v1253
    %v2278 = vpack.c.b16 %v1262, %v1254
    %v2279 = vpack.c.b16 %v1263, %v1255
    %v2280 = vpack.c.b16 %v1264, %v1256
    %v2281 = vpack.c.b16 %v1265, %v1257
    %v2282 = vpack.c.b16 %v1266, %v1258
    %v2283 = vpack.c.b16 %v1267, %v1259
    %v2284 = vpack.c.b16 %v1268, %v1260
    %v2285 = vpack.c.b16 %v1277, %v1269
    %v2286 = vpack.c.b16 %v1278, %v1270
    %v2287 = vpack.c.b16 %v1279, %v1271
    %v2288 = vpack.c.b16 %v1280, %v1272
    %v2289 = vpack.c.b16 %v1281, %v1273
    %v2290 = vpack.c.b16 %v1282, %v1274
    %v2291 = vpack.c.b16 %v1283, %v1275
    %v2292 = vpack.c.b16 %v1284, %v1276
    %v2293 = vpack.c.b16 %v1293, %v1285
    %v2294 = vpack.c.b16 %v1294, %v1286
    %v2295 = vpack.c.b16 %v1295, %v1287
    %v2296 = vpack.c.b16 %v1296, %v1288
    %v2297 = vpack.c.b16 %v1297, %v1289
    %v2298 = vpack.c.b16 %v1298, %v1290
    %v2299 = vpack.c.b16 %v1299, %v1291
    %v2300 = vpack.c.b16 %v1300, %v1292
    %v2301 = vpack.c.b16 %v1309, %v1301
    %v2302 = vpack.c.b16 %v1310, %v1302
    %v2303 = vpack.c.b16 %v1311, %v1303
    %v2304 = vpack.c.b16 %v1312, %v1304
    %v2305 = vpack.c.b16 %v1313, %v1305
    %v2306 = vpack.c.b16 %v1314, %v1306
    %v2307 = vpack.c.b16 %v1315, %v1307
    %v2308 = vpack.c.b16 %v1316, %v1308
    %v2309 = vpack.c.b16 %v1325, %v1317
    %v2310 = vpack.c.b16 %v1326, %v1318
    %v2311 = vpack.c.b16 %v1327, %v1319
    %v2312 = vpack.c.b16 %v1328, %v1320
    %v2313 = vpack.c.b16 %v1329, %v1321
    %v2314 = vpack.c.b16 %v1330, %v1322
    %v2315 = vpack.c.b16 %v1331, %v1323
    %v2316 = vpack.c.b16 %v1332, %v1324
    %v2317 = vpack.c.b16 %v1341, %v1333
    %v2318 = vpack.c.b16 %v1342, %v1334
    %v2319 = vpack.c.b16 %v1343, %v1335
    %v2320 = vpack.c.b16 %v1344, %v1336
    %v2321 = vpack.c.b16 %v1345, %v1337
    %v2322 = vpack.c.b16 %v1346, %v1338
    %v2323 = vpack.c.b16 %v1347, %v1339
    %v2324 = vpack.c.b16 %v1348, %v1340
    %v2325 = vpack.c.b16 %v1357, %v1349
    %v2326 = vpack.c.b16 %v1358, %v1350
    %v2327 = vpack.c.b16 %v1359, %v1351
    %v2328 = vpack.c.b16 %v1360, %v1352
    %v2329 = vpack.c.b16 %v1361, %v1353
    %v2330 = vpack.c.b16 %v1362, %v1354
    %v2331 = vpack.c.b16 %v1363, %v1355
    %v2332 = vpack.c.b16 %v1364, %v1356
    %v2333 = vpack.c.b16 %v1373, %v1365
    %v2334 = vpack.c.b16 %v1374, %v1366
    %v2335 = vpack.c.b16 %v1375, %v1367
    %v2336 = vpack.c.b16 %v1376, %v1368
    %v2337 = vpack.c.b16 %v1377, %v1369
    %v2338 = vpack.c.b16 %v1378, %v1370
    %v2339 = vpack.c.b16 %v1379, %v1371
    %v2340 = vpack.c.b16 %v1380, %v1372
    %v2341 = vpack.c.b16 %v1389, %v1381
    %v2342 = vpack.c.b16 %v1390, %v1382
    %v2343 = vpack.c.b16 %v1391, %v1383
    %v2344 = vpack.c.b16 %v1392, %v1384
    %v2345 = vpack.c.b16 %v1393, %v1385
    %v2346 = vpack.c.b16 %v1394, %v1386
    %v2347 = vpack.c.b16 %v1395, %v1387
    %v2348 = vpack.c.b16 %v1396, %v1388
    %v2349 = vpack.c.b16 %v1405, %v1397
    %v2350 = vpack.c.b16 %v1406, %v1398
    %v2351 = vpack.c.b16 %v1407, %v1399
    %v2352 = vpack.c.b16 %v1408, %v1400
    %v2353 = vpack.c.b16 %v1409, %v1401
    %v2354 = vpack.c.b16 %v1410, %v1402
    %v2355 = vpack.c.b16 %v1411, %v1403
    %v2356 = vpack.c.b16 %v1412, %v1404
    %v2357 = vpack.c.b16 %v1421, %v1413
    %v2358 = vpack.c.b16 %v1422, %v1414
    %v2359 = vpack.c.b16 %v1423, %v1415
    %v2360 = vpack.c.b16 %v1424, %v1416
    %v2361 = vpack.c.b16 %v1425, %v1417
    %v2362 = vpack.c.b16 %v1426, %v1418
    %v2363 = vpack.c.b16 %v1427, %v1419
    %v2364 = vpack.c.b16 %v1428, %v1420
    %v2365 = vpack.c.b16 %v1437, %v1429
    %v2366 = vpack.c.b16 %v1438, %v1430
    %v2367 = vpack.c.b16 %v1439, %v1431
    %v2368 = vpack.c.b16 %v1440, %v1432
    %v2369 = vpack.c.b16 %v1441, %v1433
    %v2370 = vpack.c.b16 %v1442, %v1434
    %v2371 = vpack.c.b16 %v1443, %v1435
    %v2372 = vpack.c.b16 %v1444, %v1436
    %v2373 = vpack.c.b16 %v1453, %v1445
    %v2374 = vpack.c.b16 %v1454, %v1446
    %v2375 = vpack.c.b16 %v1455, %v1447
    %v2376 = vpack.c.b16 %v1456, %v1448
    %v2377 = vpack.c.b16 %v1457, %v1449
    %v2378 = vpack.c.b16 %v1458, %v1450
    %v2379 = vpack.c.b16 %v1459, %v1451
    %v2380 = vpack.c.b16 %v1460, %v1452
    %v2381 = vpack.c.b16 %v1469, %v1461
    %v2382 = vpack.c.b16 %v1470, %v1462
    %v2383 = vpack.c.b16 %v1471, %v1463
    %v2384 = vpack.c.b16 %v1472, %v1464
    %v2385 = vpack.c.b16 %v1473, %v1465
    %v2386 = vpack.c.b16 %v1474, %v1466
    %v2387 = vpack.c.b16 %v1475, %v1467
    %v2388 = vpack.c.b16 %v1476, %v1468
    %v2389 = vpack.c.b16 %v1485, %v1477
    %v2390 = vpack.c.b16 %v1486, %v1478
    %v2391 = vpack.c.b16 %v1487, %v1479
    %v2392 = vpack.c.b16 %v1488, %v1480
    %v2393 = vpack.c.b16 %v1489, %v1481
    %v2394 = vpack.c.b16 %v1490, %v1482
    %v2395 = vpack.c.b16 %v1491, %v1483
    %v2396 = vpack.c.b16 %v1492, %v1484
    %v2397 = vpack.c.b16 %v1501, %v1493
    %v2398 = vpack.c.b16 %v1502, %v1494
    %v2399 = vpack.c.b16 %v1503, %v1495
    %v2400 = vpack.c.b16 %v1504, %v1496
    %v2401 = vpack.c.b16 %v1505, %v1497
    %v2402 = vpack.c.b16 %v1506, %v1498
    %v2403 = vpack.c.b16 %v1507, %v1499
    %v2404 = vpack.c.b16 %v1508, %v1500
    %v2405 = vpack.c.b16 %v1517, %v1509
    %v2406 = vpack.c.b16 %v1518, %v1510
    %v2407 = vpack.c.b16 %v1519, %v1511
    %v2408 = vpack.c.b16 %v1520, %v1512
    %v2409 = vpack.c.b16 %v1521, %v1513
    %v2410 = vpack.c.b16 %v1522, %v1514
    %v2411 = vpack.c.b16 %v1523, %v1515
    %v2412 = vpack.c.b16 %v1524, %v1516
    %v2413 = vpack.c.b16 %v1533, %v1525
    %v2414 = vpack.c.b16 %v1534, %v1526
    %v2415 = vpack.c.b16 %v1535, %v1527
    %v2416 = vpack.c.b16 %v1536, %v1528
    %v2417 = vpack.c.b16 %v1537, %v1529
    %v2418 = vpack.c.b16 %v1538, %v1530
    %v2419 = vpack.c.b16 %v1539, %v1531
    %v2420 = vpack.c.b16 %v1540, %v1532
    %v2421 = vpack.c.b16 %v1549, %v1541
    %v2422 = vpack.c.b16 %v1550, %v1542
    %v2423 = vpack.c.b16 %v1551, %v1543
    %v2424 = vpack.c.b16 %v1552, %v1544
    %v2425 = vpack.c.b16 %v1553, %v1545
    %v2426 = vpack.c.b16 %v1554, %v1546
    %v2427 = vpack.c.b16 %v1555, %v1547
    %v2428 = vpack.c.b16 %v1556, %v1548
    %v2429 = vpack.c.b16 %v1565, %v1557
    %v2430 = vpack.c.b16 %v1566, %v1558
    %v2431 = vpack.c.b16 %v1567, %v1559
    %v2432 = vpack.c.b16 %v1568, %v1560
    %v2433 = vpack.c.b16 %v1569, %v1561
    %v2434 = vpack.c.b16 %v1570, %v1562
    %v2435 = vpack.c.b16 %v1571, %v1563
    %v2436 = vpack.c.b16 %v1572, %v1564
    %v2437 = vpack.c.b16 %v1581, %v1573
    %v2438 = vpack.c.b16 %v1582, %v1574
    %v2439 = vpack.c.b16 %v1583, %v1575
    %v2440 = vpack.c.b16 %v1584, %v1576
    %v2441 = vpack.c.b16 %v1585, %v1577
    %v2442 = vpack.c.b16 %v1586, %v1578
    %v2443 = vpack.c.b16 %v1587, %v1579
    %v2444 = vpack.c.b16 %v1588, %v1580
    %v2445 = vpack.c.b16 %v1597, %v1589
    %v2446 = vpack.c.b16 %v1598, %v1590
    %v2447 = vpack.c.b16 %v1599, %v1591
    %v2448 = vpack.c.b16 %v1600, %v1592
    %v2449 = vpack.c.b16 %v1601, %v1593
    %v2450 = vpack.c.b16 %v1602, %v1594
    %v2451 = vpack.c.b16 %v1603, %v1595
    %v2452 = vpack.c.b16 %v1604, %v1596
    %v2453 = vpack.c.b16 %v1613, %v1605
    %v2454 = vpack.c.b16 %v1614, %v1606
    %v2455 = vpack.c.b16 %v1615, %v1607
    %v2456 = vpack.c.b16 %v1616, %v1608
    %v2457 = vpack.c.b16 %v1617, %v1609
    %v2458 = vpack.c.b16 %v1618, %v1610
    %v2459 = vpack.c.b16 %v1619, %v1611
    %v2460 = vpack.c.b16 %v1620, %v1612
    %v2461 = vpack.c.b16 %v1629, %v1621
    %v2462 = vpack.c.b16 %v1630, %v1622
    %v2463 = vpack.c.b16 %v1631, %v1623
    %v2464 = vpack.c.b16 %v1632, %v1624
    %v2465 = vpack.c.b16 %v1633, %v1625
    %v2466 = vpack.c.b16 %v1634, %v1626
    %v2467 = vpack.c.b16 %v1635, %v1627
    %v2468 = vpack.c.b16 %v1636, %v1628
    %v2469 = vpack.c.b16 %v1645, %v1637
    %v2470 = vpack.c.b16 %v1646, %v1638
    %v2471 = vpack.c.b16 %v1647, %v1639
    %v2472 = vpack.c.b16 %v1648, %v1640
    %v2473 = vpack.c.b16 %v1649, %v1641
    %v2474 = vpack.c.b16 %v1650, %v1642
    %v2475 = vpack.c.b16 %v1651, %v1643
    %v2476 = vpack.c.b16 %v1652, %v1644
    %v2477 = vpack.c.b16 %v1661, %v1653
    %v2478 = vpack.c.b16 %v1662, %v1654
    %v2479 = vpack.c.b16 %v1663, %v1655
    %v2480 = vpack.c.b16 %v1664, %v1656
    %v2481 = vpack.c.b16 %v1665, %v1657
    %v2482 = vpack.c.b16 %v1666, %v1658
    %v2483 = vpack.c.b16 %v1667, %v1659
    %v2484 = vpack.c.b16 %v1668, %v1660
    %v2485 = vpack.c.b16 %v1677, %v1669
    %v2486 = vpack.c.b16 %v1678, %v1670
    %v2487 = vpack.c.b16 %v1679, %v1671
    %v2488 = vpack.c.b16 %v1680, %v1672
    %v2489 = vpack.c.b16 %v1681, %v1673
    %v2490 = vpack.c.b16 %v1682, %v1674
    %v2491 = vpack.c.b16 %v1683, %v1675
    %v2492 = vpack.c.b16 %v1684, %v1676
    %v2493 = vpack.c.b16 %v1693, %v1685
    %v2494 = vpack.c.b16 %v1694, %v1686
    %v2495 = vpack.c.b16 %v1695, %v1687
    %v2496 = vpack.c.b16 %v1696, %v1688
    %v2497 = vpack.c.b16 %v1697, %v1689
    %v2498 = vpack.c.b16 %v1698, %v1690
    %v2499 = vpack.c.b16 %v1699, %v1691
    %v2500 = vpack.c.b16 %v1700, %v1692
    %v2501 = vpack.c.b16 %v1709, %v1701
    %v2502 = vpack.c.b16 %v1710, %v1702
    %v2503 = vpack.c.b16 %v1711, %v1703
    %v2504 = vpack.c.b16 %v1712, %v1704
    %v2505 = vpack.c.b16 %v1713, %v1705
    %v2506 = vpack.c.b16 %v1714, %v1706
    %v2507 = vpack.c.b16 %v1715, %v1707
    %v2508 = vpack.c.b16 %v1716, %v1708
    %v2509 = vpack.c.b16 %v1725, %v1717
    %v2510 = vpack.c.b16 %v1726, %v1718
    %v2511 = vpack.c.b16 %v1727, %v1719
    %v2512 = vpack.c.b16 %v1728, %v1720
    %v2513 = vpack.c.b16 %v1729, %v1721
    %v2514 = vpack.c.b16 %v1730, %v1722
    %v2515 = vpack.c.b16 %v1731, %v1723
    %v2516 = vpack.c.b16 %v1732, %v1724
    %v2517 = vpack.c.b16 %v1741, %v1733
    %v2518 = vpack.c.b16 %v1742, %v1734
    %v2519 = vpack.c.b16 %v1743, %v1735
    %v2520 = vpack.c.b16 %v1744, %v1736
    %v2521 = vpack.c.b16 %v1745, %v1737
    %v2522 = vpack.c.b16 %v1746, %v1738
    %v2523 = vpack.c.b16 %v1747, %v1739
    %v2524 = vpack.c.b16 %v1748, %v1740
    %v2525 = vpack.c.b16 %v1757, %v1749
    %v2526 = vpack.c.b16 %v1758, %v1750
    %v2527 = vpack.c.b16 %v1759, %v1751
    %v2528 = vpack.c.b16 %v1760, %v1752
    %v2529 = vpack.c.b16 %v1761, %v1753
    %v2530 = vpack.c.b16 %v1762, %v1754
    %v2531 = vpack.c.b16 %v1763, %v1755
    %v2532 = vpack.c.b16 %v1764, %v1756
    %v2533 = vpack.c.b16 %v1773, %v1765
    %v2534 = vpack.c.b16 %v1774, %v1766
    %v2535 = vpack.c.b16 %v1775, %v1767
    %v2536 = vpack.c.b16 %v1776, %v1768
    %v2537 = vpack.c.b16 %v1777, %v1769
    %v2538 = vpack.c.b16 %v1778, %v1770
    %v2539 = vpack.c.b16 %v1779, %v1771
    %v2540 = vpack.c.b16 %v1780, %v1772
    %v2541 = vpack.c.b16 %v1789, %v1781
    %v2542 = vpack.c.b16 %v1790, %v1782
    %v2543 = vpack.c.b16 %v1791, %v1783
    %v2544 = vpack.c.b16 %v1792, %v1784
    %v2545 = vpack.c.b16 %v1793, %v1785
    %v2546 = vpack.c.b16 %v1794, %v1786
    %v2547 = vpack.c.b16 %v1795, %v1787
    %v2548 = vpack.c.b16 %v1796, %v1788
    %v2549 = vpack.c.b16 %v1805, %v1797
    %v2550 = vpack.c.b16 %v1806, %v1798
    %v2551 = vpack.c.b16 %v1807, %v1799
    %v2552 = vpack.c.b16 %v1808, %v1800
    %v2553 = vpack.c.b16 %v1809, %v1801
    %v2554 = vpack.c.b16 %v1810, %v1802
    %v2555 = vpack.c.b16 %v1811, %v1803
    %v2556 = vpack.c.b16 %v1812, %v1804
    %v2557 = vpack.c.b16 %v1821, %v1813
    %v2558 = vpack.c.b16 %v1822, %v1814
    %v2559 = vpack.c.b16 %v1823, %v1815
    %v2560 = vpack.c.b16 %v1824, %v1816
    %v2561 = vpack.c.b16 %v1825, %v1817
    %v2562 = vpack.c.b16 %v1826, %v1818
    %v2563 = vpack.c.b16 %v1827, %v1819
    %v2564 = vpack.c.b16 %v1828, %v1820
    %v2565 = vpack.c.b16 %v1837, %v1829
    %v2566 = vpack.c.b16 %v1838, %v1830
    %v2567 = vpack.c.b16 %v1839, %v1831
    %v2568 = vpack.c.b16 %v1840, %v1832
    %v2569 = vpack.c.b16 %v1841, %v1833
    %v2570 = vpack.c.b16 %v1842, %v1834
    %v2571 = vpack.c.b16 %v1843, %v1835
    %v2572 = vpack.c.b16 %v1844, %v1836
    %v2573 = vpack.c.b16 %v1853, %v1845
    %v2574 = vpack.c.b16 %v1854, %v1846
    %v2575 = vpack.c.b16 %v1855, %v1847
    %v2576 = vpack.c.b16 %v1856, %v1848
    %v2577 = vpack.c.b16 %v1857, %v1849
    %v2578 = vpack.c.b16 %v1858, %v1850
    %v2579 = vpack.c.b16 %v1859, %v1851
    %v2580 = vpack.c.b16 %v1860, %v1852
    %v2581 = vpack.c.b16 %v1869, %v1861
    %v2582 = vpack.c.b16 %v1870, %v1862
    %v2583 = vpack.c.b16 %v1871, %v1863
    %v2584 = vpack.c.b16 %v1872, %v1864
    %v2585 = vpack.c.b16 %v1873, %v1865
    %v2586 = vpack.c.b16 %v1874, %v1866
    %v2587 = vpack.c.b16 %v1875, %v1867
    %v2588 = vpack.c.b16 %v1876, %v1868
    %v2589 = vpack.c.b16 %v1885, %v1877
    %v2590 = vpack.c.b16 %v1886, %v1878
    %v2591 = vpack.c.b16 %v1887, %v1879
    %v2592 = vpack.c.b16 %v1888, %v1880
    %v2593 = vpack.c.b16 %v1889, %v1881
    %v2594 = vpack.c.b16 %v1890, %v1882
    %v2595 = vpack.c.b16 %v1891, %v1883
    %v2596 = vpack.c.b16 %v1892, %v1884
    %v2597 = vpack.c.b16 %v1901, %v1893
    %v2598 = vpack.c.b16 %v1902, %v1894
    %v2599 = vpack.c.b16 %v1903, %v1895
    %v2600 = vpack.c.b16 %v1904, %v1896
    %v2601 = vpack.c.b16 %v1905, %v1897
    %v2602 = vpack.c.b16 %v1906, %v1898
    %v2603 = vpack.c.b16 %v1907, %v1899
    %v2604 = vpack.c.b16 %v1908, %v1900
    %v2605 = vpack.c.b16 %v1917, %v1909
    %v2606 = vpack.c.b16 %v1918, %v1910
    %v2607 = vpack.c.b16 %v1919, %v1911
    %v2608 = vpack.c.b16 %v1920, %v1912
    %v2609 = vpack.c.b16 %v1921, %v1913
    %v2610 = vpack.c.b16 %v1922, %v1914
    %v2611 = vpack.c.b16 %v1923, %v1915
    %v2612 = vpack.c.b16 %v1924, %v1916
    %v2613 = vpack.c.b16 %v1933, %v1925
    %v2614 = vpack.c.b16 %v1934, %v1926
    %v2615 = vpack.c.b16 %v1935, %v1927
    %v2616 = vpack.c.b16 %v1936, %v1928
    %v2617 = vpack.c.b16 %v1937, %v1929
    %v2618 = vpack.c.b16 %v1938, %v1930
    %v2619 = vpack.c.b16 %v1939, %v1931
    %v2620 = vpack.c.b16 %v1940, %v1932
    %v2621 = vpack.c.b16 %v1949, %v1941
    %v2622 = vpack.c.b16 %v1950, %v1942
    %v2623 = vpack.c.b16 %v1951, %v1943
    %v2624 = vpack.c.b16 %v1952, %v1944
    %v2625 = vpack.c.b16 %v1953, %v1945
    %v2626 = vpack.c.b16 %v1954, %v1946
    %v2627 = vpack.c.b16 %v1955, %v1947
    %v2628 = vpack.c.b16 %v1956, %v1948
    %v2629 = vpack.c.b16 %v1965, %v1957
    %v2630 = vpack.c.b16 %v1966, %v1958
    %v2631 = vpack.c.b16 %v1967, %v1959
    %v2632 = vpack.c.b16 %v1968, %v1960
    %v2633 = vpack.c.b16 %v1969, %v1961
    %v2634 = vpack.c.b16 %v1970, %v1962
    %v2635 = vpack.c.b16 %v1971, %v1963
    %v2636 = vpack.c.b16 %v1972, %v1964
    %v2637 = vpack.c.b16 %v1981, %v1973
    %v2638 = vpack.c.b16 %v1982, %v1974
    %v2639 = vpack.c.b16 %v1983, %v1975
    %v2640 = vpack.c.b16 %v1984, %v1976
    %v2641 = vpack.c.b16 %v1985, %v1977
    %v2642 = vpack.c.b16 %v1986, %v1978
    %v2643 = vpack.c.b16 %v1987, %v1979
    %v2644 = vpack.c.b16 %v1988, %v1980
    %v2645 = vpack.c.b16 %v1997, %v1989
    %v2646 = vpack.c.b16 %v1998, %v1990
    %v2647 = vpack.c.b16 %v1999, %v1991
    %v2648 = vpack.c.b16 %v2000, %v1992
    %v2649 = vpack.c.b16 %v2001, %v1993
    %v2650 = vpack.c.b16 %v2002, %v1994
    %v2651 = vpack.c.b16 %v2003, %v1995
    %v2652 = vpack.c.b16 %v2004, %v1996
    %v2653 = vpack.c.b16 %v2013, %v2005
    %v2654 = vpack.c.b16 %v2014, %v2006
    %v2655 = vpack.c.b16 %v2015, %v2007
    %v2656 = vpack.c.b16 %v2016, %v2008
    %v2657 = vpack.c.b16 %v2017, %v2009
    %v2658 = vpack.c.b16 %v2018, %v2010
    %v2659 = vpack.c.b16 %v2019, %v2011
    %v2660 = vpack.c.b16 %v2020, %v2012
    %v2661 = vpack.c.b16 %v2029, %v2021
    %v2662 = vpack.c.b16 %v2030, %v2022
    %v2663 = vpack.c.b16 %v2031, %v2023
    %v2664 = vpack.c.b16 %v2032, %v2024
    %v2665 = vpack.c.b16 %v2033, %v2025
    %v2666 = vpack.c.b16 %v2034, %v2026
    %v2667 = vpack.c.b16 %v2035, %v2027
    %v2668 = vpack.c.b16 %v2036, %v2028
    %v2669 = vpack.c.b16 %v2045, %v2037
    %v2670 = vpack.c.b16 %v2046, %v2038
    %v2671 = vpack.c.b16 %v2047, %v2039
    %v2672 = vpack.c.b16 %v2048, %v2040
    %v2673 = vpack.c.b16 %v2049, %v2041
    %v2674 = vpack.c.b16 %v2050, %v2042
    %v2675 = vpack.c.b16 %v2051, %v2043
    %v2676 = vpack.c.b16 %v2052, %v2044
    %v2677 = vpack.c.b16 %v2061, %v2053
    %v2678 = vpack.c.b16 %v2062, %v2054
    %v2679 = vpack.c.b16 %v2063, %v2055
    %v2680 = vpack.c.b16 %v2064, %v2056
    %v2681 = vpack.c.b16 %v2065, %v2057
    %v2682 = vpack.c.b16 %v2066, %v2058
    %v2683 = vpack.c.b16 %v2067, %v2059
    %v2684 = vpack.c.b16 %v2068, %v2060
    %v2685 = vpack.c.b16 %v2077, %v2069
    %v2686 = vpack.c.b16 %v2078, %v2070
    %v2687 = vpack.c.b16 %v2079, %v2071
    %v2688 = vpack.c.b16 %v2080, %v2072
    %v2689 = vpack.c.b16 %v2081, %v2073
    %v2690 = vpack.c.b16 %v2082, %v2074
    %v2691 = vpack.c.b16 %v2083, %v2075
    %v2692 = vpack.c.b16 %v2084, %v2076
    %v2693 = vpack.c.b16 %v2093, %v2085
    %v2694 = vpack.c.b16 %v2094, %v2086
    %v2695 = vpack.c.b16 %v2095, %v2087
    %v2696 = vpack.c.b16 %v2096, %v2088
    %v2697 = vpack.c.b16 %v2097, %v2089
    %v2698 = vpack.c.b16 %v2098, %v2090
    %v2699 = vpack.c.b16 %v2099, %v2091
    %v2700 = vpack.c.b16 %v2100, %v2092
    %v2701 = vpack.c.b16 %v2109, %v2101
    %v2702 = vpack.c.b16 %v2110, %v2102
    %v2703 = vpack.c.b16 %v2111, %v2103
    %v2704 = vpack.c.b16 %v2112, %v2104
    %v2705 = vpack.c.b16 %v2113, %v2105
    %v2706 = vpack.c.b16 %v2114, %v2106
    %v2707 = vpack.c.b16 %v2115, %v2107
    %v2708 = vpack.c.b16 %v2116, %v2108
    %v2709 = vpack.c.b16 %v2125, %v2117
    %v2710 = vpack.c.b16 %v2126, %v2118
    %v2711 = vpack.c.b16 %v2127, %v2119
    %v2712 = vpack.c.b16 %v2128, %v2120
    %v2713 = vpack.c.b16 %v2129, %v2121
    %v2714 = vpack.c.b16 %v2130, %v2122
    %v2715 = vpack.c.b16 %v2131, %v2123
    %v2716 = vpack.c.b16 %v2132, %v2124
    %v2717 = vpack.c.b16 %v2141, %v2133
    %v2718 = vpack.c.b16 %v2142, %v2134
    %v2719 = vpack.c.b16 %v2143, %v2135
    %v2720 = vpack.c.b16 %v2144, %v2136
    %v2721 = vpack.c.b16 %v2145, %v2137
    %v2722 = vpack.c.b16 %v2146, %v2138
    %v2723 = vpack.c.b16 %v2147, %v2139
    %v2724 = vpack.c.b16 %v2148, %v2140
    %v2725 = vpack.c.b16 %v2157, %v2149
    %v2726 = vpack.c.b16 %v2158, %v2150
    %v2727 = vpack.c.b16 %v2159, %v2151
    %v2728 = vpack.c.b16 %v2160, %v2152
    %v2729 = vpack.c.b16 %v2161, %v2153
    %v2730 = vpack.c.b16 %v2162, %v2154
    %v2731 = vpack.c.b16 %v2163, %v2155
    %v2732 = vpack.c.b16 %v2164, %v2156
    %v2733 = vpack.c.b16 %v2173, %v2165
    %v2734 = vpack.c.b16 %v2174, %v2166
    %v2735 = vpack.c.b16 %v2175, %v2167
    %v2736 = vpack.c.b16 %v2176, %v2168
    %v2737 = vpack.c.b16 %v2177, %v2169
    %v2738 = vpack.c.b16 %v2178, %v2170
    %v2739 = vpack.c.b16 %v2179, %v2171
    %v2740 = vpack.c.b16 %v2180, %v2172
    %v2741 = vpack.c.b16 %v2189, %v2181
    %v2742 = vpack.c.b16 %v2190, %v2182
    %v2743 = vpack.c.b16 %v2191, %v2183
    %v2744 = vpack.c.b16 %v2192, %v2184
    %v2745 = vpack.c.b16 %v2193, %v2185
    %v2746 = vpack.c.b16 %v2194, %v2186
    %v2747 = vpack.c.b16 %v2195, %v2187
    %v2748 = vpack.c.b16 %v2196, %v2188
    %v2749 = vpack.c.b16 %v2205, %v2197
    %v2750 = vpack.c.b16 %v2206, %v2198
    %v2751 = vpack.c.b16 %v2207, %v2199
    %v2752 = vpack.c.b16 %v2208, %v2200
    %v2753 = vpack.c.b16 %v2209, %v2201
    %v2754 = vpack.c.b16 %v2210, %v2202
    %v2755 = vpack.c.b16 %v2211, %v2203
    %v2756 = vpack.c.b16 %v2212, %v2204
    %v2757 = vpack.c.b16 %v2221, %v2213
    %v2758 = vpack.c.b16 %v2222, %v2214
    %v2759 = vpack.c.b16 %v2223, %v2215
    %v2760 = vpack.c.b16 %v2224, %v2216
    %v2761 = vpack.c.b16 %v2225, %v2217
    %v2762 = vpack.c.b16 %v2226, %v2218
    %v2763 = vpack.c.b16 %v2227, %v2219
    %v2764 = vpack.c.b16 %v2228, %v2220
    %v2765 = vpack.c.b16 %v2237, %v2229
    %v2766 = vpack.c.b16 %v2238, %v2230
    %v2767 = vpack.c.b16 %v2239, %v2231
    %v2768 = vpack.c.b16 %v2240, %v2232
    %v2769 = vpack.c.b16 %v2241, %v2233
    %v2770 = vpack.c.b16 %v2242, %v2234
    %v2771 = vpack.c.b16 %v2243, %v2235
    %v2772 = vpack.c.b16 %v2244, %v2236
    %v2773 = vpack.c.b16 %v2253, %v2245
    %v2774 = vpack.c.b16 %v2254, %v2246
    %v2775 = vpack.c.b16 %v2255, %v2247
    %v2776 = vpack.c.b16 %v2256, %v2248
    %v2777 = vpack.c.b16 %v2257, %v2249
    %v2778 = vpack.c.b16 %v2258, %v2250
    %v2779 = vpack.c.b16 %v2259, %v2251
    %v2780 = vpack.c.b16 %v2260, %v2252
    %v2781 = vpack.c.b16 %v2269, %v2261
    %v2782 = vpack.c.b16 %v2270, %v2262
    %v2783 = vpack.c.b16 %v2271, %v2263
    %v2784 = vpack.c.b16 %v2272, %v2264
    %v2785 = vpack.c.b16 %v2273, %v2265
    %v2786 = vpack.c.b16 %v2274, %v2266
    %v2787 = vpack.c.b16 %v2275, %v2267
    %v2788 = vpack.c.b16 %v2276, %v2268
    %3301 = vmatprep.subr.bf16.mxu0 %v2278
    %3302 = vmatpush1.bf16.msra.mxu0 %v2277
    %3303 = vmatprep.subr.bf16.mxu0 %v2286
    %3304 = vmatpush1.bf16.msra.mxu0 %v2285
    %3305 = vmatprep.subr.bf16.mxu0 %v2294
    %3306 = vmatpush1.bf16.msra.mxu0 %v2293
    %3307 = vmatprep.subr.bf16.mxu0 %v2302
    %3308 = vmatpush1.bf16.msra.mxu0 %v2301
    %3309 = vmatprep.subr.bf16.mxu0 %v2310
    %3310 = vmatpush1.bf16.msra.mxu0 %v2309
    %3311 = vmatprep.subr.bf16.mxu0 %v2318
    %3312 = vmatpush1.bf16.msra.mxu0 %v2317
    %3313 = vmatprep.subr.bf16.mxu0 %v2326
    %3314 = vmatpush1.bf16.msra.mxu0 %v2325
    %3315 = vmatprep.subr.bf16.mxu0 %v2334
    %3316 = vmatpush1.bf16.msra.mxu0 %v2333
    %3317 = vmatprep.subr.bf16.mxu0 %v2342
    %3318 = vmatpush1.bf16.msra.mxu0 %v2341
    %3319 = vmatprep.subr.bf16.mxu0 %v2350
    %3320 = vmatpush1.bf16.msra.mxu0 %v2349
    %3321 = vmatprep.subr.bf16.mxu0 %v2358
    %3322 = vmatpush1.bf16.msra.mxu0 %v2357
    %3323 = vmatprep.subr.bf16.mxu0 %v2366
    %3324 = vmatpush1.bf16.msra.mxu0 %v2365
    %3325 = vmatprep.subr.bf16.mxu0 %v2374
    %3326 = vmatpush1.bf16.msra.mxu0 %v2373
    %3327 = vmatprep.subr.bf16.mxu0 %v2382
    %3328 = vmatpush1.bf16.msra.mxu0 %v2381
    %3329 = vmatprep.subr.bf16.mxu0 %v2390
    %3330 = vmatpush1.bf16.msra.mxu0 %v2389
    %3331 = vmatprep.subr.bf16.mxu0 %v2398
    %3332 = vmatpush1.bf16.msra.mxu0 %v2397
    %3333 = vmatprep.mubr.bf16.mxu0 %v726
    %3334 = vmatmul.mubr.bf16.gmra.mrb[0].mxu0 %v725
    %v3335 = vpop.f32.mrb[0].mxu0
    %v3336 = vadd.f32 0.0, %v3335
    %v3337 = vpop.f32.mrb[0].mxu0
    %v3338 = vadd.f32 0.0, %v3337
    %v3339 = vpop.f32.mrb[0].mxu0
    %v3340 = vpop.f32.mrb[0].mxu0
    %3341 = vdwg.mxu0
    %3342 = vmatprep.subr.bf16.mxu0 %v2406
    %3343 = vmatpush1.bf16.msra.mxu0 %v2405
    %3344 = vmatprep.subr.bf16.mxu0 %v2414
    %3345 = vmatpush1.bf16.msra.mxu0 %v2413
    %3346 = vmatprep.subr.bf16.mxu0 %v2422
    %3347 = vmatpush1.bf16.msra.mxu0 %v2421
    %3348 = vmatprep.subr.bf16.mxu0 %v2430
    %3349 = vmatpush1.bf16.msra.mxu0 %v2429
    %3350 = vmatprep.subr.bf16.mxu0 %v2438
    %3351 = vmatpush1.bf16.msra.mxu0 %v2437
    %3352 = vmatprep.subr.bf16.mxu0 %v2446
    %3353 = vmatpush1.bf16.msra.mxu0 %v2445
    %3354 = vmatprep.subr.bf16.mxu0 %v2454
    %3355 = vmatpush1.bf16.msra.mxu0 %v2453
    %3356 = vmatprep.subr.bf16.mxu0 %v2462
    %3357 = vmatpush1.bf16.msra.mxu0 %v2461
    %3358 = vmatprep.subr.bf16.mxu0 %v2470
    %3359 = vmatpush1.bf16.msra.mxu0 %v2469
    %3360 = vmatprep.subr.bf16.mxu0 %v2478
    %3361 = vmatpush1.bf16.msra.mxu0 %v2477
    %3362 = vmatprep.subr.bf16.mxu0 %v2486
    %3363 = vmatpush1.bf16.msra.mxu0 %v2485
    %3364 = vmatprep.subr.bf16.mxu0 %v2494
    %3365 = vmatpush1.bf16.msra.mxu0 %v2493
    %3366 = vmatprep.subr.bf16.mxu0 %v2502
    %3367 = vmatpush1.bf16.msra.mxu0 %v2501
    %3368 = vmatprep.subr.bf16.mxu0 %v2510
    %3369 = vmatpush1.bf16.msra.mxu0 %v2509
    %3370 = vmatprep.subr.bf16.mxu0 %v2518
    %3371 = vmatpush1.bf16.msra.mxu0 %v2517
    %3372 = vmatprep.subr.bf16.mxu0 %v2526
    %3373 = vmatpush1.bf16.msra.mxu0 %v2525
    %3374 = vmatprep.mubr.bf16.mxu0 %v728
    %3375 = vmatmul.mubr.bf16.gmra.mrb[0].mxu0 %v727
    %v3376 = vpop.f32.mrb[0].mxu0
    %v3377 = vadd.f32 %v3336, %v3376
    %v3378 = vpop.f32.mrb[0].mxu0
    %v3379 = vadd.f32 %v3338, %v3378
    %v3380 = vpop.f32.mrb[0].mxu0
    %v3381 = vpop.f32.mrb[0].mxu0
    %3382 = vdwg.mxu0
    %3383 = vmatprep.subr.bf16.mxu0 %v2534
    %3384 = vmatpush1.bf16.msra.mxu0 %v2533
    %3385 = vmatprep.subr.bf16.mxu0 %v2542
    %3386 = vmatpush1.bf16.msra.mxu0 %v2541
    %3387 = vmatprep.subr.bf16.mxu0 %v2550
    %3388 = vmatpush1.bf16.msra.mxu0 %v2549
    %3389 = vmatprep.subr.bf16.mxu0 %v2558
    %3390 = vmatpush1.bf16.msra.mxu0 %v2557
    %3391 = vmatprep.subr.bf16.mxu0 %v2566
    %3392 = vmatpush1.bf16.msra.mxu0 %v2565
    %3393 = vmatprep.subr.bf16.mxu0 %v2574
    %3394 = vmatpush1.bf16.msra.mxu0 %v2573
    %3395 = vmatprep.subr.bf16.mxu0 %v2582
    %3396 = vmatpush1.bf16.msra.mxu0 %v2581
    %3397 = vmatprep.subr.bf16.mxu0 %v2590
    %3398 = vmatpush1.bf16.msra.mxu0 %v2589
    %3399 = vmatprep.subr.bf16.mxu0 %v2598
    %3400 = vmatpush1.bf16.msra.mxu0 %v2597
    %3401 = vmatprep.subr.bf16.mxu0 %v2606
    %3402 = vmatpush1.bf16.msra.mxu0 %v2605
    %3403 = vmatprep.subr.bf16.mxu0 %v2614
    %3404 = vmatpush1.bf16.msra.mxu0 %v2613
    %3405 = vmatprep.subr.bf16.mxu0 %v2622
    %3406 = vmatpush1.bf16.msra.mxu0 %v2621
    %3407 = vmatprep.subr.bf16.mxu0 %v2630
    %3408 = vmatpush1.bf16.msra.mxu0 %v2629
    %3409 = vmatprep.subr.bf16.mxu0 %v2638
    %3410 = vmatpush1.bf16.msra.mxu0 %v2637
    %3411 = vmatprep.subr.bf16.mxu0 %v2646
    %3412 = vmatpush1.bf16.msra.mxu0 %v2645
    %3413 = vmatprep.subr.bf16.mxu0 %v2654
    %3414 = vmatpush1.bf16.msra.mxu0 %v2653
    %3415 = vmatprep.mubr.bf16.mxu0 %v730
    %3416 = vmatmul.mubr.bf16.gmra.mrb[0].mxu0 %v729
    %v3417 = vpop.f32.mrb[0].mxu0
    %v3418 = vadd.f32 %v3377, %v3417
    %v3419 = vpop.f32.mrb[0].mxu0
    %v3420 = vadd.f32 %v3379, %v3419
    %v3421 = vpop.f32.mrb[0].mxu0
    %v3422 = vpop.f32.mrb[0].mxu0
    %3423 = vdwg.mxu0
    %3424 = vmatprep.subr.bf16.mxu0 %v2662
    %3425 = vmatpush1.bf16.msra.mxu0 %v2661
    %3426 = vmatprep.subr.bf16.mxu0 %v2670
    %3427 = vmatpush1.bf16.msra.mxu0 %v2669
    %3428 = vmatprep.subr.bf16.mxu0 %v2678
    %3429 = vmatpush1.bf16.msra.mxu0 %v2677
    %3430 = vmatprep.subr.bf16.mxu0 %v2686
    %3431 = vmatpush1.bf16.msra.mxu0 %v2685
    %3432 = vmatprep.subr.bf16.mxu0 %v2694
    %3433 = vmatpush1.bf16.msra.mxu0 %v2693
    %3434 = vmatprep.subr.bf16.mxu0 %v2702
    %3435 = vmatpush1.bf16.msra.mxu0 %v2701
    %3436 = vmatprep.subr.bf16.mxu0 %v2710
    %3437 = vmatpush1.bf16.msra.mxu0 %v2709
    %3438 = vmatprep.subr.bf16.mxu0 %v2718
    %3439 = vmatpush1.bf16.msra.mxu0 %v2717
    %3440 = vmatprep.subr.bf16.mxu0 %v2726
    %3441 = vmatpush1.bf16.msra.mxu0 %v2725
    %3442 = vmatprep.subr.bf16.mxu0 %v2734
    %3443 = vmatpush1.bf16.msra.mxu0 %v2733
    %3444 = vmatprep.subr.bf16.mxu0 %v2742
    %3445 = vmatpush1.bf16.msra.mxu0 %v2741
    %3446 = vmatprep.subr.bf16.mxu0 %v2750
    %3447 = vmatpush1.bf16.msra.mxu0 %v2749
    %3448 = vmatprep.subr.bf16.mxu0 %v2758
    %3449 = vmatpush1.bf16.msra.mxu0 %v2757
    %3450 = vmatprep.subr.bf16.mxu0 %v2766
    %3451 = vmatpush1.bf16.msra.mxu0 %v2765
    %3452 = vmatprep.subr.bf16.mxu0 %v2774
    %3453 = vmatpush1.bf16.msra.mxu0 %v2773
    %3454 = vmatprep.subr.bf16.mxu0 %v2782
    %3455 = vmatpush1.bf16.msra.mxu0 %v2781
    %3456 = vmatprep.mubr.bf16.mxu0 %v732
    %3457 = vmatmul.mubr.bf16.gmra.mrb[0].mxu0 %v731
    %v3458 = vpop.f32.mrb[0].mxu0
    %v3459 = vadd.f32 %v3418, %v3458
    %v3460 = vpop.f32.mrb[0].mxu0
    %v3461 = vadd.f32 %v3420, %v3460
    %v3462 = vpop.f32.mrb[0].mxu0
    %v3463 = vpop.f32.mrb[0].mxu0
    %3464 = vdwg.mxu0
    %3465 = vmatprep.subr.bf16.mxu0 %v2280
    %3466 = vmatpush1.bf16.msra.mxu0 %v2279
    %3467 = vmatprep.subr.bf16.mxu0 %v2288
    %3468 = vmatpush1.bf16.msra.mxu0 %v2287
    %3469 = vmatprep.subr.bf16.mxu0 %v2296
    %3470 = vmatpush1.bf16.msra.mxu0 %v2295
    %3471 = vmatprep.subr.bf16.mxu0 %v2304
    %3472 = vmatpush1.bf16.msra.mxu0 %v2303
    %3473 = vmatprep.subr.bf16.mxu0 %v2312
    %3474 = vmatpush1.bf16.msra.mxu0 %v2311
    %3475 = vmatprep.subr.bf16.mxu0 %v2320
    %3476 = vmatpush1.bf16.msra.mxu0 %v2319
    %3477 = vmatprep.subr.bf16.mxu0 %v2328
    %3478 = vmatpush1.bf16.msra.mxu0 %v2327
    %3479 = vmatprep.subr.bf16.mxu0 %v2336
    %3480 = vmatpush1.bf16.msra.mxu0 %v2335
    %3481 = vmatprep.subr.bf16.mxu0 %v2344
    %3482 = vmatpush1.bf16.msra.mxu0 %v2343
    %3483 = vmatprep.subr.bf16.mxu0 %v2352
    %3484 = vmatpush1.bf16.msra.mxu0 %v2351
    %3485 = vmatprep.subr.bf16.mxu0 %v2360
    %3486 = vmatpush1.bf16.msra.mxu0 %v2359
    %3487 = vmatprep.subr.bf16.mxu0 %v2368
    %3488 = vmatpush1.bf16.msra.mxu0 %v2367
    %3489 = vmatprep.subr.bf16.mxu0 %v2376
    %3490 = vmatpush1.bf16.msra.mxu0 %v2375
    %3491 = vmatprep.subr.bf16.mxu0 %v2384
    %3492 = vmatpush1.bf16.msra.mxu0 %v2383
    %3493 = vmatprep.subr.bf16.mxu0 %v2392
    %3494 = vmatpush1.bf16.msra.mxu0 %v2391
    %3495 = vmatprep.subr.bf16.mxu0 %v2400
    %3496 = vmatpush1.bf16.msra.mxu0 %v2399
    %3497 = vmatprep.mubr.bf16.mxu0 %v726
    %3498 = vmatmul.mubr.bf16.gmra.mrb[0].mxu0 %v725
    %v3499 = vpop.f32.mrb[0].mxu0
    %v3500 = vadd.f32 0.0, %v3499
    %v3501 = vpop.f32.mrb[0].mxu0
    %v3502 = vadd.f32 0.0, %v3501
    %v3503 = vpop.f32.mrb[0].mxu0
    %v3504 = vpop.f32.mrb[0].mxu0
    %3505 = vdwg.mxu0
    %3506 = vmatprep.subr.bf16.mxu0 %v2408
    %3507 = vmatpush1.bf16.msra.mxu0 %v2407
    %3508 = vmatprep.subr.bf16.mxu0 %v2416
    %3509 = vmatpush1.bf16.msra.mxu0 %v2415
    %3510 = vmatprep.subr.bf16.mxu0 %v2424
    %3511 = vmatpush1.bf16.msra.mxu0 %v2423
    %3512 = vmatprep.subr.bf16.mxu0 %v2432
    %3513 = vmatpush1.bf16.msra.mxu0 %v2431
    %3514 = vmatprep.subr.bf16.mxu0 %v2440
    %3515 = vmatpush1.bf16.msra.mxu0 %v2439
    %3516 = vmatprep.subr.bf16.mxu0 %v2448
    %3517 = vmatpush1.bf16.msra.mxu0 %v2447
    %3518 = vmatprep.subr.bf16.mxu0 %v2456
    %3519 = vmatpush1.bf16.msra.mxu0 %v2455
    %3520 = vmatprep.subr.bf16.mxu0 %v2464
    %3521 = vmatpush1.bf16.msra.mxu0 %v2463
    %3522 = vmatprep.subr.bf16.mxu0 %v2472
    %3523 = vmatpush1.bf16.msra.mxu0 %v2471
    %3524 = vmatprep.subr.bf16.mxu0 %v2480
    %3525 = vmatpush1.bf16.msra.mxu0 %v2479
    %3526 = vmatprep.subr.bf16.mxu0 %v2488
    %3527 = vmatpush1.bf16.msra.mxu0 %v2487
    %3528 = vmatprep.subr.bf16.mxu0 %v2496
    %3529 = vmatpush1.bf16.msra.mxu0 %v2495
    %3530 = vmatprep.subr.bf16.mxu0 %v2504
    %3531 = vmatpush1.bf16.msra.mxu0 %v2503
    %3532 = vmatprep.subr.bf16.mxu0 %v2512
    %3533 = vmatpush1.bf16.msra.mxu0 %v2511
    %3534 = vmatprep.subr.bf16.mxu0 %v2520
    %3535 = vmatpush1.bf16.msra.mxu0 %v2519
    %3536 = vmatprep.subr.bf16.mxu0 %v2528
    %3537 = vmatpush1.bf16.msra.mxu0 %v2527
    %3538 = vmatprep.mubr.bf16.mxu0 %v728
    %3539 = vmatmul.mubr.bf16.gmra.mrb[0].mxu0 %v727
    %v3540 = vpop.f32.mrb[0].mxu0
    %v3541 = vadd.f32 %v3500, %v3540
    %v3542 = vpop.f32.mrb[0].mxu0
    %v3543 = vadd.f32 %v3502, %v3542
    %v3544 = vpop.f32.mrb[0].mxu0
    %v3545 = vpop.f32.mrb[0].mxu0
    %3546 = vdwg.mxu0
    %3547 = vmatprep.subr.bf16.mxu0 %v2536
    %3548 = vmatpush1.bf16.msra.mxu0 %v2535
    %3549 = vmatprep.subr.bf16.mxu0 %v2544
    %3550 = vmatpush1.bf16.msra.mxu0 %v2543
    %3551 = vmatprep.subr.bf16.mxu0 %v2552
    %3552 = vmatpush1.bf16.msra.mxu0 %v2551
    %3553 = vmatprep.subr.bf16.mxu0 %v2560
    %3554 = vmatpush1.bf16.msra.mxu0 %v2559
    %3555 = vmatprep.subr.bf16.mxu0 %v2568
    %3556 = vmatpush1.bf16.msra.mxu0 %v2567
    %3557 = vmatprep.subr.bf16.mxu0 %v2576
    %3558 = vmatpush1.bf16.msra.mxu0 %v2575
    %3559 = vmatprep.subr.bf16.mxu0 %v2584
    %3560 = vmatpush1.bf16.msra.mxu0 %v2583
    %3561 = vmatprep.subr.bf16.mxu0 %v2592
    %3562 = vmatpush1.bf16.msra.mxu0 %v2591
    %3563 = vmatprep.subr.bf16.mxu0 %v2600
    %3564 = vmatpush1.bf16.msra.mxu0 %v2599
    %3565 = vmatprep.subr.bf16.mxu0 %v2608
    %3566 = vmatpush1.bf16.msra.mxu0 %v2607
    %3567 = vmatprep.subr.bf16.mxu0 %v2616
    %3568 = vmatpush1.bf16.msra.mxu0 %v2615
    %3569 = vmatprep.subr.bf16.mxu0 %v2624
    %3570 = vmatpush1.bf16.msra.mxu0 %v2623
    %3571 = vmatprep.subr.bf16.mxu0 %v2632
    %3572 = vmatpush1.bf16.msra.mxu0 %v2631
    %3573 = vmatprep.subr.bf16.mxu0 %v2640
    %3574 = vmatpush1.bf16.msra.mxu0 %v2639
    %3575 = vmatprep.subr.bf16.mxu0 %v2648
    %3576 = vmatpush1.bf16.msra.mxu0 %v2647
    %3577 = vmatprep.subr.bf16.mxu0 %v2656
    %3578 = vmatpush1.bf16.msra.mxu0 %v2655
    %3579 = vmatprep.mubr.bf16.mxu0 %v730
    %3580 = vmatmul.mubr.bf16.gmra.mrb[0].mxu0 %v729
    %v3581 = vpop.f32.mrb[0].mxu0
    %v3582 = vadd.f32 %v3541, %v3581
    %v3583 = vpop.f32.mrb[0].mxu0
    %v3584 = vadd.f32 %v3543, %v3583
    %v3585 = vpop.f32.mrb[0].mxu0
    %v3586 = vpop.f32.mrb[0].mxu0
    %3587 = vdwg.mxu0
    %3588 = vmatprep.subr.bf16.mxu0 %v2664
    %3589 = vmatpush1.bf16.msra.mxu0 %v2663
    %3590 = vmatprep.subr.bf16.mxu0 %v2672
    %3591 = vmatpush1.bf16.msra.mxu0 %v2671
    %3592 = vmatprep.subr.bf16.mxu0 %v2680
    %3593 = vmatpush1.bf16.msra.mxu0 %v2679
    %3594 = vmatprep.subr.bf16.mxu0 %v2688
    %3595 = vmatpush1.bf16.msra.mxu0 %v2687
    %3596 = vmatprep.subr.bf16.mxu0 %v2696
    %3597 = vmatpush1.bf16.msra.mxu0 %v2695
    %3598 = vmatprep.subr.bf16.mxu0 %v2704
    %3599 = vmatpush1.bf16.msra.mxu0 %v2703
    %3600 = vmatprep.subr.bf16.mxu0 %v2712
    %3601 = vmatpush1.bf16.msra.mxu0 %v2711
    %3602 = vmatprep.subr.bf16.mxu0 %v2720
    %3603 = vmatpush1.bf16.msra.mxu0 %v2719
    %3604 = vmatprep.subr.bf16.mxu0 %v2728
    %3605 = vmatpush1.bf16.msra.mxu0 %v2727
    %3606 = vmatprep.subr.bf16.mxu0 %v2736
    %3607 = vmatpush1.bf16.msra.mxu0 %v2735
    %3608 = vmatprep.subr.bf16.mxu0 %v2744
    %3609 = vmatpush1.bf16.msra.mxu0 %v2743
    %3610 = vmatprep.subr.bf16.mxu0 %v2752
    %3611 = vmatpush1.bf16.msra.mxu0 %v2751
    %3612 = vmatprep.subr.bf16.mxu0 %v2760
    %3613 = vmatpush1.bf16.msra.mxu0 %v2759
    %3614 = vmatprep.subr.bf16.mxu0 %v2768
    %3615 = vmatpush1.bf16.msra.mxu0 %v2767
    %3616 = vmatprep.subr.bf16.mxu0 %v2776
    %3617 = vmatpush1.bf16.msra.mxu0 %v2775
    %3618 = vmatprep.subr.bf16.mxu0 %v2784
    %3619 = vmatpush1.bf16.msra.mxu0 %v2783
    %3620 = vmatprep.mubr.bf16.mxu0 %v732
    %3621 = vmatmul.mubr.bf16.gmra.mrb[0].mxu0 %v731
    %v3622 = vpop.f32.mrb[0].mxu0
    %v3623 = vadd.f32 %v3582, %v3622
    %v3624 = vpop.f32.mrb[0].mxu0
    %v3625 = vadd.f32 %v3584, %v3624
    %v3626 = vpop.f32.mrb[0].mxu0
    %v3627 = vpop.f32.mrb[0].mxu0
    %3628 = vdwg.mxu0
    %3629 = vmatprep.subr.bf16.mxu0 %v2282
    %3630 = vmatpush1.bf16.msra.mxu0 %v2281
    %3631 = vmatprep.subr.bf16.mxu0 %v2290
    %3632 = vmatpush1.bf16.msra.mxu0 %v2289
    %3633 = vmatprep.subr.bf16.mxu0 %v2298
    %3634 = vmatpush1.bf16.msra.mxu0 %v2297
    %3635 = vmatprep.subr.bf16.mxu0 %v2306
    %3636 = vmatpush1.bf16.msra.mxu0 %v2305
    %3637 = vmatprep.subr.bf16.mxu0 %v2314
    %3638 = vmatpush1.bf16.msra.mxu0 %v2313
    %3639 = vmatprep.subr.bf16.mxu0 %v2322
    %3640 = vmatpush1.bf16.msra.mxu0 %v2321
    %3641 = vmatprep.subr.bf16.mxu0 %v2330
    %3642 = vmatpush1.bf16.msra.mxu0 %v2329
    %3643 = vmatprep.subr.bf16.mxu0 %v2338
    %3644 = vmatpush1.bf16.msra.mxu0 %v2337
    %3645 = vmatprep.subr.bf16.mxu0 %v2346
    %3646 = vmatpush1.bf16.msra.mxu0 %v2345
    %3647 = vmatprep.subr.bf16.mxu0 %v2354
    %3648 = vmatpush1.bf16.msra.mxu0 %v2353
    %3649 = vmatprep.subr.bf16.mxu0 %v2362
    %3650 = vmatpush1.bf16.msra.mxu0 %v2361
    %3651 = vmatprep.subr.bf16.mxu0 %v2370
    %3652 = vmatpush1.bf16.msra.mxu0 %v2369
    %3653 = vmatprep.subr.bf16.mxu0 %v2378
    %3654 = vmatpush1.bf16.msra.mxu0 %v2377
    %3655 = vmatprep.subr.bf16.mxu0 %v2386
    %3656 = vmatpush1.bf16.msra.mxu0 %v2385
    %3657 = vmatprep.subr.bf16.mxu0 %v2394
    %3658 = vmatpush1.bf16.msra.mxu0 %v2393
    %3659 = vmatprep.subr.bf16.mxu0 %v2402
    %3660 = vmatpush1.bf16.msra.mxu0 %v2401
    %3661 = vmatprep.mubr.bf16.mxu0 %v726
    %3662 = vmatmul.mubr.bf16.gmra.mrb[0].mxu0 %v725
    %v3663 = vpop.f32.mrb[0].mxu0
    %v3664 = vadd.f32 0.0, %v3663
    %v3665 = vpop.f32.mrb[0].mxu0
    %v3666 = vadd.f32 0.0, %v3665
    %v3667 = vpop.f32.mrb[0].mxu0
    %v3668 = vpop.f32.mrb[0].mxu0
    %3669 = vdwg.mxu0
    %3670 = vmatprep.subr.bf16.mxu0 %v2410
    %3671 = vmatpush1.bf16.msra.mxu0 %v2409
    %3672 = vmatprep.subr.bf16.mxu0 %v2418
    %3673 = vmatpush1.bf16.msra.mxu0 %v2417
    %3674 = vmatprep.subr.bf16.mxu0 %v2426
    %3675 = vmatpush1.bf16.msra.mxu0 %v2425
    %3676 = vmatprep.subr.bf16.mxu0 %v2434
    %3677 = vmatpush1.bf16.msra.mxu0 %v2433
    %3678 = vmatprep.subr.bf16.mxu0 %v2442
    %3679 = vmatpush1.bf16.msra.mxu0 %v2441
    %3680 = vmatprep.subr.bf16.mxu0 %v2450
    %3681 = vmatpush1.bf16.msra.mxu0 %v2449
    %3682 = vmatprep.subr.bf16.mxu0 %v2458
    %3683 = vmatpush1.bf16.msra.mxu0 %v2457
    %3684 = vmatprep.subr.bf16.mxu0 %v2466
    %3685 = vmatpush1.bf16.msra.mxu0 %v2465
    %3686 = vmatprep.subr.bf16.mxu0 %v2474
    %3687 = vmatpush1.bf16.msra.mxu0 %v2473
    %3688 = vmatprep.subr.bf16.mxu0 %v2482
    %3689 = vmatpush1.bf16.msra.mxu0 %v2481
    %3690 = vmatprep.subr.bf16.mxu0 %v2490
    %3691 = vmatpush1.bf16.msra.mxu0 %v2489
    %3692 = vmatprep.subr.bf16.mxu0 %v2498
    %3693 = vmatpush1.bf16.msra.mxu0 %v2497
    %3694 = vmatprep.subr.bf16.mxu0 %v2506
    %3695 = vmatpush1.bf16.msra.mxu0 %v2505
    %3696 = vmatprep.subr.bf16.mxu0 %v2514
    %3697 = vmatpush1.bf16.msra.mxu0 %v2513
    %3698 = vmatprep.subr.bf16.mxu0 %v2522
    %3699 = vmatpush1.bf16.msra.mxu0 %v2521
    %3700 = vmatprep.subr.bf16.mxu0 %v2530
    %3701 = vmatpush1.bf16.msra.mxu0 %v2529
    %3702 = vmatprep.mubr.bf16.mxu0 %v728
    %3703 = vmatmul.mubr.bf16.gmra.mrb[0].mxu0 %v727
    %v3704 = vpop.f32.mrb[0].mxu0
    %v3705 = vadd.f32 %v3664, %v3704
    %v3706 = vpop.f32.mrb[0].mxu0
    %v3707 = vadd.f32 %v3666, %v3706
    %v3708 = vpop.f32.mrb[0].mxu0
    %v3709 = vpop.f32.mrb[0].mxu0
    %3710 = vdwg.mxu0
    %3711 = vmatprep.subr.bf16.mxu0 %v2538
    %3712 = vmatpush1.bf16.msra.mxu0 %v2537
    %3713 = vmatprep.subr.bf16.mxu0 %v2546
    %3714 = vmatpush1.bf16.msra.mxu0 %v2545
    %3715 = vmatprep.subr.bf16.mxu0 %v2554
    %3716 = vmatpush1.bf16.msra.mxu0 %v2553
    %3717 = vmatprep.subr.bf16.mxu0 %v2562
    %3718 = vmatpush1.bf16.msra.mxu0 %v2561
    %3719 = vmatprep.subr.bf16.mxu0 %v2570
    %3720 = vmatpush1.bf16.msra.mxu0 %v2569
    %3721 = vmatprep.subr.bf16.mxu0 %v2578
    %3722 = vmatpush1.bf16.msra.mxu0 %v2577
    %3723 = vmatprep.subr.bf16.mxu0 %v2586
    %3724 = vmatpush1.bf16.msra.mxu0 %v2585
    %3725 = vmatprep.subr.bf16.mxu0 %v2594
    %3726 = vmatpush1.bf16.msra.mxu0 %v2593
    %3727 = vmatprep.subr.bf16.mxu0 %v2602
    %3728 = vmatpush1.bf16.msra.mxu0 %v2601
    %3729 = vmatprep.subr.bf16.mxu0 %v2610
    %3730 = vmatpush1.bf16.msra.mxu0 %v2609
    %3731 = vmatprep.subr.bf16.mxu0 %v2618
    %3732 = vmatpush1.bf16.msra.mxu0 %v2617
    %3733 = vmatprep.subr.bf16.mxu0 %v2626
    %3734 = vmatpush1.bf16.msra.mxu0 %v2625
    %3735 = vmatprep.subr.bf16.mxu0 %v2634
    %3736 = vmatpush1.bf16.msra.mxu0 %v2633
    %3737 = vmatprep.subr.bf16.mxu0 %v2642
    %3738 = vmatpush1.bf16.msra.mxu0 %v2641
    %3739 = vmatprep.subr.bf16.mxu0 %v2650
    %3740 = vmatpush1.bf16.msra.mxu0 %v2649
    %3741 = vmatprep.subr.bf16.mxu0 %v2658
    %3742 = vmatpush1.bf16.msra.mxu0 %v2657
    %3743 = vmatprep.mubr.bf16.mxu0 %v730
    %3744 = vmatmul.mubr.bf16.gmra.mrb[0].mxu0 %v729
    %v3745 = vpop.f32.mrb[0].mxu0
    %v3746 = vadd.f32 %v3705, %v3745
    %v3747 = vpop.f32.mrb[0].mxu0
    %v3748 = vadd.f32 %v3707, %v3747
    %v3749 = vpop.f32.mrb[0].mxu0
    %v3750 = vpop.f32.mrb[0].mxu0
    %3751 = vdwg.mxu0
    %3752 = vmatprep.subr.bf16.mxu0 %v2666
    %3753 = vmatpush1.bf16.msra.mxu0 %v2665
    %3754 = vmatprep.subr.bf16.mxu0 %v2674
    %3755 = vmatpush1.bf16.msra.mxu0 %v2673
    %3756 = vmatprep.subr.bf16.mxu0 %v2682
    %3757 = vmatpush1.bf16.msra.mxu0 %v2681
    %3758 = vmatprep.subr.bf16.mxu0 %v2690
    %3759 = vmatpush1.bf16.msra.mxu0 %v2689
    %3760 = vmatprep.subr.bf16.mxu0 %v2698
    %3761 = vmatpush1.bf16.msra.mxu0 %v2697
    %3762 = vmatprep.subr.bf16.mxu0 %v2706
    %3763 = vmatpush1.bf16.msra.mxu0 %v2705
    %3764 = vmatprep.subr.bf16.mxu0 %v2714
    %3765 = vmatpush1.bf16.msra.mxu0 %v2713
    %3766 = vmatprep.subr.bf16.mxu0 %v2722
    %3767 = vmatpush1.bf16.msra.mxu0 %v2721
    %3768 = vmatprep.subr.bf16.mxu0 %v2730
    %3769 = vmatpush1.bf16.msra.mxu0 %v2729
    %3770 = vmatprep.subr.bf16.mxu0 %v2738
    %3771 = vmatpush1.bf16.msra.mxu0 %v2737
    %3772 = vmatprep.subr.bf16.mxu0 %v2746
    %3773 = vmatpush1.bf16.msra.mxu0 %v2745
    %3774 = vmatprep.subr.bf16.mxu0 %v2754
    %3775 = vmatpush1.bf16.msra.mxu0 %v2753
    %3776 = vmatprep.subr.bf16.mxu0 %v2762
    %3777 = vmatpush1.bf16.msra.mxu0 %v2761
    %3778 = vmatprep.subr.bf16.mxu0 %v2770
    %3779 = vmatpush1.bf16.msra.mxu0 %v2769
    %3780 = vmatprep.subr.bf16.mxu0 %v2778
    %3781 = vmatpush1.bf16.msra.mxu0 %v2777
    %3782 = vmatprep.subr.bf16.mxu0 %v2786
    %3783 = vmatpush1.bf16.msra.mxu0 %v2785
    %3784 = vmatprep.mubr.bf16.mxu0 %v732
    %3785 = vmatmul.mubr.bf16.gmra.mrb[0].mxu0 %v731
    %v3786 = vpop.f32.mrb[0].mxu0
    %v3787 = vadd.f32 %v3746, %v3786
    %v3788 = vpop.f32.mrb[0].mxu0
    %v3789 = vadd.f32 %v3748, %v3788
    %v3790 = vpop.f32.mrb[0].mxu0
    %v3791 = vpop.f32.mrb[0].mxu0
    %3792 = vdwg.mxu0
    %3793 = vmatprep.subr.bf16.mxu0 %v2284
    %3794 = vmatpush1.bf16.msra.mxu0 %v2283
    %3795 = vmatprep.subr.bf16.mxu0 %v2292
    %3796 = vmatpush1.bf16.msra.mxu0 %v2291
    %3797 = vmatprep.subr.bf16.mxu0 %v2300
    %3798 = vmatpush1.bf16.msra.mxu0 %v2299
    %3799 = vmatprep.subr.bf16.mxu0 %v2308
    %3800 = vmatpush1.bf16.msra.mxu0 %v2307
    %3801 = vmatprep.subr.bf16.mxu0 %v2316
    %3802 = vmatpush1.bf16.msra.mxu0 %v2315
    %3803 = vmatprep.subr.bf16.mxu0 %v2324
    %3804 = vmatpush1.bf16.msra.mxu0 %v2323
    %3805 = vmatprep.subr.bf16.mxu0 %v2332
    %3806 = vmatpush1.bf16.msra.mxu0 %v2331
    %3807 = vmatprep.subr.bf16.mxu0 %v2340
    %3808 = vmatpush1.bf16.msra.mxu0 %v2339
    %3809 = vmatprep.subr.bf16.mxu0 %v2348
    %3810 = vmatpush1.bf16.msra.mxu0 %v2347
    %3811 = vmatprep.subr.bf16.mxu0 %v2356
    %3812 = vmatpush1.bf16.msra.mxu0 %v2355
    %3813 = vmatprep.subr.bf16.mxu0 %v2364
    %3814 = vmatpush1.bf16.msra.mxu0 %v2363
    %3815 = vmatprep.subr.bf16.mxu0 %v2372
    %3816 = vmatpush1.bf16.msra.mxu0 %v2371
    %3817 = vmatprep.subr.bf16.mxu0 %v2380
    %3818 = vmatpush1.bf16.msra.mxu0 %v2379
    %3819 = vmatprep.subr.bf16.mxu0 %v2388
    %3820 = vmatpush1.bf16.msra.mxu0 %v2387
    %3821 = vmatprep.subr.bf16.mxu0 %v2396
    %3822 = vmatpush1.bf16.msra.mxu0 %v2395
    %3823 = vmatprep.subr.bf16.mxu0 %v2404
    %3824 = vmatpush1.bf16.msra.mxu0 %v2403
    %3825 = vmatprep.mubr.bf16.mxu0 %v726
    %3826 = vmatmul.mubr.bf16.gmra.mrb[0].mxu0 %v725
    %v3827 = vpop.f32.mrb[0].mxu0
    %v3828 = vadd.f32 0.0, %v3827
    %v3829 = vpop.f32.mrb[0].mxu0
    %v3830 = vadd.f32 0.0, %v3829
    %v3831 = vpop.f32.mrb[0].mxu0
    %v3832 = vpop.f32.mrb[0].mxu0
    %3833 = vdwg.mxu0
    %3834 = vmatprep.subr.bf16.mxu0 %v2412
    %3835 = vmatpush1.bf16.msra.mxu0 %v2411
    %3836 = vmatprep.subr.bf16.mxu0 %v2420
    %3837 = vmatpush1.bf16.msra.mxu0 %v2419
    %3838 = vmatprep.subr.bf16.mxu0 %v2428
    %3839 = vmatpush1.bf16.msra.mxu0 %v2427
    %3840 = vmatprep.subr.bf16.mxu0 %v2436
    %3841 = vmatpush1.bf16.msra.mxu0 %v2435
    %3842 = vmatprep.subr.bf16.mxu0 %v2444
    %3843 = vmatpush1.bf16.msra.mxu0 %v2443
    %3844 = vmatprep.subr.bf16.mxu0 %v2452
    %3845 = vmatpush1.bf16.msra.mxu0 %v2451
    %3846 = vmatprep.subr.bf16.mxu0 %v2460
    %3847 = vmatpush1.bf16.msra.mxu0 %v2459
    %3848 = vmatprep.subr.bf16.mxu0 %v2468
    %3849 = vmatpush1.bf16.msra.mxu0 %v2467
    %3850 = vmatprep.subr.bf16.mxu0 %v2476
    %3851 = vmatpush1.bf16.msra.mxu0 %v2475
    %3852 = vmatprep.subr.bf16.mxu0 %v2484
    %3853 = vmatpush1.bf16.msra.mxu0 %v2483
    %3854 = vmatprep.subr.bf16.mxu0 %v2492
    %3855 = vmatpush1.bf16.msra.mxu0 %v2491
    %3856 = vmatprep.subr.bf16.mxu0 %v2500
    %3857 = vmatpush1.bf16.msra.mxu0 %v2499
    %3858 = vmatprep.subr.bf16.mxu0 %v2508
    %3859 = vmatpush1.bf16.msra.mxu0 %v2507
    %3860 = vmatprep.subr.bf16.mxu0 %v2516
    %3861 = vmatpush1.bf16.msra.mxu0 %v2515
    %3862 = vmatprep.subr.bf16.mxu0 %v2524
    %3863 = vmatpush1.bf16.msra.mxu0 %v2523
    %3864 = vmatprep.subr.bf16.mxu0 %v2532
    %3865 = vmatpush1.bf16.msra.mxu0 %v2531
    %3866 = vmatprep.mubr.bf16.mxu0 %v728
    %3867 = vmatmul.mubr.bf16.gmra.mrb[0].mxu0 %v727
    %v3868 = vpop.f32.mrb[0].mxu0
    %v3869 = vadd.f32 %v3828, %v3868
    %v3870 = vpop.f32.mrb[0].mxu0
    %v3871 = vadd.f32 %v3830, %v3870
    %v3872 = vpop.f32.mrb[0].mxu0
    %v3873 = vpop.f32.mrb[0].mxu0
    %3874 = vdwg.mxu0
    %3875 = vmatprep.subr.bf16.mxu0 %v2540
    %3876 = vmatpush1.bf16.msra.mxu0 %v2539
    %3877 = vmatprep.subr.bf16.mxu0 %v2548
    %3878 = vmatpush1.bf16.msra.mxu0 %v2547
    %3879 = vmatprep.subr.bf16.mxu0 %v2556
    %3880 = vmatpush1.bf16.msra.mxu0 %v2555
    %3881 = vmatprep.subr.bf16.mxu0 %v2564
    %3882 = vmatpush1.bf16.msra.mxu0 %v2563
    %3883 = vmatprep.subr.bf16.mxu0 %v2572
    %3884 = vmatpush1.bf16.msra.mxu0 %v2571
    %3885 = vmatprep.subr.bf16.mxu0 %v2580
    %3886 = vmatpush1.bf16.msra.mxu0 %v2579
    %3887 = vmatprep.subr.bf16.mxu0 %v2588
    %3888 = vmatpush1.bf16.msra.mxu0 %v2587
    %3889 = vmatprep.subr.bf16.mxu0 %v2596
    %3890 = vmatpush1.bf16.msra.mxu0 %v2595
    %3891 = vmatprep.subr.bf16.mxu0 %v2604
    %3892 = vmatpush1.bf16.msra.mxu0 %v2603
    %3893 = vmatprep.subr.bf16.mxu0 %v2612
    %3894 = vmatpush1.bf16.msra.mxu0 %v2611
    %3895 = vmatprep.subr.bf16.mxu0 %v2620
    %3896 = vmatpush1.bf16.msra.mxu0 %v2619
    %3897 = vmatprep.subr.bf16.mxu0 %v2628
    %3898 = vmatpush1.bf16.msra.mxu0 %v2627
    %3899 = vmatprep.subr.bf16.mxu0 %v2636
    %3900 = vmatpush1.bf16.msra.mxu0 %v2635
    %3901 = vmatprep.subr.bf16.mxu0 %v2644
    %3902 = vmatpush1.bf16.msra.mxu0 %v2643
    %3903 = vmatprep.subr.bf16.mxu0 %v2652
    %3904 = vmatpush1.bf16.msra.mxu0 %v2651
    %3905 = vmatprep.subr.bf16.mxu0 %v2660
    %3906 = vmatpush1.bf16.msra.mxu0 %v2659
    %3907 = vmatprep.mubr.bf16.mxu0 %v730
    %3908 = vmatmul.mubr.bf16.gmra.mrb[0].mxu0 %v729
    %v3909 = vpop.f32.mrb[0].mxu0
    %v3910 = vadd.f32 %v3869, %v3909
    %v3911 = vpop.f32.mrb[0].mxu0
    %v3912 = vadd.f32 %v3871, %v3911
    %v3913 = vpop.f32.mrb[0].mxu0
    %v3914 = vpop.f32.mrb[0].mxu0
    %3915 = vdwg.mxu0
    %3916 = vmatprep.subr.bf16.mxu0 %v2668
    %3917 = vmatpush1.bf16.msra.mxu0 %v2667
    %3918 = vmatprep.subr.bf16.mxu0 %v2676
    %3919 = vmatpush1.bf16.msra.mxu0 %v2675
    %3920 = vmatprep.subr.bf16.mxu0 %v2684
    %3921 = vmatpush1.bf16.msra.mxu0 %v2683
    %3922 = vmatprep.subr.bf16.mxu0 %v2692
    %3923 = vmatpush1.bf16.msra.mxu0 %v2691
    %3924 = vmatprep.subr.bf16.mxu0 %v2700
    %3925 = vmatpush1.bf16.msra.mxu0 %v2699
    %3926 = vmatprep.subr.bf16.mxu0 %v2708
    %3927 = vmatpush1.bf16.msra.mxu0 %v2707
    %3928 = vmatprep.subr.bf16.mxu0 %v2716
    %3929 = vmatpush1.bf16.msra.mxu0 %v2715
    %3930 = vmatprep.subr.bf16.mxu0 %v2724
    %3931 = vmatpush1.bf16.msra.mxu0 %v2723
    %3932 = vmatprep.subr.bf16.mxu0 %v2732
    %3933 = vmatpush1.bf16.msra.mxu0 %v2731
    %3934 = vmatprep.subr.bf16.mxu0 %v2740
    %3935 = vmatpush1.bf16.msra.mxu0 %v2739
    %3936 = vmatprep.subr.bf16.mxu0 %v2748
    %3937 = vmatpush1.bf16.msra.mxu0 %v2747
    %3938 = vmatprep.subr.bf16.mxu0 %v2756
    %3939 = vmatpush1.bf16.msra.mxu0 %v2755
    %3940 = vmatprep.subr.bf16.mxu0 %v2764
    %3941 = vmatpush1.bf16.msra.mxu0 %v2763
    %3942 = vmatprep.subr.bf16.mxu0 %v2772
    %3943 = vmatpush1.bf16.msra.mxu0 %v2771
    %3944 = vmatprep.subr.bf16.mxu0 %v2780
    %3945 = vmatpush1.bf16.msra.mxu0 %v2779
    %3946 = vmatprep.subr.bf16.mxu0 %v2788
    %3947 = vmatpush1.bf16.msra.mxu0 %v2787
    %3948 = vmatprep.mubr.bf16.mxu0 %v732
    %3949 = vmatmul.mubr.bf16.gmra.mrb[0].mxu0 %v731
    %v3950 = vpop.f32.mrb[0].mxu0
    %v3951 = vadd.f32 %v3910, %v3950
    %v3952 = vpop.f32.mrb[0].mxu0
    %v3953 = vadd.f32 %v3912, %v3952
    %v3954 = vpop.f32.mrb[0].mxu0
    %v3955 = vpop.f32.mrb[0].mxu0
    %3956 = vdwg.mxu0
    %v3957 = vadd.f32 %v189, %v3459
    %v3958 = vadd.f32 %v190, %v3461
    %v3959 = vadd.f32 %v191, %v3623
    %v3960 = vadd.f32 %v192, %v3625
    %v3961 = vadd.f32 %v193, %v3787
    %v3962 = vadd.f32 %v194, %v3789
    %v3963 = vadd.f32 %v195, %v3951
    %v3964 = vadd.f32 %v196, %v3953
    %3965 = vst [vmem:[#allocation2] sm:$0xff] %v3957
    %3966 = vst [vmem:[#allocation2 + $0x8] sm:$0xff] %v3958
    %3967 = vst [vmem:[#allocation2 + $0x10] sm:$0xff] %v3959
    %3968 = vst [vmem:[#allocation2 + $0x18] sm:$0xff] %v3960
    %3969 = vst [vmem:[#allocation2 + $0x20] sm:$0xff] %v3961
    %3970 = vst [vmem:[#allocation2 + $0x28] sm:$0xff] %v3962
    %3971 = vst [vmem:[#allocation2 + $0x30] sm:$0xff] %v3963
    %3972 = vst [vmem:[#allocation2 + $0x38] sm:$0xff] %v3964
    // Predicated region
    $region94: #{tpu_custom_call.1} parent=1 // pred_check
      %p3973 = pneg %p177
    $region95: #{tpu_custom_call.1} parent=1 // pred_check_branch
      %3975 = sbr.rel (%p3973) target = $region97
    $region96: #{tpu_custom_call.1} parent=1 // pred_region
      %v3976 = vld [vmem:[#allocation2] sm:$0xff]
      %v3977 = vld [vmem:[#allocation2 + $0x8] sm:$0xff]
      %v3978 = vld [vmem:[#allocation2 + $0x10] sm:$0xff]
      %v3979 = vld [vmem:[#allocation2 + $0x18] sm:$0xff]
      %v3980 = vld [vmem:[#allocation2 + $0x20] sm:$0xff]
      %v3981 = vld [vmem:[#allocation2 + $0x28] sm:$0xff]
      %v3982 = vld [vmem:[#allocation2 + $0x30] sm:$0xff]
      %v3983 = vld [vmem:[#allocation2 + $0x38] sm:$0xff]
      %v3984 = vld [vmem:[#allocation8] sm:$0xff]
      %v3986 = vlaneseq
      %v3987 = vshrl.u32 %v3986, 7
      %v3988 = vsub.s32 0, %v3987
      %v3989 = vrot.slane %v3984, %v3988
      %v3990 = vlaneseq
      %v3991 = vshrl.u32 %v3990, 7
      %v3992 = vsub.s32 1, %v3991
      %v3993 = vrot.slane %v3984, %v3992
      %v3994 = vlaneseq
      %v3995 = vshrl.u32 %v3994, 7
      %v3996 = vsub.s32 2, %v3995
      %v3997 = vrot.slane %v3984, %v3996
      %v3998 = vlaneseq
      %v3999 = vshrl.u32 %v3998, 7
      %v4000 = vsub.s32 3, %v3999
      %v4001 = vrot.slane %v3984, %v4000
      %v4002 = vlaneseq
      %v4003 = vshrl.u32 %v4002, 7
      %v4004 = vsub.s32 4, %v4003
      %v4005 = vrot.slane %v3984, %v4004
      %v4006 = vlaneseq
      %v4007 = vshrl.u32 %v4006, 7
      %v4008 = vsub.s32 5, %v4007
      %v4009 = vrot.slane %v3984, %v4008
      %v4010 = vlaneseq
      %v4011 = vshrl.u32 %v4010, 7
      %v4012 = vsub.s32 6, %v4011
      %v4013 = vrot.slane %v3984, %v4012
      %v4014 = vlaneseq
      %v4015 = vshrl.u32 %v4014, 7
      %v4016 = vsub.s32 7, %v4015
      %v4017 = vrot.slane %v3984, %v4016
      %v4026 = vadd.f32 %v3976, %v3989
      %v4027 = vadd.f32 %v3977, %v3993
      %v4028 = vadd.f32 %v3978, %v3997
      %v4029 = vadd.f32 %v3979, %v4001
      %v4030 = vadd.f32 %v3980, %v4005
      %v4031 = vadd.f32 %v3981, %v4009
      %v4032 = vadd.f32 %v3982, %v4013
      %v4033 = vadd.f32 %v3983, %v4017
      %v4034 = vpack.c.bf16 %v4026, %v4026
      %v4035 = vpack.c.bf16 %v4027, %v4027
      %v4036 = vpack.c.bf16 %v4028, %v4028
      %v4037 = vpack.c.bf16 %v4029, %v4029
      %v4038 = vpack.c.bf16 %v4030, %v4030
      %v4039 = vpack.c.bf16 %v4031, %v4031
      %v4040 = vpack.c.bf16 %v4032, %v4032
      %v4041 = vpack.c.bf16 %v4033, %v4033
      %v4042 = vld [vmem:[#allocation9] sm:$0xff]
      %v4043 = vld [vmem:[#allocation9 + $0x8] sm:$0xff]
      %v4044 = vld [vmem:[#allocation9 + $0x10] sm:$0xff]
      %v4045 = vld [vmem:[#allocation9 + $0x18] sm:$0xff]
      %v4046 = vld [vmem:[#allocation9 + $0x20] sm:$0xff]
      %v4047 = vld [vmem:[#allocation9 + $0x28] sm:$0xff]
      %v4048 = vld [vmem:[#allocation9 + $0x30] sm:$0xff]
      %v4049 = vld [vmem:[#allocation9 + $0x38] sm:$0xff]
      %v4050 = vld [vmem:[#allocation9 + $0x40] sm:$0xff]
      %v4051 = vld [vmem:[#allocation9 + $0x48] sm:$0xff]
      %v4052 = vld [vmem:[#allocation9 + $0x50] sm:$0xff]
      %v4053 = vld [vmem:[#allocation9 + $0x58] sm:$0xff]
      %v4054 = vld [vmem:[#allocation9 + $0x60] sm:$0xff]
      %v4055 = vld [vmem:[#allocation9 + $0x68] sm:$0xff]
      %v4056 = vld [vmem:[#allocation9 + $0x70] sm:$0xff]
      %v4057 = vld [vmem:[#allocation9 + $0x78] sm:$0xff]
      %v4058 = vld [vmem:[#allocation9 + $0x80] sm:$0xff]
      %v4059 = vld [vmem:[#allocation9 + $0x88] sm:$0xff]
      %v4060 = vld [vmem:[#allocation9 + $0x90] sm:$0xff]
      %v4061 = vld [vmem:[#allocation9 + $0x98] sm:$0xff]
      %v4062 = vld [vmem:[#allocation9 + $0xa0] sm:$0xff]
      %v4063 = vld [vmem:[#allocation9 + $0xa8] sm:$0xff]
      %v4064 = vld [vmem:[#allocation9 + $0xb0] sm:$0xff]
      %v4065 = vld [vmem:[#allocation9 + $0xb8] sm:$0xff]
      %v4066 = vld [vmem:[#allocation9 + $0xc0] sm:$0xff]
      %v4067 = vld [vmem:[#allocation9 + $0xc8] sm:$0xff]
      %v4068 = vld [vmem:[#allocation9 + $0xd0] sm:$0xff]
      %v4069 = vld [vmem:[#allocation9 + $0xd8] sm:$0xff]
      %v4070 = vld [vmem:[#allocation9 + $0xe0] sm:$0xff]
      %v4071 = vld [vmem:[#allocation9 + $0xe8] sm:$0xff]
      %v4072 = vld [vmem:[#allocation9 + $0xf0] sm:$0xff]
      %v4073 = vld [vmem:[#allocation9 + $0xf8] sm:$0xff]
      %v4074 = vld [vmem:[#allocation9 + $0x100] sm:$0xff]
      %v4075 = vld [vmem:[#allocation9 + $0x108] sm:$0xff]
      %v4076 = vld [vmem:[#allocation9 + $0x110] sm:$0xff]
      %v4077 = vld [vmem:[#allocation9 + $0x118] sm:$0xff]
      %v4078 = vld [vmem:[#allocation9 + $0x120] sm:$0xff]
      %v4079 = vld [vmem:[#allocation9 + $0x128] sm:$0xff]
      %v4080 = vld [vmem:[#allocation9 + $0x130] sm:$0xff]
      %v4081 = vld [vmem:[#allocation9 + $0x138] sm:$0xff]
      %v4082 = vld [vmem:[#allocation9 + $0x140] sm:$0xff]
      %v4083 = vld [vmem:[#allocation9 + $0x148] sm:$0xff]
      %v4084 = vld [vmem:[#allocation9 + $0x150] sm:$0xff]
      %v4085 = vld [vmem:[#allocation9 + $0x158] sm:$0xff]
      %v4086 = vld [vmem:[#allocation9 + $0x160] sm:$0xff]
      %v4087 = vld [vmem:[#allocation9 + $0x168] sm:$0xff]
      %v4088 = vld [vmem:[#allocation9 + $0x170] sm:$0xff]
      %v4089 = vld [vmem:[#allocation9 + $0x178] sm:$0xff]
      %v4090 = vld [vmem:[#allocation9 + $0x180] sm:$0xff]
      %v4091 = vld [vmem:[#allocation9 + $0x188] sm:$0xff]
      %v4092 = vld [vmem:[#allocation9 + $0x190] sm:$0xff]
      %v4093 = vld [vmem:[#allocation9 + $0x198] sm:$0xff]
      %v4094 = vld [vmem:[#allocation9 + $0x1a0] sm:$0xff]
      %v4095 = vld [vmem:[#allocation9 + $0x1a8] sm:$0xff]
      %v4096 = vld [vmem:[#allocation9 + $0x1b0] sm:$0xff]
      %v4097 = vld [vmem:[#allocation9 + $0x1b8] sm:$0xff]
      %v4098 = vld [vmem:[#allocation9 + $0x1c0] sm:$0xff]
      %v4099 = vld [vmem:[#allocation9 + $0x1c8] sm:$0xff]
      %v4100 = vld [vmem:[#allocation9 + $0x1d0] sm:$0xff]
      %v4101 = vld [vmem:[#allocation9 + $0x1d8] sm:$0xff]
      %v4102 = vld [vmem:[#allocation9 + $0x1e0] sm:$0xff]
      %v4103 = vld [vmem:[#allocation9 + $0x1e8] sm:$0xff]
      %v4104 = vld [vmem:[#allocation9 + $0x1f0] sm:$0xff]
      %v4105 = vld [vmem:[#allocation9 + $0x1f8] sm:$0xff]
      %v4106 = vld [vmem:[#allocation9 + $0x200] sm:$0xff]
      %v4107 = vld [vmem:[#allocation9 + $0x208] sm:$0xff]
      %v4108 = vld [vmem:[#allocation9 + $0x210] sm:$0xff]
      %v4109 = vld [vmem:[#allocation9 + $0x218] sm:$0xff]
      %v4110 = vld [vmem:[#allocation9 + $0x220] sm:$0xff]
      %v4111 = vld [vmem:[#allocation9 + $0x228] sm:$0xff]
      %v4112 = vld [vmem:[#allocation9 + $0x230] sm:$0xff]
      %v4113 = vld [vmem:[#allocation9 + $0x238] sm:$0xff]
      %v4114 = vld [vmem:[#allocation9 + $0x240] sm:$0xff]
      %v4115 = vld [vmem:[#allocation9 + $0x248] sm:$0xff]
      %v4116 = vld [vmem:[#allocation9 + $0x250] sm:$0xff]
      %v4117 = vld [vmem:[#allocation9 + $0x258] sm:$0xff]
      %v4118 = vld [vmem:[#allocation9 + $0x260] sm:$0xff]
      %v4119 = vld [vmem:[#allocation9 + $0x268] sm:$0xff]
      %v4120 = vld [vmem:[#allocation9 + $0x270] sm:$0xff]
      %v4121 = vld [vmem:[#allocation9 + $0x278] sm:$0xff]
      %v4122 = vld [vmem:[#allocation9 + $0x280] sm:$0xff]
      %v4123 = vld [vmem:[#allocation9 + $0x288] sm:$0xff]
      %v4124 = vld [vmem:[#allocation9 + $0x290] sm:$0xff]
      %v4125 = vld [vmem:[#allocation9 + $0x298] sm:$0xff]
      %v4126 = vld [vmem:[#allocation9 + $0x2a0] sm:$0xff]
      %v4127 = vld [vmem:[#allocation9 + $0x2a8] sm:$0xff]
      %v4128 = vld [vmem:[#allocation9 + $0x2b0] sm:$0xff]
      %v4129 = vld [vmem:[#allocation9 + $0x2b8] sm:$0xff]
      %v4130 = vld [vmem:[#allocation9 + $0x2c0] sm:$0xff]
      %v4131 = vld [vmem:[#allocation9 + $0x2c8] sm:$0xff]
      %v4132 = vld [vmem:[#allocation9 + $0x2d0] sm:$0xff]
      %v4133 = vld [vmem:[#allocation9 + $0x2d8] sm:$0xff]
      %v4134 = vld [vmem:[#allocation9 + $0x2e0] sm:$0xff]
      %v4135 = vld [vmem:[#allocation9 + $0x2e8] sm:$0xff]
      %v4136 = vld [vmem:[#allocation9 + $0x2f0] sm:$0xff]
      %v4137 = vld [vmem:[#allocation9 + $0x2f8] sm:$0xff]
      %v4138 = vld [vmem:[#allocation9 + $0x300] sm:$0xff]
      %v4139 = vld [vmem:[#allocation9 + $0x308] sm:$0xff]
      %v4140 = vld [vmem:[#allocation9 + $0x310] sm:$0xff]
      %v4141 = vld [vmem:[#allocation9 + $0x318] sm:$0xff]
      %v4142 = vld [vmem:[#allocation9 + $0x320] sm:$0xff]
      %v4143 = vld [vmem:[#allocation9 + $0x328] sm:$0xff]
      %v4144 = vld [vmem:[#allocation9 + $0x330] sm:$0xff]
      %v4145 = vld [vmem:[#allocation9 + $0x338] sm:$0xff]
      %v4146 = vld [vmem:[#allocation9 + $0x340] sm:$0xff]
      %v4147 = vld [vmem:[#allocation9 + $0x348] sm:$0xff]
      %v4148 = vld [vmem:[#allocation9 + $0x350] sm:$0xff]
      %v4149 = vld [vmem:[#allocation9 + $0x358] sm:$0xff]
      %v4150 = vld [vmem:[#allocation9 + $0x360] sm:$0xff]
      %v4151 = vld [vmem:[#allocation9 + $0x368] sm:$0xff]
      %v4152 = vld [vmem:[#allocation9 + $0x370] sm:$0xff]
      %v4153 = vld [vmem:[#allocation9 + $0x378] sm:$0xff]
      %v4154 = vld [vmem:[#allocation9 + $0x380] sm:$0xff]
      %v4155 = vld [vmem:[#allocation9 + $0x388] sm:$0xff]
      %v4156 = vld [vmem:[#allocation9 + $0x390] sm:$0xff]
      %v4157 = vld [vmem:[#allocation9 + $0x398] sm:$0xff]
      %v4158 = vld [vmem:[#allocation9 + $0x3a0] sm:$0xff]
      %v4159 = vld [vmem:[#allocation9 + $0x3a8] sm:$0xff]
      %v4160 = vld [vmem:[#allocation9 + $0x3b0] sm:$0xff]
      %v4161 = vld [vmem:[#allocation9 + $0x3b8] sm:$0xff]
      %v4162 = vld [vmem:[#allocation9 + $0x3c0] sm:$0xff]
      %v4163 = vld [vmem:[#allocation9 + $0x3c8] sm:$0xff]
      %v4164 = vld [vmem:[#allocation9 + $0x3d0] sm:$0xff]
      %v4165 = vld [vmem:[#allocation9 + $0x3d8] sm:$0xff]
      %v4166 = vld [vmem:[#allocation9 + $0x3e0] sm:$0xff]
      %v4167 = vld [vmem:[#allocation9 + $0x3e8] sm:$0xff]
      %v4168 = vld [vmem:[#allocation9 + $0x3f0] sm:$0xff]
      %v4169 = vld [vmem:[#allocation9 + $0x3f8] sm:$0xff]
      %v4170 = vld [vmem:[#allocation9 + $0x400] sm:$0xff]
      %v4171 = vld [vmem:[#allocation9 + $0x408] sm:$0xff]
      %v4172 = vld [vmem:[#allocation9 + $0x410] sm:$0xff]
      %v4173 = vld [vmem:[#allocation9 + $0x418] sm:$0xff]
      %v4174 = vld [vmem:[#allocation9 + $0x420] sm:$0xff]
      %v4175 = vld [vmem:[#allocation9 + $0x428] sm:$0xff]
      %v4176 = vld [vmem:[#allocation9 + $0x430] sm:$0xff]
      %v4177 = vld [vmem:[#allocation9 + $0x438] sm:$0xff]
      %v4178 = vld [vmem:[#allocation9 + $0x440] sm:$0xff]
      %v4179 = vld [vmem:[#allocation9 + $0x448] sm:$0xff]
      %v4180 = vld [vmem:[#allocation9 + $0x450] sm:$0xff]
      %v4181 = vld [vmem:[#allocation9 + $0x458] sm:$0xff]
      %v4182 = vld [vmem:[#allocation9 + $0x460] sm:$0xff]
      %v4183 = vld [vmem:[#allocation9 + $0x468] sm:$0xff]
      %v4184 = vld [vmem:[#allocation9 + $0x470] sm:$0xff]
      %v4185 = vld [vmem:[#allocation9 + $0x478] sm:$0xff]
      %v4186 = vld [vmem:[#allocation9 + $0x480] sm:$0xff]
      %v4187 = vld [vmem:[#allocation9 + $0x488] sm:$0xff]
      %v4188 = vld [vmem:[#allocation9 + $0x490] sm:$0xff]
      %v4189 = vld [vmem:[#allocation9 + $0x498] sm:$0xff]
      %v4190 = vld [vmem:[#allocation9 + $0x4a0] sm:$0xff]
      %v4191 = vld [vmem:[#allocation9 + $0x4a8] sm:$0xff]
      %v4192 = vld [vmem:[#allocation9 + $0x4b0] sm:$0xff]
      %v4193 = vld [vmem:[#allocation9 + $0x4b8] sm:$0xff]
      %v4194 = vld [vmem:[#allocation9 + $0x4c0] sm:$0xff]
      %v4195 = vld [vmem:[#allocation9 + $0x4c8] sm:$0xff]
      %v4196 = vld [vmem:[#allocation9 + $0x4d0] sm:$0xff]
      %v4197 = vld [vmem:[#allocation9 + $0x4d8] sm:$0xff]
      %v4198 = vld [vmem:[#allocation9 + $0x4e0] sm:$0xff]
      %v4199 = vld [vmem:[#allocation9 + $0x4e8] sm:$0xff]
      %v4200 = vld [vmem:[#allocation9 + $0x4f0] sm:$0xff]
      %v4201 = vld [vmem:[#allocation9 + $0x4f8] sm:$0xff]
      %v4202 = vld [vmem:[#allocation9 + $0x500] sm:$0xff]
      %v4203 = vld [vmem:[#allocation9 + $0x508] sm:$0xff]
      %v4204 = vld [vmem:[#allocation9 + $0x510] sm:$0xff]
      %v4205 = vld [vmem:[#allocation9 + $0x518] sm:$0xff]
      %v4206 = vld [vmem:[#allocation9 + $0x520] sm:$0xff]
      %v4207 = vld [vmem:[#allocation9 + $0x528] sm:$0xff]
      %v4208 = vld [vmem:[#allocation9 + $0x530] sm:$0xff]
      %v4209 = vld [vmem:[#allocation9 + $0x538] sm:$0xff]
      %v4210 = vld [vmem:[#allocation9 + $0x540] sm:$0xff]
      %v4211 = vld [vmem:[#allocation9 + $0x548] sm:$0xff]
      %v4212 = vld [vmem:[#allocation9 + $0x550] sm:$0xff]
      %v4213 = vld [vmem:[#allocation9 + $0x558] sm:$0xff]
      %v4214 = vld [vmem:[#allocation9 + $0x560] sm:$0xff]
      %v4215 = vld [vmem:[#allocation9 + $0x568] sm:$0xff]
      %v4216 = vld [vmem:[#allocation9 + $0x570] sm:$0xff]
      %v4217 = vld [vmem:[#allocation9 + $0x578] sm:$0xff]
      %v4218 = vld [vmem:[#allocation9 + $0x580] sm:$0xff]
      %v4219 = vld [vmem:[#allocation9 + $0x588] sm:$0xff]
      %v4220 = vld [vmem:[#allocation9 + $0x590] sm:$0xff]
      %v4221 = vld [vmem:[#allocation9 + $0x598] sm:$0xff]
      %v4222 = vld [vmem:[#allocation9 + $0x5a0] sm:$0xff]
      %v4223 = vld [vmem:[#allocation9 + $0x5a8] sm:$0xff]
      %v4224 = vld [vmem:[#allocation9 + $0x5b0] sm:$0xff]
      %v4225 = vld [vmem:[#allocation9 + $0x5b8] sm:$0xff]
      %v4226 = vld [vmem:[#allocation9 + $0x5c0] sm:$0xff]
      %v4227 = vld [vmem:[#allocation9 + $0x5c8] sm:$0xff]
      %v4228 = vld [vmem:[#allocation9 + $0x5d0] sm:$0xff]
      %v4229 = vld [vmem:[#allocation9 + $0x5d8] sm:$0xff]
      %v4230 = vld [vmem:[#allocation9 + $0x5e0] sm:$0xff]
      %v4231 = vld [vmem:[#allocation9 + $0x5e8] sm:$0xff]
      %v4232 = vld [vmem:[#allocation9 + $0x5f0] sm:$0xff]
      %v4233 = vld [vmem:[#allocation9 + $0x5f8] sm:$0xff]
      %v4234 = vld [vmem:[#allocation9 + $0x600] sm:$0xff]
      %v4235 = vld [vmem:[#allocation9 + $0x608] sm:$0xff]
      %v4236 = vld [vmem:[#allocation9 + $0x610] sm:$0xff]
      %v4237 = vld [vmem:[#allocation9 + $0x618] sm:$0xff]
      %v4238 = vld [vmem:[#allocation9 + $0x620] sm:$0xff]
      %v4239 = vld [vmem:[#allocation9 + $0x628] sm:$0xff]
      %v4240 = vld [vmem:[#allocation9 + $0x630] sm:$0xff]
      %v4241 = vld [vmem:[#allocation9 + $0x638] sm:$0xff]
      %v4242 = vld [vmem:[#allocation9 + $0x640] sm:$0xff]
      %v4243 = vld [vmem:[#allocation9 + $0x648] sm:$0xff]
      %v4244 = vld [vmem:[#allocation9 + $0x650] sm:$0xff]
      %v4245 = vld [vmem:[#allocation9 + $0x658] sm:$0xff]
      %v4246 = vld [vmem:[#allocation9 + $0x660] sm:$0xff]
      %v4247 = vld [vmem:[#allocation9 + $0x668] sm:$0xff]
      %v4248 = vld [vmem:[#allocation9 + $0x670] sm:$0xff]
      %v4249 = vld [vmem:[#allocation9 + $0x678] sm:$0xff]
      %v4250 = vld [vmem:[#allocation9 + $0x680] sm:$0xff]
      %v4251 = vld [vmem:[#allocation9 + $0x688] sm:$0xff]
      %v4252 = vld [vmem:[#allocation9 + $0x690] sm:$0xff]
      %v4253 = vld [vmem:[#allocation9 + $0x698] sm:$0xff]
      %v4254 = vld [vmem:[#allocation9 + $0x6a0] sm:$0xff]
      %v4255 = vld [vmem:[#allocation9 + $0x6a8] sm:$0xff]
      %v4256 = vld [vmem:[#allocation9 + $0x6b0] sm:$0xff]
      %v4257 = vld [vmem:[#allocation9 + $0x6b8] sm:$0xff]
      %v4258 = vld [vmem:[#allocation9 + $0x6c0] sm:$0xff]
      %v4259 = vld [vmem:[#allocation9 + $0x6c8] sm:$0xff]
      %v4260 = vld [vmem:[#allocation9 + $0x6d0] sm:$0xff]
      %v4261 = vld [vmem:[#allocation9 + $0x6d8] sm:$0xff]
      %v4262 = vld [vmem:[#allocation9 + $0x6e0] sm:$0xff]
      %v4263 = vld [vmem:[#allocation9 + $0x6e8] sm:$0xff]
      %v4264 = vld [vmem:[#allocation9 + $0x6f0] sm:$0xff]
      %v4265 = vld [vmem:[#allocation9 + $0x6f8] sm:$0xff]
      %v4266 = vld [vmem:[#allocation9 + $0x700] sm:$0xff]
      %v4267 = vld [vmem:[#allocation9 + $0x708] sm:$0xff]
      %v4268 = vld [vmem:[#allocation9 + $0x710] sm:$0xff]
      %v4269 = vld [vmem:[#allocation9 + $0x718] sm:$0xff]
      %v4270 = vld [vmem:[#allocation9 + $0x720] sm:$0xff]
      %v4271 = vld [vmem:[#allocation9 + $0x728] sm:$0xff]
      %v4272 = vld [vmem:[#allocation9 + $0x730] sm:$0xff]
      %v4273 = vld [vmem:[#allocation9 + $0x738] sm:$0xff]
      %v4274 = vld [vmem:[#allocation9 + $0x740] sm:$0xff]
      %v4275 = vld [vmem:[#allocation9 + $0x748] sm:$0xff]
      %v4276 = vld [vmem:[#allocation9 + $0x750] sm:$0xff]
      %v4277 = vld [vmem:[#allocation9 + $0x758] sm:$0xff]
      %v4278 = vld [vmem:[#allocation9 + $0x760] sm:$0xff]
      %v4279 = vld [vmem:[#allocation9 + $0x768] sm:$0xff]
      %v4280 = vld [vmem:[#allocation9 + $0x770] sm:$0xff]
      %v4281 = vld [vmem:[#allocation9 + $0x778] sm:$0xff]
      %v4282 = vld [vmem:[#allocation9 + $0x780] sm:$0xff]
      %v4283 = vld [vmem:[#allocation9 + $0x788] sm:$0xff]
      %v4284 = vld [vmem:[#allocation9 + $0x790] sm:$0xff]
      %v4285 = vld [vmem:[#allocation9 + $0x798] sm:$0xff]
      %v4286 = vld [vmem:[#allocation9 + $0x7a0] sm:$0xff]
      %v4287 = vld [vmem:[#allocation9 + $0x7a8] sm:$0xff]
      %v4288 = vld [vmem:[#allocation9 + $0x7b0] sm:$0xff]
      %v4289 = vld [vmem:[#allocation9 + $0x7b8] sm:$0xff]
      %v4290 = vld [vmem:[#allocation9 + $0x7c0] sm:$0xff]
      %v4291 = vld [vmem:[#allocation9 + $0x7c8] sm:$0xff]
      %v4292 = vld [vmem:[#allocation9 + $0x7d0] sm:$0xff]
      %v4293 = vld [vmem:[#allocation9 + $0x7d8] sm:$0xff]
      %v4294 = vld [vmem:[#allocation9 + $0x7e0] sm:$0xff]
      %v4295 = vld [vmem:[#allocation9 + $0x7e8] sm:$0xff]
      %v4296 = vld [vmem:[#allocation9 + $0x7f0] sm:$0xff]
      %v4297 = vld [vmem:[#allocation9 + $0x7f8] sm:$0xff]
      %v4298 = vld [vmem:[#allocation11] sm:$0xf]
      %v4300 = vlaneseq
      %v4301 = vshrl.u32 %v4300, 7
      %v4302 = vsub.s32 0, %v4301
      %v4303 = vrot.slane %v4298, %v4302
      %v4304 = vlaneseq
      %v4305 = vshrl.u32 %v4304, 7
      %v4306 = vsub.s32 1, %v4305
      %v4307 = vrot.slane %v4298, %v4306
      %v4308 = vlaneseq
      %v4309 = vshrl.u32 %v4308, 7
      %v4310 = vsub.s32 2, %v4309
      %v4311 = vrot.slane %v4298, %v4310
      %v4312 = vlaneseq
      %v4313 = vshrl.u32 %v4312, 7
      %v4314 = vsub.s32 3, %v4313
      %v4315 = vrot.slane %v4298, %v4314
      %v4576 = vunpack.c.l.b16 %v4042
      %v4577 = vunpack.c.h.b16 %v4042
      %v4578 = vunpack.c.l.b16 %v4043
      %v4579 = vunpack.c.h.b16 %v4043
      %v4580 = vunpack.c.l.b16 %v4044
      %v4581 = vunpack.c.h.b16 %v4044
      %v4582 = vunpack.c.l.b16 %v4045
      %v4583 = vunpack.c.h.b16 %v4045
      %v4584 = vunpack.c.l.b16 %v4046
      %v4585 = vunpack.c.h.b16 %v4046
      %v4586 = vunpack.c.l.b16 %v4047
      %v4587 = vunpack.c.h.b16 %v4047
      %v4588 = vunpack.c.l.b16 %v4048
      %v4589 = vunpack.c.h.b16 %v4048
      %v4590 = vunpack.c.l.b16 %v4049
      %v4591 = vunpack.c.h.b16 %v4049
      %v4592 = vunpack.c.l.b16 %v4050
      %v4593 = vunpack.c.h.b16 %v4050
      %v4594 = vunpack.c.l.b16 %v4051
      %v4595 = vunpack.c.h.b16 %v4051
      %v4596 = vunpack.c.l.b16 %v4052
      %v4597 = vunpack.c.h.b16 %v4052
      %v4598 = vunpack.c.l.b16 %v4053
      %v4599 = vunpack.c.h.b16 %v4053
      %v4600 = vunpack.c.l.b16 %v4054
      %v4601 = vunpack.c.h.b16 %v4054
      %v4602 = vunpack.c.l.b16 %v4055
      %v4603 = vunpack.c.h.b16 %v4055
      %v4604 = vunpack.c.l.b16 %v4056
      %v4605 = vunpack.c.h.b16 %v4056
      %v4606 = vunpack.c.l.b16 %v4057
      %v4607 = vunpack.c.h.b16 %v4057
      %v4608 = vunpack.c.l.b16 %v4058
      %v4609 = vunpack.c.h.b16 %v4058
      %v4610 = vunpack.c.l.b16 %v4059
      %v4611 = vunpack.c.h.b16 %v4059
      %v4612 = vunpack.c.l.b16 %v4060
      %v4613 = vunpack.c.h.b16 %v4060
      %v4614 = vunpack.c.l.b16 %v4061
      %v4615 = vunpack.c.h.b16 %v4061
      %v4616 = vunpack.c.l.b16 %v4062
      %v4617 = vunpack.c.h.b16 %v4062
      %v4618 = vunpack.c.l.b16 %v4063
      %v4619 = vunpack.c.h.b16 %v4063
      %v4620 = vunpack.c.l.b16 %v4064
      %v4621 = vunpack.c.h.b16 %v4064
      %v4622 = vunpack.c.l.b16 %v4065
      %v4623 = vunpack.c.h.b16 %v4065
      %v4624 = vunpack.c.l.b16 %v4066
      %v4625 = vunpack.c.h.b16 %v4066
      %v4626 = vunpack.c.l.b16 %v4067
      %v4627 = vunpack.c.h.b16 %v4067
      %v4628 = vunpack.c.l.b16 %v4068
      %v4629 = vunpack.c.h.b16 %v4068
      %v4630 = vunpack.c.l.b16 %v4069
      %v4631 = vunpack.c.h.b16 %v4069
      %v4632 = vunpack.c.l.b16 %v4070
      %v4633 = vunpack.c.h.b16 %v4070
      %v4634 = vunpack.c.l.b16 %v4071
      %v4635 = vunpack.c.h.b16 %v4071
      %v4636 = vunpack.c.l.b16 %v4072
      %v4637 = vunpack.c.h.b16 %v4072
      %v4638 = vunpack.c.l.b16 %v4073
      %v4639 = vunpack.c.h.b16 %v4073
      %v4640 = vunpack.c.l.b16 %v4074
      %v4641 = vunpack.c.h.b16 %v4074
      %v4642 = vunpack.c.l.b16 %v4075
      %v4643 = vunpack.c.h.b16 %v4075
      %v4644 = vunpack.c.l.b16 %v4076
      %v4645 = vunpack.c.h.b16 %v4076
      %v4646 = vunpack.c.l.b16 %v4077
      %v4647 = vunpack.c.h.b16 %v4077
      %v4648 = vunpack.c.l.b16 %v4078
      %v4649 = vunpack.c.h.b16 %v4078
      %v4650 = vunpack.c.l.b16 %v4079
      %v4651 = vunpack.c.h.b16 %v4079
      %v4652 = vunpack.c.l.b16 %v4080
      %v4653 = vunpack.c.h.b16 %v4080
      %v4654 = vunpack.c.l.b16 %v4081
      %v4655 = vunpack.c.h.b16 %v4081
      %v4656 = vunpack.c.l.b16 %v4082
      %v4657 = vunpack.c.h.b16 %v4082
      %v4658 = vunpack.c.l.b16 %v4083
      %v4659 = vunpack.c.h.b16 %v4083
      %v4660 = vunpack.c.l.b16 %v4084
      %v4661 = vunpack.c.h.b16 %v4084
      %v4662 = vunpack.c.l.b16 %v4085
      %v4663 = vunpack.c.h.b16 %v4085
      %v4664 = vunpack.c.l.b16 %v4086
      %v4665 = vunpack.c.h.b16 %v4086
      %v4666 = vunpack.c.l.b16 %v4087
      %v4667 = vunpack.c.h.b16 %v4087
      %v4668 = vunpack.c.l.b16 %v4088
      %v4669 = vunpack.c.h.b16 %v4088
      %v4670 = vunpack.c.l.b16 %v4089
      %v4671 = vunpack.c.h.b16 %v4089
      %v4672 = vunpack.c.l.b16 %v4090
      %v4673 = vunpack.c.h.b16 %v4090
      %v4674 = vunpack.c.l.b16 %v4091
      %v4675 = vunpack.c.h.b16 %v4091
      %v4676 = vunpack.c.l.b16 %v4092
      %v4677 = vunpack.c.h.b16 %v4092
      %v4678 = vunpack.c.l.b16 %v4093
      %v4679 = vunpack.c.h.b16 %v4093
      %v4680 = vunpack.c.l.b16 %v4094
      %v4681 = vunpack.c.h.b16 %v4094
      %v4682 = vunpack.c.l.b16 %v4095
      %v4683 = vunpack.c.h.b16 %v4095
      %v4684 = vunpack.c.l.b16 %v4096
      %v4685 = vunpack.c.h.b16 %v4096
      %v4686 = vunpack.c.l.b16 %v4097
      %v4687 = vunpack.c.h.b16 %v4097
      %v4688 = vunpack.c.l.b16 %v4098
      %v4689 = vunpack.c.h.b16 %v4098
      %v4690 = vunpack.c.l.b16 %v4099
      %v4691 = vunpack.c.h.b16 %v4099
      %v4692 = vunpack.c.l.b16 %v4100
      %v4693 = vunpack.c.h.b16 %v4100
      %v4694 = vunpack.c.l.b16 %v4101
      %v4695 = vunpack.c.h.b16 %v4101
      %v4696 = vunpack.c.l.b16 %v4102
      %v4697 = vunpack.c.h.b16 %v4102
      %v4698 = vunpack.c.l.b16 %v4103
      %v4699 = vunpack.c.h.b16 %v4103
      %v4700 = vunpack.c.l.b16 %v4104
      %v4701 = vunpack.c.h.b16 %v4104
      %v4702 = vunpack.c.l.b16 %v4105
      %v4703 = vunpack.c.h.b16 %v4105
      %v4704 = vunpack.c.l.b16 %v4106
      %v4705 = vunpack.c.h.b16 %v4106
      %v4706 = vunpack.c.l.b16 %v4107
      %v4707 = vunpack.c.h.b16 %v4107
      %v4708 = vunpack.c.l.b16 %v4108
      %v4709 = vunpack.c.h.b16 %v4108
      %v4710 = vunpack.c.l.b16 %v4109
      %v4711 = vunpack.c.h.b16 %v4109
      %v4712 = vunpack.c.l.b16 %v4110
      %v4713 = vunpack.c.h.b16 %v4110
      %v4714 = vunpack.c.l.b16 %v4111
      %v4715 = vunpack.c.h.b16 %v4111
      %v4716 = vunpack.c.l.b16 %v4112
      %v4717 = vunpack.c.h.b16 %v4112
      %v4718 = vunpack.c.l.b16 %v4113
      %v4719 = vunpack.c.h.b16 %v4113
      %v4720 = vunpack.c.l.b16 %v4114
      %v4721 = vunpack.c.h.b16 %v4114
      %v4722 = vunpack.c.l.b16 %v4115
      %v4723 = vunpack.c.h.b16 %v4115
      %v4724 = vunpack.c.l.b16 %v4116
      %v4725 = vunpack.c.h.b16 %v4116
      %v4726 = vunpack.c.l.b16 %v4117
      %v4727 = vunpack.c.h.b16 %v4117
      %v4728 = vunpack.c.l.b16 %v4118
      %v4729 = vunpack.c.h.b16 %v4118
      %v4730 = vunpack.c.l.b16 %v4119
      %v4731 = vunpack.c.h.b16 %v4119
      %v4732 = vunpack.c.l.b16 %v4120
      %v4733 = vunpack.c.h.b16 %v4120
      %v4734 = vunpack.c.l.b16 %v4121
      %v4735 = vunpack.c.h.b16 %v4121
      %v4736 = vunpack.c.l.b16 %v4122
      %v4737 = vunpack.c.h.b16 %v4122
      %v4738 = vunpack.c.l.b16 %v4123
      %v4739 = vunpack.c.h.b16 %v4123
      %v4740 = vunpack.c.l.b16 %v4124
      %v4741 = vunpack.c.h.b16 %v4124
      %v4742 = vunpack.c.l.b16 %v4125
      %v4743 = vunpack.c.h.b16 %v4125
      %v4744 = vunpack.c.l.b16 %v4126
      %v4745 = vunpack.c.h.b16 %v4126
      %v4746 = vunpack.c.l.b16 %v4127
      %v4747 = vunpack.c.h.b16 %v4127
      %v4748 = vunpack.c.l.b16 %v4128
      %v4749 = vunpack.c.h.b16 %v4128
      %v4750 = vunpack.c.l.b16 %v4129
      %v4751 = vunpack.c.h.b16 %v4129
      %v4752 = vunpack.c.l.b16 %v4130
      %v4753 = vunpack.c.h.b16 %v4130
      %v4754 = vunpack.c.l.b16 %v4131
      %v4755 = vunpack.c.h.b16 %v4131
      %v4756 = vunpack.c.l.b16 %v4132
      %v4757 = vunpack.c.h.b16 %v4132
      %v4758 = vunpack.c.l.b16 %v4133
      %v4759 = vunpack.c.h.b16 %v4133
      %v4760 = vunpack.c.l.b16 %v4134
      %v4761 = vunpack.c.h.b16 %v4134
      %v4762 = vunpack.c.l.b16 %v4135
      %v4763 = vunpack.c.h.b16 %v4135
      %v4764 = vunpack.c.l.b16 %v4136
      %v4765 = vunpack.c.h.b16 %v4136
      %v4766 = vunpack.c.l.b16 %v4137
      %v4767 = vunpack.c.h.b16 %v4137
      %v4768 = vunpack.c.l.b16 %v4138
      %v4769 = vunpack.c.h.b16 %v4138
      %v4770 = vunpack.c.l.b16 %v4139
      %v4771 = vunpack.c.h.b16 %v4139
      %v4772 = vunpack.c.l.b16 %v4140
      %v4773 = vunpack.c.h.b16 %v4140
      %v4774 = vunpack.c.l.b16 %v4141
      %v4775 = vunpack.c.h.b16 %v4141
      %v4776 = vunpack.c.l.b16 %v4142
      %v4777 = vunpack.c.h.b16 %v4142
      %v4778 = vunpack.c.l.b16 %v4143
      %v4779 = vunpack.c.h.b16 %v4143
      %v4780 = vunpack.c.l.b16 %v4144
      %v4781 = vunpack.c.h.b16 %v4144
      %v4782 = vunpack.c.l.b16 %v4145
      %v4783 = vunpack.c.h.b16 %v4145
      %v4784 = vunpack.c.l.b16 %v4146
      %v4785 = vunpack.c.h.b16 %v4146
      %v4786 = vunpack.c.l.b16 %v4147
      %v4787 = vunpack.c.h.b16 %v4147
      %v4788 = vunpack.c.l.b16 %v4148
      %v4789 = vunpack.c.h.b16 %v4148
      %v4790 = vunpack.c.l.b16 %v4149
      %v4791 = vunpack.c.h.b16 %v4149
      %v4792 = vunpack.c.l.b16 %v4150
      %v4793 = vunpack.c.h.b16 %v4150
      %v4794 = vunpack.c.l.b16 %v4151
      %v4795 = vunpack.c.h.b16 %v4151
      %v4796 = vunpack.c.l.b16 %v4152
      %v4797 = vunpack.c.h.b16 %v4152
      %v4798 = vunpack.c.l.b16 %v4153
      %v4799 = vunpack.c.h.b16 %v4153
      %v4800 = vunpack.c.l.b16 %v4154
      %v4801 = vunpack.c.h.b16 %v4154
      %v4802 = vunpack.c.l.b16 %v4155
      %v4803 = vunpack.c.h.b16 %v4155
      %v4804 = vunpack.c.l.b16 %v4156
      %v4805 = vunpack.c.h.b16 %v4156
      %v4806 = vunpack.c.l.b16 %v4157
      %v4807 = vunpack.c.h.b16 %v4157
      %v4808 = vunpack.c.l.b16 %v4158
      %v4809 = vunpack.c.h.b16 %v4158
      %v4810 = vunpack.c.l.b16 %v4159
      %v4811 = vunpack.c.h.b16 %v4159
      %v4812 = vunpack.c.l.b16 %v4160
      %v4813 = vunpack.c.h.b16 %v4160
      %v4814 = vunpack.c.l.b16 %v4161
      %v4815 = vunpack.c.h.b16 %v4161
      %v4816 = vunpack.c.l.b16 %v4162
      %v4817 = vunpack.c.h.b16 %v4162
      %v4818 = vunpack.c.l.b16 %v4163
      %v4819 = vunpack.c.h.b16 %v4163
      %v4820 = vunpack.c.l.b16 %v4164
      %v4821 = vunpack.c.h.b16 %v4164
      %v4822 = vunpack.c.l.b16 %v4165
      %v4823 = vunpack.c.h.b16 %v4165
      %v4824 = vunpack.c.l.b16 %v4166
      %v4825 = vunpack.c.h.b16 %v4166
      %v4826 = vunpack.c.l.b16 %v4167
      %v4827 = vunpack.c.h.b16 %v4167
      %v4828 = vunpack.c.l.b16 %v4168
      %v4829 = vunpack.c.h.b16 %v4168
      %v4830 = vunpack.c.l.b16 %v4169
      %v4831 = vunpack.c.h.b16 %v4169
      %v4832 = vunpack.c.l.b16 %v4170
      %v4833 = vunpack.c.h.b16 %v4170
      %v4834 = vunpack.c.l.b16 %v4171
      %v4835 = vunpack.c.h.b16 %v4171
      %v4836 = vunpack.c.l.b16 %v4172
      %v4837 = vunpack.c.h.b16 %v4172
      %v4838 = vunpack.c.l.b16 %v4173
      %v4839 = vunpack.c.h.b16 %v4173
      %v4840 = vunpack.c.l.b16 %v4174
      %v4841 = vunpack.c.h.b16 %v4174
      %v4842 = vunpack.c.l.b16 %v4175
      %v4843 = vunpack.c.h.b16 %v4175
      %v4844 = vunpack.c.l.b16 %v4176
      %v4845 = vunpack.c.h.b16 %v4176
      %v4846 = vunpack.c.l.b16 %v4177
      %v4847 = vunpack.c.h.b16 %v4177
      %v4848 = vunpack.c.l.b16 %v4178
      %v4849 = vunpack.c.h.b16 %v4178
      %v4850 = vunpack.c.l.b16 %v4179
      %v4851 = vunpack.c.h.b16 %v4179
      %v4852 = vunpack.c.l.b16 %v4180
      %v4853 = vunpack.c.h.b16 %v4180
      %v4854 = vunpack.c.l.b16 %v4181
      %v4855 = vunpack.c.h.b16 %v4181
      %v4856 = vunpack.c.l.b16 %v4182
      %v4857 = vunpack.c.h.b16 %v4182
      %v4858 = vunpack.c.l.b16 %v4183
      %v4859 = vunpack.c.h.b16 %v4183
      %v4860 = vunpack.c.l.b16 %v4184
      %v4861 = vunpack.c.h.b16 %v4184
      %v4862 = vunpack.c.l.b16 %v4185
      %v4863 = vunpack.c.h.b16 %v4185
      %v4864 = vunpack.c.l.b16 %v4186
      %v4865 = vunpack.c.h.b16 %v4186
      %v4866 = vunpack.c.l.b16 %v4187
      %v4867 = vunpack.c.h.b16 %v4187
      %v4868 = vunpack.c.l.b16 %v4188
      %v4869 = vunpack.c.h.b16 %v4188
      %v4870 = vunpack.c.l.b16 %v4189
      %v4871 = vunpack.c.h.b16 %v4189
      %v4872 = vunpack.c.l.b16 %v4190
      %v4873 = vunpack.c.h.b16 %v4190
      %v4874 = vunpack.c.l.b16 %v4191
      %v4875 = vunpack.c.h.b16 %v4191
      %v4876 = vunpack.c.l.b16 %v4192
      %v4877 = vunpack.c.h.b16 %v4192
      %v4878 = vunpack.c.l.b16 %v4193
      %v4879 = vunpack.c.h.b16 %v4193
      %v4880 = vunpack.c.l.b16 %v4194
      %v4881 = vunpack.c.h.b16 %v4194
      %v4882 = vunpack.c.l.b16 %v4195
      %v4883 = vunpack.c.h.b16 %v4195
      %v4884 = vunpack.c.l.b16 %v4196
      %v4885 = vunpack.c.h.b16 %v4196
      %v4886 = vunpack.c.l.b16 %v4197
      %v4887 = vunpack.c.h.b16 %v4197
      %v4888 = vunpack.c.l.b16 %v4198
      %v4889 = vunpack.c.h.b16 %v4198
      %v4890 = vunpack.c.l.b16 %v4199
      %v4891 = vunpack.c.h.b16 %v4199
      %v4892 = vunpack.c.l.b16 %v4200
      %v4893 = vunpack.c.h.b16 %v4200
      %v4894 = vunpack.c.l.b16 %v4201
      %v4895 = vunpack.c.h.b16 %v4201
      %v4896 = vunpack.c.l.b16 %v4202
      %v4897 = vunpack.c.h.b16 %v4202
      %v4898 = vunpack.c.l.b16 %v4203
      %v4899 = vunpack.c.h.b16 %v4203
      %v4900 = vunpack.c.l.b16 %v4204
      %v4901 = vunpack.c.h.b16 %v4204
      %v4902 = vunpack.c.l.b16 %v4205
      %v4903 = vunpack.c.h.b16 %v4205
      %v4904 = vunpack.c.l.b16 %v4206
      %v4905 = vunpack.c.h.b16 %v4206
      %v4906 = vunpack.c.l.b16 %v4207
      %v4907 = vunpack.c.h.b16 %v4207
      %v4908 = vunpack.c.l.b16 %v4208
      %v4909 = vunpack.c.h.b16 %v4208
      %v4910 = vunpack.c.l.b16 %v4209
      %v4911 = vunpack.c.h.b16 %v4209
      %v4912 = vunpack.c.l.b16 %v4210
      %v4913 = vunpack.c.h.b16 %v4210
      %v4914 = vunpack.c.l.b16 %v4211
      %v4915 = vunpack.c.h.b16 %v4211
      %v4916 = vunpack.c.l.b16 %v4212
      %v4917 = vunpack.c.h.b16 %v4212
      %v4918 = vunpack.c.l.b16 %v4213
      %v4919 = vunpack.c.h.b16 %v4213
      %v4920 = vunpack.c.l.b16 %v4214
      %v4921 = vunpack.c.h.b16 %v4214
      %v4922 = vunpack.c.l.b16 %v4215
      %v4923 = vunpack.c.h.b16 %v4215
      %v4924 = vunpack.c.l.b16 %v4216
      %v4925 = vunpack.c.h.b16 %v4216
      %v4926 = vunpack.c.l.b16 %v4217
      %v4927 = vunpack.c.h.b16 %v4217
      %v4928 = vunpack.c.l.b16 %v4218
      %v4929 = vunpack.c.h.b16 %v4218
      %v4930 = vunpack.c.l.b16 %v4219
      %v4931 = vunpack.c.h.b16 %v4219
      %v4932 = vunpack.c.l.b16 %v4220
      %v4933 = vunpack.c.h.b16 %v4220
      %v4934 = vunpack.c.l.b16 %v4221
      %v4935 = vunpack.c.h.b16 %v4221
      %v4936 = vunpack.c.l.b16 %v4222
      %v4937 = vunpack.c.h.b16 %v4222
      %v4938 = vunpack.c.l.b16 %v4223
      %v4939 = vunpack.c.h.b16 %v4223
      %v4940 = vunpack.c.l.b16 %v4224
      %v4941 = vunpack.c.h.b16 %v4224
      %v4942 = vunpack.c.l.b16 %v4225
      %v4943 = vunpack.c.h.b16 %v4225
      %v4944 = vunpack.c.l.b16 %v4226
      %v4945 = vunpack.c.h.b16 %v4226
      %v4946 = vunpack.c.l.b16 %v4227
      %v4947 = vunpack.c.h.b16 %v4227
      %v4948 = vunpack.c.l.b16 %v4228
      %v4949 = vunpack.c.h.b16 %v4228
      %v4950 = vunpack.c.l.b16 %v4229
      %v4951 = vunpack.c.h.b16 %v4229
      %v4952 = vunpack.c.l.b16 %v4230
      %v4953 = vunpack.c.h.b16 %v4230
      %v4954 = vunpack.c.l.b16 %v4231
      %v4955 = vunpack.c.h.b16 %v4231
      %v4956 = vunpack.c.l.b16 %v4232
      %v4957 = vunpack.c.h.b16 %v4232
      %v4958 = vunpack.c.l.b16 %v4233
      %v4959 = vunpack.c.h.b16 %v4233
      %v4960 = vunpack.c.l.b16 %v4234
      %v4961 = vunpack.c.h.b16 %v4234
      %v4962 = vunpack.c.l.b16 %v4235
      %v4963 = vunpack.c.h.b16 %v4235
      %v4964 = vunpack.c.l.b16 %v4236
      %v4965 = vunpack.c.h.b16 %v4236
      %v4966 = vunpack.c.l.b16 %v4237
      %v4967 = vunpack.c.h.b16 %v4237
      %v4968 = vunpack.c.l.b16 %v4238
      %v4969 = vunpack.c.h.b16 %v4238
      %v4970 = vunpack.c.l.b16 %v4239
      %v4971 = vunpack.c.h.b16 %v4239
      %v4972 = vunpack.c.l.b16 %v4240
      %v4973 = vunpack.c.h.b16 %v4240
      %v4974 = vunpack.c.l.b16 %v4241
      %v4975 = vunpack.c.h.b16 %v4241
      %v4976 = vunpack.c.l.b16 %v4242
      %v4977 = vunpack.c.h.b16 %v4242
      %v4978 = vunpack.c.l.b16 %v4243
      %v4979 = vunpack.c.h.b16 %v4243
      %v4980 = vunpack.c.l.b16 %v4244
      %v4981 = vunpack.c.h.b16 %v4244
      %v4982 = vunpack.c.l.b16 %v4245
      %v4983 = vunpack.c.h.b16 %v4245
      %v4984 = vunpack.c.l.b16 %v4246
      %v4985 = vunpack.c.h.b16 %v4246
      %v4986 = vunpack.c.l.b16 %v4247
      %v4987 = vunpack.c.h.b16 %v4247
      %v4988 = vunpack.c.l.b16 %v4248
      %v4989 = vunpack.c.h.b16 %v4248
      %v4990 = vunpack.c.l.b16 %v4249
      %v4991 = vunpack.c.h.b16 %v4249
      %v4992 = vunpack.c.l.b16 %v4250
      %v4993 = vunpack.c.h.b16 %v4250
      %v4994 = vunpack.c.l.b16 %v4251
      %v4995 = vunpack.c.h.b16 %v4251
      %v4996 = vunpack.c.l.b16 %v4252
      %v4997 = vunpack.c.h.b16 %v4252
      %v4998 = vunpack.c.l.b16 %v4253
      %v4999 = vunpack.c.h.b16 %v4253
      %v5000 = vunpack.c.l.b16 %v4254
      %v5001 = vunpack.c.h.b16 %v4254
      %v5002 = vunpack.c.l.b16 %v4255
      %v5003 = vunpack.c.h.b16 %v4255
      %v5004 = vunpack.c.l.b16 %v4256
      %v5005 = vunpack.c.h.b16 %v4256
      %v5006 = vunpack.c.l.b16 %v4257
      %v5007 = vunpack.c.h.b16 %v4257
      %v5008 = vunpack.c.l.b16 %v4258
      %v5009 = vunpack.c.h.b16 %v4258
      %v5010 = vunpack.c.l.b16 %v4259
      %v5011 = vunpack.c.h.b16 %v4259
      %v5012 = vunpack.c.l.b16 %v4260
      %v5013 = vunpack.c.h.b16 %v4260
      %v5014 = vunpack.c.l.b16 %v4261
      %v5015 = vunpack.c.h.b16 %v4261
      %v5016 = vunpack.c.l.b16 %v4262
      %v5017 = vunpack.c.h.b16 %v4262
      %v5018 = vunpack.c.l.b16 %v4263
      %v5019 = vunpack.c.h.b16 %v4263
      %v5020 = vunpack.c.l.b16 %v4264
      %v5021 = vunpack.c.h.b16 %v4264
      %v5022 = vunpack.c.l.b16 %v4265
      %v5023 = vunpack.c.h.b16 %v4265
      %v5024 = vunpack.c.l.b16 %v4266
      %v5025 = vunpack.c.h.b16 %v4266
      %v5026 = vunpack.c.l.b16 %v4267
      %v5027 = vunpack.c.h.b16 %v4267
      %v5028 = vunpack.c.l.b16 %v4268
      %v5029 = vunpack.c.h.b16 %v4268
      %v5030 = vunpack.c.l.b16 %v4269
      %v5031 = vunpack.c.h.b16 %v4269
      %v5032 = vunpack.c.l.b16 %v4270
      %v5033 = vunpack.c.h.b16 %v4270
      %v5034 = vunpack.c.l.b16 %v4271
      %v5035 = vunpack.c.h.b16 %v4271
      %v5036 = vunpack.c.l.b16 %v4272
      %v5037 = vunpack.c.h.b16 %v4272
      %v5038 = vunpack.c.l.b16 %v4273
      %v5039 = vunpack.c.h.b16 %v4273
      %v5040 = vunpack.c.l.b16 %v4274
      %v5041 = vunpack.c.h.b16 %v4274
      %v5042 = vunpack.c.l.b16 %v4275
      %v5043 = vunpack.c.h.b16 %v4275
      %v5044 = vunpack.c.l.b16 %v4276
      %v5045 = vunpack.c.h.b16 %v4276
      %v5046 = vunpack.c.l.b16 %v4277
      %v5047 = vunpack.c.h.b16 %v4277
      %v5048 = vunpack.c.l.b16 %v4278
      %v5049 = vunpack.c.h.b16 %v4278
      %v5050 = vunpack.c.l.b16 %v4279
      %v5051 = vunpack.c.h.b16 %v4279
      %v5052 = vunpack.c.l.b16 %v4280
      %v5053 = vunpack.c.h.b16 %v4280
      %v5054 = vunpack.c.l.b16 %v4281
      %v5055 = vunpack.c.h.b16 %v4281
      %v5056 = vunpack.c.l.b16 %v4282
      %v5057 = vunpack.c.h.b16 %v4282
      %v5058 = vunpack.c.l.b16 %v4283
      %v5059 = vunpack.c.h.b16 %v4283
      %v5060 = vunpack.c.l.b16 %v4284
      %v5061 = vunpack.c.h.b16 %v4284
      %v5062 = vunpack.c.l.b16 %v4285
      %v5063 = vunpack.c.h.b16 %v4285
      %v5064 = vunpack.c.l.b16 %v4286
      %v5065 = vunpack.c.h.b16 %v4286
      %v5066 = vunpack.c.l.b16 %v4287
      %v5067 = vunpack.c.h.b16 %v4287
      %v5068 = vunpack.c.l.b16 %v4288
      %v5069 = vunpack.c.h.b16 %v4288
      %v5070 = vunpack.c.l.b16 %v4289
      %v5071 = vunpack.c.h.b16 %v4289
      %v5072 = vunpack.c.l.b16 %v4290
      %v5073 = vunpack.c.h.b16 %v4290
      %v5074 = vunpack.c.l.b16 %v4291
      %v5075 = vunpack.c.h.b16 %v4291
      %v5076 = vunpack.c.l.b16 %v4292
      %v5077 = vunpack.c.h.b16 %v4292
      %v5078 = vunpack.c.l.b16 %v4293
      %v5079 = vunpack.c.h.b16 %v4293
      %v5080 = vunpack.c.l.b16 %v4294
      %v5081 = vunpack.c.h.b16 %v4294
      %v5082 = vunpack.c.l.b16 %v4295
      %v5083 = vunpack.c.h.b16 %v4295
      %v5084 = vunpack.c.l.b16 %v4296
      %v5085 = vunpack.c.h.b16 %v4296
      %v5086 = vunpack.c.l.b16 %v4297
      %v5087 = vunpack.c.h.b16 %v4297
      %v5088 = vpack.c.b16 %v4580, %v4576
      %v5089 = vpack.c.b16 %v4581, %v4577
      %v5090 = vpack.c.b16 %v4582, %v4578
      %v5091 = vpack.c.b16 %v4583, %v4579
      %v5092 = vpack.c.b16 %v4588, %v4584
      %v5093 = vpack.c.b16 %v4589, %v4585
      %v5094 = vpack.c.b16 %v4590, %v4586
      %v5095 = vpack.c.b16 %v4591, %v4587
      %v5096 = vpack.c.b16 %v4596, %v4592
      %v5097 = vpack.c.b16 %v4597, %v4593
      %v5098 = vpack.c.b16 %v4598, %v4594
      %v5099 = vpack.c.b16 %v4599, %v4595
      %v5100 = vpack.c.b16 %v4604, %v4600
      %v5101 = vpack.c.b16 %v4605, %v4601
      %v5102 = vpack.c.b16 %v4606, %v4602
      %v5103 = vpack.c.b16 %v4607, %v4603
      %v5104 = vpack.c.b16 %v4612, %v4608
      %v5105 = vpack.c.b16 %v4613, %v4609
      %v5106 = vpack.c.b16 %v4614, %v4610
      %v5107 = vpack.c.b16 %v4615, %v4611
      %v5108 = vpack.c.b16 %v4620, %v4616
      %v5109 = vpack.c.b16 %v4621, %v4617
      %v5110 = vpack.c.b16 %v4622, %v4618
      %v5111 = vpack.c.b16 %v4623, %v4619
      %v5112 = vpack.c.b16 %v4628, %v4624
      %v5113 = vpack.c.b16 %v4629, %v4625
      %v5114 = vpack.c.b16 %v4630, %v4626
      %v5115 = vpack.c.b16 %v4631, %v4627
      %v5116 = vpack.c.b16 %v4636, %v4632
      %v5117 = vpack.c.b16 %v4637, %v4633
      %v5118 = vpack.c.b16 %v4638, %v4634
      %v5119 = vpack.c.b16 %v4639, %v4635
      %v5120 = vpack.c.b16 %v4644, %v4640
      %v5121 = vpack.c.b16 %v4645, %v4641
      %v5122 = vpack.c.b16 %v4646, %v4642
      %v5123 = vpack.c.b16 %v4647, %v4643
      %v5124 = vpack.c.b16 %v4652, %v4648
      %v5125 = vpack.c.b16 %v4653, %v4649
      %v5126 = vpack.c.b16 %v4654, %v4650
      %v5127 = vpack.c.b16 %v4655, %v4651
      %v5128 = vpack.c.b16 %v4660, %v4656
      %v5129 = vpack.c.b16 %v4661, %v4657
      %v5130 = vpack.c.b16 %v4662, %v4658
      %v5131 = vpack.c.b16 %v4663, %v4659
      %v5132 = vpack.c.b16 %v4668, %v4664
      %v5133 = vpack.c.b16 %v4669, %v4665
      %v5134 = vpack.c.b16 %v4670, %v4666
      %v5135 = vpack.c.b16 %v4671, %v4667
      %v5136 = vpack.c.b16 %v4676, %v4672
      %v5137 = vpack.c.b16 %v4677, %v4673
      %v5138 = vpack.c.b16 %v4678, %v4674
      %v5139 = vpack.c.b16 %v4679, %v4675
      %v5140 = vpack.c.b16 %v4684, %v4680
      %v5141 = vpack.c.b16 %v4685, %v4681
      %v5142 = vpack.c.b16 %v4686, %v4682
      %v5143 = vpack.c.b16 %v4687, %v4683
      %v5144 = vpack.c.b16 %v4692, %v4688
      %v5145 = vpack.c.b16 %v4693, %v4689
      %v5146 = vpack.c.b16 %v4694, %v4690
      %v5147 = vpack.c.b16 %v4695, %v4691
      %v5148 = vpack.c.b16 %v4700, %v4696
      %v5149 = vpack.c.b16 %v4701, %v4697
      %v5150 = vpack.c.b16 %v4702, %v4698
      %v5151 = vpack.c.b16 %v4703, %v4699
      %v5152 = vpack.c.b16 %v4708, %v4704
      %v5153 = vpack.c.b16 %v4709, %v4705
      %v5154 = vpack.c.b16 %v4710, %v4706
      %v5155 = vpack.c.b16 %v4711, %v4707
      %v5156 = vpack.c.b16 %v4716, %v4712
      %v5157 = vpack.c.b16 %v4717, %v4713
      %v5158 = vpack.c.b16 %v4718, %v4714
      %v5159 = vpack.c.b16 %v4719, %v4715
      %v5160 = vpack.c.b16 %v4724, %v4720
      %v5161 = vpack.c.b16 %v4725, %v4721
      %v5162 = vpack.c.b16 %v4726, %v4722
      %v5163 = vpack.c.b16 %v4727, %v4723
      %v5164 = vpack.c.b16 %v4732, %v4728
      %v5165 = vpack.c.b16 %v4733, %v4729
      %v5166 = vpack.c.b16 %v4734, %v4730
      %v5167 = vpack.c.b16 %v4735, %v4731
      %v5168 = vpack.c.b16 %v4740, %v4736
      %v5169 = vpack.c.b16 %v4741, %v4737
      %v5170 = vpack.c.b16 %v4742, %v4738
      %v5171 = vpack.c.b16 %v4743, %v4739
      %v5172 = vpack.c.b16 %v4748, %v4744
      %v5173 = vpack.c.b16 %v4749, %v4745
      %v5174 = vpack.c.b16 %v4750, %v4746
      %v5175 = vpack.c.b16 %v4751, %v4747
      %v5176 = vpack.c.b16 %v4756, %v4752
      %v5177 = vpack.c.b16 %v4757, %v4753
      %v5178 = vpack.c.b16 %v4758, %v4754
      %v5179 = vpack.c.b16 %v4759, %v4755
      %v5180 = vpack.c.b16 %v4764, %v4760
      %v5181 = vpack.c.b16 %v4765, %v4761
      %v5182 = vpack.c.b16 %v4766, %v4762
      %v5183 = vpack.c.b16 %v4767, %v4763
      %v5184 = vpack.c.b16 %v4772, %v4768
      %v5185 = vpack.c.b16 %v4773, %v4769
      %v5186 = vpack.c.b16 %v4774, %v4770
      %v5187 = vpack.c.b16 %v4775, %v4771
      %v5188 = vpack.c.b16 %v4780, %v4776
      %v5189 = vpack.c.b16 %v4781, %v4777
      %v5190 = vpack.c.b16 %v4782, %v4778
      %v5191 = vpack.c.b16 %v4783, %v4779
      %v5192 = vpack.c.b16 %v4788, %v4784
      %v5193 = vpack.c.b16 %v4789, %v4785
      %v5194 = vpack.c.b16 %v4790, %v4786
      %v5195 = vpack.c.b16 %v4791, %v4787
      %v5196 = vpack.c.b16 %v4796, %v4792
      %v5197 = vpack.c.b16 %v4797, %v4793
      %v5198 = vpack.c.b16 %v4798, %v4794
      %v5199 = vpack.c.b16 %v4799, %v4795
      %v5200 = vpack.c.b16 %v4804, %v4800
      %v5201 = vpack.c.b16 %v4805, %v4801
      %v5202 = vpack.c.b16 %v4806, %v4802
      %v5203 = vpack.c.b16 %v4807, %v4803
      %v5204 = vpack.c.b16 %v4812, %v4808
      %v5205 = vpack.c.b16 %v4813, %v4809
      %v5206 = vpack.c.b16 %v4814, %v4810
      %v5207 = vpack.c.b16 %v4815, %v4811
      %v5208 = vpack.c.b16 %v4820, %v4816
      %v5209 = vpack.c.b16 %v4821, %v4817
      %v5210 = vpack.c.b16 %v4822, %v4818
      %v5211 = vpack.c.b16 %v4823, %v4819
      %v5212 = vpack.c.b16 %v4828, %v4824
      %v5213 = vpack.c.b16 %v4829, %v4825
      %v5214 = vpack.c.b16 %v4830, %v4826
      %v5215 = vpack.c.b16 %v4831, %v4827
      %v5216 = vpack.c.b16 %v4836, %v4832
      %v5217 = vpack.c.b16 %v4837, %v4833
      %v5218 = vpack.c.b16 %v4838, %v4834
      %v5219 = vpack.c.b16 %v4839, %v4835
      %v5220 = vpack.c.b16 %v4844, %v4840
      %v5221 = vpack.c.b16 %v4845, %v4841
      %v5222 = vpack.c.b16 %v4846, %v4842
      %v5223 = vpack.c.b16 %v4847, %v4843
      %v5224 = vpack.c.b16 %v4852, %v4848
      %v5225 = vpack.c.b16 %v4853, %v4849
      %v5226 = vpack.c.b16 %v4854, %v4850
      %v5227 = vpack.c.b16 %v4855, %v4851
      %v5228 = vpack.c.b16 %v4860, %v4856
      %v5229 = vpack.c.b16 %v4861, %v4857
      %v5230 = vpack.c.b16 %v4862, %v4858
      %v5231 = vpack.c.b16 %v4863, %v4859
      %v5232 = vpack.c.b16 %v4868, %v4864
      %v5233 = vpack.c.b16 %v4869, %v4865
      %v5234 = vpack.c.b16 %v4870, %v4866
      %v5235 = vpack.c.b16 %v4871, %v4867
      %v5236 = vpack.c.b16 %v4876, %v4872
      %v5237 = vpack.c.b16 %v4877, %v4873
      %v5238 = vpack.c.b16 %v4878, %v4874
      %v5239 = vpack.c.b16 %v4879, %v4875
      %v5240 = vpack.c.b16 %v4884, %v4880
      %v5241 = vpack.c.b16 %v4885, %v4881
      %v5242 = vpack.c.b16 %v4886, %v4882
      %v5243 = vpack.c.b16 %v4887, %v4883
      %v5244 = vpack.c.b16 %v4892, %v4888
      %v5245 = vpack.c.b16 %v4893, %v4889
      %v5246 = vpack.c.b16 %v4894, %v4890
      %v5247 = vpack.c.b16 %v4895, %v4891
      %v5248 = vpack.c.b16 %v4900, %v4896
      %v5249 = vpack.c.b16 %v4901, %v4897
      %v5250 = vpack.c.b16 %v4902, %v4898
      %v5251 = vpack.c.b16 %v4903, %v4899
      %v5252 = vpack.c.b16 %v4908, %v4904
      %v5253 = vpack.c.b16 %v4909, %v4905
      %v5254 = vpack.c.b16 %v4910, %v4906
      %v5255 = vpack.c.b16 %v4911, %v4907
      %v5256 = vpack.c.b16 %v4916, %v4912
      %v5257 = vpack.c.b16 %v4917, %v4913
      %v5258 = vpack.c.b16 %v4918, %v4914
      %v5259 = vpack.c.b16 %v4919, %v4915
      %v5260 = vpack.c.b16 %v4924, %v4920
      %v5261 = vpack.c.b16 %v4925, %v4921
      %v5262 = vpack.c.b16 %v4926, %v4922
      %v5263 = vpack.c.b16 %v4927, %v4923
      %v5264 = vpack.c.b16 %v4932, %v4928
      %v5265 = vpack.c.b16 %v4933, %v4929
      %v5266 = vpack.c.b16 %v4934, %v4930
      %v5267 = vpack.c.b16 %v4935, %v4931
      %v5268 = vpack.c.b16 %v4940, %v4936
      %v5269 = vpack.c.b16 %v4941, %v4937
      %v5270 = vpack.c.b16 %v4942, %v4938
      %v5271 = vpack.c.b16 %v4943, %v4939
      %v5272 = vpack.c.b16 %v4948, %v4944
      %v5273 = vpack.c.b16 %v4949, %v4945
      %v5274 = vpack.c.b16 %v4950, %v4946
      %v5275 = vpack.c.b16 %v4951, %v4947
      %v5276 = vpack.c.b16 %v4956, %v4952
      %v5277 = vpack.c.b16 %v4957, %v4953
      %v5278 = vpack.c.b16 %v4958, %v4954
      %v5279 = vpack.c.b16 %v4959, %v4955
      %v5280 = vpack.c.b16 %v4964, %v4960
      %v5281 = vpack.c.b16 %v4965, %v4961
      %v5282 = vpack.c.b16 %v4966, %v4962
      %v5283 = vpack.c.b16 %v4967, %v4963
      %v5284 = vpack.c.b16 %v4972, %v4968
      %v5285 = vpack.c.b16 %v4973, %v4969
      %v5286 = vpack.c.b16 %v4974, %v4970
      %v5287 = vpack.c.b16 %v4975, %v4971
      %v5288 = vpack.c.b16 %v4980, %v4976
      %v5289 = vpack.c.b16 %v4981, %v4977
      %v5290 = vpack.c.b16 %v4982, %v4978
      %v5291 = vpack.c.b16 %v4983, %v4979
      %v5292 = vpack.c.b16 %v4988, %v4984
      %v5293 = vpack.c.b16 %v4989, %v4985
      %v5294 = vpack.c.b16 %v4990, %v4986
      %v5295 = vpack.c.b16 %v4991, %v4987
      %v5296 = vpack.c.b16 %v4996, %v4992
      %v5297 = vpack.c.b16 %v4997, %v4993
      %v5298 = vpack.c.b16 %v4998, %v4994
      %v5299 = vpack.c.b16 %v4999, %v4995
      %v5300 = vpack.c.b16 %v5004, %v5000
      %v5301 = vpack.c.b16 %v5005, %v5001
      %v5302 = vpack.c.b16 %v5006, %v5002
      %v5303 = vpack.c.b16 %v5007, %v5003
      %v5304 = vpack.c.b16 %v5012, %v5008
      %v5305 = vpack.c.b16 %v5013, %v5009
      %v5306 = vpack.c.b16 %v5014, %v5010
      %v5307 = vpack.c.b16 %v5015, %v5011
      %v5308 = vpack.c.b16 %v5020, %v5016
      %v5309 = vpack.c.b16 %v5021, %v5017
      %v5310 = vpack.c.b16 %v5022, %v5018
      %v5311 = vpack.c.b16 %v5023, %v5019
      %v5312 = vpack.c.b16 %v5028, %v5024
      %v5313 = vpack.c.b16 %v5029, %v5025
      %v5314 = vpack.c.b16 %v5030, %v5026
      %v5315 = vpack.c.b16 %v5031, %v5027
      %v5316 = vpack.c.b16 %v5036, %v5032
      %v5317 = vpack.c.b16 %v5037, %v5033
      %v5318 = vpack.c.b16 %v5038, %v5034
      %v5319 = vpack.c.b16 %v5039, %v5035
      %v5320 = vpack.c.b16 %v5044, %v5040
      %v5321 = vpack.c.b16 %v5045, %v5041
      %v5322 = vpack.c.b16 %v5046, %v5042
      %v5323 = vpack.c.b16 %v5047, %v5043
      %v5324 = vpack.c.b16 %v5052, %v5048
      %v5325 = vpack.c.b16 %v5053, %v5049
      %v5326 = vpack.c.b16 %v5054, %v5050
      %v5327 = vpack.c.b16 %v5055, %v5051
      %v5328 = vpack.c.b16 %v5060, %v5056
      %v5329 = vpack.c.b16 %v5061, %v5057
      %v5330 = vpack.c.b16 %v5062, %v5058
      %v5331 = vpack.c.b16 %v5063, %v5059
      %v5332 = vpack.c.b16 %v5068, %v5064
      %v5333 = vpack.c.b16 %v5069, %v5065
      %v5334 = vpack.c.b16 %v5070, %v5066
      %v5335 = vpack.c.b16 %v5071, %v5067
      %v5336 = vpack.c.b16 %v5076, %v5072
      %v5337 = vpack.c.b16 %v5077, %v5073
      %v5338 = vpack.c.b16 %v5078, %v5074
      %v5339 = vpack.c.b16 %v5079, %v5075
      %v5340 = vpack.c.b16 %v5084, %v5080
      %v5341 = vpack.c.b16 %v5085, %v5081
      %v5342 = vpack.c.b16 %v5086, %v5082
      %v5343 = vpack.c.b16 %v5087, %v5083
      %5600 = vmatprep.subr.bf16.mxu0 %v5089
      %5601 = vmatpush1.bf16.msra.mxu0 %v5088
      %5602 = vmatprep.subr.bf16.mxu0 %v5093
      %5603 = vmatpush1.bf16.msra.mxu0 %v5092
      %5604 = vmatprep.subr.bf16.mxu0 %v5097
      %5605 = vmatpush1.bf16.msra.mxu0 %v5096
      %5606 = vmatprep.subr.bf16.mxu0 %v5101
      %5607 = vmatpush1.bf16.msra.mxu0 %v5100
      %5608 = vmatprep.subr.bf16.mxu0 %v5105
      %5609 = vmatpush1.bf16.msra.mxu0 %v5104
      %5610 = vmatprep.subr.bf16.mxu0 %v5109
      %5611 = vmatpush1.bf16.msra.mxu0 %v5108
      %5612 = vmatprep.subr.bf16.mxu0 %v5113
      %5613 = vmatpush1.bf16.msra.mxu0 %v5112
      %5614 = vmatprep.subr.bf16.mxu0 %v5117
      %5615 = vmatpush1.bf16.msra.mxu0 %v5116
      %5616 = vmatprep.subr.bf16.mxu0 %v5121
      %5617 = vmatpush1.bf16.msra.mxu0 %v5120
      %5618 = vmatprep.subr.bf16.mxu0 %v5125
      %5619 = vmatpush1.bf16.msra.mxu0 %v5124
      %5620 = vmatprep.subr.bf16.mxu0 %v5129
      %5621 = vmatpush1.bf16.msra.mxu0 %v5128
      %5622 = vmatprep.subr.bf16.mxu0 %v5133
      %5623 = vmatpush1.bf16.msra.mxu0 %v5132
      %5624 = vmatprep.subr.bf16.mxu0 %v5137
      %5625 = vmatpush1.bf16.msra.mxu0 %v5136
      %5626 = vmatprep.subr.bf16.mxu0 %v5141
      %5627 = vmatpush1.bf16.msra.mxu0 %v5140
      %5628 = vmatprep.subr.bf16.mxu0 %v5145
      %5629 = vmatpush1.bf16.msra.mxu0 %v5144
      %5630 = vmatprep.subr.bf16.mxu0 %v5149
      %5631 = vmatpush1.bf16.msra.mxu0 %v5148
      %5632 = vmatprep.mubr.bf16.mxu0 %v4035
      %5633 = vmatmul.mubr.bf16.gmra.mrb[0].mxu0 %v4034
      %v5634 = vpop.f32.mrb[0].mxu0
      %v5635 = vadd.f32 %v4303, %v5634
      %v5636 = vpop.f32.mrb[0].mxu0
      %v5637 = vadd.f32 %v4307, %v5636
      %v5638 = vpop.f32.mrb[0].mxu0
      %v5639 = vpop.f32.mrb[0].mxu0
      %5640 = vdwg.mxu0
      %5641 = vmatprep.subr.bf16.mxu0 %v5153
      %5642 = vmatpush1.bf16.msra.mxu0 %v5152
      %5643 = vmatprep.subr.bf16.mxu0 %v5157
      %5644 = vmatpush1.bf16.msra.mxu0 %v5156
      %5645 = vmatprep.subr.bf16.mxu0 %v5161
      %5646 = vmatpush1.bf16.msra.mxu0 %v5160
      %5647 = vmatprep.subr.bf16.mxu0 %v5165
      %5648 = vmatpush1.bf16.msra.mxu0 %v5164
      %5649 = vmatprep.subr.bf16.mxu0 %v5169
      %5650 = vmatpush1.bf16.msra.mxu0 %v5168
      %5651 = vmatprep.subr.bf16.mxu0 %v5173
      %5652 = vmatpush1.bf16.msra.mxu0 %v5172
      %5653 = vmatprep.subr.bf16.mxu0 %v5177
      %5654 = vmatpush1.bf16.msra.mxu0 %v5176
      %5655 = vmatprep.subr.bf16.mxu0 %v5181
      %5656 = vmatpush1.bf16.msra.mxu0 %v5180
      %5657 = vmatprep.subr.bf16.mxu0 %v5185
      %5658 = vmatpush1.bf16.msra.mxu0 %v5184
      %5659 = vmatprep.subr.bf16.mxu0 %v5189
      %5660 = vmatpush1.bf16.msra.mxu0 %v5188
      %5661 = vmatprep.subr.bf16.mxu0 %v5193
      %5662 = vmatpush1.bf16.msra.mxu0 %v5192
      %5663 = vmatprep.subr.bf16.mxu0 %v5197
      %5664 = vmatpush1.bf16.msra.mxu0 %v5196
      %5665 = vmatprep.subr.bf16.mxu0 %v5201
      %5666 = vmatpush1.bf16.msra.mxu0 %v5200
      %5667 = vmatprep.subr.bf16.mxu0 %v5205
      %5668 = vmatpush1.bf16.msra.mxu0 %v5204
      %5669 = vmatprep.subr.bf16.mxu0 %v5209
      %5670 = vmatpush1.bf16.msra.mxu0 %v5208
      %5671 = vmatprep.subr.bf16.mxu0 %v5213
      %5672 = vmatpush1.bf16.msra.mxu0 %v5212
      %5673 = vmatprep.mubr.bf16.mxu0 %v4037
      %5674 = vmatmul.mubr.bf16.gmra.mrb[0].mxu0 %v4036
      %v5675 = vpop.f32.mrb[0].mxu0
      %v5676 = vadd.f32 %v5635, %v5675
      %v5677 = vpop.f32.mrb[0].mxu0
      %v5678 = vadd.f32 %v5637, %v5677
      %v5679 = vpop.f32.mrb[0].mxu0
      %v5680 = vpop.f32.mrb[0].mxu0
      %5681 = vdwg.mxu0
      %5682 = vmatprep.subr.bf16.mxu0 %v5217
      %5683 = vmatpush1.bf16.msra.mxu0 %v5216
      %5684 = vmatprep.subr.bf16.mxu0 %v5221
      %5685 = vmatpush1.bf16.msra.mxu0 %v5220
      %5686 = vmatprep.subr.bf16.mxu0 %v5225
      %5687 = vmatpush1.bf16.msra.mxu0 %v5224
      %5688 = vmatprep.subr.bf16.mxu0 %v5229
      %5689 = vmatpush1.bf16.msra.mxu0 %v5228
      %5690 = vmatprep.subr.bf16.mxu0 %v5233
      %5691 = vmatpush1.bf16.msra.mxu0 %v5232
      %5692 = vmatprep.subr.bf16.mxu0 %v5237
      %5693 = vmatpush1.bf16.msra.mxu0 %v5236
      %5694 = vmatprep.subr.bf16.mxu0 %v5241
      %5695 = vmatpush1.bf16.msra.mxu0 %v5240
      %5696 = vmatprep.subr.bf16.mxu0 %v5245
      %5697 = vmatpush1.bf16.msra.mxu0 %v5244
      %5698 = vmatprep.subr.bf16.mxu0 %v5249
      %5699 = vmatpush1.bf16.msra.mxu0 %v5248
      %5700 = vmatprep.subr.bf16.mxu0 %v5253
      %5701 = vmatpush1.bf16.msra.mxu0 %v5252
      %5702 = vmatprep.subr.bf16.mxu0 %v5257
      %5703 = vmatpush1.bf16.msra.mxu0 %v5256
      %5704 = vmatprep.subr.bf16.mxu0 %v5261
      %5705 = vmatpush1.bf16.msra.mxu0 %v5260
      %5706 = vmatprep.subr.bf16.mxu0 %v5265
      %5707 = vmatpush1.bf16.msra.mxu0 %v5264
      %5708 = vmatprep.subr.bf16.mxu0 %v5269
      %5709 = vmatpush1.bf16.msra.mxu0 %v5268
      %5710 = vmatprep.subr.bf16.mxu0 %v5273
      %5711 = vmatpush1.bf16.msra.mxu0 %v5272
      %5712 = vmatprep.subr.bf16.mxu0 %v5277
      %5713 = vmatpush1.bf16.msra.mxu0 %v5276
      %5714 = vmatprep.mubr.bf16.mxu0 %v4039
      %5715 = vmatmul.mubr.bf16.gmra.mrb[0].mxu0 %v4038
      %v5716 = vpop.f32.mrb[0].mxu0
      %v5717 = vadd.f32 %v5676, %v5716
      %v5718 = vpop.f32.mrb[0].mxu0
      %v5719 = vadd.f32 %v5678, %v5718
      %v5720 = vpop.f32.mrb[0].mxu0
      %v5721 = vpop.f32.mrb[0].mxu0
      %5722 = vdwg.mxu0
      %5723 = vmatprep.subr.bf16.mxu0 %v5281
      %5724 = vmatpush1.bf16.msra.mxu0 %v5280
      %5725 = vmatprep.subr.bf16.mxu0 %v5285
      %5726 = vmatpush1.bf16.msra.mxu0 %v5284
      %5727 = vmatprep.subr.bf16.mxu0 %v5289
      %5728 = vmatpush1.bf16.msra.mxu0 %v5288
      %5729 = vmatprep.subr.bf16.mxu0 %v5293
      %5730 = vmatpush1.bf16.msra.mxu0 %v5292
      %5731 = vmatprep.subr.bf16.mxu0 %v5297
      %5732 = vmatpush1.bf16.msra.mxu0 %v5296
      %5733 = vmatprep.subr.bf16.mxu0 %v5301
      %5734 = vmatpush1.bf16.msra.mxu0 %v5300
      %5735 = vmatprep.subr.bf16.mxu0 %v5305
      %5736 = vmatpush1.bf16.msra.mxu0 %v5304
      %5737 = vmatprep.subr.bf16.mxu0 %v5309
      %5738 = vmatpush1.bf16.msra.mxu0 %v5308
      %5739 = vmatprep.subr.bf16.mxu0 %v5313
      %5740 = vmatpush1.bf16.msra.mxu0 %v5312
      %5741 = vmatprep.subr.bf16.mxu0 %v5317
      %5742 = vmatpush1.bf16.msra.mxu0 %v5316
      %5743 = vmatprep.subr.bf16.mxu0 %v5321
      %5744 = vmatpush1.bf16.msra.mxu0 %v5320
      %5745 = vmatprep.subr.bf16.mxu0 %v5325
      %5746 = vmatpush1.bf16.msra.mxu0 %v5324
      %5747 = vmatprep.subr.bf16.mxu0 %v5329
      %5748 = vmatpush1.bf16.msra.mxu0 %v5328
      %5749 = vmatprep.subr.bf16.mxu0 %v5333
      %5750 = vmatpush1.bf16.msra.mxu0 %v5332
      %5751 = vmatprep.subr.bf16.mxu0 %v5337
      %5752 = vmatpush1.bf16.msra.mxu0 %v5336
      %5753 = vmatprep.subr.bf16.mxu0 %v5341
      %5754 = vmatpush1.bf16.msra.mxu0 %v5340
      %5755 = vmatprep.mubr.bf16.mxu0 %v4041
      %5756 = vmatmul.mubr.bf16.gmra.mrb[0].mxu0 %v4040
      %v5757 = vpop.f32.mrb[0].mxu0
      %v5758 = vadd.f32 %v5717, %v5757
      %v5759 = vpop.f32.mrb[0].mxu0
      %v5760 = vadd.f32 %v5719, %v5759
      %v5761 = vpop.f32.mrb[0].mxu0
      %v5762 = vpop.f32.mrb[0].mxu0
      %5763 = vdwg.mxu0
      %5764 = vmatprep.subr.bf16.mxu0 %v5091
      %5765 = vmatpush1.bf16.msra.mxu0 %v5090
      %5766 = vmatprep.subr.bf16.mxu0 %v5095
      %5767 = vmatpush1.bf16.msra.mxu0 %v5094
      %5768 = vmatprep.subr.bf16.mxu0 %v5099
      %5769 = vmatpush1.bf16.msra.mxu0 %v5098
      %5770 = vmatprep.subr.bf16.mxu0 %v5103
      %5771 = vmatpush1.bf16.msra.mxu0 %v5102
      %5772 = vmatprep.subr.bf16.mxu0 %v5107
      %5773 = vmatpush1.bf16.msra.mxu0 %v5106
      %5774 = vmatprep.subr.bf16.mxu0 %v5111
      %5775 = vmatpush1.bf16.msra.mxu0 %v5110
      %5776 = vmatprep.subr.bf16.mxu0 %v5115
      %5777 = vmatpush1.bf16.msra.mxu0 %v5114
      %5778 = vmatprep.subr.bf16.mxu0 %v5119
      %5779 = vmatpush1.bf16.msra.mxu0 %v5118
      %5780 = vmatprep.subr.bf16.mxu0 %v5123
      %5781 = vmatpush1.bf16.msra.mxu0 %v5122
      %5782 = vmatprep.subr.bf16.mxu0 %v5127
      %5783 = vmatpush1.bf16.msra.mxu0 %v5126
      %5784 = vmatprep.subr.bf16.mxu0 %v5131
      %5785 = vmatpush1.bf16.msra.mxu0 %v5130
      %5786 = vmatprep.subr.bf16.mxu0 %v5135
      %5787 = vmatpush1.bf16.msra.mxu0 %v5134
      %5788 = vmatprep.subr.bf16.mxu0 %v5139
      %5789 = vmatpush1.bf16.msra.mxu0 %v5138
      %5790 = vmatprep.subr.bf16.mxu0 %v5143
      %5791 = vmatpush1.bf16.msra.mxu0 %v5142
      %5792 = vmatprep.subr.bf16.mxu0 %v5147
      %5793 = vmatpush1.bf16.msra.mxu0 %v5146
      %5794 = vmatprep.subr.bf16.mxu0 %v5151
      %5795 = vmatpush1.bf16.msra.mxu0 %v5150
      %5796 = vmatprep.mubr.bf16.mxu0 %v4035
      %5797 = vmatmul.mubr.bf16.gmra.mrb[0].mxu0 %v4034
      %v5798 = vpop.f32.mrb[0].mxu0
      %v5799 = vadd.f32 %v4311, %v5798
      %v5800 = vpop.f32.mrb[0].mxu0
      %v5801 = vadd.f32 %v4315, %v5800
      %v5802 = vpop.f32.mrb[0].mxu0
      %v5803 = vpop.f32.mrb[0].mxu0
      %5804 = vdwg.mxu0
      %5805 = vmatprep.subr.bf16.mxu0 %v5155
      %5806 = vmatpush1.bf16.msra.mxu0 %v5154
      %5807 = vmatprep.subr.bf16.mxu0 %v5159
      %5808 = vmatpush1.bf16.msra.mxu0 %v5158
      %5809 = vmatprep.subr.bf16.mxu0 %v5163
      %5810 = vmatpush1.bf16.msra.mxu0 %v5162
      %5811 = vmatprep.subr.bf16.mxu0 %v5167
      %5812 = vmatpush1.bf16.msra.mxu0 %v5166
      %5813 = vmatprep.subr.bf16.mxu0 %v5171
      %5814 = vmatpush1.bf16.msra.mxu0 %v5170
      %5815 = vmatprep.subr.bf16.mxu0 %v5175
      %5816 = vmatpush1.bf16.msra.mxu0 %v5174
      %5817 = vmatprep.subr.bf16.mxu0 %v5179
      %5818 = vmatpush1.bf16.msra.mxu0 %v5178
      %5819 = vmatprep.subr.bf16.mxu0 %v5183
      %5820 = vmatpush1.bf16.msra.mxu0 %v5182
      %5821 = vmatprep.subr.bf16.mxu0 %v5187
      %5822 = vmatpush1.bf16.msra.mxu0 %v5186
      %5823 = vmatprep.subr.bf16.mxu0 %v5191
      %5824 = vmatpush1.bf16.msra.mxu0 %v5190
      %5825 = vmatprep.subr.bf16.mxu0 %v5195
      %5826 = vmatpush1.bf16.msra.mxu0 %v5194
      %5827 = vmatprep.subr.bf16.mxu0 %v5199
      %5828 = vmatpush1.bf16.msra.mxu0 %v5198
      %5829 = vmatprep.subr.bf16.mxu0 %v5203
      %5830 = vmatpush1.bf16.msra.mxu0 %v5202
      %5831 = vmatprep.subr.bf16.mxu0 %v5207
      %5832 = vmatpush1.bf16.msra.mxu0 %v5206
      %5833 = vmatprep.subr.bf16.mxu0 %v5211
      %5834 = vmatpush1.bf16.msra.mxu0 %v5210
      %5835 = vmatprep.subr.bf16.mxu0 %v5215
      %5836 = vmatpush1.bf16.msra.mxu0 %v5214
      %5837 = vmatprep.mubr.bf16.mxu0 %v4037
      %5838 = vmatmul.mubr.bf16.gmra.mrb[0].mxu0 %v4036
      %v5839 = vpop.f32.mrb[0].mxu0
      %v5840 = vadd.f32 %v5799, %v5839
      %v5841 = vpop.f32.mrb[0].mxu0
      %v5842 = vadd.f32 %v5801, %v5841
      %v5843 = vpop.f32.mrb[0].mxu0
      %v5844 = vpop.f32.mrb[0].mxu0
      %5845 = vdwg.mxu0
      %5846 = vmatprep.subr.bf16.mxu0 %v5219
      %5847 = vmatpush1.bf16.msra.mxu0 %v5218
      %5848 = vmatprep.subr.bf16.mxu0 %v5223
      %5849 = vmatpush1.bf16.msra.mxu0 %v5222
      %5850 = vmatprep.subr.bf16.mxu0 %v5227
      %5851 = vmatpush1.bf16.msra.mxu0 %v5226
      %5852 = vmatprep.subr.bf16.mxu0 %v5231
      %5853 = vmatpush1.bf16.msra.mxu0 %v5230
      %5854 = vmatprep.subr.bf16.mxu0 %v5235
      %5855 = vmatpush1.bf16.msra.mxu0 %v5234
      %5856 = vmatprep.subr.bf16.mxu0 %v5239
      %5857 = vmatpush1.bf16.msra.mxu0 %v5238
      %5858 = vmatprep.subr.bf16.mxu0 %v5243
      %5859 = vmatpush1.bf16.msra.mxu0 %v5242
      %5860 = vmatprep.subr.bf16.mxu0 %v5247
      %5861 = vmatpush1.bf16.msra.mxu0 %v5246
      %5862 = vmatprep.subr.bf16.mxu0 %v5251
      %5863 = vmatpush1.bf16.msra.mxu0 %v5250
      %5864 = vmatprep.subr.bf16.mxu0 %v5255
      %5865 = vmatpush1.bf16.msra.mxu0 %v5254
      %5866 = vmatprep.subr.bf16.mxu0 %v5259
      %5867 = vmatpush1.bf16.msra.mxu0 %v5258
      %5868 = vmatprep.subr.bf16.mxu0 %v5263
      %5869 = vmatpush1.bf16.msra.mxu0 %v5262
      %5870 = vmatprep.subr.bf16.mxu0 %v5267
      %5871 = vmatpush1.bf16.msra.mxu0 %v5266
      %5872 = vmatprep.subr.bf16.mxu0 %v5271
      %5873 = vmatpush1.bf16.msra.mxu0 %v5270
      %5874 = vmatprep.subr.bf16.mxu0 %v5275
      %5875 = vmatpush1.bf16.msra.mxu0 %v5274
      %5876 = vmatprep.subr.bf16.mxu0 %v5279
      %5877 = vmatpush1.bf16.msra.mxu0 %v5278
      %5878 = vmatprep.mubr.bf16.mxu0 %v4039
      %5879 = vmatmul.mubr.bf16.gmra.mrb[0].mxu0 %v4038
      %v5880 = vpop.f32.mrb[0].mxu0
      %v5881 = vadd.f32 %v5840, %v5880
      %v5882 = vpop.f32.mrb[0].mxu0
      %v5883 = vadd.f32 %v5842, %v5882
      %v5884 = vpop.f32.mrb[0].mxu0
      %v5885 = vpop.f32.mrb[0].mxu0
      %5886 = vdwg.mxu0
      %5887 = vmatprep.subr.bf16.mxu0 %v5283
      %5888 = vmatpush1.bf16.msra.mxu0 %v5282
      %5889 = vmatprep.subr.bf16.mxu0 %v5287
      %5890 = vmatpush1.bf16.msra.mxu0 %v5286
      %5891 = vmatprep.subr.bf16.mxu0 %v5291
      %5892 = vmatpush1.bf16.msra.mxu0 %v5290
      %5893 = vmatprep.subr.bf16.mxu0 %v5295
      %5894 = vmatpush1.bf16.msra.mxu0 %v5294
      %5895 = vmatprep.subr.bf16.mxu0 %v5299
      %5896 = vmatpush1.bf16.msra.mxu0 %v5298
      %5897 = vmatprep.subr.bf16.mxu0 %v5303
      %5898 = vmatpush1.bf16.msra.mxu0 %v5302
      %5899 = vmatprep.subr.bf16.mxu0 %v5307
      %5900 = vmatpush1.bf16.msra.mxu0 %v5306
      %5901 = vmatprep.subr.bf16.mxu0 %v5311
      %5902 = vmatpush1.bf16.msra.mxu0 %v5310
      %5903 = vmatprep.subr.bf16.mxu0 %v5315
      %5904 = vmatpush1.bf16.msra.mxu0 %v5314
      %5905 = vmatprep.subr.bf16.mxu0 %v5319
      %5906 = vmatpush1.bf16.msra.mxu0 %v5318
      %5907 = vmatprep.subr.bf16.mxu0 %v5323
      %5908 = vmatpush1.bf16.msra.mxu0 %v5322
      %5909 = vmatprep.subr.bf16.mxu0 %v5327
      %5910 = vmatpush1.bf16.msra.mxu0 %v5326
      %5911 = vmatprep.subr.bf16.mxu0 %v5331
      %5912 = vmatpush1.bf16.msra.mxu0 %v5330
      %5913 = vmatprep.subr.bf16.mxu0 %v5335
      %5914 = vmatpush1.bf16.msra.mxu0 %v5334
      %5915 = vmatprep.subr.bf16.mxu0 %v5339
      %5916 = vmatpush1.bf16.msra.mxu0 %v5338
      %5917 = vmatprep.subr.bf16.mxu0 %v5343
      %5918 = vmatpush1.bf16.msra.mxu0 %v5342
      %5919 = vmatprep.mubr.bf16.mxu0 %v4041
      %5920 = vmatmul.mubr.bf16.gmra.mrb[0].mxu0 %v4040
      %v5921 = vpop.f32.mrb[0].mxu0
      %v5922 = vadd.f32 %v5881, %v5921
      %v5923 = vpop.f32.mrb[0].mxu0
      %v5924 = vadd.f32 %v5883, %v5923
      %v5925 = vpop.f32.mrb[0].mxu0
      %v5926 = vpop.f32.mrb[0].mxu0
      %5927 = vdwg.mxu0
      %v5928 = vmul.f32 %v5758, 0.2
      %v5929 = vmul.f32 %v5760, 0.2
      %v5930 = vmul.f32 %v5922, 0.2
      %v5931 = vmul.f32 %v5924, 0.2
      %v5932 = vmax.f32 %v5758, %v5928
      %v5933 = vmax.f32 %v5760, %v5929
      %v5934 = vmax.f32 %v5922, %v5930
      %v5935 = vmax.f32 %v5924, %v5931
      %v5936 = vpack.c.bf16 %v5932, %v5932
      %v5937 = vpack.c.bf16 %v5933, %v5933
      %v5938 = vpack.c.bf16 %v5934, %v5934
      %v5939 = vpack.c.bf16 %v5935, %v5935
      %v5940 = vld [vmem:[#allocation12] sm:$0xff]
      %v5941 = vld [vmem:[#allocation12 + $0x8] sm:$0xff]
      %v5942 = vld [vmem:[#allocation12 + $0x10] sm:$0xff]
      %v5943 = vld [vmem:[#allocation12 + $0x18] sm:$0xff]
      %v5944 = vld [vmem:[#allocation12 + $0x20] sm:$0xff]
      %v5945 = vld [vmem:[#allocation12 + $0x28] sm:$0xff]
      %v5946 = vld [vmem:[#allocation12 + $0x30] sm:$0xff]
      %v5947 = vld [vmem:[#allocation12 + $0x38] sm:$0xff]
      %v5948 = vld [vmem:[#allocation12 + $0x40] sm:$0xff]
      %v5949 = vld [vmem:[#allocation12 + $0x48] sm:$0xff]
      %v5950 = vld [vmem:[#allocation12 + $0x50] sm:$0xff]
      %v5951 = vld [vmem:[#allocation12 + $0x58] sm:$0xff]
      %v5952 = vld [vmem:[#allocation12 + $0x60] sm:$0xff]
      %v5953 = vld [vmem:[#allocation12 + $0x68] sm:$0xff]
      %v5954 = vld [vmem:[#allocation12 + $0x70] sm:$0xff]
      %v5955 = vld [vmem:[#allocation12 + $0x78] sm:$0xff]
      %v5956 = vld [vmem:[#allocation12 + $0x80] sm:$0xff]
      %v5957 = vld [vmem:[#allocation12 + $0x88] sm:$0xff]
      %v5958 = vld [vmem:[#allocation12 + $0x90] sm:$0xff]
      %v5959 = vld [vmem:[#allocation12 + $0x98] sm:$0xff]
      %v5960 = vld [vmem:[#allocation12 + $0xa0] sm:$0xff]
      %v5961 = vld [vmem:[#allocation12 + $0xa8] sm:$0xff]
      %v5962 = vld [vmem:[#allocation12 + $0xb0] sm:$0xff]
      %v5963 = vld [vmem:[#allocation12 + $0xb8] sm:$0xff]
      %v5964 = vld [vmem:[#allocation12 + $0xc0] sm:$0xff]
      %v5965 = vld [vmem:[#allocation12 + $0xc8] sm:$0xff]
      %v5966 = vld [vmem:[#allocation12 + $0xd0] sm:$0xff]
      %v5967 = vld [vmem:[#allocation12 + $0xd8] sm:$0xff]
      %v5968 = vld [vmem:[#allocation12 + $0xe0] sm:$0xff]
      %v5969 = vld [vmem:[#allocation12 + $0xe8] sm:$0xff]
      %v5970 = vld [vmem:[#allocation12 + $0xf0] sm:$0xff]
      %v5971 = vld [vmem:[#allocation12 + $0xf8] sm:$0xff]
      %v5972 = vld [vmem:[#allocation12 + $0x100] sm:$0xff]
      %v5973 = vld [vmem:[#allocation12 + $0x108] sm:$0xff]
      %v5974 = vld [vmem:[#allocation12 + $0x110] sm:$0xff]
      %v5975 = vld [vmem:[#allocation12 + $0x118] sm:$0xff]
      %v5976 = vld [vmem:[#allocation12 + $0x120] sm:$0xff]
      %v5977 = vld [vmem:[#allocation12 + $0x128] sm:$0xff]
      %v5978 = vld [vmem:[#allocation12 + $0x130] sm:$0xff]
      %v5979 = vld [vmem:[#allocation12 + $0x138] sm:$0xff]
      %v5980 = vld [vmem:[#allocation12 + $0x140] sm:$0xff]
      %v5981 = vld [vmem:[#allocation12 + $0x148] sm:$0xff]
      %v5982 = vld [vmem:[#allocation12 + $0x150] sm:$0xff]
      %v5983 = vld [vmem:[#allocation12 + $0x158] sm:$0xff]
      %v5984 = vld [vmem:[#allocation12 + $0x160] sm:$0xff]
      %v5985 = vld [vmem:[#allocation12 + $0x168] sm:$0xff]
      %v5986 = vld [vmem:[#allocation12 + $0x170] sm:$0xff]
      %v5987 = vld [vmem:[#allocation12 + $0x178] sm:$0xff]
      %v5988 = vld [vmem:[#allocation12 + $0x180] sm:$0xff]
      %v5989 = vld [vmem:[#allocation12 + $0x188] sm:$0xff]
      %v5990 = vld [vmem:[#allocation12 + $0x190] sm:$0xff]
      %v5991 = vld [vmem:[#allocation12 + $0x198] sm:$0xff]
      %v5992 = vld [vmem:[#allocation12 + $0x1a0] sm:$0xff]
      %v5993 = vld [vmem:[#allocation12 + $0x1a8] sm:$0xff]
      %v5994 = vld [vmem:[#allocation12 + $0x1b0] sm:$0xff]
      %v5995 = vld [vmem:[#allocation12 + $0x1b8] sm:$0xff]
      %v5996 = vld [vmem:[#allocation12 + $0x1c0] sm:$0xff]
      %v5997 = vld [vmem:[#allocation12 + $0x1c8] sm:$0xff]
      %v5998 = vld [vmem:[#allocation12 + $0x1d0] sm:$0xff]
      %v5999 = vld [vmem:[#allocation12 + $0x1d8] sm:$0xff]
      %v6000 = vld [vmem:[#allocation12 + $0x1e0] sm:$0xff]
      %v6001 = vld [vmem:[#allocation12 + $0x1e8] sm:$0xff]
      %v6002 = vld [vmem:[#allocation12 + $0x1f0] sm:$0xff]
      %v6003 = vld [vmem:[#allocation12 + $0x1f8] sm:$0xff]
      %v6004 = vld [vmem:[#allocation14] sm:$0x3]
      %v6006 = vlaneseq
      %v6007 = vshrl.u32 %v6006, 7
      %v6008 = vsub.s32 0, %v6007
      %v6009 = vrot.slane %v6004, %v6008
      %v6010 = vlaneseq
      %v6011 = vshrl.u32 %v6010, 7
      %v6012 = vsub.s32 1, %v6011
      %v6013 = vrot.slane %v6004, %v6012
      %v6080 = vunpack.c.l.b16 %v5940
      %v6081 = vunpack.c.h.b16 %v5940
      %v6082 = vunpack.c.l.b16 %v5941
      %v6083 = vunpack.c.h.b16 %v5941
      %v6084 = vunpack.c.l.b16 %v5942
      %v6085 = vunpack.c.h.b16 %v5942
      %v6086 = vunpack.c.l.b16 %v5943
      %v6087 = vunpack.c.h.b16 %v5943
      %v6088 = vunpack.c.l.b16 %v5944
      %v6089 = vunpack.c.h.b16 %v5944
      %v6090 = vunpack.c.l.b16 %v5945
      %v6091 = vunpack.c.h.b16 %v5945
      %v6092 = vunpack.c.l.b16 %v5946
      %v6093 = vunpack.c.h.b16 %v5946
      %v6094 = vunpack.c.l.b16 %v5947
      %v6095 = vunpack.c.h.b16 %v5947
      %v6096 = vunpack.c.l.b16 %v5948
      %v6097 = vunpack.c.h.b16 %v5948
      %v6098 = vunpack.c.l.b16 %v5949
      %v6099 = vunpack.c.h.b16 %v5949
      %v6100 = vunpack.c.l.b16 %v5950
      %v6101 = vunpack.c.h.b16 %v5950
      %v6102 = vunpack.c.l.b16 %v5951
      %v6103 = vunpack.c.h.b16 %v5951
      %v6104 = vunpack.c.l.b16 %v5952
      %v6105 = vunpack.c.h.b16 %v5952
      %v6106 = vunpack.c.l.b16 %v5953
      %v6107 = vunpack.c.h.b16 %v5953
      %v6108 = vunpack.c.l.b16 %v5954
      %v6109 = vunpack.c.h.b16 %v5954
      %v6110 = vunpack.c.l.b16 %v5955
      %v6111 = vunpack.c.h.b16 %v5955
      %v6112 = vunpack.c.l.b16 %v5956
      %v6113 = vunpack.c.h.b16 %v5956
      %v6114 = vunpack.c.l.b16 %v5957
      %v6115 = vunpack.c.h.b16 %v5957
      %v6116 = vunpack.c.l.b16 %v5958
      %v6117 = vunpack.c.h.b16 %v5958
      %v6118 = vunpack.c.l.b16 %v5959
      %v6119 = vunpack.c.h.b16 %v5959
      %v6120 = vunpack.c.l.b16 %v5960
      %v6121 = vunpack.c.h.b16 %v5960
      %v6122 = vunpack.c.l.b16 %v5961
      %v6123 = vunpack.c.h.b16 %v5961
      %v6124 = vunpack.c.l.b16 %v5962
      %v6125 = vunpack.c.h.b16 %v5962
      %v6126 = vunpack.c.l.b16 %v5963
      %v6127 = vunpack.c.h.b16 %v5963
      %v6128 = vunpack.c.l.b16 %v5964
      %v6129 = vunpack.c.h.b16 %v5964
      %v6130 = vunpack.c.l.b16 %v5965
      %v6131 = vunpack.c.h.b16 %v5965
      %v6132 = vunpack.c.l.b16 %v5966
      %v6133 = vunpack.c.h.b16 %v5966
      %v6134 = vunpack.c.l.b16 %v5967
      %v6135 = vunpack.c.h.b16 %v5967
      %v6136 = vunpack.c.l.b16 %v5968
      %v6137 = vunpack.c.h.b16 %v5968
      %v6138 = vunpack.c.l.b16 %v5969
      %v6139 = vunpack.c.h.b16 %v5969
      %v6140 = vunpack.c.l.b16 %v5970
      %v6141 = vunpack.c.h.b16 %v5970
      %v6142 = vunpack.c.l.b16 %v5971
      %v6143 = vunpack.c.h.b16 %v5971
      %v6144 = vunpack.c.l.b16 %v5972
      %v6145 = vunpack.c.h.b16 %v5972
      %v6146 = vunpack.c.l.b16 %v5973
      %v6147 = vunpack.c.h.b16 %v5973
      %v6148 = vunpack.c.l.b16 %v5974
      %v6149 = vunpack.c.h.b16 %v5974
      %v6150 = vunpack.c.l.b16 %v5975
      %v6151 = vunpack.c.h.b16 %v5975
      %v6152 = vunpack.c.l.b16 %v5976
      %v6153 = vunpack.c.h.b16 %v5976
      %v6154 = vunpack.c.l.b16 %v5977
      %v6155 = vunpack.c.h.b16 %v5977
      %v6156 = vunpack.c.l.b16 %v5978
      %v6157 = vunpack.c.h.b16 %v5978
      %v6158 = vunpack.c.l.b16 %v5979
      %v6159 = vunpack.c.h.b16 %v5979
      %v6160 = vunpack.c.l.b16 %v5980
      %v6161 = vunpack.c.h.b16 %v5980
      %v6162 = vunpack.c.l.b16 %v5981
      %v6163 = vunpack.c.h.b16 %v5981
      %v6164 = vunpack.c.l.b16 %v5982
      %v6165 = vunpack.c.h.b16 %v5982
      %v6166 = vunpack.c.l.b16 %v5983
      %v6167 = vunpack.c.h.b16 %v5983
      %v6168 = vunpack.c.l.b16 %v5984
      %v6169 = vunpack.c.h.b16 %v5984
      %v6170 = vunpack.c.l.b16 %v5985
      %v6171 = vunpack.c.h.b16 %v5985
      %v6172 = vunpack.c.l.b16 %v5986
      %v6173 = vunpack.c.h.b16 %v5986
      %v6174 = vunpack.c.l.b16 %v5987
      %v6175 = vunpack.c.h.b16 %v5987
      %v6176 = vunpack.c.l.b16 %v5988
      %v6177 = vunpack.c.h.b16 %v5988
      %v6178 = vunpack.c.l.b16 %v5989
      %v6179 = vunpack.c.h.b16 %v5989
      %v6180 = vunpack.c.l.b16 %v5990
      %v6181 = vunpack.c.h.b16 %v5990
      %v6182 = vunpack.c.l.b16 %v5991
      %v6183 = vunpack.c.h.b16 %v5991
      %v6184 = vunpack.c.l.b16 %v5992
      %v6185 = vunpack.c.h.b16 %v5992
      %v6186 = vunpack.c.l.b16 %v5993
      %v6187 = vunpack.c.h.b16 %v5993
      %v6188 = vunpack.c.l.b16 %v5994
      %v6189 = vunpack.c.h.b16 %v5994
      %v6190 = vunpack.c.l.b16 %v5995
      %v6191 = vunpack.c.h.b16 %v5995
      %v6192 = vunpack.c.l.b16 %v5996
      %v6193 = vunpack.c.h.b16 %v5996
      %v6194 = vunpack.c.l.b16 %v5997
      %v6195 = vunpack.c.h.b16 %v5997
      %v6196 = vunpack.c.l.b16 %v5998
      %v6197 = vunpack.c.h.b16 %v5998
      %v6198 = vunpack.c.l.b16 %v5999
      %v6199 = vunpack.c.h.b16 %v5999
      %v6200 = vunpack.c.l.b16 %v6000
      %v6201 = vunpack.c.h.b16 %v6000
      %v6202 = vunpack.c.l.b16 %v6001
      %v6203 = vunpack.c.h.b16 %v6001
      %v6204 = vunpack.c.l.b16 %v6002
      %v6205 = vunpack.c.h.b16 %v6002
      %v6206 = vunpack.c.l.b16 %v6003
      %v6207 = vunpack.c.h.b16 %v6003
      %v6208 = vpack.c.b16 %v6082, %v6080
      %v6209 = vpack.c.b16 %v6083, %v6081
      %v6210 = vpack.c.b16 %v6086, %v6084
      %v6211 = vpack.c.b16 %v6087, %v6085
      %v6212 = vpack.c.b16 %v6090, %v6088
      %v6213 = vpack.c.b16 %v6091, %v6089
      %v6214 = vpack.c.b16 %v6094, %v6092
      %v6215 = vpack.c.b16 %v6095, %v6093
      %v6216 = vpack.c.b16 %v6098, %v6096
      %v6217 = vpack.c.b16 %v6099, %v6097
      %v6218 = vpack.c.b16 %v6102, %v6100
      %v6219 = vpack.c.b16 %v6103, %v6101
      %v6220 = vpack.c.b16 %v6106, %v6104
      %v6221 = vpack.c.b16 %v6107, %v6105
      %v6222 = vpack.c.b16 %v6110, %v6108
      %v6223 = vpack.c.b16 %v6111, %v6109
      %v6224 = vpack.c.b16 %v6114, %v6112
      %v6225 = vpack.c.b16 %v6115, %v6113
      %v6226 = vpack.c.b16 %v6118, %v6116
      %v6227 = vpack.c.b16 %v6119, %v6117
      %v6228 = vpack.c.b16 %v6122, %v6120
      %v6229 = vpack.c.b16 %v6123, %v6121
      %v6230 = vpack.c.b16 %v6126, %v6124
      %v6231 = vpack.c.b16 %v6127, %v6125
      %v6232 = vpack.c.b16 %v6130, %v6128
      %v6233 = vpack.c.b16 %v6131, %v6129
      %v6234 = vpack.c.b16 %v6134, %v6132
      %v6235 = vpack.c.b16 %v6135, %v6133
      %v6236 = vpack.c.b16 %v6138, %v6136
      %v6237 = vpack.c.b16 %v6139, %v6137
      %v6238 = vpack.c.b16 %v6142, %v6140
      %v6239 = vpack.c.b16 %v6143, %v6141
      %v6240 = vpack.c.b16 %v6146, %v6144
      %v6241 = vpack.c.b16 %v6147, %v6145
      %v6242 = vpack.c.b16 %v6150, %v6148
      %v6243 = vpack.c.b16 %v6151, %v6149
      %v6244 = vpack.c.b16 %v6154, %v6152
      %v6245 = vpack.c.b16 %v6155, %v6153
      %v6246 = vpack.c.b16 %v6158, %v6156
      %v6247 = vpack.c.b16 %v6159, %v6157
      %v6248 = vpack.c.b16 %v6162, %v6160
      %v6249 = vpack.c.b16 %v6163, %v6161
      %v6250 = vpack.c.b16 %v6166, %v6164
      %v6251 = vpack.c.b16 %v6167, %v6165
      %v6252 = vpack.c.b16 %v6170, %v6168
      %v6253 = vpack.c.b16 %v6171, %v6169
      %v6254 = vpack.c.b16 %v6174, %v6172
      %v6255 = vpack.c.b16 %v6175, %v6173
      %v6256 = vpack.c.b16 %v6178, %v6176
      %v6257 = vpack.c.b16 %v6179, %v6177
      %v6258 = vpack.c.b16 %v6182, %v6180
      %v6259 = vpack.c.b16 %v6183, %v6181
      %v6260 = vpack.c.b16 %v6186, %v6184
      %v6261 = vpack.c.b16 %v6187, %v6185
      %v6262 = vpack.c.b16 %v6190, %v6188
      %v6263 = vpack.c.b16 %v6191, %v6189
      %v6264 = vpack.c.b16 %v6194, %v6192
      %v6265 = vpack.c.b16 %v6195, %v6193
      %v6266 = vpack.c.b16 %v6198, %v6196
      %v6267 = vpack.c.b16 %v6199, %v6197
      %v6268 = vpack.c.b16 %v6202, %v6200
      %v6269 = vpack.c.b16 %v6203, %v6201
      %v6270 = vpack.c.b16 %v6206, %v6204
      %v6271 = vpack.c.b16 %v6207, %v6205
      %6336 = vmatprep.subr.bf16.mxu0 %v6209
      %6337 = vmatpush1.bf16.msra.mxu0 %v6208
      %6338 = vmatprep.subr.bf16.mxu0 %v6211
      %6339 = vmatpush1.bf16.msra.mxu0 %v6210
      %6340 = vmatprep.subr.bf16.mxu0 %v6213
      %6341 = vmatpush1.bf16.msra.mxu0 %v6212
      %6342 = vmatprep.subr.bf16.mxu0 %v6215
      %6343 = vmatpush1.bf16.msra.mxu0 %v6214
      %6344 = vmatprep.subr.bf16.mxu0 %v6217
      %6345 = vmatpush1.bf16.msra.mxu0 %v6216
      %6346 = vmatprep.subr.bf16.mxu0 %v6219
      %6347 = vmatpush1.bf16.msra.mxu0 %v6218
      %6348 = vmatprep.subr.bf16.mxu0 %v6221
      %6349 = vmatpush1.bf16.msra.mxu0 %v6220
      %6350 = vmatprep.subr.bf16.mxu0 %v6223
      %6351 = vmatpush1.bf16.msra.mxu0 %v6222
      %6352 = vmatprep.subr.bf16.mxu0 %v6225
      %6353 = vmatpush1.bf16.msra.mxu0 %v6224
      %6354 = vmatprep.subr.bf16.mxu0 %v6227
      %6355 = vmatpush1.bf16.msra.mxu0 %v6226
      %6356 = vmatprep.subr.bf16.mxu0 %v6229
      %6357 = vmatpush1.bf16.msra.mxu0 %v6228
      %6358 = vmatprep.subr.bf16.mxu0 %v6231
      %6359 = vmatpush1.bf16.msra.mxu0 %v6230
      %6360 = vmatprep.subr.bf16.mxu0 %v6233
      %6361 = vmatpush1.bf16.msra.mxu0 %v6232
      %6362 = vmatprep.subr.bf16.mxu0 %v6235
      %6363 = vmatpush1.bf16.msra.mxu0 %v6234
      %6364 = vmatprep.subr.bf16.mxu0 %v6237
      %6365 = vmatpush1.bf16.msra.mxu0 %v6236
      %6366 = vmatprep.subr.bf16.mxu0 %v6239
      %6367 = vmatpush1.bf16.msra.mxu0 %v6238
      %6368 = vmatprep.mubr.bf16.mxu0 %v5937
      %6369 = vmatmul.mubr.bf16.gmra.mrb[0].mxu0 %v5936
      %v6370 = vpop.f32.mrb[0].mxu0
      %v6371 = vadd.f32 %v6009, %v6370
      %v6372 = vpop.f32.mrb[0].mxu0
      %v6373 = vadd.f32 %v6013, %v6372
      %v6374 = vpop.f32.mrb[0].mxu0
      %v6375 = vpop.f32.mrb[0].mxu0
      %6376 = vdwg.mxu0
      %6377 = vmatprep.subr.bf16.mxu0 %v6241
      %6378 = vmatpush1.bf16.msra.mxu0 %v6240
      %6379 = vmatprep.subr.bf16.mxu0 %v6243
      %6380 = vmatpush1.bf16.msra.mxu0 %v6242
      %6381 = vmatprep.subr.bf16.mxu0 %v6245
      %6382 = vmatpush1.bf16.msra.mxu0 %v6244
      %6383 = vmatprep.subr.bf16.mxu0 %v6247
      %6384 = vmatpush1.bf16.msra.mxu0 %v6246
      %6385 = vmatprep.subr.bf16.mxu0 %v6249
      %6386 = vmatpush1.bf16.msra.mxu0 %v6248
      %6387 = vmatprep.subr.bf16.mxu0 %v6251
      %6388 = vmatpush1.bf16.msra.mxu0 %v6250
      %6389 = vmatprep.subr.bf16.mxu0 %v6253
      %6390 = vmatpush1.bf16.msra.mxu0 %v6252
      %6391 = vmatprep.subr.bf16.mxu0 %v6255
      %6392 = vmatpush1.bf16.msra.mxu0 %v6254
      %6393 = vmatprep.subr.bf16.mxu0 %v6257
      %6394 = vmatpush1.bf16.msra.mxu0 %v6256
      %6395 = vmatprep.subr.bf16.mxu0 %v6259
      %6396 = vmatpush1.bf16.msra.mxu0 %v6258
      %6397 = vmatprep.subr.bf16.mxu0 %v6261
      %6398 = vmatpush1.bf16.msra.mxu0 %v6260
      %6399 = vmatprep.subr.bf16.mxu0 %v6263
      %6400 = vmatpush1.bf16.msra.mxu0 %v6262
      %6401 = vmatprep.subr.bf16.mxu0 %v6265
      %6402 = vmatpush1.bf16.msra.mxu0 %v6264
      %6403 = vmatprep.subr.bf16.mxu0 %v6267
      %6404 = vmatpush1.bf16.msra.mxu0 %v6266
      %6405 = vmatprep.subr.bf16.mxu0 %v6269
      %6406 = vmatpush1.bf16.msra.mxu0 %v6268
      %6407 = vmatprep.subr.bf16.mxu0 %v6271
      %6408 = vmatpush1.bf16.msra.mxu0 %v6270
      %6409 = vmatprep.mubr.bf16.mxu0 %v5939
      %6410 = vmatmul.mubr.bf16.gmra.mrb[0].mxu0 %v5938
      %v6411 = vpop.f32.mrb[0].mxu0
      %v6412 = vadd.f32 %v6371, %v6411
      %v6413 = vpop.f32.mrb[0].mxu0
      %v6414 = vadd.f32 %v6373, %v6413
      %v6415 = vpop.f32.mrb[0].mxu0
      %v6416 = vpop.f32.mrb[0].mxu0
      %6417 = vdwg.mxu0
      %v6418 = vmul.f32 %v6412, 0.2
      %v6419 = vmul.f32 %v6414, 0.2
      %v6420 = vmax.f32 %v6412, %v6418
      %v6421 = vmax.f32 %v6414, %v6419
      %v6422 = vpack.c.bf16 %v6420, %v6420
      %v6423 = vpack.c.bf16 %v6421, %v6421
      %v6424 = vld [vmem:[#allocation15] sm:$0xf]
      %v6425 = vld [vmem:[#allocation15 + $0x4] sm:$0xf]
      %v6426 = vld [vmem:[#allocation15 + $0x8] sm:$0xf]
      %v6427 = vld [vmem:[#allocation15 + $0xc] sm:$0xf]
      %v6428 = vld [vmem:[#allocation15 + $0x10] sm:$0xf]
      %v6429 = vld [vmem:[#allocation15 + $0x14] sm:$0xf]
      %v6430 = vld [vmem:[#allocation15 + $0x18] sm:$0xf]
      %v6431 = vld [vmem:[#allocation15 + $0x1c] sm:$0xf]
      %v6432 = vld [vmem:[#allocation15 + $0x20] sm:$0xf]
      %v6433 = vld [vmem:[#allocation15 + $0x24] sm:$0xf]
      %v6434 = vld [vmem:[#allocation15 + $0x28] sm:$0xf]
      %v6435 = vld [vmem:[#allocation15 + $0x2c] sm:$0xf]
      %v6436 = vld [vmem:[#allocation15 + $0x30] sm:$0xf]
      %v6437 = vld [vmem:[#allocation15 + $0x34] sm:$0xf]
      %v6438 = vld [vmem:[#allocation15 + $0x38] sm:$0xf]
      %v6439 = vld [vmem:[#allocation15 + $0x3c] sm:$0xf]
      %v6440 = vld [vmem:[#allocation15 + $0x40] sm:$0xf]
      %v6441 = vld [vmem:[#allocation15 + $0x44] sm:$0xf]
      %v6442 = vld [vmem:[#allocation15 + $0x48] sm:$0xf]
      %v6443 = vld [vmem:[#allocation15 + $0x4c] sm:$0xf]
      %v6444 = vld [vmem:[#allocation15 + $0x50] sm:$0xf]
      %v6445 = vld [vmem:[#allocation15 + $0x54] sm:$0xf]
      %v6446 = vld [vmem:[#allocation15 + $0x58] sm:$0xf]
      %v6447 = vld [vmem:[#allocation15 + $0x5c] sm:$0xf]
      %v6448 = vld [vmem:[#allocation15 + $0x60] sm:$0xf]
      %v6449 = vld [vmem:[#allocation15 + $0x64] sm:$0xf]
      %v6450 = vld [vmem:[#allocation15 + $0x68] sm:$0xf]
      %v6451 = vld [vmem:[#allocation15 + $0x6c] sm:$0xf]
      %v6452 = vld [vmem:[#allocation15 + $0x70] sm:$0xf]
      %v6453 = vld [vmem:[#allocation15 + $0x74] sm:$0xf]
      %v6454 = vld [vmem:[#allocation15 + $0x78] sm:$0xf]
      %v6455 = vld [vmem:[#allocation15 + $0x7c] sm:$0xf]
      %v6456 = vld [vmem:[#allocation17] sm:$0x1]
      %v6458 = vlaneseq
      %v6459 = vshrl.u32 %v6458, 7
      %v6460 = vsub.s32 0, %v6459
      %v6461 = vrot.slane %v6456, %v6460
      %v6495 = vunpack.c.l.b16 %v6424
      %v6496 = vunpack.c.l.b16 %v6425
      %v6497 = vunpack.c.l.b16 %v6426
      %v6498 = vunpack.c.l.b16 %v6427
      %v6499 = vunpack.c.l.b16 %v6428
      %v6500 = vunpack.c.l.b16 %v6429
      %v6501 = vunpack.c.l.b16 %v6430
      %v6502 = vunpack.c.l.b16 %v6431
      %v6503 = vunpack.c.l.b16 %v6432
      %v6504 = vunpack.c.l.b16 %v6433
      %v6505 = vunpack.c.l.b16 %v6434
      %v6506 = vunpack.c.l.b16 %v6435
      %v6507 = vunpack.c.l.b16 %v6436
      %v6508 = vunpack.c.l.b16 %v6437
      %v6509 = vunpack.c.l.b16 %v6438
      %v6510 = vunpack.c.l.b16 %v6439
      %v6511 = vunpack.c.l.b16 %v6440
      %v6512 = vunpack.c.l.b16 %v6441
      %v6513 = vunpack.c.l.b16 %v6442
      %v6514 = vunpack.c.l.b16 %v6443
      %v6515 = vunpack.c.l.b16 %v6444
      %v6516 = vunpack.c.l.b16 %v6445
      %v6517 = vunpack.c.l.b16 %v6446
      %v6518 = vunpack.c.l.b16 %v6447
      %v6519 = vunpack.c.l.b16 %v6448
      %v6520 = vunpack.c.l.b16 %v6449
      %v6521 = vunpack.c.l.b16 %v6450
      %v6522 = vunpack.c.l.b16 %v6451
      %v6523 = vunpack.c.l.b16 %v6452
      %v6524 = vunpack.c.l.b16 %v6453
      %v6525 = vunpack.c.l.b16 %v6454
      %v6526 = vunpack.c.l.b16 %v6455
      %v6527 = vpack.c.b16 %v6496, %v6495
      %v6528 = vpack.c.b16 %v6498, %v6497
      %v6529 = vpack.c.b16 %v6500, %v6499
      %v6530 = vpack.c.b16 %v6502, %v6501
      %v6531 = vpack.c.b16 %v6504, %v6503
      %v6532 = vpack.c.b16 %v6506, %v6505
      %v6533 = vpack.c.b16 %v6508, %v6507
      %v6534 = vpack.c.b16 %v6510, %v6509
      %v6535 = vpack.c.b16 %v6512, %v6511
      %v6536 = vpack.c.b16 %v6514, %v6513
      %v6537 = vpack.c.b16 %v6516, %v6515
      %v6538 = vpack.c.b16 %v6518, %v6517
      %v6539 = vpack.c.b16 %v6520, %v6519
      %v6540 = vpack.c.b16 %v6522, %v6521
      %v6541 = vpack.c.b16 %v6524, %v6523
      %v6542 = vpack.c.b16 %v6526, %v6525
      %6559 = vmatprep.subr.bf16.mxu0 0
      %6560 = vmatpush1.bf16.msra.mxu0 %v6527
      %6561 = vmatprep.subr.bf16.mxu0 0
      %6562 = vmatpush1.bf16.msra.mxu0 %v6528
      %6563 = vmatprep.subr.bf16.mxu0 0
      %6564 = vmatpush1.bf16.msra.mxu0 %v6529
      %6565 = vmatprep.subr.bf16.mxu0 0
      %6566 = vmatpush1.bf16.msra.mxu0 %v6530
      %6567 = vmatprep.subr.bf16.mxu0 0
      %6568 = vmatpush1.bf16.msra.mxu0 %v6531
      %6569 = vmatprep.subr.bf16.mxu0 0
      %6570 = vmatpush1.bf16.msra.mxu0 %v6532
      %6571 = vmatprep.subr.bf16.mxu0 0
      %6572 = vmatpush1.bf16.msra.mxu0 %v6533
      %6573 = vmatprep.subr.bf16.mxu0 0
      %6574 = vmatpush1.bf16.msra.mxu0 %v6534
      %6575 = vmatprep.subr.bf16.mxu0 0
      %6576 = vmatpush1.bf16.msra.mxu0 %v6535
      %6577 = vmatprep.subr.bf16.mxu0 0
      %6578 = vmatpush1.bf16.msra.mxu0 %v6536
      %6579 = vmatprep.subr.bf16.mxu0 0
      %6580 = vmatpush1.bf16.msra.mxu0 %v6537
      %6581 = vmatprep.subr.bf16.mxu0 0
      %6582 = vmatpush1.bf16.msra.mxu0 %v6538
      %6583 = vmatprep.subr.bf16.mxu0 0
      %6584 = vmatpush1.bf16.msra.mxu0 %v6539
      %6585 = vmatprep.subr.bf16.mxu0 0
      %6586 = vmatpush1.bf16.msra.mxu0 %v6540
      %6587 = vmatprep.subr.bf16.mxu0 0
      %6588 = vmatpush1.bf16.msra.mxu0 %v6541
      %6589 = vmatprep.subr.bf16.mxu0 0
      %6590 = vmatpush1.bf16.msra.mxu0 %v6542
      %6591 = vmatprep.mubr.bf16.mxu0 %v6423
      %6592 = vmatmul.mubr.bf16.gmra.mrb[0].mxu0 %v6422
      %v6593 = vpop.f32.mrb[0].mxu0
      %v6594 = vadd.f32 %v6461, %v6593
      %v6595 = vpop.f32.mrb[0].mxu0
      %v6596 = vpop.f32.mrb[0].mxu0
      %v6597 = vpop.f32.mrb[0].mxu0
      %6598 = vdwg.mxu0
      %v6599 = vmul.f32 %v6594, 0.2
      %v6600 = vmax.f32 %v6594, %v6599
      %v6601 = vpack.c.bf16 %v6600, %v6600
      %v6602 = vld [vmem:[#allocation18] sm:$0xf]
      %v6603 = vld [vmem:[#allocation18 + $0x4] sm:$0xf]
      %v6604 = vld [vmem:[#allocation18 + $0x8] sm:$0xf]
      %v6605 = vld [vmem:[#allocation18 + $0xc] sm:$0xf]
      %v6606 = vld [vmem:[#allocation18 + $0x10] sm:$0xf]
      %v6607 = vld [vmem:[#allocation18 + $0x14] sm:$0xf]
      %v6608 = vld [vmem:[#allocation18 + $0x18] sm:$0xf]
      %v6609 = vld [vmem:[#allocation18 + $0x1c] sm:$0xf]
      %v6610 = vld [vmem:[#allocation18 + $0x20] sm:$0xf]
      %v6611 = vld [vmem:[#allocation18 + $0x24] sm:$0xf]
      %v6612 = vld [vmem:[#allocation18 + $0x28] sm:$0xf]
      %v6613 = vld [vmem:[#allocation18 + $0x2c] sm:$0xf]
      %v6614 = vld [vmem:[#allocation18 + $0x30] sm:$0xf]
      %v6615 = vld [vmem:[#allocation18 + $0x34] sm:$0xf]
      %v6616 = vld [vmem:[#allocation18 + $0x38] sm:$0xf]
      %v6617 = vld [vmem:[#allocation18 + $0x3c] sm:$0xf]
      %v6618 = vld [vmem:[#allocation20] sm:$0x1]
      %v6620 = vlaneseq
      %v6621 = vshrl.u32 %v6620, 7
      %v6622 = vsub.s32 0, %v6621
      %v6623 = vrot.slane %v6618, %v6622
      %v6641 = vunpack.c.l.b16 %v6602
      %v6642 = vunpack.c.l.b16 %v6603
      %v6643 = vunpack.c.l.b16 %v6604
      %v6644 = vunpack.c.l.b16 %v6605
      %v6645 = vunpack.c.l.b16 %v6606
      %v6646 = vunpack.c.l.b16 %v6607
      %v6647 = vunpack.c.l.b16 %v6608
      %v6648 = vunpack.c.l.b16 %v6609
      %v6649 = vunpack.c.l.b16 %v6610
      %v6650 = vunpack.c.l.b16 %v6611
      %v6651 = vunpack.c.l.b16 %v6612
      %v6652 = vunpack.c.l.b16 %v6613
      %v6653 = vunpack.c.l.b16 %v6614
      %v6654 = vunpack.c.l.b16 %v6615
      %v6655 = vunpack.c.l.b16 %v6616
      %v6656 = vunpack.c.l.b16 %v6617
      %v6657 = vpack.c.b16 %v6642, %v6641
      %v6658 = vpack.c.b16 %v6644, %v6643
      %v6659 = vpack.c.b16 %v6646, %v6645
      %v6660 = vpack.c.b16 %v6648, %v6647
      %v6661 = vpack.c.b16 %v6650, %v6649
      %v6662 = vpack.c.b16 %v6652, %v6651
      %v6663 = vpack.c.b16 %v6654, %v6653
      %v6664 = vpack.c.b16 %v6656, %v6655
      %6673 = vmatprep.subr.bf16.mxu0 0
      %6674 = vmatpush1.bf16.msra.mxu0 %v6657
      %6675 = vmatprep.subr.bf16.mxu0 0
      %6676 = vmatpush1.bf16.msra.mxu0 %v6658
      %6677 = vmatprep.subr.bf16.mxu0 0
      %6678 = vmatpush1.bf16.msra.mxu0 %v6659
      %6679 = vmatprep.subr.bf16.mxu0 0
      %6680 = vmatpush1.bf16.msra.mxu0 %v6660
      %6681 = vmatprep.subr.bf16.mxu0 0
      %6682 = vmatpush1.bf16.msra.mxu0 %v6661
      %6683 = vmatprep.subr.bf16.mxu0 0
      %6684 = vmatpush1.bf16.msra.mxu0 %v6662
      %6685 = vmatprep.subr.bf16.mxu0 0
      %6686 = vmatpush1.bf16.msra.mxu0 %v6663
      %6687 = vmatprep.subr.bf16.mxu0 0
      %6688 = vmatpush1.bf16.msra.mxu0 %v6664
      %6689 = vmatprep.subr.bf16.mxu0 0
      %6690 = vmatpush1.bf16.msra.mxu0 0
      %6691 = vmatprep.subr.bf16.mxu0 0
      %6692 = vmatpush1.bf16.msra.mxu0 0
      %6693 = vmatprep.subr.bf16.mxu0 0
      %6694 = vmatpush1.bf16.msra.mxu0 0
      %6695 = vmatprep.subr.bf16.mxu0 0
      %6696 = vmatpush1.bf16.msra.mxu0 0
      %6697 = vmatprep.subr.bf16.mxu0 0
      %6698 = vmatpush1.bf16.msra.mxu0 0
      %6699 = vmatprep.subr.bf16.mxu0 0
      %6700 = vmatpush1.bf16.msra.mxu0 0
      %6701 = vmatprep.subr.bf16.mxu0 0
      %6702 = vmatpush1.bf16.msra.mxu0 0
      %6703 = vmatprep.subr.bf16.mxu0 0
      %6704 = vmatpush1.bf16.msra.mxu0 0
      %6705 = vmatprep.mubr.bf16.mxu0 0
      %6706 = vmatmul.mubr.bf16.gmra.mrb[0].mxu0 %v6601
      %v6707 = vpop.f32.mrb[0].mxu0
      %v6708 = vadd.f32 %v6623, %v6707
      %v6709 = vpop.f32.mrb[0].mxu0
      %v6710 = vpop.f32.mrb[0].mxu0
      %v6711 = vpop.f32.mrb[0].mxu0
      %6712 = vdwg.mxu0
      %v6713 = vmul.f32 %v6708, 0.2
      %v6714 = vmax.f32 %v6708, %v6713
      %v6715 = vtanh.pop %v6714
      %6716 = vst [vmem:[#allocation21] sm:$0xff] %v6715
    $region97: #{tpu_custom_call.1} parent=1 // pred_fallthru
      _
    // Predicated region
    $region98: #{tpu_custom_call.1} parent=1 // pred_check
      _
    $region99: #{tpu_custom_call.1} parent=1 // pred_check_branch
      %6718 = sbr.rel (0) target = $region101
    $region100: #{tpu_custom_call.1} parent=1 // pred_region
      %s6720 = ssub.s32 128, 128
      %6721 = vsyncadd [#allocation5], %s6720
      %s6723 = sshll.u32 [#allocation21], 4
      %s6724 = int_to_ptr.vmem [resolvable:$true] %s6723
      %6726 = dma.vmem_to_hbm [thread:$0]  %s6724, 128, %s11, [#allocation5]
    $region101: #{tpu_custom_call.1} parent=1 // pred_fallthru
      _
    // Predicated region
    $region102: #{tpu_custom_call.1} parent=1 // pred_check
      _
    $region103: #{tpu_custom_call.1} parent=1 // pred_check_branch
      %6728 = sbr.rel (0) target = $region105
    $region104: #{tpu_custom_call.1} parent=1 // pred_region
      %6729 = dma.done [#allocation5], 128
    $region105: #{tpu_custom_call.1} parent=1 // pred_fallthru
      _
    %6730 = vsyncpa [#allocation4], 1
    %6731 = vsyncpa [#allocation7], 1
    %6732 = vsyncpa [#allocation10], 1
    %6733 = vsyncpa [#allocation13], 1
    %6734 = vsyncpa [#allocation16], 1
    %6735 = vsyncpa [#allocation19], 1
    %6736 = vsyncpa [#allocation5], 1

</llo_original>
